<compile_context>
chip_gen: v7x
topology: tpu7x:2x2x1
jax: 0.10.0
libtpu: 0.0.40
codegen_flags: <defaults>
</compile_context>

<pallas_src>
import math
import functools

import jax
import jax.numpy as jnp
from jax.experimental import pallas as pl
from jax.experimental.pallas import tpu as pltpu

# ---------------- config (small, consistent with the module) ----------------
VOCAB = 50          # input_dim
D_MODEL = 32        # model_dim
NUM_HEADS = 4
NUM_LAYERS = 2
FF = 2048           # nn.TransformerEncoderLayer default dim_feedforward
EPS = 1e-5          # layer_norm_eps default
B, S = 2, 8
DH = D_MODEL // NUM_HEADS


# ---------------- helpers (traced inside the kernel) ----------------
def _layer_norm(x, gamma, beta):
    mu = jnp.mean(x, axis=-1, keepdims=True)
    var = jnp.mean((x - mu) ** 2, axis=-1, keepdims=True)
    return (x - mu) * jax.lax.rsqrt(var + EPS) * gamma + beta


# ---------------- single fused forward kernel ----------------
def _fused_forward_kernel(x_ref, pe_ref,
                          wqkv_ref, bqkv_ref, wo_ref, bo_ref,
                          g1_ref, be1_ref, w1_ref, b1_ref, w2_ref, b2_ref,
                          g2_ref, be2_ref, fcw_ref, fcb_ref, o_ref):
    Bq, Sq, Dq = x_ref.shape
    BS = Bq * Sq
    scale = math.sqrt(Dq)
    inv_sqrt_dh = 1.0 / math.sqrt(DH)

    # --- scale-by-sqrt(d) + positional encoding (dropout = identity) ---
    # TODO(synk): reference PositionalEncoding stores pe as (max_len, 1, d) and adds
    # pe[:, :seq_len, :] to a batch-first tensor (only broadcasts when batch==max_len,
    # a bug in the reference). We implement the intended semantics: x[b, s] += pe[s].
    x3 = x_ref[...] * scale + pe_ref[...][None, :, :]
    xt = x3.reshape(BS, Dq)                                   # flattened tokens (B*S, D)

    for l in range(NUM_LAYERS):                               # static layer loop
        # --- QKV projection: one matmul over all tokens, pre-transposed weight ---
        qkv = jnp.dot(xt, wqkv_ref[l],
                      preferred_element_type=jnp.float32) + bqkv_ref[l]   # (BS, 3D)
        q = qkv[:, :Dq].reshape(Bq, Sq, Dq)
        k = qkv[:, Dq:2 * Dq].reshape(Bq, Sq, Dq)
        v = qkv[:, 2 * Dq:].reshape(Bq, Sq, Dq)

        # --- all heads batched into one contraction: (B*H, S, dh) ---
        def split_heads(t):
            return jnp.concatenate(
                [t[:, :, h * DH:(h + 1) * DH] for h in range(NUM_HEADS)], axis=0)

        qh = split_heads(q) * inv_sqrt_dh                     # (B*H, S, dh)
        kh = split_heads(k)
        vh = split_heads(v)

        sc = jnp.einsum('bqd,bkd->bqk', qh, kh,
                        preferred_element_type=jnp.float32)   # (B*H, S, S)
        sc = sc - jnp.max(sc, axis=-1, keepdims=True)
        e = jnp.exp(sc)
        p_attn = e * pl.reciprocal(jnp.sum(e, axis=-1, keepdims=True), approx=True)
        oh = jnp.einsum('bqk,bkd->bqd', p_attn, vh,
                        preferred_element_type=jnp.float32)   # (B*H, S, dh)

        # --- re-assemble heads (concat-of-heads) and do ONE out-projection matmul ---
        ctx = jnp.concatenate(
            [oh[h * Bq:(h + 1) * Bq] for h in range(NUM_HEADS)], axis=-1)  # (B, S, D)
        attn = jnp.dot(ctx.reshape(BS, Dq), wo_ref[l],
                       preferred_element_type=jnp.float32) + bo_ref[l]

        # --- residual + norm1 (post-norm, matches PyTorch norm_first=False) ---
        y = _layer_norm(xt + attn, g1_ref[l], be1_ref[l])

        # --- feed-forward (relu); bf16 matmul operands, f32 accumulation ---
        h1 = jnp.dot(y.astype(jnp.bfloat16), w1_ref[l],
                     preferred_element_type=jnp.float32) + b1_ref[l]       # (BS, FF)
        h1 = jnp.maximum(h1, 0.0)
        ff = jnp.dot(h1.astype(jnp.bfloat16), w2_ref[l],
                     preferred_element_type=jnp.float32) + b2_ref[l]       # (BS, D)

        # --- residual + norm2 ---
        xt = _layer_norm(y + ff, g2_ref[l], be2_ref[l])

    # --- mean-pool over sequence + final linear ---
    pooled = jnp.mean(xt.reshape(Bq, Sq, Dq), axis=1)          # (B, D)
    o_ref[...] = jnp.dot(pooled, fcw_ref[...],
                         preferred_element_type=jnp.float32) + fcb_ref[...]


# ---------------- wrapper ----------------
def transformer_encoder_forward(src, params):
    # embedding lookup (gather) is plain-JAX glue; everything else runs in one Pallas kernel.
    embedded = jnp.take(params["embedding"], src, axis=0)      # (B, S, D)
    pe = params["pe"][: src.shape[1]]                          # (S, D)

    args = (embedded, pe,
            params["wqkv"], params["bqkv"], params["wo"], params["bo"],
            params["g1"], params["be1"], params["w1"], params["b1"],
            params["w2"], params["b2"], params["g2"], params["be2"],
            params["fc_w"], params["fc_b"])

    def full_spec(a):
        nd = a.ndim
        return pl.BlockSpec(a.shape, lambda i, nd=nd: (0,) * nd)

    out = pl.pallas_call(
        _fused_forward_kernel,
        out_shape=jax.ShapeDtypeStruct((src.shape[0], 1), jnp.float32),
        grid=(1,),
        in_specs=[full_spec(a) for a in args],
        out_specs=pl.BlockSpec((src.shape[0], 1), lambda i: (0, 0)),
        compiler_params=pltpu.CompilerParams(
            dimension_semantics=("arbitrary",),
            vmem_limit_bytes=32 * 1024 * 1024),
    )(*args)
    return jnp.squeeze(out)                                    # matches output.squeeze()


# ---------------- parameter setup (deterministic, synthetic) ----------------
def make_pe(max_len, d_model):
    position = jnp.arange(max_len, dtype=jnp.float32)[:, None]
    div_term = jnp.exp(jnp.arange(0, d_model, 2, dtype=jnp.float32)
                       * (-math.log(10000.0) / d_model))
    pe = jnp.zeros((max_len, d_model), jnp.float32)
    pe = pe.at[:, 0::2].set(jnp.sin(position * div_term))
    pe = pe.at[:, 1::2].set(jnp.cos(position * div_term))
    return pe


def init_params(key):
    keys = jax.random.split(key, 2 + NUM_LAYERS)
    emb = jax.random.normal(keys[0], (VOCAB, D_MODEL), jnp.float32) * 0.5
    emb = emb.at[0].set(0.0)                                   # padding_idx=0

    # PyTorch stores Linear weights as (out, in); pre-transpose to (in, out) on the host.
    fc_w = (jax.random.normal(keys[1], (1, D_MODEL), jnp.float32) / math.sqrt(D_MODEL)).T
    fc_b = jnp.zeros((1, 1), jnp.float32)

    stacks = {k: [] for k in ("wqkv", "bqkv", "wo", "bo", "w1", "b1", "w2", "b2",
                              "g1", "be1", "g2", "be2")}
    for l in range(NUM_LAYERS):
        k = jax.random.split(keys[2 + l], 4)
        stacks["wqkv"].append(
            (jax.random.normal(k[0], (3 * D_MODEL, D_MODEL), jnp.float32)
             / math.sqrt(D_MODEL)).T)                                        # (D, 3D)
        stacks["bqkv"].append(jnp.zeros((1, 3 * D_MODEL), jnp.float32))
        stacks["wo"].append(
            (jax.random.normal(k[1], (D_MODEL, D_MODEL), jnp.float32)
             / math.sqrt(D_MODEL)).T)                                        # (D, D)
        stacks["bo"].append(jnp.zeros((1, D_MODEL), jnp.float32))
        stacks["w1"].append(
            ((jax.random.normal(k[2], (FF, D_MODEL), jnp.float32)
              / math.sqrt(D_MODEL)).T).astype(jnp.bfloat16))                 # (D, FF) bf16
        stacks["b1"].append(jnp.zeros((1, FF), jnp.float32))
        stacks["w2"].append(
            ((jax.random.normal(k[3], (D_MODEL, FF), jnp.float32)
              / math.sqrt(FF)).T).astype(jnp.bfloat16))                      # (FF, D) bf16
        stacks["b2"].append(jnp.zeros((1, D_MODEL), jnp.float32))
        stacks["g1"].append(jnp.ones((1, D_MODEL), jnp.float32))
        stacks["be1"].append(jnp.zeros((1, D_MODEL), jnp.float32))
        stacks["g2"].append(jnp.ones((1, D_MODEL), jnp.float32))
        stacks["be2"].append(jnp.zeros((1, D_MODEL), jnp.float32))

    params = {k: jnp.stack(v, axis=0) for k, v in stacks.items()}
    params.update(embedding=emb, pe=make_pe(5000, D_MODEL), fc_w=fc_w, fc_b=fc_b)
    return params


if __name__ == "__main__":
    key = jax.random.PRNGKey(0)
    k_param, k_data = jax.random.split(key)
    params = init_params(k_param)

    src = jax.random.randint(k_data, (B, S), 0, VOCAB, dtype=jnp.int32)
    src = src.at[:, -1].set(0)   # include some padding tokens (padding_idx=0 -> zero embedding)

    fwd = jax.jit(transformer_encoder_forward)
    logits = fwd(src, params)
    logits = jax.block_until_ready(logits)
    assert logits.shape == (B,), logits.shape
    assert bool(jnp.all(jnp.isfinite(logits)))
    print("KERNEL_OK")
</pallas_src>

<mosaic_0001>
module attributes {stable_mosaic.version = 11 : i64} {
  func.func @_fused_forward_kernel(%arg0: i32, %arg1: memref<2x8x32xf32, #tpu.memory_space<vmem>>, %arg2: memref<8x32xf32, #tpu.memory_space<vmem>>, %arg3: memref<2x32x96xf32, #tpu.memory_space<vmem>>, %arg4: memref<2x1x96xf32, #tpu.memory_space<vmem>>, %arg5: memref<2x32x32xf32, #tpu.memory_space<vmem>>, %arg6: memref<2x1x32xf32, #tpu.memory_space<vmem>>, %arg7: memref<2x1x32xf32, #tpu.memory_space<vmem>>, %arg8: memref<2x1x32xf32, #tpu.memory_space<vmem>>, %arg9: memref<2x32x2048xbf16, #tpu.memory_space<vmem>>, %arg10: memref<2x1x2048xf32, #tpu.memory_space<vmem>>, %arg11: memref<2x2048x32xbf16, #tpu.memory_space<vmem>>, %arg12: memref<2x1x32xf32, #tpu.memory_space<vmem>>, %arg13: memref<2x1x32xf32, #tpu.memory_space<vmem>>, %arg14: memref<2x1x32xf32, #tpu.memory_space<vmem>>, %arg15: memref<32x1xf32, #tpu.memory_space<vmem>>, %arg16: memref<1x1xf32, #tpu.memory_space<vmem>>, %arg17: memref<2x1xf32, #tpu.memory_space<vmem>>) attributes {dimension_semantics = [#tpu.dimension_semantics<arbitrary>], iteration_bounds = array<i64: 1>, scalar_prefetch = 0 : i64, scratch_operands = 0 : i64, tpu.core_type = #tpu.core_type<tc>, window_params = [{pipeline_mode = #tpu.pipeline_mode<synchronous>, transform_indices = @transform_0, window_bounds = array<i64: 2, 8, 32>}, {pipeline_mode = #tpu.pipeline_mode<synchronous>, transform_indices = @transform_1, window_bounds = array<i64: 8, 32>}, {pipeline_mode = #tpu.pipeline_mode<synchronous>, transform_indices = @transform_2, window_bounds = array<i64: 2, 32, 96>}, {pipeline_mode = #tpu.pipeline_mode<synchronous>, transform_indices = @transform_3, window_bounds = array<i64: 2, 1, 96>}, {pipeline_mode = #tpu.pipeline_mode<synchronous>, transform_indices = @transform_4, window_bounds = array<i64: 2, 32, 32>}, {pipeline_mode = #tpu.pipeline_mode<synchronous>, transform_indices = @transform_5, window_bounds = array<i64: 2, 1, 32>}, {pipeline_mode = #tpu.pipeline_mode<synchronous>, transform_indices = @transform_6, window_bounds = array<i64: 2, 1, 32>}, {pipeline_mode = #tpu.pipeline_mode<synchronous>, transform_indices = @transform_7, window_bounds = array<i64: 2, 1, 32>}, {pipeline_mode = #tpu.pipeline_mode<synchronous>, transform_indices = @transform_8, window_bounds = array<i64: 2, 32, 2048>}, {pipeline_mode = #tpu.pipeline_mode<synchronous>, transform_indices = @transform_9, window_bounds = array<i64: 2, 1, 2048>}, {pipeline_mode = #tpu.pipeline_mode<synchronous>, transform_indices = @transform_10, window_bounds = array<i64: 2, 2048, 32>}, {pipeline_mode = #tpu.pipeline_mode<synchronous>, transform_indices = @transform_11, window_bounds = array<i64: 2, 1, 32>}, {pipeline_mode = #tpu.pipeline_mode<synchronous>, transform_indices = @transform_12, window_bounds = array<i64: 2, 1, 32>}, {pipeline_mode = #tpu.pipeline_mode<synchronous>, transform_indices = @transform_13, window_bounds = array<i64: 2, 1, 32>}, {pipeline_mode = #tpu.pipeline_mode<synchronous>, transform_indices = @transform_14, window_bounds = array<i64: 32, 1>}, {pipeline_mode = #tpu.pipeline_mode<synchronous>, transform_indices = @transform_15, window_bounds = array<i64: 1, 1>}, {pipeline_mode = #tpu.pipeline_mode<synchronous>, transform_indices = @transform_16, window_bounds = array<i64: 2, 1>}]} {
    %c0 = arith.constant 0 : index
    %c0_0 = arith.constant 0 : index
    %c0_1 = arith.constant 0 : index
    %0 = vector.load %arg1[%c0, %c0_0, %c0_1] : memref<2x8x32xf32, #tpu.memory_space<vmem>>, vector<2x8x32xf32>
    %cst = arith.constant 5.65685415 : f32
    %1 = vector.broadcast %cst : f32 to vector<2x8x32xf32>
    %2 = arith.mulf %0, %1 : vector<2x8x32xf32>
    %c0_2 = arith.constant 0 : index
    %c0_3 = arith.constant 0 : index
    %3 = vector.load %arg2[%c0_2, %c0_3] : memref<8x32xf32, #tpu.memory_space<vmem>>, vector<8x32xf32>
    %4 = vector.shape_cast %3 : vector<8x32xf32> to vector<1x8x32xf32>
    %5 = vector.broadcast %4 : vector<1x8x32xf32> to vector<2x8x32xf32>
    %6 = arith.addf %2, %5 : vector<2x8x32xf32>
    %7 = vector.shape_cast %6 : vector<2x8x32xf32> to vector<16x32xf32>
    %c0_4 = arith.constant 0 : index
    %c0_5 = arith.constant 0 : index
    %c0_6 = arith.constant 0 : index
    %8 = vector.load %arg3[%c0_4, %c0_5, %c0_6] : memref<2x32x96xf32, #tpu.memory_space<vmem>>, vector<1x32x96xf32>
    %9 = vector.shape_cast %8 : vector<1x32x96xf32> to vector<32x96xf32>
    %cst_7 = arith.constant dense<0.000000e+00> : vector<16x96xf32>
    %10 = tpu.matmul %7, %9, %cst_7 {dimension_numbers = #tpu.dot_dimension_numbers<[1], [0], [0], [1], [0, 0, 1, 1], [], []>} : vector<16x32xf32>, vector<32x96xf32>, vector<16x96xf32> -> vector<16x96xf32>
    %c0_8 = arith.constant 0 : index
    %c0_9 = arith.constant 0 : index
    %c0_10 = arith.constant 0 : index
    %11 = vector.load %arg4[%c0_8, %c0_9, %c0_10] : memref<2x1x96xf32, #tpu.memory_space<vmem>>, vector<1x1x96xf32>
    %12 = vector.shape_cast %11 : vector<1x1x96xf32> to vector<1x96xf32>
    %13 = vector.broadcast %12 : vector<1x96xf32> to vector<16x96xf32>
    %14 = arith.addf %10, %13 : vector<16x96xf32>
    %15 = vector.extract_strided_slice %14 {offsets = [0, 0], sizes = [16, 32], strides = [1, 1]} : vector<16x96xf32> to vector<16x32xf32>
    %16 = vector.shape_cast %15 : vector<16x32xf32> to vector<2x8x32xf32>
    %17 = vector.extract_strided_slice %14 {offsets = [0, 32], sizes = [16, 32], strides = [1, 1]} : vector<16x96xf32> to vector<16x32xf32>
    %18 = vector.shape_cast %17 : vector<16x32xf32> to vector<2x8x32xf32>
    %19 = vector.extract_strided_slice %14 {offsets = [0, 64], sizes = [16, 32], strides = [1, 1]} : vector<16x96xf32> to vector<16x32xf32>
    %20 = vector.shape_cast %19 : vector<16x32xf32> to vector<2x8x32xf32>
    %21 = vector.extract_strided_slice %16 {offsets = [0, 0, 0], sizes = [2, 8, 8], strides = [1, 1, 1]} : vector<2x8x32xf32> to vector<2x8x8xf32>
    %22 = vector.extract_strided_slice %16 {offsets = [0, 0, 8], sizes = [2, 8, 8], strides = [1, 1, 1]} : vector<2x8x32xf32> to vector<2x8x8xf32>
    %23 = vector.extract_strided_slice %16 {offsets = [0, 0, 16], sizes = [2, 8, 8], strides = [1, 1, 1]} : vector<2x8x32xf32> to vector<2x8x8xf32>
    %24 = vector.extract_strided_slice %16 {offsets = [0, 0, 24], sizes = [2, 8, 8], strides = [1, 1, 1]} : vector<2x8x32xf32> to vector<2x8x8xf32>
    %25 = tpu.concatenate %21, %22, %23, %24 in 0 : vector<2x8x8xf32>, vector<2x8x8xf32>, vector<2x8x8xf32>, vector<2x8x8xf32> -> vector<8x8x8xf32>
    %cst_11 = arith.constant 0.353553385 : f32
    %26 = vector.broadcast %cst_11 : f32 to vector<8x8x8xf32>
    %27 = arith.mulf %25, %26 : vector<8x8x8xf32>
    %28 = vector.extract_strided_slice %18 {offsets = [0, 0, 0], sizes = [2, 8, 8], strides = [1, 1, 1]} : vector<2x8x32xf32> to vector<2x8x8xf32>
    %29 = vector.extract_strided_slice %18 {offsets = [0, 0, 8], sizes = [2, 8, 8], strides = [1, 1, 1]} : vector<2x8x32xf32> to vector<2x8x8xf32>
    %30 = vector.extract_strided_slice %18 {offsets = [0, 0, 16], sizes = [2, 8, 8], strides = [1, 1, 1]} : vector<2x8x32xf32> to vector<2x8x8xf32>
    %31 = vector.extract_strided_slice %18 {offsets = [0, 0, 24], sizes = [2, 8, 8], strides = [1, 1, 1]} : vector<2x8x32xf32> to vector<2x8x8xf32>
    %32 = tpu.concatenate %28, %29, %30, %31 in 0 : vector<2x8x8xf32>, vector<2x8x8xf32>, vector<2x8x8xf32>, vector<2x8x8xf32> -> vector<8x8x8xf32>
    %33 = vector.extract_strided_slice %20 {offsets = [0, 0, 0], sizes = [2, 8, 8], strides = [1, 1, 1]} : vector<2x8x32xf32> to vector<2x8x8xf32>
    %34 = vector.extract_strided_slice %20 {offsets = [0, 0, 8], sizes = [2, 8, 8], strides = [1, 1, 1]} : vector<2x8x32xf32> to vector<2x8x8xf32>
    %35 = vector.extract_strided_slice %20 {offsets = [0, 0, 16], sizes = [2, 8, 8], strides = [1, 1, 1]} : vector<2x8x32xf32> to vector<2x8x8xf32>
    %36 = vector.extract_strided_slice %20 {offsets = [0, 0, 24], sizes = [2, 8, 8], strides = [1, 1, 1]} : vector<2x8x32xf32> to vector<2x8x8xf32>
    %37 = tpu.concatenate %33, %34, %35, %36 in 0 : vector<2x8x8xf32>, vector<2x8x8xf32>, vector<2x8x8xf32>, vector<2x8x8xf32> -> vector<8x8x8xf32>
    "tpu.trace_start"() <{level = 10 : i32, message = "bqd,bkd->bqk"}> : () -> ()
    %cst_12 = arith.constant dense<0.000000e+00> : vector<8x8x8xf32>
    %38 = tpu.matmul %27, %32, %cst_12 {dimension_numbers = #tpu.dot_dimension_numbers<[2], [2], [1], [1], [0, 0, 0, 1, 1, 1], [0], [0]>} : vector<8x8x8xf32>, vector<8x8x8xf32>, vector<8x8x8xf32> -> vector<8x8x8xf32>
    "tpu.trace_stop"() : () -> ()
    %cst_13 = arith.constant dense<0xFF800000> : vector<8x8xf32>
    %39 = vector.multi_reduction <maximumf>, %38, %cst_13 [2] : vector<8x8x8xf32> to vector<8x8xf32>
    %40 = vector.shape_cast %39 : vector<8x8xf32> to vector<8x8x1xf32>
    %41 = vector.broadcast %40 : vector<8x8x1xf32> to vector<8x8x8xf32>
    %42 = arith.subf %38, %41 : vector<8x8x8xf32>
    %43 = math.exp %42 : vector<8x8x8xf32>
    %cst_14 = arith.constant dense<0.000000e+00> : vector<8x8xf32>
    %44 = vector.multi_reduction <add>, %43, %cst_14 [2] : vector<8x8x8xf32> to vector<8x8xf32>
    %45 = vector.shape_cast %44 : vector<8x8xf32> to vector<8x8x1xf32>
    %46 = tpu.reciprocal %45 {approx = true} : vector<8x8x1xf32> -> vector<8x8x1xf32>
    %47 = vector.broadcast %46 : vector<8x8x1xf32> to vector<8x8x8xf32>
    %48 = arith.mulf %43, %47 : vector<8x8x8xf32>
    "tpu.trace_start"() <{level = 10 : i32, message = "bqk,bkd->bqd"}> : () -> ()
    %cst_15 = arith.constant dense<0.000000e+00> : vector<8x8x8xf32>
    %49 = tpu.matmul %48, %37, %cst_15 {dimension_numbers = #tpu.dot_dimension_numbers<[2], [1], [1], [2], [0, 0, 0, 1, 1, 2], [0], [0]>} : vector<8x8x8xf32>, vector<8x8x8xf32>, vector<8x8x8xf32> -> vector<8x8x8xf32>
    "tpu.trace_stop"() : () -> ()
    %50 = vector.extract_strided_slice %49 {offsets = [0, 0, 0], sizes = [2, 8, 8], strides = [1, 1, 1]} : vector<8x8x8xf32> to vector<2x8x8xf32>
    %51 = vector.extract_strided_slice %49 {offsets = [2, 0, 0], sizes = [2, 8, 8], strides = [1, 1, 1]} : vector<8x8x8xf32> to vector<2x8x8xf32>
    %52 = vector.extract_strided_slice %49 {offsets = [4, 0, 0], sizes = [2, 8, 8], strides = [1, 1, 1]} : vector<8x8x8xf32> to vector<2x8x8xf32>
    %53 = vector.extract_strided_slice %49 {offsets = [6, 0, 0], sizes = [2, 8, 8], strides = [1, 1, 1]} : vector<8x8x8xf32> to vector<2x8x8xf32>
    %54 = tpu.concatenate %50, %51, %52, %53 in 2 : vector<2x8x8xf32>, vector<2x8x8xf32>, vector<2x8x8xf32>, vector<2x8x8xf32> -> vector<2x8x32xf32>
    %55 = vector.shape_cast %54 : vector<2x8x32xf32> to vector<16x32xf32>
    %c0_16 = arith.constant 0 : index
    %c0_17 = arith.constant 0 : index
    %c0_18 = arith.constant 0 : index
    %56 = vector.load %arg5[%c0_16, %c0_17, %c0_18] : memref<2x32x32xf32, #tpu.memory_space<vmem>>, vector<1x32x32xf32>
    %57 = vector.shape_cast %56 : vector<1x32x32xf32> to vector<32x32xf32>
    %cst_19 = arith.constant dense<0.000000e+00> : vector<16x32xf32>
    %58 = tpu.matmul %55, %57, %cst_19 {dimension_numbers = #tpu.dot_dimension_numbers<[1], [0], [0], [1], [0, 0, 1, 1], [], []>} : vector<16x32xf32>, vector<32x32xf32>, vector<16x32xf32> -> vector<16x32xf32>
    %c0_20 = arith.constant 0 : index
    %c0_21 = arith.constant 0 : index
    %c0_22 = arith.constant 0 : index
    %59 = vector.load %arg6[%c0_20, %c0_21, %c0_22] : memref<2x1x32xf32, #tpu.memory_space<vmem>>, vector<1x1x32xf32>
    %60 = vector.shape_cast %59 : vector<1x1x32xf32> to vector<1x32xf32>
    %61 = vector.broadcast %60 : vector<1x32xf32> to vector<16x32xf32>
    %62 = arith.addf %58, %61 : vector<16x32xf32>
    %63 = arith.addf %7, %62 : vector<16x32xf32>
    %c0_23 = arith.constant 0 : index
    %c0_24 = arith.constant 0 : index
    %c0_25 = arith.constant 0 : index
    %64 = vector.load %arg7[%c0_23, %c0_24, %c0_25] : memref<2x1x32xf32, #tpu.memory_space<vmem>>, vector<1x1x32xf32>
    %65 = vector.shape_cast %64 : vector<1x1x32xf32> to vector<1x32xf32>
    %c0_26 = arith.constant 0 : index
    %c0_27 = arith.constant 0 : index
    %c0_28 = arith.constant 0 : index
    %66 = vector.load %arg8[%c0_26, %c0_27, %c0_28] : memref<2x1x32xf32, #tpu.memory_space<vmem>>, vector<1x1x32xf32>
    %67 = vector.shape_cast %66 : vector<1x1x32xf32> to vector<1x32xf32>
    %cst_29 = arith.constant dense<0.000000e+00> : vector<16xf32>
    %68 = vector.multi_reduction <add>, %63, %cst_29 [1] : vector<16x32xf32> to vector<16xf32>
    %69 = vector.shape_cast %68 : vector<16xf32> to vector<16x1xf32>
    %cst_30 = arith.constant 3.200000e+01 : f32
    %70 = vector.broadcast %cst_30 : f32 to vector<16x1xf32>
    %71 = arith.divf %69, %70 : vector<16x1xf32>
    %72 = vector.broadcast %71 : vector<16x1xf32> to vector<16x32xf32>
    %73 = arith.subf %63, %72 : vector<16x32xf32>
    %74 = arith.mulf %73, %73 : vector<16x32xf32>
    %cst_31 = arith.constant dense<0.000000e+00> : vector<16xf32>
    %75 = vector.multi_reduction <add>, %74, %cst_31 [1] : vector<16x32xf32> to vector<16xf32>
    %76 = vector.shape_cast %75 : vector<16xf32> to vector<16x1xf32>
    %cst_32 = arith.constant 3.200000e+01 : f32
    %77 = vector.broadcast %cst_32 : f32 to vector<16x1xf32>
    %78 = arith.divf %76, %77 : vector<16x1xf32>
    %79 = vector.broadcast %71 : vector<16x1xf32> to vector<16x32xf32>
    %80 = arith.subf %63, %79 : vector<16x32xf32>
    %cst_33 = arith.constant 9.99999974E-6 : f32
    %81 = vector.broadcast %cst_33 : f32 to vector<16x1xf32>
    %82 = arith.addf %78, %81 : vector<16x1xf32>
    %83 = math.rsqrt %82 : vector<16x1xf32>
    %84 = vector.broadcast %83 : vector<16x1xf32> to vector<16x32xf32>
    %85 = arith.mulf %80, %84 : vector<16x32xf32>
    %86 = vector.broadcast %65 : vector<1x32xf32> to vector<16x32xf32>
    %87 = arith.mulf %85, %86 : vector<16x32xf32>
    %88 = vector.broadcast %67 : vector<1x32xf32> to vector<16x32xf32>
    %89 = arith.addf %87, %88 : vector<16x32xf32>
    %90 = arith.truncf %89 : vector<16x32xf32> to vector<16x32xbf16>
    %c0_34 = arith.constant 0 : index
    %c0_35 = arith.constant 0 : index
    %c0_36 = arith.constant 0 : index
    %91 = vector.load %arg9[%c0_34, %c0_35, %c0_36] : memref<2x32x2048xbf16, #tpu.memory_space<vmem>>, vector<1x32x2048xbf16>
    %92 = vector.shape_cast %91 : vector<1x32x2048xbf16> to vector<32x2048xbf16>
    %cst_37 = arith.constant dense<0.000000e+00> : vector<16x2048xf32>
    %93 = tpu.matmul %90, %92, %cst_37 {dimension_numbers = #tpu.dot_dimension_numbers<[1], [0], [0], [1], [0, 0, 1, 1], [], []>} : vector<16x32xbf16>, vector<32x2048xbf16>, vector<16x2048xf32> -> vector<16x2048xf32>
    %c0_38 = arith.constant 0 : index
    %c0_39 = arith.constant 0 : index
    %c0_40 = arith.constant 0 : index
    %94 = vector.load %arg10[%c0_38, %c0_39, %c0_40] : memref<2x1x2048xf32, #tpu.memory_space<vmem>>, vector<1x1x2048xf32>
    %95 = vector.shape_cast %94 : vector<1x1x2048xf32> to vector<1x2048xf32>
    %96 = vector.broadcast %95 : vector<1x2048xf32> to vector<16x2048xf32>
    %97 = arith.addf %93, %96 : vector<16x2048xf32>
    %cst_41 = arith.constant 0.000000e+00 : f32
    %98 = vector.broadcast %cst_41 : f32 to vector<16x2048xf32>
    %99 = arith.maximumf %97, %98 : vector<16x2048xf32>
    %100 = arith.truncf %99 : vector<16x2048xf32> to vector<16x2048xbf16>
    %c0_42 = arith.constant 0 : index
    %c0_43 = arith.constant 0 : index
    %c0_44 = arith.constant 0 : index
    %101 = vector.load %arg11[%c0_42, %c0_43, %c0_44] : memref<2x2048x32xbf16, #tpu.memory_space<vmem>>, vector<1x2048x32xbf16>
    %102 = vector.shape_cast %101 : vector<1x2048x32xbf16> to vector<2048x32xbf16>
    %cst_45 = arith.constant dense<0.000000e+00> : vector<16x32xf32>
    %103 = tpu.matmul %100, %102, %cst_45 {dimension_numbers = #tpu.dot_dimension_numbers<[1], [0], [0], [1], [0, 0, 1, 1], [], []>} : vector<16x2048xbf16>, vector<2048x32xbf16>, vector<16x32xf32> -> vector<16x32xf32>
    %c0_46 = arith.constant 0 : index
    %c0_47 = arith.constant 0 : index
    %c0_48 = arith.constant 0 : index
    %104 = vector.load %arg12[%c0_46, %c0_47, %c0_48] : memref<2x1x32xf32, #tpu.memory_space<vmem>>, vector<1x1x32xf32>
    %105 = vector.shape_cast %104 : vector<1x1x32xf32> to vector<1x32xf32>
    %106 = vector.broadcast %105 : vector<1x32xf32> to vector<16x32xf32>
    %107 = arith.addf %103, %106 : vector<16x32xf32>
    %108 = arith.addf %89, %107 : vector<16x32xf32>
    %c0_49 = arith.constant 0 : index
    %c0_50 = arith.constant 0 : index
    %c0_51 = arith.constant 0 : index
    %109 = vector.load %arg13[%c0_49, %c0_50, %c0_51] : memref<2x1x32xf32, #tpu.memory_space<vmem>>, vector<1x1x32xf32>
    %110 = vector.shape_cast %109 : vector<1x1x32xf32> to vector<1x32xf32>
    %c0_52 = arith.constant 0 : index
    %c0_53 = arith.constant 0 : index
    %c0_54 = arith.constant 0 : index
    %111 = vector.load %arg14[%c0_52, %c0_53, %c0_54] : memref<2x1x32xf32, #tpu.memory_space<vmem>>, vector<1x1x32xf32>
    %112 = vector.shape_cast %111 : vector<1x1x32xf32> to vector<1x32xf32>
    %cst_55 = arith.constant dense<0.000000e+00> : vector<16xf32>
    %113 = vector.multi_reduction <add>, %108, %cst_55 [1] : vector<16x32xf32> to vector<16xf32>
    %114 = vector.shape_cast %113 : vector<16xf32> to vector<16x1xf32>
    %cst_56 = arith.constant 3.200000e+01 : f32
    %115 = vector.broadcast %cst_56 : f32 to vector<16x1xf32>
    %116 = arith.divf %114, %115 : vector<16x1xf32>
    %117 = vector.broadcast %116 : vector<16x1xf32> to vector<16x32xf32>
    %118 = arith.subf %108, %117 : vector<16x32xf32>
    %119 = arith.mulf %118, %118 : vector<16x32xf32>
    %cst_57 = arith.constant dense<0.000000e+00> : vector<16xf32>
    %120 = vector.multi_reduction <add>, %119, %cst_57 [1] : vector<16x32xf32> to vector<16xf32>
    %121 = vector.shape_cast %120 : vector<16xf32> to vector<16x1xf32>
    %cst_58 = arith.constant 3.200000e+01 : f32
    %122 = vector.broadcast %cst_58 : f32 to vector<16x1xf32>
    %123 = arith.divf %121, %122 : vector<16x1xf32>
    %124 = vector.broadcast %116 : vector<16x1xf32> to vector<16x32xf32>
    %125 = arith.subf %108, %124 : vector<16x32xf32>
    %cst_59 = arith.constant 9.99999974E-6 : f32
    %126 = vector.broadcast %cst_59 : f32 to vector<16x1xf32>
    %127 = arith.addf %123, %126 : vector<16x1xf32>
    %128 = math.rsqrt %127 : vector<16x1xf32>
    %129 = vector.broadcast %128 : vector<16x1xf32> to vector<16x32xf32>
    %130 = arith.mulf %125, %129 : vector<16x32xf32>
    %131 = vector.broadcast %110 : vector<1x32xf32> to vector<16x32xf32>
    %132 = arith.mulf %130, %131 : vector<16x32xf32>
    %133 = vector.broadcast %112 : vector<1x32xf32> to vector<16x32xf32>
    %134 = arith.addf %132, %133 : vector<16x32xf32>
    %c1 = arith.constant 1 : index
    %c0_60 = arith.constant 0 : index
    %c0_61 = arith.constant 0 : index
    %135 = vector.load %arg3[%c1, %c0_60, %c0_61] : memref<2x32x96xf32, #tpu.memory_space<vmem>>, vector<1x32x96xf32>
    %136 = vector.shape_cast %135 : vector<1x32x96xf32> to vector<32x96xf32>
    %cst_62 = arith.constant dense<0.000000e+00> : vector<16x96xf32>
    %137 = tpu.matmul %134, %136, %cst_62 {dimension_numbers = #tpu.dot_dimension_numbers<[1], [0], [0], [1], [0, 0, 1, 1], [], []>} : vector<16x32xf32>, vector<32x96xf32>, vector<16x96xf32> -> vector<16x96xf32>
    %c1_63 = arith.constant 1 : index
    %c0_64 = arith.constant 0 : index
    %c0_65 = arith.constant 0 : index
    %138 = vector.load %arg4[%c1_63, %c0_64, %c0_65] : memref<2x1x96xf32, #tpu.memory_space<vmem>>, vector<1x1x96xf32>
    %139 = vector.shape_cast %138 : vector<1x1x96xf32> to vector<1x96xf32>
    %140 = vector.broadcast %139 : vector<1x96xf32> to vector<16x96xf32>
    %141 = arith.addf %137, %140 : vector<16x96xf32>
    %142 = vector.extract_strided_slice %141 {offsets = [0, 0], sizes = [16, 32], strides = [1, 1]} : vector<16x96xf32> to vector<16x32xf32>
    %143 = vector.shape_cast %142 : vector<16x32xf32> to vector<2x8x32xf32>
    %144 = vector.extract_strided_slice %141 {offsets = [0, 32], sizes = [16, 32], strides = [1, 1]} : vector<16x96xf32> to vector<16x32xf32>
    %145 = vector.shape_cast %144 : vector<16x32xf32> to vector<2x8x32xf32>
    %146 = vector.extract_strided_slice %141 {offsets = [0, 64], sizes = [16, 32], strides = [1, 1]} : vector<16x96xf32> to vector<16x32xf32>
    %147 = vector.shape_cast %146 : vector<16x32xf32> to vector<2x8x32xf32>
    %148 = vector.extract_strided_slice %143 {offsets = [0, 0, 0], sizes = [2, 8, 8], strides = [1, 1, 1]} : vector<2x8x32xf32> to vector<2x8x8xf32>
    %149 = vector.extract_strided_slice %143 {offsets = [0, 0, 8], sizes = [2, 8, 8], strides = [1, 1, 1]} : vector<2x8x32xf32> to vector<2x8x8xf32>
    %150 = vector.extract_strided_slice %143 {offsets = [0, 0, 16], sizes = [2, 8, 8], strides = [1, 1, 1]} : vector<2x8x32xf32> to vector<2x8x8xf32>
    %151 = vector.extract_strided_slice %143 {offsets = [0, 0, 24], sizes = [2, 8, 8], strides = [1, 1, 1]} : vector<2x8x32xf32> to vector<2x8x8xf32>
    %152 = tpu.concatenate %148, %149, %150, %151 in 0 : vector<2x8x8xf32>, vector<2x8x8xf32>, vector<2x8x8xf32>, vector<2x8x8xf32> -> vector<8x8x8xf32>
    %cst_66 = arith.constant 0.353553385 : f32
    %153 = vector.broadcast %cst_66 : f32 to vector<8x8x8xf32>
    %154 = arith.mulf %152, %153 : vector<8x8x8xf32>
    %155 = vector.extract_strided_slice %145 {offsets = [0, 0, 0], sizes = [2, 8, 8], strides = [1, 1, 1]} : vector<2x8x32xf32> to vector<2x8x8xf32>
    %156 = vector.extract_strided_slice %145 {offsets = [0, 0, 8], sizes = [2, 8, 8], strides = [1, 1, 1]} : vector<2x8x32xf32> to vector<2x8x8xf32>
    %157 = vector.extract_strided_slice %145 {offsets = [0, 0, 16], sizes = [2, 8, 8], strides = [1, 1, 1]} : vector<2x8x32xf32> to vector<2x8x8xf32>
    %158 = vector.extract_strided_slice %145 {offsets = [0, 0, 24], sizes = [2, 8, 8], strides = [1, 1, 1]} : vector<2x8x32xf32> to vector<2x8x8xf32>
    %159 = tpu.concatenate %155, %156, %157, %158 in 0 : vector<2x8x8xf32>, vector<2x8x8xf32>, vector<2x8x8xf32>, vector<2x8x8xf32> -> vector<8x8x8xf32>
    %160 = vector.extract_strided_slice %147 {offsets = [0, 0, 0], sizes = [2, 8, 8], strides = [1, 1, 1]} : vector<2x8x32xf32> to vector<2x8x8xf32>
    %161 = vector.extract_strided_slice %147 {offsets = [0, 0, 8], sizes = [2, 8, 8], strides = [1, 1, 1]} : vector<2x8x32xf32> to vector<2x8x8xf32>
    %162 = vector.extract_strided_slice %147 {offsets = [0, 0, 16], sizes = [2, 8, 8], strides = [1, 1, 1]} : vector<2x8x32xf32> to vector<2x8x8xf32>
    %163 = vector.extract_strided_slice %147 {offsets = [0, 0, 24], sizes = [2, 8, 8], strides = [1, 1, 1]} : vector<2x8x32xf32> to vector<2x8x8xf32>
    %164 = tpu.concatenate %160, %161, %162, %163 in 0 : vector<2x8x8xf32>, vector<2x8x8xf32>, vector<2x8x8xf32>, vector<2x8x8xf32> -> vector<8x8x8xf32>
    "tpu.trace_start"() <{level = 10 : i32, message = "bqd,bkd->bqk"}> : () -> ()
    %cst_67 = arith.constant dense<0.000000e+00> : vector<8x8x8xf32>
    %165 = tpu.matmul %154, %159, %cst_67 {dimension_numbers = #tpu.dot_dimension_numbers<[2], [2], [1], [1], [0, 0, 0, 1, 1, 1], [0], [0]>} : vector<8x8x8xf32>, vector<8x8x8xf32>, vector<8x8x8xf32> -> vector<8x8x8xf32>
    "tpu.trace_stop"() : () -> ()
    %cst_68 = arith.constant dense<0xFF800000> : vector<8x8xf32>
    %166 = vector.multi_reduction <maximumf>, %165, %cst_68 [2] : vector<8x8x8xf32> to vector<8x8xf32>
    %167 = vector.shape_cast %166 : vector<8x8xf32> to vector<8x8x1xf32>
    %168 = vector.broadcast %167 : vector<8x8x1xf32> to vector<8x8x8xf32>
    %169 = arith.subf %165, %168 : vector<8x8x8xf32>
    %170 = math.exp %169 : vector<8x8x8xf32>
    %cst_69 = arith.constant dense<0.000000e+00> : vector<8x8xf32>
    %171 = vector.multi_reduction <add>, %170, %cst_69 [2] : vector<8x8x8xf32> to vector<8x8xf32>
    %172 = vector.shape_cast %171 : vector<8x8xf32> to vector<8x8x1xf32>
    %173 = tpu.reciprocal %172 {approx = true} : vector<8x8x1xf32> -> vector<8x8x1xf32>
    %174 = vector.broadcast %173 : vector<8x8x1xf32> to vector<8x8x8xf32>
    %175 = arith.mulf %170, %174 : vector<8x8x8xf32>
    "tpu.trace_start"() <{level = 10 : i32, message = "bqk,bkd->bqd"}> : () -> ()
    %cst_70 = arith.constant dense<0.000000e+00> : vector<8x8x8xf32>
    %176 = tpu.matmul %175, %164, %cst_70 {dimension_numbers = #tpu.dot_dimension_numbers<[2], [1], [1], [2], [0, 0, 0, 1, 1, 2], [0], [0]>} : vector<8x8x8xf32>, vector<8x8x8xf32>, vector<8x8x8xf32> -> vector<8x8x8xf32>
    "tpu.trace_stop"() : () -> ()
    %177 = vector.extract_strided_slice %176 {offsets = [0, 0, 0], sizes = [2, 8, 8], strides = [1, 1, 1]} : vector<8x8x8xf32> to vector<2x8x8xf32>
    %178 = vector.extract_strided_slice %176 {offsets = [2, 0, 0], sizes = [2, 8, 8], strides = [1, 1, 1]} : vector<8x8x8xf32> to vector<2x8x8xf32>
    %179 = vector.extract_strided_slice %176 {offsets = [4, 0, 0], sizes = [2, 8, 8], strides = [1, 1, 1]} : vector<8x8x8xf32> to vector<2x8x8xf32>
    %180 = vector.extract_strided_slice %176 {offsets = [6, 0, 0], sizes = [2, 8, 8], strides = [1, 1, 1]} : vector<8x8x8xf32> to vector<2x8x8xf32>
    %181 = tpu.concatenate %177, %178, %179, %180 in 2 : vector<2x8x8xf32>, vector<2x8x8xf32>, vector<2x8x8xf32>, vector<2x8x8xf32> -> vector<2x8x32xf32>
    %182 = vector.shape_cast %181 : vector<2x8x32xf32> to vector<16x32xf32>
    %c1_71 = arith.constant 1 : index
    %c0_72 = arith.constant 0 : index
    %c0_73 = arith.constant 0 : index
    %183 = vector.load %arg5[%c1_71, %c0_72, %c0_73] : memref<2x32x32xf32, #tpu.memory_space<vmem>>, vector<1x32x32xf32>
    %184 = vector.shape_cast %183 : vector<1x32x32xf32> to vector<32x32xf32>
    %cst_74 = arith.constant dense<0.000000e+00> : vector<16x32xf32>
    %185 = tpu.matmul %182, %184, %cst_74 {dimension_numbers = #tpu.dot_dimension_numbers<[1], [0], [0], [1], [0, 0, 1, 1], [], []>} : vector<16x32xf32>, vector<32x32xf32>, vector<16x32xf32> -> vector<16x32xf32>
    %c1_75 = arith.constant 1 : index
    %c0_76 = arith.constant 0 : index
    %c0_77 = arith.constant 0 : index
    %186 = vector.load %arg6[%c1_75, %c0_76, %c0_77] : memref<2x1x32xf32, #tpu.memory_space<vmem>>, vector<1x1x32xf32>
    %187 = vector.shape_cast %186 : vector<1x1x32xf32> to vector<1x32xf32>
    %188 = vector.broadcast %187 : vector<1x32xf32> to vector<16x32xf32>
    %189 = arith.addf %185, %188 : vector<16x32xf32>
    %190 = arith.addf %134, %189 : vector<16x32xf32>
    %c1_78 = arith.constant 1 : index
    %c0_79 = arith.constant 0 : index
    %c0_80 = arith.constant 0 : index
    %191 = vector.load %arg7[%c1_78, %c0_79, %c0_80] : memref<2x1x32xf32, #tpu.memory_space<vmem>>, vector<1x1x32xf32>
    %192 = vector.shape_cast %191 : vector<1x1x32xf32> to vector<1x32xf32>
    %c1_81 = arith.constant 1 : index
    %c0_82 = arith.constant 0 : index
    %c0_83 = arith.constant 0 : index
    %193 = vector.load %arg8[%c1_81, %c0_82, %c0_83] : memref<2x1x32xf32, #tpu.memory_space<vmem>>, vector<1x1x32xf32>
    %194 = vector.shape_cast %193 : vector<1x1x32xf32> to vector<1x32xf32>
    %cst_84 = arith.constant dense<0.000000e+00> : vector<16xf32>
    %195 = vector.multi_reduction <add>, %190, %cst_84 [1] : vector<16x32xf32> to vector<16xf32>
    %196 = vector.shape_cast %195 : vector<16xf32> to vector<16x1xf32>
    %cst_85 = arith.constant 3.200000e+01 : f32
    %197 = vector.broadcast %cst_85 : f32 to vector<16x1xf32>
    %198 = arith.divf %196, %197 : vector<16x1xf32>
    %199 = vector.broadcast %198 : vector<16x1xf32> to vector<16x32xf32>
    %200 = arith.subf %190, %199 : vector<16x32xf32>
    %201 = arith.mulf %200, %200 : vector<16x32xf32>
    %cst_86 = arith.constant dense<0.000000e+00> : vector<16xf32>
    %202 = vector.multi_reduction <add>, %201, %cst_86 [1] : vector<16x32xf32> to vector<16xf32>
    %203 = vector.shape_cast %202 : vector<16xf32> to vector<16x1xf32>
    %cst_87 = arith.constant 3.200000e+01 : f32
    %204 = vector.broadcast %cst_87 : f32 to vector<16x1xf32>
    %205 = arith.divf %203, %204 : vector<16x1xf32>
    %206 = vector.broadcast %198 : vector<16x1xf32> to vector<16x32xf32>
    %207 = arith.subf %190, %206 : vector<16x32xf32>
    %cst_88 = arith.constant 9.99999974E-6 : f32
    %208 = vector.broadcast %cst_88 : f32 to vector<16x1xf32>
    %209 = arith.addf %205, %208 : vector<16x1xf32>
    %210 = math.rsqrt %209 : vector<16x1xf32>
    %211 = vector.broadcast %210 : vector<16x1xf32> to vector<16x32xf32>
    %212 = arith.mulf %207, %211 : vector<16x32xf32>
    %213 = vector.broadcast %192 : vector<1x32xf32> to vector<16x32xf32>
    %214 = arith.mulf %212, %213 : vector<16x32xf32>
    %215 = vector.broadcast %194 : vector<1x32xf32> to vector<16x32xf32>
    %216 = arith.addf %214, %215 : vector<16x32xf32>
    %217 = arith.truncf %216 : vector<16x32xf32> to vector<16x32xbf16>
    %c1_89 = arith.constant 1 : index
    %c0_90 = arith.constant 0 : index
    %c0_91 = arith.constant 0 : index
    %218 = vector.load %arg9[%c1_89, %c0_90, %c0_91] : memref<2x32x2048xbf16, #tpu.memory_space<vmem>>, vector<1x32x2048xbf16>
    %219 = vector.shape_cast %218 : vector<1x32x2048xbf16> to vector<32x2048xbf16>
    %cst_92 = arith.constant dense<0.000000e+00> : vector<16x2048xf32>
    %220 = tpu.matmul %217, %219, %cst_92 {dimension_numbers = #tpu.dot_dimension_numbers<[1], [0], [0], [1], [0, 0, 1, 1], [], []>} : vector<16x32xbf16>, vector<32x2048xbf16>, vector<16x2048xf32> -> vector<16x2048xf32>
    %c1_93 = arith.constant 1 : index
    %c0_94 = arith.constant 0 : index
    %c0_95 = arith.constant 0 : index
    %221 = vector.load %arg10[%c1_93, %c0_94, %c0_95] : memref<2x1x2048xf32, #tpu.memory_space<vmem>>, vector<1x1x2048xf32>
    %222 = vector.shape_cast %221 : vector<1x1x2048xf32> to vector<1x2048xf32>
    %223 = vector.broadcast %222 : vector<1x2048xf32> to vector<16x2048xf32>
    %224 = arith.addf %220, %223 : vector<16x2048xf32>
    %cst_96 = arith.constant 0.000000e+00 : f32
    %225 = vector.broadcast %cst_96 : f32 to vector<16x2048xf32>
    %226 = arith.maximumf %224, %225 : vector<16x2048xf32>
    %227 = arith.truncf %226 : vector<16x2048xf32> to vector<16x2048xbf16>
    %c1_97 = arith.constant 1 : index
    %c0_98 = arith.constant 0 : index
    %c0_99 = arith.constant 0 : index
    %228 = vector.load %arg11[%c1_97, %c0_98, %c0_99] : memref<2x2048x32xbf16, #tpu.memory_space<vmem>>, vector<1x2048x32xbf16>
    %229 = vector.shape_cast %228 : vector<1x2048x32xbf16> to vector<2048x32xbf16>
    %cst_100 = arith.constant dense<0.000000e+00> : vector<16x32xf32>
    %230 = tpu.matmul %227, %229, %cst_100 {dimension_numbers = #tpu.dot_dimension_numbers<[1], [0], [0], [1], [0, 0, 1, 1], [], []>} : vector<16x2048xbf16>, vector<2048x32xbf16>, vector<16x32xf32> -> vector<16x32xf32>
    %c1_101 = arith.constant 1 : index
    %c0_102 = arith.constant 0 : index
    %c0_103 = arith.constant 0 : index
    %231 = vector.load %arg12[%c1_101, %c0_102, %c0_103] : memref<2x1x32xf32, #tpu.memory_space<vmem>>, vector<1x1x32xf32>
    %232 = vector.shape_cast %231 : vector<1x1x32xf32> to vector<1x32xf32>
    %233 = vector.broadcast %232 : vector<1x32xf32> to vector<16x32xf32>
    %234 = arith.addf %230, %233 : vector<16x32xf32>
    %235 = arith.addf %216, %234 : vector<16x32xf32>
    %c1_104 = arith.constant 1 : index
    %c0_105 = arith.constant 0 : index
    %c0_106 = arith.constant 0 : index
    %236 = vector.load %arg13[%c1_104, %c0_105, %c0_106] : memref<2x1x32xf32, #tpu.memory_space<vmem>>, vector<1x1x32xf32>
    %237 = vector.shape_cast %236 : vector<1x1x32xf32> to vector<1x32xf32>
    %c1_107 = arith.constant 1 : index
    %c0_108 = arith.constant 0 : index
    %c0_109 = arith.constant 0 : index
    %238 = vector.load %arg14[%c1_107, %c0_108, %c0_109] : memref<2x1x32xf32, #tpu.memory_space<vmem>>, vector<1x1x32xf32>
    %239 = vector.shape_cast %238 : vector<1x1x32xf32> to vector<1x32xf32>
    %cst_110 = arith.constant dense<0.000000e+00> : vector<16xf32>
    %240 = vector.multi_reduction <add>, %235, %cst_110 [1] : vector<16x32xf32> to vector<16xf32>
    %241 = vector.shape_cast %240 : vector<16xf32> to vector<16x1xf32>
    %cst_111 = arith.constant 3.200000e+01 : f32
    %242 = vector.broadcast %cst_111 : f32 to vector<16x1xf32>
    %243 = arith.divf %241, %242 : vector<16x1xf32>
    %244 = vector.broadcast %243 : vector<16x1xf32> to vector<16x32xf32>
    %245 = arith.subf %235, %244 : vector<16x32xf32>
    %246 = arith.mulf %245, %245 : vector<16x32xf32>
    %cst_112 = arith.constant dense<0.000000e+00> : vector<16xf32>
    %247 = vector.multi_reduction <add>, %246, %cst_112 [1] : vector<16x32xf32> to vector<16xf32>
    %248 = vector.shape_cast %247 : vector<16xf32> to vector<16x1xf32>
    %cst_113 = arith.constant 3.200000e+01 : f32
    %249 = vector.broadcast %cst_113 : f32 to vector<16x1xf32>
    %250 = arith.divf %248, %249 : vector<16x1xf32>
    %251 = vector.broadcast %243 : vector<16x1xf32> to vector<16x32xf32>
    %252 = arith.subf %235, %251 : vector<16x32xf32>
    %cst_114 = arith.constant 9.99999974E-6 : f32
    %253 = vector.broadcast %cst_114 : f32 to vector<16x1xf32>
    %254 = arith.addf %250, %253 : vector<16x1xf32>
    %255 = math.rsqrt %254 : vector<16x1xf32>
    %256 = vector.broadcast %255 : vector<16x1xf32> to vector<16x32xf32>
    %257 = arith.mulf %252, %256 : vector<16x32xf32>
    %258 = vector.broadcast %237 : vector<1x32xf32> to vector<16x32xf32>
    %259 = arith.mulf %257, %258 : vector<16x32xf32>
    %260 = vector.broadcast %239 : vector<1x32xf32> to vector<16x32xf32>
    %261 = arith.addf %259, %260 : vector<16x32xf32>
    %262 = vector.shape_cast %261 : vector<16x32xf32> to vector<2x8x32xf32>
    %cst_115 = arith.constant dense<0.000000e+00> : vector<2x32xf32>
    %263 = vector.multi_reduction <add>, %262, %cst_115 [1] : vector<2x8x32xf32> to vector<2x32xf32>
    %cst_116 = arith.constant 8.000000e+00 : f32
    %264 = vector.broadcast %cst_116 : f32 to vector<2x32xf32>
    %265 = arith.divf %263, %264 : vector<2x32xf32>
    %c0_117 = arith.constant 0 : index
    %c0_118 = arith.constant 0 : index
    %266 = vector.load %arg15[%c0_117, %c0_118] : memref<32x1xf32, #tpu.memory_space<vmem>>, vector<32x1xf32>
    %cst_119 = arith.constant dense<0.000000e+00> : vector<2x1xf32>
    %267 = tpu.matmul %265, %266, %cst_119 {dimension_numbers = #tpu.dot_dimension_numbers<[1], [0], [0], [1], [0, 0, 1, 1], [], []>} : vector<2x32xf32>, vector<32x1xf32>, vector<2x1xf32> -> vector<2x1xf32>
    %c0_120 = arith.constant 0 : index
    %c0_121 = arith.constant 0 : index
    %268 = vector.load %arg16[%c0_120, %c0_121] : memref<1x1xf32, #tpu.memory_space<vmem>>, vector<1x1xf32>
    %269 = vector.broadcast %268 : vector<1x1xf32> to vector<2x1xf32>
    %270 = arith.addf %267, %269 : vector<2x1xf32>
    %c0_122 = arith.constant 0 : index
    %c0_123 = arith.constant 0 : index
    %271 = vector.load %arg17[%c0_122, %c0_123] : memref<2x1xf32, #tpu.memory_space<vmem>>, vector<2x1xf32>
    tpu.vector_store %arg17[%c0_122, %c0_123], %270 {strides = array<i32>} : memref<2x1xf32, #tpu.memory_space<vmem>>, vector<2x1xf32>,
    return
  }
  func.func @transform_0(%arg0: i32) -> (i32, i32, i32) {
    %c0_i32 = arith.constant 0 : i32
    %c0_i32_0 = arith.constant 0 : i32
    %c0_i32_1 = arith.constant 0 : i32
    %c0_i32_2 = arith.constant 0 : i32
    return %c0_i32, %c0_i32_0, %c0_i32_1 : i32, i32, i32
  }
  func.func @transform_1(%arg0: i32) -> (i32, i32) {
    %c0_i32 = arith.constant 0 : i32
    %c0_i32_0 = arith.constant 0 : i32
    %c0_i32_1 = arith.constant 0 : i32
    return %c0_i32, %c0_i32_0 : i32, i32
  }
  func.func @transform_2(%arg0: i32) -> (i32, i32, i32) {
    %c0_i32 = arith.constant 0 : i32
    %c0_i32_0 = arith.constant 0 : i32
    %c0_i32_1 = arith.constant 0 : i32
    %c0_i32_2 = arith.constant 0 : i32
    return %c0_i32, %c0_i32_0, %c0_i32_1 : i32, i32, i32
  }
  func.func @transform_3(%arg0: i32) -> (i32, i32, i32) {
    %c0_i32 = arith.constant 0 : i32
    %c0_i32_0 = arith.constant 0 : i32
    %c0_i32_1 = arith.constant 0 : i32
    %c0_i32_2 = arith.constant 0 : i32
    return %c0_i32, %c0_i32_0, %c0_i32_1 : i32, i32, i32
  }
  func.func @transform_4(%arg0: i32) -> (i32, i32, i32) {
    %c0_i32 = arith.constant 0 : i32
    %c0_i32_0 = arith.constant 0 : i32
    %c0_i32_1 = arith.constant 0 : i32
    %c0_i32_2 = arith.constant 0 : i32
    return %c0_i32, %c0_i32_0, %c0_i32_1 : i32, i32, i32
  }
  func.func @transform_5(%arg0: i32) -> (i32, i32, i32) {
    %c0_i32 = arith.constant 0 : i32
    %c0_i32_0 = arith.constant 0 : i32
    %c0_i32_1 = arith.constant 0 : i32
    %c0_i32_2 = arith.constant 0 : i32
    return %c0_i32, %c0_i32_0, %c0_i32_1 : i32, i32, i32
  }
  func.func @transform_6(%arg0: i32) -> (i32, i32, i32) {
    %c0_i32 = arith.constant 0 : i32
    %c0_i32_0 = arith.constant 0 : i32
    %c0_i32_1 = arith.constant 0 : i32
    %c0_i32_2 = arith.constant 0 : i32
    return %c0_i32, %c0_i32_0, %c0_i32_1 : i32, i32, i32
  }
  func.func @transform_7(%arg0: i32) -> (i32, i32, i32) {
    %c0_i32 = arith.constant 0 : i32
    %c0_i32_0 = arith.constant 0 : i32
    %c0_i32_1 = arith.constant 0 : i32
    %c0_i32_2 = arith.constant 0 : i32
    return %c0_i32, %c0_i32_0, %c0_i32_1 : i32, i32, i32
  }
  func.func @transform_8(%arg0: i32) -> (i32, i32, i32) {
    %c0_i32 = arith.constant 0 : i32
    %c0_i32_0 = arith.constant 0 : i32
    %c0_i32_1 = arith.constant 0 : i32
    %c0_i32_2 = arith.constant 0 : i32
    return %c0_i32, %c0_i32_0, %c0_i32_1 : i32, i32, i32
  }
  func.func @transform_9(%arg0: i32) -> (i32, i32, i32) {
    %c0_i32 = arith.constant 0 : i32
    %c0_i32_0 = arith.constant 0 : i32
    %c0_i32_1 = arith.constant 0 : i32
    %c0_i32_2 = arith.constant 0 : i32
    return %c0_i32, %c0_i32_0, %c0_i32_1 : i32, i32, i32
  }
  func.func @transform_10(%arg0: i32) -> (i32, i32, i32) {
    %c0_i32 = arith.constant 0 : i32
    %c0_i32_0 = arith.constant 0 : i32
    %c0_i32_1 = arith.constant 0 : i32
    %c0_i32_2 = arith.constant 0 : i32
    return %c0_i32, %c0_i32_0, %c0_i32_1 : i32, i32, i32
  }
  func.func @transform_11(%arg0: i32) -> (i32, i32, i32) {
    %c0_i32 = arith.constant 0 : i32
    %c0_i32_0 = arith.constant 0 : i32
    %c0_i32_1 = arith.constant 0 : i32
    %c0_i32_2 = arith.constant 0 : i32
    return %c0_i32, %c0_i32_0, %c0_i32_1 : i32, i32, i32
  }
  func.func @transform_12(%arg0: i32) -> (i32, i32, i32) {
    %c0_i32 = arith.constant 0 : i32
    %c0_i32_0 = arith.constant 0 : i32
    %c0_i32_1 = arith.constant 0 : i32
    %c0_i32_2 = arith.constant 0 : i32
    return %c0_i32, %c0_i32_0, %c0_i32_1 : i32, i32, i32
  }
  func.func @transform_13(%arg0: i32) -> (i32, i32, i32) {
    %c0_i32 = arith.constant 0 : i32
    %c0_i32_0 = arith.constant 0 : i32
    %c0_i32_1 = arith.constant 0 : i32
    %c0_i32_2 = arith.constant 0 : i32
    return %c0_i32, %c0_i32_0, %c0_i32_1 : i32, i32, i32
  }
  func.func @transform_14(%arg0: i32) -> (i32, i32) {
    %c0_i32 = arith.constant 0 : i32
    %c0_i32_0 = arith.constant 0 : i32
    %c0_i32_1 = arith.constant 0 : i32
    return %c0_i32, %c0_i32_0 : i32, i32
  }
  func.func @transform_15(%arg0: i32) -> (i32, i32) {
    %c0_i32 = arith.constant 0 : i32
    %c0_i32_0 = arith.constant 0 : i32
    %c0_i32_1 = arith.constant 0 : i32
    return %c0_i32, %c0_i32_0 : i32, i32
  }
  func.func @transform_16(%arg0: i32) -> (i32, i32) {
    %c0_i32 = arith.constant 0 : i32
    %c0_i32_0 = arith.constant 0 : i32
    %c0_i32_1 = arith.constant 0 : i32
    return %c0_i32, %c0_i32_0 : i32, i32
  }
}

</mosaic_0001>

<llo_original>
// kernel: transformer_encoder_forward.1
$region0: #{transformer_encoder_forward.1}
  #allocation0 [shape = 'u32[]', space=smem, size = 0x4, offset = 0x4, fixed_abs, tag = 'smem constant byte address 0x4 - core index']
  #allocation1 [shape = 'u32[144,128]{1,0:T(1,128)}', space=vmem, size = 0x12000, scoped, tag = 'internal scratch']
  #allocation2 [shape = 'f32[1,1]{1,0:T(1,128)S(1)}', space=vmem, size = 0x200, scoped, tag = 'scoped memory for transformer_encoder_forward.1']
  %s0 = inlined_call_operand.vmem [shape: f32[2,8,32], index: 0, kind: input, shape index: {}]
  %s1 = inlined_call_operand.vmem [shape: f32[8,32], index: 1, kind: input, shape index: {}]
  %s2 = inlined_call_operand.vmem [shape: f32[2,32,96], index: 2, kind: input, shape index: {}]
  %s3 = inlined_call_operand.vmem [shape: f32[2,1,96], index: 3, kind: input, shape index: {}]
  %s4 = inlined_call_operand.vmem [shape: f32[2,32,32], index: 4, kind: input, shape index: {}]
  %s5 = inlined_call_operand.vmem [shape: f32[2,1,32], index: 5, kind: input, shape index: {}]
  %s6 = inlined_call_operand.vmem [shape: f32[2,1,32], index: 6, kind: input, shape index: {}]
  %s7 = inlined_call_operand.vmem [shape: f32[2,1,32], index: 7, kind: input, shape index: {}]
  %s8 = inlined_call_operand.vmem [shape: bf16[2,32,2048], index: 8, kind: input, shape index: {}]
  %s9 = inlined_call_operand.vmem [shape: f32[2,1,2048], index: 9, kind: input, shape index: {}]
  %s10 = inlined_call_operand.vmem [shape: bf16[2,2048,32], index: 10, kind: input, shape index: {}]
  %s11 = inlined_call_operand.vmem [shape: f32[2,1,32], index: 11, kind: input, shape index: {}]
  %s12 = inlined_call_operand.vmem [shape: f32[2,1,32], index: 12, kind: input, shape index: {}]
  %s13 = inlined_call_operand.vmem [shape: f32[2,1,32], index: 13, kind: input, shape index: {}]
  %s14 = inlined_call_operand.vmem [shape: f32[32,1], index: 14, kind: input, shape index: {}]
  %s15 = inlined_call_operand.<no memory space> [shape: f32[1,1], index: 15, kind: input, shape index: {}]
  %s16 = inlined_call_operand.vmem [shape: f32[2,1], index: 16, kind: output, shape index: {}]
  %s17 = sld [smem:[#allocation0]]
  $region74: #{transformer_encoder_forward.1} parent=0
    _
  %s19 = ssub.s32 1, %s17
  %s20 = scalar_select 0, %s19, %s17
  %v21 = vstv %s15
  %22 = vst [vmem:[#allocation2] sm:$0x1] %v21
  // Predicated region
  $region2: #{transformer_encoder_forward.1} parent=0 // pred_check
    _
  $region3: #{transformer_encoder_forward.1} parent=0 // pred_check_branch
    %24 = sbr.rel (0) target = $region5
  $region4: #{transformer_encoder_forward.1} parent=0 // pred_region
    _
  $region5: #{transformer_encoder_forward.1} parent=0 // pred_fallthru
    _
  // Predicated region
  $region6: #{transformer_encoder_forward.1} parent=0 // pred_check
    _
  $region7: #{transformer_encoder_forward.1} parent=0 // pred_check_branch
    %26 = sbr.rel (0) target = $region9
  $region8: #{transformer_encoder_forward.1} parent=0 // pred_region
    _
  $region9: #{transformer_encoder_forward.1} parent=0 // pred_fallthru
    _
  // Predicated region
  $region10: #{transformer_encoder_forward.1} parent=0 // pred_check
    _
  $region11: #{transformer_encoder_forward.1} parent=0 // pred_check_branch
    %28 = sbr.rel (0) target = $region13
  $region12: #{transformer_encoder_forward.1} parent=0 // pred_region
    _
  $region13: #{transformer_encoder_forward.1} parent=0 // pred_fallthru
    _
  // Predicated region
  $region14: #{transformer_encoder_forward.1} parent=0 // pred_check
    _
  $region15: #{transformer_encoder_forward.1} parent=0 // pred_check_branch
    %30 = sbr.rel (0) target = $region17
  $region16: #{transformer_encoder_forward.1} parent=0 // pred_region
    _
  $region17: #{transformer_encoder_forward.1} parent=0 // pred_fallthru
    _
  // Predicated region
  $region18: #{transformer_encoder_forward.1} parent=0 // pred_check
    _
  $region19: #{transformer_encoder_forward.1} parent=0 // pred_check_branch
    %32 = sbr.rel (0) target = $region21
  $region20: #{transformer_encoder_forward.1} parent=0 // pred_region
    _
  $region21: #{transformer_encoder_forward.1} parent=0 // pred_fallthru
    _
  // Predicated region
  $region22: #{transformer_encoder_forward.1} parent=0 // pred_check
    _
  $region23: #{transformer_encoder_forward.1} parent=0 // pred_check_branch
    %34 = sbr.rel (0) target = $region25
  $region24: #{transformer_encoder_forward.1} parent=0 // pred_region
    _
  $region25: #{transformer_encoder_forward.1} parent=0 // pred_fallthru
    _
  // Predicated region
  $region26: #{transformer_encoder_forward.1} parent=0 // pred_check
    _
  $region27: #{transformer_encoder_forward.1} parent=0 // pred_check_branch
    %36 = sbr.rel (0) target = $region29
  $region28: #{transformer_encoder_forward.1} parent=0 // pred_region
    _
  $region29: #{transformer_encoder_forward.1} parent=0 // pred_fallthru
    _
  // Predicated region
  $region30: #{transformer_encoder_forward.1} parent=0 // pred_check
    _
  $region31: #{transformer_encoder_forward.1} parent=0 // pred_check_branch
    %38 = sbr.rel (0) target = $region33
  $region32: #{transformer_encoder_forward.1} parent=0 // pred_region
    _
  $region33: #{transformer_encoder_forward.1} parent=0 // pred_fallthru
    _
  // Predicated region
  $region34: #{transformer_encoder_forward.1} parent=0 // pred_check
    _
  $region35: #{transformer_encoder_forward.1} parent=0 // pred_check_branch
    %40 = sbr.rel (0) target = $region37
  $region36: #{transformer_encoder_forward.1} parent=0 // pred_region
    _
  $region37: #{transformer_encoder_forward.1} parent=0 // pred_fallthru
    _
  // Predicated region
  $region38: #{transformer_encoder_forward.1} parent=0 // pred_check
    _
  $region39: #{transformer_encoder_forward.1} parent=0 // pred_check_branch
    %42 = sbr.rel (0) target = $region41
  $region40: #{transformer_encoder_forward.1} parent=0 // pred_region
    _
  $region41: #{transformer_encoder_forward.1} parent=0 // pred_fallthru
    _
  // Predicated region
  $region42: #{transformer_encoder_forward.1} parent=0 // pred_check
    _
  $region43: #{transformer_encoder_forward.1} parent=0 // pred_check_branch
    %44 = sbr.rel (0) target = $region45
  $region44: #{transformer_encoder_forward.1} parent=0 // pred_region
    _
  $region45: #{transformer_encoder_forward.1} parent=0 // pred_fallthru
    _
  // Predicated region
  $region46: #{transformer_encoder_forward.1} parent=0 // pred_check
    _
  $region47: #{transformer_encoder_forward.1} parent=0 // pred_check_branch
    %46 = sbr.rel (0) target = $region49
  $region48: #{transformer_encoder_forward.1} parent=0 // pred_region
    _
  $region49: #{transformer_encoder_forward.1} parent=0 // pred_fallthru
    _
  // Predicated region
  $region50: #{transformer_encoder_forward.1} parent=0 // pred_check
    _
  $region51: #{transformer_encoder_forward.1} parent=0 // pred_check_branch
    %48 = sbr.rel (0) target = $region53
  $region52: #{transformer_encoder_forward.1} parent=0 // pred_region
    _
  $region53: #{transformer_encoder_forward.1} parent=0 // pred_fallthru
    _
  // Predicated region
  $region54: #{transformer_encoder_forward.1} parent=0 // pred_check
    _
  $region55: #{transformer_encoder_forward.1} parent=0 // pred_check_branch
    %50 = sbr.rel (0) target = $region57
  $region56: #{transformer_encoder_forward.1} parent=0 // pred_region
    _
  $region57: #{transformer_encoder_forward.1} parent=0 // pred_fallthru
    _
  // Predicated region
  $region58: #{transformer_encoder_forward.1} parent=0 // pred_check
    _
  $region59: #{transformer_encoder_forward.1} parent=0 // pred_check_branch
    %52 = sbr.rel (0) target = $region61
  $region60: #{transformer_encoder_forward.1} parent=0 // pred_region
    _
  $region61: #{transformer_encoder_forward.1} parent=0 // pred_fallthru
    _
  // Predicated region
  $region62: #{transformer_encoder_forward.1} parent=0 // pred_check
    _
  $region63: #{transformer_encoder_forward.1} parent=0 // pred_check_branch
    %54 = sbr.rel (0) target = $region65
  $region64: #{transformer_encoder_forward.1} parent=0 // pred_region
    _
  $region65: #{transformer_encoder_forward.1} parent=0 // pred_fallthru
    _
  %v56 = vld [vmem:[%s0] sm:$0xff]
  %v57 = vld [vmem:[%s0 + $0x8] sm:$0xff]
  %v58 = vmul.f32 %v56, 5.656854
  %v59 = vmul.f32 %v57, 5.656854
  %v60 = vld [vmem:[%s1] sm:$0xff]
  %v61 = vadd.f32 %v58, %v60
  %v62 = vadd.f32 %v59, %v60
  %v63 = vld [vmem:[%s2] sm:$0xff]
  %v64 = vld [vmem:[%s2 + $0x8] sm:$0xff]
  %v65 = vld [vmem:[%s2 + $0x10] sm:$0xff]
  %v66 = vld [vmem:[%s2 + $0x18] sm:$0xff]
  %v67 = vld [vmem:[%s3] sm:$0x1]
  %v69 = vlaneseq
  %v70 = vshrl.u32 %v69, 7
  %v71 = vsub.s32 0, %v70
  %v72 = vrot.slane %v67, %v71
  %vm74 = vcmask 261120
  %v76 = vsel %vm74, %v61, 0
  %v79 = vsel %vm74, %v62, 0
  %81 = vmatprep.subr.mxu0 0.0
  %82 = vmatpush1.msra.mxu0 %v63
  %83 = vmatprep.subr.mxu0 0.0
  %84 = vmatpush1.msra.mxu0 %v64
  %85 = vmatprep.subr.mxu0 0.0
  %86 = vmatpush1.msra.mxu0 %v65
  %87 = vmatprep.subr.mxu0 0.0
  %88 = vmatpush1.msra.mxu0 %v66
  %89 = vmatprep.subr.mxu0 0.0
  %90 = vmatpush1.msra.mxu0 0.0
  %91 = vmatprep.subr.mxu0 0.0
  %92 = vmatpush1.msra.mxu0 0.0
  %93 = vmatprep.subr.mxu0 0.0
  %94 = vmatpush1.msra.mxu0 0.0
  %95 = vmatprep.subr.mxu0 0.0
  %96 = vmatpush1.msra.mxu0 0.0
  %97 = vmatprep.subr.mxu0 0.0
  %98 = vmatpush1.msra.mxu0 0.0
  %99 = vmatprep.subr.mxu0 0.0
  %100 = vmatpush1.msra.mxu0 0.0
  %101 = vmatprep.subr.mxu0 0.0
  %102 = vmatpush1.msra.mxu0 0.0
  %103 = vmatprep.subr.mxu0 0.0
  %104 = vmatpush1.msra.mxu0 0.0
  %105 = vmatprep.subr.mxu0 0.0
  %106 = vmatpush1.msra.mxu0 0.0
  %107 = vmatprep.subr.mxu0 0.0
  %108 = vmatpush1.msra.mxu0 0.0
  %109 = vmatprep.subr.mxu0 0.0
  %110 = vmatpush1.msra.mxu0 0.0
  %111 = vmatprep.subr.mxu0 0.0
  %112 = vmatpush1.msra.mxu0 0.0
  %113 = vmatprep.subr.mxu0 0.0
  %114 = vmatpush1.msra.mxu0 0.0
  %115 = vmatprep.subr.mxu0 0.0
  %116 = vmatpush1.msra.mxu0 0.0
  %117 = vmatprep.subr.mxu0 0.0
  %118 = vmatpush1.msra.mxu0 0.0
  %119 = vmatprep.subr.mxu0 0.0
  %120 = vmatpush1.msra.mxu0 0.0
  %121 = vmatprep.subr.mxu0 0.0
  %122 = vmatpush1.msra.mxu0 0.0
  %123 = vmatprep.subr.mxu0 0.0
  %124 = vmatpush1.msra.mxu0 0.0
  %125 = vmatprep.subr.mxu0 0.0
  %126 = vmatpush1.msra.mxu0 0.0
  %127 = vmatprep.subr.mxu0 0.0
  %128 = vmatpush1.msra.mxu0 0.0
  %129 = vmatprep.subr.mxu0 0.0
  %130 = vmatpush1.msra.mxu0 0.0
  %131 = vmatprep.subr.mxu0 0.0
  %132 = vmatpush1.msra.mxu0 0.0
  %133 = vmatprep.subr.mxu0 0.0
  %134 = vmatpush1.msra.mxu0 0.0
  %135 = vmatprep.subr.mxu0 0.0
  %136 = vmatpush1.msra.mxu0 0.0
  %137 = vmatprep.subr.mxu0 0.0
  %138 = vmatpush1.msra.mxu0 0.0
  %139 = vmatprep.subr.mxu0 0.0
  %140 = vmatpush1.msra.mxu0 0.0
  %141 = vmatprep.subr.mxu0 0.0
  %142 = vmatpush1.msra.mxu0 0.0
  %143 = vmatprep.subr.mxu0 0.0
  %144 = vmatpush1.msra.mxu0 0.0
  %145 = vmatprep.mubr.f32.mxu0 0.0
  %146 = vmatmul.mubr.f32.gmra.mrb[0].mxu0 %v76
  %v147 = vpop.f32.mrb[0].mxu0
  %v148 = vadd.f32 %v72, %v147
  %v149 = vpop.f32.mrb[0].mxu0
  %150 = vmatprep.mubr.f32.mxu0 0.0
  %151 = vmatmul.mubr.f32.gmra.mrb[0].mxu0 %v79
  %v152 = vpop.f32.mrb[0].mxu0
  %v153 = vadd.f32 %v72, %v152
  %v154 = vpop.f32.mrb[0].mxu0
  %155 = vdwg.mxu0
  %158 = vrot.lane.b32.xlu0 %v148, 120
  %v159 = vpop.permute.xlu0 %158
  %160 = vrot.lane.b32.xlu0 %v153, 120
  %v161 = vpop.permute.xlu0 %160
  %164 = vrot.lane.b32.xlu0 %v148, 112
  %v165 = vpop.permute.xlu0 %164
  %166 = vrot.lane.b32.xlu0 %v153, 112
  %v167 = vpop.permute.xlu0 %166
  %170 = vrot.lane.b32.xlu0 %v148, 104
  %v171 = vpop.permute.xlu0 %170
  %172 = vrot.lane.b32.xlu0 %v153, 104
  %v173 = vpop.permute.xlu0 %172
  %v176 = vmul.f32 %v148, 0.35355338
  %v177 = vmul.f32 %v153, 0.35355338
  %v178 = vmul.f32 %v159, 0.35355338
  %v179 = vmul.f32 %v161, 0.35355338
  %v180 = vmul.f32 %v165, 0.35355338
  %v181 = vmul.f32 %v167, 0.35355338
  %v182 = vmul.f32 %v171, 0.35355338
  %v183 = vmul.f32 %v173, 0.35355338
  %184 = vrot.lane.b32.xlu0 %v148, 96
  %v185 = vpop.permute.xlu0 %184
  %vm186 = vcmask 64512
  %v188 = vsel %vm186, %v176, 0
  %v190 = vsel %vm186, %v185, 0
  %192 = vmatprep.subr.mxu0 0.0
  %193 = vmatpush1.xpose.msra.mxu0 %v190
  %194 = vmatprep.subr.mxu0 0.0
  %195 = vmatpush1.xpose.msra.mxu0 0.0
  %196 = vmatprep.subr.mxu0 0.0
  %197 = vmatpush1.xpose.msra.mxu0 0.0
  %198 = vmatprep.subr.mxu0 0.0
  %199 = vmatpush1.xpose.msra.mxu0 0.0
  %200 = vmatprep.subr.mxu0 0.0
  %201 = vmatpush1.xpose.msra.mxu0 0.0
  %202 = vmatprep.subr.mxu0 0.0
  %203 = vmatpush1.xpose.msra.mxu0 0.0
  %204 = vmatprep.subr.mxu0 0.0
  %205 = vmatpush1.xpose.msra.mxu0 0.0
  %206 = vmatprep.subr.mxu0 0.0
  %207 = vmatpush1.xpose.msra.mxu0 0.0
  %208 = vmatprep.subr.mxu0 0.0
  %209 = vmatpush1.xpose.msra.mxu0 0.0
  %210 = vmatprep.subr.mxu0 0.0
  %211 = vmatpush1.xpose.msra.mxu0 0.0
  %212 = vmatprep.subr.mxu0 0.0
  %213 = vmatpush1.xpose.msra.mxu0 0.0
  %214 = vmatprep.subr.mxu0 0.0
  %215 = vmatpush1.xpose.msra.mxu0 0.0
  %216 = vmatprep.subr.mxu0 0.0
  %217 = vmatpush1.xpose.msra.mxu0 0.0
  %218 = vmatprep.subr.mxu0 0.0
  %219 = vmatpush1.xpose.msra.mxu0 0.0
  %220 = vmatprep.subr.mxu0 0.0
  %221 = vmatpush1.xpose.msra.mxu0 0.0
  %222 = vmatprep.subr.mxu0 0.0
  %223 = vmatpush1.xpose.msra.mxu0 0.0
  %224 = vmatprep.subr.mxu0 0.0
  %225 = vmatpush1.xpose.msra.mxu0 0.0
  %226 = vmatprep.subr.mxu0 0.0
  %227 = vmatpush1.xpose.msra.mxu0 0.0
  %228 = vmatprep.subr.mxu0 0.0
  %229 = vmatpush1.xpose.msra.mxu0 0.0
  %230 = vmatprep.subr.mxu0 0.0
  %231 = vmatpush1.xpose.msra.mxu0 0.0
  %232 = vmatprep.subr.mxu0 0.0
  %233 = vmatpush1.xpose.msra.mxu0 0.0
  %234 = vmatprep.subr.mxu0 0.0
  %235 = vmatpush1.xpose.msra.mxu0 0.0
  %236 = vmatprep.subr.mxu0 0.0
  %237 = vmatpush1.xpose.msra.mxu0 0.0
  %238 = vmatprep.subr.mxu0 0.0
  %239 = vmatpush1.xpose.msra.mxu0 0.0
  %240 = vmatprep.subr.mxu0 0.0
  %241 = vmatpush1.xpose.msra.mxu0 0.0
  %242 = vmatprep.subr.mxu0 0.0
  %243 = vmatpush1.xpose.msra.mxu0 0.0
  %244 = vmatprep.subr.mxu0 0.0
  %245 = vmatpush1.xpose.msra.mxu0 0.0
  %246 = vmatprep.subr.mxu0 0.0
  %247 = vmatpush1.xpose.msra.mxu0 0.0
  %248 = vmatprep.subr.mxu0 0.0
  %249 = vmatpush1.xpose.msra.mxu0 0.0
  %250 = vmatprep.subr.mxu0 0.0
  %251 = vmatpush1.xpose.msra.mxu0 0.0
  %252 = vmatprep.subr.mxu0 0.0
  %253 = vmatpush1.xpose.msra.mxu0 0.0
  %254 = vmatprep.subr.mxu0 0.0
  %255 = vmatpush1.xpose.msra.mxu0 0.0
  %256 = vmatprep.mubr.f32.mxu0 0.0
  %257 = vmatmul.mubr.f32.gmra.mrb[0].mxu0 %v188
  %v258 = vpop.f32.mrb[0].mxu0
  %v259 = vadd.f32 0.0, %v258
  %v260 = vpop.f32.mrb[0].mxu0
  %261 = vdwg.mxu0
  %262 = vrot.lane.b32.xlu0 %v153, 96
  %v263 = vpop.permute.xlu0 %262
  %v265 = vsel %vm186, %v177, 0
  %v267 = vsel %vm186, %v263, 0
  %269 = vmatprep.subr.mxu0 0.0
  %270 = vmatpush1.xpose.msra.mxu0 %v267
  %271 = vmatprep.subr.mxu0 0.0
  %272 = vmatpush1.xpose.msra.mxu0 0.0
  %273 = vmatprep.subr.mxu0 0.0
  %274 = vmatpush1.xpose.msra.mxu0 0.0
  %275 = vmatprep.subr.mxu0 0.0
  %276 = vmatpush1.xpose.msra.mxu0 0.0
  %277 = vmatprep.subr.mxu0 0.0
  %278 = vmatpush1.xpose.msra.mxu0 0.0
  %279 = vmatprep.subr.mxu0 0.0
  %280 = vmatpush1.xpose.msra.mxu0 0.0
  %281 = vmatprep.subr.mxu0 0.0
  %282 = vmatpush1.xpose.msra.mxu0 0.0
  %283 = vmatprep.subr.mxu0 0.0
  %284 = vmatpush1.xpose.msra.mxu0 0.0
  %285 = vmatprep.subr.mxu0 0.0
  %286 = vmatpush1.xpose.msra.mxu0 0.0
  %287 = vmatprep.subr.mxu0 0.0
  %288 = vmatpush1.xpose.msra.mxu0 0.0
  %289 = vmatprep.subr.mxu0 0.0
  %290 = vmatpush1.xpose.msra.mxu0 0.0
  %291 = vmatprep.subr.mxu0 0.0
  %292 = vmatpush1.xpose.msra.mxu0 0.0
  %293 = vmatprep.subr.mxu0 0.0
  %294 = vmatpush1.xpose.msra.mxu0 0.0
  %295 = vmatprep.subr.mxu0 0.0
  %296 = vmatpush1.xpose.msra.mxu0 0.0
  %297 = vmatprep.subr.mxu0 0.0
  %298 = vmatpush1.xpose.msra.mxu0 0.0
  %299 = vmatprep.subr.mxu0 0.0
  %300 = vmatpush1.xpose.msra.mxu0 0.0
  %301 = vmatprep.subr.mxu0 0.0
  %302 = vmatpush1.xpose.msra.mxu0 0.0
  %303 = vmatprep.subr.mxu0 0.0
  %304 = vmatpush1.xpose.msra.mxu0 0.0
  %305 = vmatprep.subr.mxu0 0.0
  %306 = vmatpush1.xpose.msra.mxu0 0.0
  %307 = vmatprep.subr.mxu0 0.0
  %308 = vmatpush1.xpose.msra.mxu0 0.0
  %309 = vmatprep.subr.mxu0 0.0
  %310 = vmatpush1.xpose.msra.mxu0 0.0
  %311 = vmatprep.subr.mxu0 0.0
  %312 = vmatpush1.xpose.msra.mxu0 0.0
  %313 = vmatprep.subr.mxu0 0.0
  %314 = vmatpush1.xpose.msra.mxu0 0.0
  %315 = vmatprep.subr.mxu0 0.0
  %316 = vmatpush1.xpose.msra.mxu0 0.0
  %317 = vmatprep.subr.mxu0 0.0
  %318 = vmatpush1.xpose.msra.mxu0 0.0
  %319 = vmatprep.subr.mxu0 0.0
  %320 = vmatpush1.xpose.msra.mxu0 0.0
  %321 = vmatprep.subr.mxu0 0.0
  %322 = vmatpush1.xpose.msra.mxu0 0.0
  %323 = vmatprep.subr.mxu0 0.0
  %324 = vmatpush1.xpose.msra.mxu0 0.0
  %325 = vmatprep.subr.mxu0 0.0
  %326 = vmatpush1.xpose.msra.mxu0 0.0
  %327 = vmatprep.subr.mxu0 0.0
  %328 = vmatpush1.xpose.msra.mxu0 0.0
  %329 = vmatprep.subr.mxu0 0.0
  %330 = vmatpush1.xpose.msra.mxu0 0.0
  %331 = vmatprep.subr.mxu0 0.0
  %332 = vmatpush1.xpose.msra.mxu0 0.0
  %333 = vmatprep.mubr.f32.mxu0 0.0
  %334 = vmatmul.mubr.f32.gmra.mrb[0].mxu0 %v265
  %v335 = vpop.f32.mrb[0].mxu0
  %v336 = vadd.f32 0.0, %v335
  %v337 = vpop.f32.mrb[0].mxu0
  %338 = vdwg.mxu0
  %339 = vrot.lane.b32.xlu0 %v159, 96
  %v340 = vpop.permute.xlu0 %339
  %v342 = vsel %vm186, %v178, 0
  %v344 = vsel %vm186, %v340, 0
  %346 = vmatprep.subr.mxu0 0.0
  %347 = vmatpush1.xpose.msra.mxu0 %v344
  %348 = vmatprep.subr.mxu0 0.0
  %349 = vmatpush1.xpose.msra.mxu0 0.0
  %350 = vmatprep.subr.mxu0 0.0
  %351 = vmatpush1.xpose.msra.mxu0 0.0
  %352 = vmatprep.subr.mxu0 0.0
  %353 = vmatpush1.xpose.msra.mxu0 0.0
  %354 = vmatprep.subr.mxu0 0.0
  %355 = vmatpush1.xpose.msra.mxu0 0.0
  %356 = vmatprep.subr.mxu0 0.0
  %357 = vmatpush1.xpose.msra.mxu0 0.0
  %358 = vmatprep.subr.mxu0 0.0
  %359 = vmatpush1.xpose.msra.mxu0 0.0
  %360 = vmatprep.subr.mxu0 0.0
  %361 = vmatpush1.xpose.msra.mxu0 0.0
  %362 = vmatprep.subr.mxu0 0.0
  %363 = vmatpush1.xpose.msra.mxu0 0.0
  %364 = vmatprep.subr.mxu0 0.0
  %365 = vmatpush1.xpose.msra.mxu0 0.0
  %366 = vmatprep.subr.mxu0 0.0
  %367 = vmatpush1.xpose.msra.mxu0 0.0
  %368 = vmatprep.subr.mxu0 0.0
  %369 = vmatpush1.xpose.msra.mxu0 0.0
  %370 = vmatprep.subr.mxu0 0.0
  %371 = vmatpush1.xpose.msra.mxu0 0.0
  %372 = vmatprep.subr.mxu0 0.0
  %373 = vmatpush1.xpose.msra.mxu0 0.0
  %374 = vmatprep.subr.mxu0 0.0
  %375 = vmatpush1.xpose.msra.mxu0 0.0
  %376 = vmatprep.subr.mxu0 0.0
  %377 = vmatpush1.xpose.msra.mxu0 0.0
  %378 = vmatprep.subr.mxu0 0.0
  %379 = vmatpush1.xpose.msra.mxu0 0.0
  %380 = vmatprep.subr.mxu0 0.0
  %381 = vmatpush1.xpose.msra.mxu0 0.0
  %382 = vmatprep.subr.mxu0 0.0
  %383 = vmatpush1.xpose.msra.mxu0 0.0
  %384 = vmatprep.subr.mxu0 0.0
  %385 = vmatpush1.xpose.msra.mxu0 0.0
  %386 = vmatprep.subr.mxu0 0.0
  %387 = vmatpush1.xpose.msra.mxu0 0.0
  %388 = vmatprep.subr.mxu0 0.0
  %389 = vmatpush1.xpose.msra.mxu0 0.0
  %390 = vmatprep.subr.mxu0 0.0
  %391 = vmatpush1.xpose.msra.mxu0 0.0
  %392 = vmatprep.subr.mxu0 0.0
  %393 = vmatpush1.xpose.msra.mxu0 0.0
  %394 = vmatprep.subr.mxu0 0.0
  %395 = vmatpush1.xpose.msra.mxu0 0.0
  %396 = vmatprep.subr.mxu0 0.0
  %397 = vmatpush1.xpose.msra.mxu0 0.0
  %398 = vmatprep.subr.mxu0 0.0
  %399 = vmatpush1.xpose.msra.mxu0 0.0
  %400 = vmatprep.subr.mxu0 0.0
  %401 = vmatpush1.xpose.msra.mxu0 0.0
  %402 = vmatprep.subr.mxu0 0.0
  %403 = vmatpush1.xpose.msra.mxu0 0.0
  %404 = vmatprep.subr.mxu0 0.0
  %405 = vmatpush1.xpose.msra.mxu0 0.0
  %406 = vmatprep.subr.mxu0 0.0
  %407 = vmatpush1.xpose.msra.mxu0 0.0
  %408 = vmatprep.subr.mxu0 0.0
  %409 = vmatpush1.xpose.msra.mxu0 0.0
  %410 = vmatprep.mubr.f32.mxu0 0.0
  %411 = vmatmul.mubr.f32.gmra.mrb[0].mxu0 %v342
  %v412 = vpop.f32.mrb[0].mxu0
  %v413 = vadd.f32 0.0, %v412
  %v414 = vpop.f32.mrb[0].mxu0
  %415 = vdwg.mxu0
  %416 = vrot.lane.b32.xlu0 %v161, 96
  %v417 = vpop.permute.xlu0 %416
  %v419 = vsel %vm186, %v179, 0
  %v421 = vsel %vm186, %v417, 0
  %423 = vmatprep.subr.mxu0 0.0
  %424 = vmatpush1.xpose.msra.mxu0 %v421
  %425 = vmatprep.subr.mxu0 0.0
  %426 = vmatpush1.xpose.msra.mxu0 0.0
  %427 = vmatprep.subr.mxu0 0.0
  %428 = vmatpush1.xpose.msra.mxu0 0.0
  %429 = vmatprep.subr.mxu0 0.0
  %430 = vmatpush1.xpose.msra.mxu0 0.0
  %431 = vmatprep.subr.mxu0 0.0
  %432 = vmatpush1.xpose.msra.mxu0 0.0
  %433 = vmatprep.subr.mxu0 0.0
  %434 = vmatpush1.xpose.msra.mxu0 0.0
  %435 = vmatprep.subr.mxu0 0.0
  %436 = vmatpush1.xpose.msra.mxu0 0.0
  %437 = vmatprep.subr.mxu0 0.0
  %438 = vmatpush1.xpose.msra.mxu0 0.0
  %439 = vmatprep.subr.mxu0 0.0
  %440 = vmatpush1.xpose.msra.mxu0 0.0
  %441 = vmatprep.subr.mxu0 0.0
  %442 = vmatpush1.xpose.msra.mxu0 0.0
  %443 = vmatprep.subr.mxu0 0.0
  %444 = vmatpush1.xpose.msra.mxu0 0.0
  %445 = vmatprep.subr.mxu0 0.0
  %446 = vmatpush1.xpose.msra.mxu0 0.0
  %447 = vmatprep.subr.mxu0 0.0
  %448 = vmatpush1.xpose.msra.mxu0 0.0
  %449 = vmatprep.subr.mxu0 0.0
  %450 = vmatpush1.xpose.msra.mxu0 0.0
  %451 = vmatprep.subr.mxu0 0.0
  %452 = vmatpush1.xpose.msra.mxu0 0.0
  %453 = vmatprep.subr.mxu0 0.0
  %454 = vmatpush1.xpose.msra.mxu0 0.0
  %455 = vmatprep.subr.mxu0 0.0
  %456 = vmatpush1.xpose.msra.mxu0 0.0
  %457 = vmatprep.subr.mxu0 0.0
  %458 = vmatpush1.xpose.msra.mxu0 0.0
  %459 = vmatprep.subr.mxu0 0.0
  %460 = vmatpush1.xpose.msra.mxu0 0.0
  %461 = vmatprep.subr.mxu0 0.0
  %462 = vmatpush1.xpose.msra.mxu0 0.0
  %463 = vmatprep.subr.mxu0 0.0
  %464 = vmatpush1.xpose.msra.mxu0 0.0
  %465 = vmatprep.subr.mxu0 0.0
  %466 = vmatpush1.xpose.msra.mxu0 0.0
  %467 = vmatprep.subr.mxu0 0.0
  %468 = vmatpush1.xpose.msra.mxu0 0.0
  %469 = vmatprep.subr.mxu0 0.0
  %470 = vmatpush1.xpose.msra.mxu0 0.0
  %471 = vmatprep.subr.mxu0 0.0
  %472 = vmatpush1.xpose.msra.mxu0 0.0
  %473 = vmatprep.subr.mxu0 0.0
  %474 = vmatpush1.xpose.msra.mxu0 0.0
  %475 = vmatprep.subr.mxu0 0.0
  %476 = vmatpush1.xpose.msra.mxu0 0.0
  %477 = vmatprep.subr.mxu0 0.0
  %478 = vmatpush1.xpose.msra.mxu0 0.0
  %479 = vmatprep.subr.mxu0 0.0
  %480 = vmatpush1.xpose.msra.mxu0 0.0
  %481 = vmatprep.subr.mxu0 0.0
  %482 = vmatpush1.xpose.msra.mxu0 0.0
  %483 = vmatprep.subr.mxu0 0.0
  %484 = vmatpush1.xpose.msra.mxu0 0.0
  %485 = vmatprep.subr.mxu0 0.0
  %486 = vmatpush1.xpose.msra.mxu0 0.0
  %487 = vmatprep.mubr.f32.mxu0 0.0
  %488 = vmatmul.mubr.f32.gmra.mrb[0].mxu0 %v419
  %v489 = vpop.f32.mrb[0].mxu0
  %v490 = vadd.f32 0.0, %v489
  %v491 = vpop.f32.mrb[0].mxu0
  %492 = vdwg.mxu0
  %493 = vrot.lane.b32.xlu0 %v165, 96
  %v494 = vpop.permute.xlu0 %493
  %v496 = vsel %vm186, %v180, 0
  %v498 = vsel %vm186, %v494, 0
  %500 = vmatprep.subr.mxu0 0.0
  %501 = vmatpush1.xpose.msra.mxu0 %v498
  %502 = vmatprep.subr.mxu0 0.0
  %503 = vmatpush1.xpose.msra.mxu0 0.0
  %504 = vmatprep.subr.mxu0 0.0
  %505 = vmatpush1.xpose.msra.mxu0 0.0
  %506 = vmatprep.subr.mxu0 0.0
  %507 = vmatpush1.xpose.msra.mxu0 0.0
  %508 = vmatprep.subr.mxu0 0.0
  %509 = vmatpush1.xpose.msra.mxu0 0.0
  %510 = vmatprep.subr.mxu0 0.0
  %511 = vmatpush1.xpose.msra.mxu0 0.0
  %512 = vmatprep.subr.mxu0 0.0
  %513 = vmatpush1.xpose.msra.mxu0 0.0
  %514 = vmatprep.subr.mxu0 0.0
  %515 = vmatpush1.xpose.msra.mxu0 0.0
  %516 = vmatprep.subr.mxu0 0.0
  %517 = vmatpush1.xpose.msra.mxu0 0.0
  %518 = vmatprep.subr.mxu0 0.0
  %519 = vmatpush1.xpose.msra.mxu0 0.0
  %520 = vmatprep.subr.mxu0 0.0
  %521 = vmatpush1.xpose.msra.mxu0 0.0
  %522 = vmatprep.subr.mxu0 0.0
  %523 = vmatpush1.xpose.msra.mxu0 0.0
  %524 = vmatprep.subr.mxu0 0.0
  %525 = vmatpush1.xpose.msra.mxu0 0.0
  %526 = vmatprep.subr.mxu0 0.0
  %527 = vmatpush1.xpose.msra.mxu0 0.0
  %528 = vmatprep.subr.mxu0 0.0
  %529 = vmatpush1.xpose.msra.mxu0 0.0
  %530 = vmatprep.subr.mxu0 0.0
  %531 = vmatpush1.xpose.msra.mxu0 0.0
  %532 = vmatprep.subr.mxu0 0.0
  %533 = vmatpush1.xpose.msra.mxu0 0.0
  %534 = vmatprep.subr.mxu0 0.0
  %535 = vmatpush1.xpose.msra.mxu0 0.0
  %536 = vmatprep.subr.mxu0 0.0
  %537 = vmatpush1.xpose.msra.mxu0 0.0
  %538 = vmatprep.subr.mxu0 0.0
  %539 = vmatpush1.xpose.msra.mxu0 0.0
  %540 = vmatprep.subr.mxu0 0.0
  %541 = vmatpush1.xpose.msra.mxu0 0.0
  %542 = vmatprep.subr.mxu0 0.0
  %543 = vmatpush1.xpose.msra.mxu0 0.0
  %544 = vmatprep.subr.mxu0 0.0
  %545 = vmatpush1.xpose.msra.mxu0 0.0
  %546 = vmatprep.subr.mxu0 0.0
  %547 = vmatpush1.xpose.msra.mxu0 0.0
  %548 = vmatprep.subr.mxu0 0.0
  %549 = vmatpush1.xpose.msra.mxu0 0.0
  %550 = vmatprep.subr.mxu0 0.0
  %551 = vmatpush1.xpose.msra.mxu0 0.0
  %552 = vmatprep.subr.mxu0 0.0
  %553 = vmatpush1.xpose.msra.mxu0 0.0
  %554 = vmatprep.subr.mxu0 0.0
  %555 = vmatpush1.xpose.msra.mxu0 0.0
  %556 = vmatprep.subr.mxu0 0.0
  %557 = vmatpush1.xpose.msra.mxu0 0.0
  %558 = vmatprep.subr.mxu0 0.0
  %559 = vmatpush1.xpose.msra.mxu0 0.0
  %560 = vmatprep.subr.mxu0 0.0
  %561 = vmatpush1.xpose.msra.mxu0 0.0
  %562 = vmatprep.subr.mxu0 0.0
  %563 = vmatpush1.xpose.msra.mxu0 0.0
  %564 = vmatprep.mubr.f32.mxu0 0.0
  %565 = vmatmul.mubr.f32.gmra.mrb[0].mxu0 %v496
  %v566 = vpop.f32.mrb[0].mxu0
  %v567 = vadd.f32 0.0, %v566
  %v568 = vpop.f32.mrb[0].mxu0
  %569 = vdwg.mxu0
  %570 = vrot.lane.b32.xlu0 %v167, 96
  %v571 = vpop.permute.xlu0 %570
  %v573 = vsel %vm186, %v181, 0
  %v575 = vsel %vm186, %v571, 0
  %577 = vmatprep.subr.mxu0 0.0
  %578 = vmatpush1.xpose.msra.mxu0 %v575
  %579 = vmatprep.subr.mxu0 0.0
  %580 = vmatpush1.xpose.msra.mxu0 0.0
  %581 = vmatprep.subr.mxu0 0.0
  %582 = vmatpush1.xpose.msra.mxu0 0.0
  %583 = vmatprep.subr.mxu0 0.0
  %584 = vmatpush1.xpose.msra.mxu0 0.0
  %585 = vmatprep.subr.mxu0 0.0
  %586 = vmatpush1.xpose.msra.mxu0 0.0
  %587 = vmatprep.subr.mxu0 0.0
  %588 = vmatpush1.xpose.msra.mxu0 0.0
  %589 = vmatprep.subr.mxu0 0.0
  %590 = vmatpush1.xpose.msra.mxu0 0.0
  %591 = vmatprep.subr.mxu0 0.0
  %592 = vmatpush1.xpose.msra.mxu0 0.0
  %593 = vmatprep.subr.mxu0 0.0
  %594 = vmatpush1.xpose.msra.mxu0 0.0
  %595 = vmatprep.subr.mxu0 0.0
  %596 = vmatpush1.xpose.msra.mxu0 0.0
  %597 = vmatprep.subr.mxu0 0.0
  %598 = vmatpush1.xpose.msra.mxu0 0.0
  %599 = vmatprep.subr.mxu0 0.0
  %600 = vmatpush1.xpose.msra.mxu0 0.0
  %601 = vmatprep.subr.mxu0 0.0
  %602 = vmatpush1.xpose.msra.mxu0 0.0
  %603 = vmatprep.subr.mxu0 0.0
  %604 = vmatpush1.xpose.msra.mxu0 0.0
  %605 = vmatprep.subr.mxu0 0.0
  %606 = vmatpush1.xpose.msra.mxu0 0.0
  %607 = vmatprep.subr.mxu0 0.0
  %608 = vmatpush1.xpose.msra.mxu0 0.0
  %609 = vmatprep.subr.mxu0 0.0
  %610 = vmatpush1.xpose.msra.mxu0 0.0
  %611 = vmatprep.subr.mxu0 0.0
  %612 = vmatpush1.xpose.msra.mxu0 0.0
  %613 = vmatprep.subr.mxu0 0.0
  %614 = vmatpush1.xpose.msra.mxu0 0.0
  %615 = vmatprep.subr.mxu0 0.0
  %616 = vmatpush1.xpose.msra.mxu0 0.0
  %617 = vmatprep.subr.mxu0 0.0
  %618 = vmatpush1.xpose.msra.mxu0 0.0
  %619 = vmatprep.subr.mxu0 0.0
  %620 = vmatpush1.xpose.msra.mxu0 0.0
  %621 = vmatprep.subr.mxu0 0.0
  %622 = vmatpush1.xpose.msra.mxu0 0.0
  %623 = vmatprep.subr.mxu0 0.0
  %624 = vmatpush1.xpose.msra.mxu0 0.0
  %625 = vmatprep.subr.mxu0 0.0
  %626 = vmatpush1.xpose.msra.mxu0 0.0
  %627 = vmatprep.subr.mxu0 0.0
  %628 = vmatpush1.xpose.msra.mxu0 0.0
  %629 = vmatprep.subr.mxu0 0.0
  %630 = vmatpush1.xpose.msra.mxu0 0.0
  %631 = vmatprep.subr.mxu0 0.0
  %632 = vmatpush1.xpose.msra.mxu0 0.0
  %633 = vmatprep.subr.mxu0 0.0
  %634 = vmatpush1.xpose.msra.mxu0 0.0
  %635 = vmatprep.subr.mxu0 0.0
  %636 = vmatpush1.xpose.msra.mxu0 0.0
  %637 = vmatprep.subr.mxu0 0.0
  %638 = vmatpush1.xpose.msra.mxu0 0.0
  %639 = vmatprep.subr.mxu0 0.0
  %640 = vmatpush1.xpose.msra.mxu0 0.0
  %641 = vmatprep.mubr.f32.mxu0 0.0
  %642 = vmatmul.mubr.f32.gmra.mrb[0].mxu0 %v573
  %v643 = vpop.f32.mrb[0].mxu0
  %v644 = vadd.f32 0.0, %v643
  %v645 = vpop.f32.mrb[0].mxu0
  %646 = vdwg.mxu0
  %647 = vrot.lane.b32.xlu0 %v171, 96
  %v648 = vpop.permute.xlu0 %647
  %v650 = vsel %vm186, %v182, 0
  %v652 = vsel %vm186, %v648, 0
  %654 = vmatprep.subr.mxu0 0.0
  %655 = vmatpush1.xpose.msra.mxu0 %v652
  %656 = vmatprep.subr.mxu0 0.0
  %657 = vmatpush1.xpose.msra.mxu0 0.0
  %658 = vmatprep.subr.mxu0 0.0
  %659 = vmatpush1.xpose.msra.mxu0 0.0
  %660 = vmatprep.subr.mxu0 0.0
  %661 = vmatpush1.xpose.msra.mxu0 0.0
  %662 = vmatprep.subr.mxu0 0.0
  %663 = vmatpush1.xpose.msra.mxu0 0.0
  %664 = vmatprep.subr.mxu0 0.0
  %665 = vmatpush1.xpose.msra.mxu0 0.0
  %666 = vmatprep.subr.mxu0 0.0
  %667 = vmatpush1.xpose.msra.mxu0 0.0
  %668 = vmatprep.subr.mxu0 0.0
  %669 = vmatpush1.xpose.msra.mxu0 0.0
  %670 = vmatprep.subr.mxu0 0.0
  %671 = vmatpush1.xpose.msra.mxu0 0.0
  %672 = vmatprep.subr.mxu0 0.0
  %673 = vmatpush1.xpose.msra.mxu0 0.0
  %674 = vmatprep.subr.mxu0 0.0
  %675 = vmatpush1.xpose.msra.mxu0 0.0
  %676 = vmatprep.subr.mxu0 0.0
  %677 = vmatpush1.xpose.msra.mxu0 0.0
  %678 = vmatprep.subr.mxu0 0.0
  %679 = vmatpush1.xpose.msra.mxu0 0.0
  %680 = vmatprep.subr.mxu0 0.0
  %681 = vmatpush1.xpose.msra.mxu0 0.0
  %682 = vmatprep.subr.mxu0 0.0
  %683 = vmatpush1.xpose.msra.mxu0 0.0
  %684 = vmatprep.subr.mxu0 0.0
  %685 = vmatpush1.xpose.msra.mxu0 0.0
  %686 = vmatprep.subr.mxu0 0.0
  %687 = vmatpush1.xpose.msra.mxu0 0.0
  %688 = vmatprep.subr.mxu0 0.0
  %689 = vmatpush1.xpose.msra.mxu0 0.0
  %690 = vmatprep.subr.mxu0 0.0
  %691 = vmatpush1.xpose.msra.mxu0 0.0
  %692 = vmatprep.subr.mxu0 0.0
  %693 = vmatpush1.xpose.msra.mxu0 0.0
  %694 = vmatprep.subr.mxu0 0.0
  %695 = vmatpush1.xpose.msra.mxu0 0.0
  %696 = vmatprep.subr.mxu0 0.0
  %697 = vmatpush1.xpose.msra.mxu0 0.0
  %698 = vmatprep.subr.mxu0 0.0
  %699 = vmatpush1.xpose.msra.mxu0 0.0
  %700 = vmatprep.subr.mxu0 0.0
  %701 = vmatpush1.xpose.msra.mxu0 0.0
  %702 = vmatprep.subr.mxu0 0.0
  %703 = vmatpush1.xpose.msra.mxu0 0.0
  %704 = vmatprep.subr.mxu0 0.0
  %705 = vmatpush1.xpose.msra.mxu0 0.0
  %706 = vmatprep.subr.mxu0 0.0
  %707 = vmatpush1.xpose.msra.mxu0 0.0
  %708 = vmatprep.subr.mxu0 0.0
  %709 = vmatpush1.xpose.msra.mxu0 0.0
  %710 = vmatprep.subr.mxu0 0.0
  %711 = vmatpush1.xpose.msra.mxu0 0.0
  %712 = vmatprep.subr.mxu0 0.0
  %713 = vmatpush1.xpose.msra.mxu0 0.0
  %714 = vmatprep.subr.mxu0 0.0
  %715 = vmatpush1.xpose.msra.mxu0 0.0
  %716 = vmatprep.subr.mxu0 0.0
  %717 = vmatpush1.xpose.msra.mxu0 0.0
  %718 = vmatprep.mubr.f32.mxu0 0.0
  %719 = vmatmul.mubr.f32.gmra.mrb[0].mxu0 %v650
  %v720 = vpop.f32.mrb[0].mxu0
  %v721 = vadd.f32 0.0, %v720
  %v722 = vpop.f32.mrb[0].mxu0
  %723 = vdwg.mxu0
  %724 = vrot.lane.b32.xlu0 %v173, 96
  %v725 = vpop.permute.xlu0 %724
  %v727 = vsel %vm186, %v183, 0
  %v729 = vsel %vm186, %v725, 0
  %731 = vmatprep.subr.mxu0 0.0
  %732 = vmatpush1.xpose.msra.mxu0 %v729
  %733 = vmatprep.subr.mxu0 0.0
  %734 = vmatpush1.xpose.msra.mxu0 0.0
  %735 = vmatprep.subr.mxu0 0.0
  %736 = vmatpush1.xpose.msra.mxu0 0.0
  %737 = vmatprep.subr.mxu0 0.0
  %738 = vmatpush1.xpose.msra.mxu0 0.0
  %739 = vmatprep.subr.mxu0 0.0
  %740 = vmatpush1.xpose.msra.mxu0 0.0
  %741 = vmatprep.subr.mxu0 0.0
  %742 = vmatpush1.xpose.msra.mxu0 0.0
  %743 = vmatprep.subr.mxu0 0.0
  %744 = vmatpush1.xpose.msra.mxu0 0.0
  %745 = vmatprep.subr.mxu0 0.0
  %746 = vmatpush1.xpose.msra.mxu0 0.0
  %747 = vmatprep.subr.mxu0 0.0
  %748 = vmatpush1.xpose.msra.mxu0 0.0
  %749 = vmatprep.subr.mxu0 0.0
  %750 = vmatpush1.xpose.msra.mxu0 0.0
  %751 = vmatprep.subr.mxu0 0.0
  %752 = vmatpush1.xpose.msra.mxu0 0.0
  %753 = vmatprep.subr.mxu0 0.0
  %754 = vmatpush1.xpose.msra.mxu0 0.0
  %755 = vmatprep.subr.mxu0 0.0
  %756 = vmatpush1.xpose.msra.mxu0 0.0
  %757 = vmatprep.subr.mxu0 0.0
  %758 = vmatpush1.xpose.msra.mxu0 0.0
  %759 = vmatprep.subr.mxu0 0.0
  %760 = vmatpush1.xpose.msra.mxu0 0.0
  %761 = vmatprep.subr.mxu0 0.0
  %762 = vmatpush1.xpose.msra.mxu0 0.0
  %763 = vmatprep.subr.mxu0 0.0
  %764 = vmatpush1.xpose.msra.mxu0 0.0
  %765 = vmatprep.subr.mxu0 0.0
  %766 = vmatpush1.xpose.msra.mxu0 0.0
  %767 = vmatprep.subr.mxu0 0.0
  %768 = vmatpush1.xpose.msra.mxu0 0.0
  %769 = vmatprep.subr.mxu0 0.0
  %770 = vmatpush1.xpose.msra.mxu0 0.0
  %771 = vmatprep.subr.mxu0 0.0
  %772 = vmatpush1.xpose.msra.mxu0 0.0
  %773 = vmatprep.subr.mxu0 0.0
  %774 = vmatpush1.xpose.msra.mxu0 0.0
  %775 = vmatprep.subr.mxu0 0.0
  %776 = vmatpush1.xpose.msra.mxu0 0.0
  %777 = vmatprep.subr.mxu0 0.0
  %778 = vmatpush1.xpose.msra.mxu0 0.0
  %779 = vmatprep.subr.mxu0 0.0
  %780 = vmatpush1.xpose.msra.mxu0 0.0
  %781 = vmatprep.subr.mxu0 0.0
  %782 = vmatpush1.xpose.msra.mxu0 0.0
  %783 = vmatprep.subr.mxu0 0.0
  %784 = vmatpush1.xpose.msra.mxu0 0.0
  %785 = vmatprep.subr.mxu0 0.0
  %786 = vmatpush1.xpose.msra.mxu0 0.0
  %787 = vmatprep.subr.mxu0 0.0
  %788 = vmatpush1.xpose.msra.mxu0 0.0
  %789 = vmatprep.subr.mxu0 0.0
  %790 = vmatpush1.xpose.msra.mxu0 0.0
  %791 = vmatprep.subr.mxu0 0.0
  %792 = vmatpush1.xpose.msra.mxu0 0.0
  %793 = vmatprep.subr.mxu0 0.0
  %794 = vmatpush1.xpose.msra.mxu0 0.0
  %795 = vmatprep.mubr.f32.mxu0 0.0
  %796 = vmatmul.mubr.f32.gmra.mrb[0].mxu0 %v727
  %v797 = vpop.f32.mrb[0].mxu0
  %v798 = vadd.f32 0.0, %v797
  %v799 = vpop.f32.mrb[0].mxu0
  %800 = vdwg.mxu0
  %v801 = vsel %vm186, %v259, -inf
  %802 = vmax.xlane.f32.xlu0 %v801
  %v803 = vpop.xlane.xlu0 %802
  %v804 = vsel %vm186, %v336, -inf
  %805 = vmax.xlane.f32.xlu0 %v804
  %v806 = vpop.xlane.xlu0 %805
  %v807 = vsel %vm186, %v413, -inf
  %808 = vmax.xlane.f32.xlu0 %v807
  %v809 = vpop.xlane.xlu0 %808
  %v810 = vsel %vm186, %v490, -inf
  %811 = vmax.xlane.f32.xlu0 %v810
  %v812 = vpop.xlane.xlu0 %811
  %v813 = vsel %vm186, %v567, -inf
  %814 = vmax.xlane.f32.xlu0 %v813
  %v815 = vpop.xlane.xlu0 %814
  %v816 = vsel %vm186, %v644, -inf
  %817 = vmax.xlane.f32.xlu0 %v816
  %v818 = vpop.xlane.xlu0 %817
  %v819 = vsel %vm186, %v721, -inf
  %820 = vmax.xlane.f32.xlu0 %v819
  %v821 = vpop.xlane.xlu0 %820
  %v822 = vsel %vm186, %v798, -inf
  %823 = vmax.xlane.f32.xlu0 %v822
  %v824 = vpop.xlane.xlu0 %823
  %v825 = vsub.f32 %v259, %v803
  %v826 = vsub.f32 %v336, %v806
  %v827 = vsub.f32 %v413, %v809
  %v828 = vsub.f32 %v490, %v812
  %v829 = vsub.f32 %v567, %v815
  %v830 = vsub.f32 %v644, %v818
  %v831 = vsub.f32 %v721, %v821
  %v832 = vsub.f32 %v798, %v824
  %v833 = vmul.f32 %v825, 1.442695
  %v834 = vpow.pop %v833
  %v835 = vmul.f32 %v826, 1.442695
  %v836 = vpow.pop %v835
  %v837 = vmul.f32 %v827, 1.442695
  %v838 = vpow.pop %v837
  %v839 = vmul.f32 %v828, 1.442695
  %v840 = vpow.pop %v839
  %v841 = vmul.f32 %v829, 1.442695
  %v842 = vpow.pop %v841
  %v843 = vmul.f32 %v830, 1.442695
  %v844 = vpow.pop %v843
  %v845 = vmul.f32 %v831, 1.442695
  %v846 = vpow.pop %v845
  %v847 = vmul.f32 %v832, 1.442695
  %v848 = vpow.pop %v847
  %v849 = vsel %vm186, %v834, 0.0
  %850 = vadd.xlane.f32.xlu0 %v849
  %v851 = vpop.xlane.xlu0 %850
  %v852 = vsel %vm186, %v836, 0.0
  %853 = vadd.xlane.f32.xlu0 %v852
  %v854 = vpop.xlane.xlu0 %853
  %v855 = vsel %vm186, %v838, 0.0
  %856 = vadd.xlane.f32.xlu0 %v855
  %v857 = vpop.xlane.xlu0 %856
  %v858 = vsel %vm186, %v840, 0.0
  %859 = vadd.xlane.f32.xlu0 %v858
  %v860 = vpop.xlane.xlu0 %859
  %v861 = vsel %vm186, %v842, 0.0
  %862 = vadd.xlane.f32.xlu0 %v861
  %v863 = vpop.xlane.xlu0 %862
  %v864 = vsel %vm186, %v844, 0.0
  %865 = vadd.xlane.f32.xlu0 %v864
  %v866 = vpop.xlane.xlu0 %865
  %v867 = vsel %vm186, %v846, 0.0
  %868 = vadd.xlane.f32.xlu0 %v867
  %v869 = vpop.xlane.xlu0 %868
  %v870 = vsel %vm186, %v848, 0.0
  %871 = vadd.xlane.f32.xlu0 %v870
  %v872 = vpop.xlane.xlu0 %871
  %v873 = vrcp.pop %v851
  %v874 = vrcp.pop %v854
  %v875 = vrcp.pop %v857
  %v876 = vrcp.pop %v860
  %v877 = vrcp.pop %v863
  %v878 = vrcp.pop %v866
  %v879 = vrcp.pop %v869
  %v880 = vrcp.pop %v872
  %v881 = vmul.f32 %v834, %v873
  %v882 = vmul.f32 %v836, %v874
  %v883 = vmul.f32 %v838, %v875
  %v884 = vmul.f32 %v840, %v876
  %v885 = vmul.f32 %v842, %v877
  %v886 = vmul.f32 %v844, %v878
  %v887 = vmul.f32 %v846, %v879
  %v888 = vmul.f32 %v848, %v880
  %889 = vrot.lane.b32.xlu0 %v148, 64
  %v890 = vpop.permute.xlu0 %889
  %v893 = vsel %vm186, %v881, 0
  %895 = vmatprep.subr.mxu0 0.0
  %896 = vmatpush1.msra.mxu0 %v890
  %897 = vmatprep.subr.mxu0 0.0
  %898 = vmatpush1.msra.mxu0 0.0
  %899 = vmatprep.subr.mxu0 0.0
  %900 = vmatpush1.msra.mxu0 0.0
  %901 = vmatprep.subr.mxu0 0.0
  %902 = vmatpush1.msra.mxu0 0.0
  %903 = vmatprep.subr.mxu0 0.0
  %904 = vmatpush1.msra.mxu0 0.0
  %905 = vmatprep.subr.mxu0 0.0
  %906 = vmatpush1.msra.mxu0 0.0
  %907 = vmatprep.subr.mxu0 0.0
  %908 = vmatpush1.msra.mxu0 0.0
  %909 = vmatprep.subr.mxu0 0.0
  %910 = vmatpush1.msra.mxu0 0.0
  %911 = vmatprep.subr.mxu0 0.0
  %912 = vmatpush1.msra.mxu0 0.0
  %913 = vmatprep.subr.mxu0 0.0
  %914 = vmatpush1.msra.mxu0 0.0
  %915 = vmatprep.subr.mxu0 0.0
  %916 = vmatpush1.msra.mxu0 0.0
  %917 = vmatprep.subr.mxu0 0.0
  %918 = vmatpush1.msra.mxu0 0.0
  %919 = vmatprep.subr.mxu0 0.0
  %920 = vmatpush1.msra.mxu0 0.0
  %921 = vmatprep.subr.mxu0 0.0
  %922 = vmatpush1.msra.mxu0 0.0
  %923 = vmatprep.subr.mxu0 0.0
  %924 = vmatpush1.msra.mxu0 0.0
  %925 = vmatprep.subr.mxu0 0.0
  %926 = vmatpush1.msra.mxu0 0.0
  %927 = vmatprep.subr.mxu0 0.0
  %928 = vmatpush1.msra.mxu0 0.0
  %929 = vmatprep.subr.mxu0 0.0
  %930 = vmatpush1.msra.mxu0 0.0
  %931 = vmatprep.subr.mxu0 0.0
  %932 = vmatpush1.msra.mxu0 0.0
  %933 = vmatprep.subr.mxu0 0.0
  %934 = vmatpush1.msra.mxu0 0.0
  %935 = vmatprep.subr.mxu0 0.0
  %936 = vmatpush1.msra.mxu0 0.0
  %937 = vmatprep.subr.mxu0 0.0
  %938 = vmatpush1.msra.mxu0 0.0
  %939 = vmatprep.subr.mxu0 0.0
  %940 = vmatpush1.msra.mxu0 0.0
  %941 = vmatprep.subr.mxu0 0.0
  %942 = vmatpush1.msra.mxu0 0.0
  %943 = vmatprep.subr.mxu0 0.0
  %944 = vmatpush1.msra.mxu0 0.0
  %945 = vmatprep.subr.mxu0 0.0
  %946 = vmatpush1.msra.mxu0 0.0
  %947 = vmatprep.subr.mxu0 0.0
  %948 = vmatpush1.msra.mxu0 0.0
  %949 = vmatprep.subr.mxu0 0.0
  %950 = vmatpush1.msra.mxu0 0.0
  %951 = vmatprep.subr.mxu0 0.0
  %952 = vmatpush1.msra.mxu0 0.0
  %953 = vmatprep.subr.mxu0 0.0
  %954 = vmatpush1.msra.mxu0 0.0
  %955 = vmatprep.subr.mxu0 0.0
  %956 = vmatpush1.msra.mxu0 0.0
  %957 = vmatprep.subr.mxu0 0.0
  %958 = vmatpush1.msra.mxu0 0.0
  %959 = vmatprep.mubr.f32.mxu0 0.0
  %960 = vmatmul.mubr.f32.gmra.mrb[0].mxu0 %v893
  %v961 = vpop.f32.mrb[0].mxu0
  %v962 = vadd.f32 0.0, %v961
  %v963 = vpop.f32.mrb[0].mxu0
  %964 = vdwg.mxu0
  %965 = vrot.lane.b32.xlu0 %v153, 64
  %v966 = vpop.permute.xlu0 %965
  %v969 = vsel %vm186, %v882, 0
  %971 = vmatprep.subr.mxu0 0.0
  %972 = vmatpush1.msra.mxu0 %v966
  %973 = vmatprep.subr.mxu0 0.0
  %974 = vmatpush1.msra.mxu0 0.0
  %975 = vmatprep.subr.mxu0 0.0
  %976 = vmatpush1.msra.mxu0 0.0
  %977 = vmatprep.subr.mxu0 0.0
  %978 = vmatpush1.msra.mxu0 0.0
  %979 = vmatprep.subr.mxu0 0.0
  %980 = vmatpush1.msra.mxu0 0.0
  %981 = vmatprep.subr.mxu0 0.0
  %982 = vmatpush1.msra.mxu0 0.0
  %983 = vmatprep.subr.mxu0 0.0
  %984 = vmatpush1.msra.mxu0 0.0
  %985 = vmatprep.subr.mxu0 0.0
  %986 = vmatpush1.msra.mxu0 0.0
  %987 = vmatprep.subr.mxu0 0.0
  %988 = vmatpush1.msra.mxu0 0.0
  %989 = vmatprep.subr.mxu0 0.0
  %990 = vmatpush1.msra.mxu0 0.0
  %991 = vmatprep.subr.mxu0 0.0
  %992 = vmatpush1.msra.mxu0 0.0
  %993 = vmatprep.subr.mxu0 0.0
  %994 = vmatpush1.msra.mxu0 0.0
  %995 = vmatprep.subr.mxu0 0.0
  %996 = vmatpush1.msra.mxu0 0.0
  %997 = vmatprep.subr.mxu0 0.0
  %998 = vmatpush1.msra.mxu0 0.0
  %999 = vmatprep.subr.mxu0 0.0
  %1000 = vmatpush1.msra.mxu0 0.0
  %1001 = vmatprep.subr.mxu0 0.0
  %1002 = vmatpush1.msra.mxu0 0.0
  %1003 = vmatprep.subr.mxu0 0.0
  %1004 = vmatpush1.msra.mxu0 0.0
  %1005 = vmatprep.subr.mxu0 0.0
  %1006 = vmatpush1.msra.mxu0 0.0
  %1007 = vmatprep.subr.mxu0 0.0
  %1008 = vmatpush1.msra.mxu0 0.0
  %1009 = vmatprep.subr.mxu0 0.0
  %1010 = vmatpush1.msra.mxu0 0.0
  %1011 = vmatprep.subr.mxu0 0.0
  %1012 = vmatpush1.msra.mxu0 0.0
  %1013 = vmatprep.subr.mxu0 0.0
  %1014 = vmatpush1.msra.mxu0 0.0
  %1015 = vmatprep.subr.mxu0 0.0
  %1016 = vmatpush1.msra.mxu0 0.0
  %1017 = vmatprep.subr.mxu0 0.0
  %1018 = vmatpush1.msra.mxu0 0.0
  %1019 = vmatprep.subr.mxu0 0.0
  %1020 = vmatpush1.msra.mxu0 0.0
  %1021 = vmatprep.subr.mxu0 0.0
  %1022 = vmatpush1.msra.mxu0 0.0
  %1023 = vmatprep.subr.mxu0 0.0
  %1024 = vmatpush1.msra.mxu0 0.0
  %1025 = vmatprep.subr.mxu0 0.0
  %1026 = vmatpush1.msra.mxu0 0.0
  %1027 = vmatprep.subr.mxu0 0.0
  %1028 = vmatpush1.msra.mxu0 0.0
  %1029 = vmatprep.subr.mxu0 0.0
  %1030 = vmatpush1.msra.mxu0 0.0
  %1031 = vmatprep.subr.mxu0 0.0
  %1032 = vmatpush1.msra.mxu0 0.0
  %1033 = vmatprep.subr.mxu0 0.0
  %1034 = vmatpush1.msra.mxu0 0.0
  %1035 = vmatprep.mubr.f32.mxu0 0.0
  %1036 = vmatmul.mubr.f32.gmra.mrb[0].mxu0 %v969
  %v1037 = vpop.f32.mrb[0].mxu0
  %v1038 = vadd.f32 0.0, %v1037
  %v1039 = vpop.f32.mrb[0].mxu0
  %1040 = vdwg.mxu0
  %1041 = vrot.lane.b32.xlu0 %v159, 64
  %v1042 = vpop.permute.xlu0 %1041
  %v1045 = vsel %vm186, %v883, 0
  %1047 = vmatprep.subr.mxu0 0.0
  %1048 = vmatpush1.msra.mxu0 %v1042
  %1049 = vmatprep.subr.mxu0 0.0
  %1050 = vmatpush1.msra.mxu0 0.0
  %1051 = vmatprep.subr.mxu0 0.0
  %1052 = vmatpush1.msra.mxu0 0.0
  %1053 = vmatprep.subr.mxu0 0.0
  %1054 = vmatpush1.msra.mxu0 0.0
  %1055 = vmatprep.subr.mxu0 0.0
  %1056 = vmatpush1.msra.mxu0 0.0
  %1057 = vmatprep.subr.mxu0 0.0
  %1058 = vmatpush1.msra.mxu0 0.0
  %1059 = vmatprep.subr.mxu0 0.0
  %1060 = vmatpush1.msra.mxu0 0.0
  %1061 = vmatprep.subr.mxu0 0.0
  %1062 = vmatpush1.msra.mxu0 0.0
  %1063 = vmatprep.subr.mxu0 0.0
  %1064 = vmatpush1.msra.mxu0 0.0
  %1065 = vmatprep.subr.mxu0 0.0
  %1066 = vmatpush1.msra.mxu0 0.0
  %1067 = vmatprep.subr.mxu0 0.0
  %1068 = vmatpush1.msra.mxu0 0.0
  %1069 = vmatprep.subr.mxu0 0.0
  %1070 = vmatpush1.msra.mxu0 0.0
  %1071 = vmatprep.subr.mxu0 0.0
  %1072 = vmatpush1.msra.mxu0 0.0
  %1073 = vmatprep.subr.mxu0 0.0
  %1074 = vmatpush1.msra.mxu0 0.0
  %1075 = vmatprep.subr.mxu0 0.0
  %1076 = vmatpush1.msra.mxu0 0.0
  %1077 = vmatprep.subr.mxu0 0.0
  %1078 = vmatpush1.msra.mxu0 0.0
  %1079 = vmatprep.subr.mxu0 0.0
  %1080 = vmatpush1.msra.mxu0 0.0
  %1081 = vmatprep.subr.mxu0 0.0
  %1082 = vmatpush1.msra.mxu0 0.0
  %1083 = vmatprep.subr.mxu0 0.0
  %1084 = vmatpush1.msra.mxu0 0.0
  %1085 = vmatprep.subr.mxu0 0.0
  %1086 = vmatpush1.msra.mxu0 0.0
  %1087 = vmatprep.subr.mxu0 0.0
  %1088 = vmatpush1.msra.mxu0 0.0
  %1089 = vmatprep.subr.mxu0 0.0
  %1090 = vmatpush1.msra.mxu0 0.0
  %1091 = vmatprep.subr.mxu0 0.0
  %1092 = vmatpush1.msra.mxu0 0.0
  %1093 = vmatprep.subr.mxu0 0.0
  %1094 = vmatpush1.msra.mxu0 0.0
  %1095 = vmatprep.subr.mxu0 0.0
  %1096 = vmatpush1.msra.mxu0 0.0
  %1097 = vmatprep.subr.mxu0 0.0
  %1098 = vmatpush1.msra.mxu0 0.0
  %1099 = vmatprep.subr.mxu0 0.0
  %1100 = vmatpush1.msra.mxu0 0.0
  %1101 = vmatprep.subr.mxu0 0.0
  %1102 = vmatpush1.msra.mxu0 0.0
  %1103 = vmatprep.subr.mxu0 0.0
  %1104 = vmatpush1.msra.mxu0 0.0
  %1105 = vmatprep.subr.mxu0 0.0
  %1106 = vmatpush1.msra.mxu0 0.0
  %1107 = vmatprep.subr.mxu0 0.0
  %1108 = vmatpush1.msra.mxu0 0.0
  %1109 = vmatprep.subr.mxu0 0.0
  %1110 = vmatpush1.msra.mxu0 0.0
  %1111 = vmatprep.mubr.f32.mxu0 0.0
  %1112 = vmatmul.mubr.f32.gmra.mrb[0].mxu0 %v1045
  %v1113 = vpop.f32.mrb[0].mxu0
  %v1114 = vadd.f32 0.0, %v1113
  %v1115 = vpop.f32.mrb[0].mxu0
  %1116 = vdwg.mxu0
  %1117 = vrot.lane.b32.xlu0 %v161, 64
  %v1118 = vpop.permute.xlu0 %1117
  %v1121 = vsel %vm186, %v884, 0
  %1123 = vmatprep.subr.mxu0 0.0
  %1124 = vmatpush1.msra.mxu0 %v1118
  %1125 = vmatprep.subr.mxu0 0.0
  %1126 = vmatpush1.msra.mxu0 0.0
  %1127 = vmatprep.subr.mxu0 0.0
  %1128 = vmatpush1.msra.mxu0 0.0
  %1129 = vmatprep.subr.mxu0 0.0
  %1130 = vmatpush1.msra.mxu0 0.0
  %1131 = vmatprep.subr.mxu0 0.0
  %1132 = vmatpush1.msra.mxu0 0.0
  %1133 = vmatprep.subr.mxu0 0.0
  %1134 = vmatpush1.msra.mxu0 0.0
  %1135 = vmatprep.subr.mxu0 0.0
  %1136 = vmatpush1.msra.mxu0 0.0
  %1137 = vmatprep.subr.mxu0 0.0
  %1138 = vmatpush1.msra.mxu0 0.0
  %1139 = vmatprep.subr.mxu0 0.0
  %1140 = vmatpush1.msra.mxu0 0.0
  %1141 = vmatprep.subr.mxu0 0.0
  %1142 = vmatpush1.msra.mxu0 0.0
  %1143 = vmatprep.subr.mxu0 0.0
  %1144 = vmatpush1.msra.mxu0 0.0
  %1145 = vmatprep.subr.mxu0 0.0
  %1146 = vmatpush1.msra.mxu0 0.0
  %1147 = vmatprep.subr.mxu0 0.0
  %1148 = vmatpush1.msra.mxu0 0.0
  %1149 = vmatprep.subr.mxu0 0.0
  %1150 = vmatpush1.msra.mxu0 0.0
  %1151 = vmatprep.subr.mxu0 0.0
  %1152 = vmatpush1.msra.mxu0 0.0
  %1153 = vmatprep.subr.mxu0 0.0
  %1154 = vmatpush1.msra.mxu0 0.0
  %1155 = vmatprep.subr.mxu0 0.0
  %1156 = vmatpush1.msra.mxu0 0.0
  %1157 = vmatprep.subr.mxu0 0.0
  %1158 = vmatpush1.msra.mxu0 0.0
  %1159 = vmatprep.subr.mxu0 0.0
  %1160 = vmatpush1.msra.mxu0 0.0
  %1161 = vmatprep.subr.mxu0 0.0
  %1162 = vmatpush1.msra.mxu0 0.0
  %1163 = vmatprep.subr.mxu0 0.0
  %1164 = vmatpush1.msra.mxu0 0.0
  %1165 = vmatprep.subr.mxu0 0.0
  %1166 = vmatpush1.msra.mxu0 0.0
  %1167 = vmatprep.subr.mxu0 0.0
  %1168 = vmatpush1.msra.mxu0 0.0
  %1169 = vmatprep.subr.mxu0 0.0
  %1170 = vmatpush1.msra.mxu0 0.0
  %1171 = vmatprep.subr.mxu0 0.0
  %1172 = vmatpush1.msra.mxu0 0.0
  %1173 = vmatprep.subr.mxu0 0.0
  %1174 = vmatpush1.msra.mxu0 0.0
  %1175 = vmatprep.subr.mxu0 0.0
  %1176 = vmatpush1.msra.mxu0 0.0
  %1177 = vmatprep.subr.mxu0 0.0
  %1178 = vmatpush1.msra.mxu0 0.0
  %1179 = vmatprep.subr.mxu0 0.0
  %1180 = vmatpush1.msra.mxu0 0.0
  %1181 = vmatprep.subr.mxu0 0.0
  %1182 = vmatpush1.msra.mxu0 0.0
  %1183 = vmatprep.subr.mxu0 0.0
  %1184 = vmatpush1.msra.mxu0 0.0
  %1185 = vmatprep.subr.mxu0 0.0
  %1186 = vmatpush1.msra.mxu0 0.0
  %1187 = vmatprep.mubr.f32.mxu0 0.0
  %1188 = vmatmul.mubr.f32.gmra.mrb[0].mxu0 %v1121
  %v1189 = vpop.f32.mrb[0].mxu0
  %v1190 = vadd.f32 0.0, %v1189
  %v1191 = vpop.f32.mrb[0].mxu0
  %1192 = vdwg.mxu0
  %1193 = vrot.lane.b32.xlu0 %v165, 64
  %v1194 = vpop.permute.xlu0 %1193
  %v1197 = vsel %vm186, %v885, 0
  %1199 = vmatprep.subr.mxu0 0.0
  %1200 = vmatpush1.msra.mxu0 %v1194
  %1201 = vmatprep.subr.mxu0 0.0
  %1202 = vmatpush1.msra.mxu0 0.0
  %1203 = vmatprep.subr.mxu0 0.0
  %1204 = vmatpush1.msra.mxu0 0.0
  %1205 = vmatprep.subr.mxu0 0.0
  %1206 = vmatpush1.msra.mxu0 0.0
  %1207 = vmatprep.subr.mxu0 0.0
  %1208 = vmatpush1.msra.mxu0 0.0
  %1209 = vmatprep.subr.mxu0 0.0
  %1210 = vmatpush1.msra.mxu0 0.0
  %1211 = vmatprep.subr.mxu0 0.0
  %1212 = vmatpush1.msra.mxu0 0.0
  %1213 = vmatprep.subr.mxu0 0.0
  %1214 = vmatpush1.msra.mxu0 0.0
  %1215 = vmatprep.subr.mxu0 0.0
  %1216 = vmatpush1.msra.mxu0 0.0
  %1217 = vmatprep.subr.mxu0 0.0
  %1218 = vmatpush1.msra.mxu0 0.0
  %1219 = vmatprep.subr.mxu0 0.0
  %1220 = vmatpush1.msra.mxu0 0.0
  %1221 = vmatprep.subr.mxu0 0.0
  %1222 = vmatpush1.msra.mxu0 0.0
  %1223 = vmatprep.subr.mxu0 0.0
  %1224 = vmatpush1.msra.mxu0 0.0
  %1225 = vmatprep.subr.mxu0 0.0
  %1226 = vmatpush1.msra.mxu0 0.0
  %1227 = vmatprep.subr.mxu0 0.0
  %1228 = vmatpush1.msra.mxu0 0.0
  %1229 = vmatprep.subr.mxu0 0.0
  %1230 = vmatpush1.msra.mxu0 0.0
  %1231 = vmatprep.subr.mxu0 0.0
  %1232 = vmatpush1.msra.mxu0 0.0
  %1233 = vmatprep.subr.mxu0 0.0
  %1234 = vmatpush1.msra.mxu0 0.0
  %1235 = vmatprep.subr.mxu0 0.0
  %1236 = vmatpush1.msra.mxu0 0.0
  %1237 = vmatprep.subr.mxu0 0.0
  %1238 = vmatpush1.msra.mxu0 0.0
  %1239 = vmatprep.subr.mxu0 0.0
  %1240 = vmatpush1.msra.mxu0 0.0
  %1241 = vmatprep.subr.mxu0 0.0
  %1242 = vmatpush1.msra.mxu0 0.0
  %1243 = vmatprep.subr.mxu0 0.0
  %1244 = vmatpush1.msra.mxu0 0.0
  %1245 = vmatprep.subr.mxu0 0.0
  %1246 = vmatpush1.msra.mxu0 0.0
  %1247 = vmatprep.subr.mxu0 0.0
  %1248 = vmatpush1.msra.mxu0 0.0
  %1249 = vmatprep.subr.mxu0 0.0
  %1250 = vmatpush1.msra.mxu0 0.0
  %1251 = vmatprep.subr.mxu0 0.0
  %1252 = vmatpush1.msra.mxu0 0.0
  %1253 = vmatprep.subr.mxu0 0.0
  %1254 = vmatpush1.msra.mxu0 0.0
  %1255 = vmatprep.subr.mxu0 0.0
  %1256 = vmatpush1.msra.mxu0 0.0
  %1257 = vmatprep.subr.mxu0 0.0
  %1258 = vmatpush1.msra.mxu0 0.0
  %1259 = vmatprep.subr.mxu0 0.0
  %1260 = vmatpush1.msra.mxu0 0.0
  %1261 = vmatprep.subr.mxu0 0.0
  %1262 = vmatpush1.msra.mxu0 0.0
  %1263 = vmatprep.mubr.f32.mxu0 0.0
  %1264 = vmatmul.mubr.f32.gmra.mrb[0].mxu0 %v1197
  %v1265 = vpop.f32.mrb[0].mxu0
  %v1266 = vadd.f32 0.0, %v1265
  %v1267 = vpop.f32.mrb[0].mxu0
  %1268 = vdwg.mxu0
  %1269 = vrot.lane.b32.xlu0 %v167, 64
  %v1270 = vpop.permute.xlu0 %1269
  %v1273 = vsel %vm186, %v886, 0
  %1275 = vmatprep.subr.mxu0 0.0
  %1276 = vmatpush1.msra.mxu0 %v1270
  %1277 = vmatprep.subr.mxu0 0.0
  %1278 = vmatpush1.msra.mxu0 0.0
  %1279 = vmatprep.subr.mxu0 0.0
  %1280 = vmatpush1.msra.mxu0 0.0
  %1281 = vmatprep.subr.mxu0 0.0
  %1282 = vmatpush1.msra.mxu0 0.0
  %1283 = vmatprep.subr.mxu0 0.0
  %1284 = vmatpush1.msra.mxu0 0.0
  %1285 = vmatprep.subr.mxu0 0.0
  %1286 = vmatpush1.msra.mxu0 0.0
  %1287 = vmatprep.subr.mxu0 0.0
  %1288 = vmatpush1.msra.mxu0 0.0
  %1289 = vmatprep.subr.mxu0 0.0
  %1290 = vmatpush1.msra.mxu0 0.0
  %1291 = vmatprep.subr.mxu0 0.0
  %1292 = vmatpush1.msra.mxu0 0.0
  %1293 = vmatprep.subr.mxu0 0.0
  %1294 = vmatpush1.msra.mxu0 0.0
  %1295 = vmatprep.subr.mxu0 0.0
  %1296 = vmatpush1.msra.mxu0 0.0
  %1297 = vmatprep.subr.mxu0 0.0
  %1298 = vmatpush1.msra.mxu0 0.0
  %1299 = vmatprep.subr.mxu0 0.0
  %1300 = vmatpush1.msra.mxu0 0.0
  %1301 = vmatprep.subr.mxu0 0.0
  %1302 = vmatpush1.msra.mxu0 0.0
  %1303 = vmatprep.subr.mxu0 0.0
  %1304 = vmatpush1.msra.mxu0 0.0
  %1305 = vmatprep.subr.mxu0 0.0
  %1306 = vmatpush1.msra.mxu0 0.0
  %1307 = vmatprep.subr.mxu0 0.0
  %1308 = vmatpush1.msra.mxu0 0.0
  %1309 = vmatprep.subr.mxu0 0.0
  %1310 = vmatpush1.msra.mxu0 0.0
  %1311 = vmatprep.subr.mxu0 0.0
  %1312 = vmatpush1.msra.mxu0 0.0
  %1313 = vmatprep.subr.mxu0 0.0
  %1314 = vmatpush1.msra.mxu0 0.0
  %1315 = vmatprep.subr.mxu0 0.0
  %1316 = vmatpush1.msra.mxu0 0.0
  %1317 = vmatprep.subr.mxu0 0.0
  %1318 = vmatpush1.msra.mxu0 0.0
  %1319 = vmatprep.subr.mxu0 0.0
  %1320 = vmatpush1.msra.mxu0 0.0
  %1321 = vmatprep.subr.mxu0 0.0
  %1322 = vmatpush1.msra.mxu0 0.0
  %1323 = vmatprep.subr.mxu0 0.0
  %1324 = vmatpush1.msra.mxu0 0.0
  %1325 = vmatprep.subr.mxu0 0.0
  %1326 = vmatpush1.msra.mxu0 0.0
  %1327 = vmatprep.subr.mxu0 0.0
  %1328 = vmatpush1.msra.mxu0 0.0
  %1329 = vmatprep.subr.mxu0 0.0
  %1330 = vmatpush1.msra.mxu0 0.0
  %1331 = vmatprep.subr.mxu0 0.0
  %1332 = vmatpush1.msra.mxu0 0.0
  %1333 = vmatprep.subr.mxu0 0.0
  %1334 = vmatpush1.msra.mxu0 0.0
  %1335 = vmatprep.subr.mxu0 0.0
  %1336 = vmatpush1.msra.mxu0 0.0
  %1337 = vmatprep.subr.mxu0 0.0
  %1338 = vmatpush1.msra.mxu0 0.0
  %1339 = vmatprep.mubr.f32.mxu0 0.0
  %1340 = vmatmul.mubr.f32.gmra.mrb[0].mxu0 %v1273
  %v1341 = vpop.f32.mrb[0].mxu0
  %v1342 = vadd.f32 0.0, %v1341
  %v1343 = vpop.f32.mrb[0].mxu0
  %1344 = vdwg.mxu0
  %1345 = vrot.lane.b32.xlu0 %v171, 64
  %v1346 = vpop.permute.xlu0 %1345
  %v1349 = vsel %vm186, %v887, 0
  %1351 = vmatprep.subr.mxu0 0.0
  %1352 = vmatpush1.msra.mxu0 %v1346
  %1353 = vmatprep.subr.mxu0 0.0
  %1354 = vmatpush1.msra.mxu0 0.0
  %1355 = vmatprep.subr.mxu0 0.0
  %1356 = vmatpush1.msra.mxu0 0.0
  %1357 = vmatprep.subr.mxu0 0.0
  %1358 = vmatpush1.msra.mxu0 0.0
  %1359 = vmatprep.subr.mxu0 0.0
  %1360 = vmatpush1.msra.mxu0 0.0
  %1361 = vmatprep.subr.mxu0 0.0
  %1362 = vmatpush1.msra.mxu0 0.0
  %1363 = vmatprep.subr.mxu0 0.0
  %1364 = vmatpush1.msra.mxu0 0.0
  %1365 = vmatprep.subr.mxu0 0.0
  %1366 = vmatpush1.msra.mxu0 0.0
  %1367 = vmatprep.subr.mxu0 0.0
  %1368 = vmatpush1.msra.mxu0 0.0
  %1369 = vmatprep.subr.mxu0 0.0
  %1370 = vmatpush1.msra.mxu0 0.0
  %1371 = vmatprep.subr.mxu0 0.0
  %1372 = vmatpush1.msra.mxu0 0.0
  %1373 = vmatprep.subr.mxu0 0.0
  %1374 = vmatpush1.msra.mxu0 0.0
  %1375 = vmatprep.subr.mxu0 0.0
  %1376 = vmatpush1.msra.mxu0 0.0
  %1377 = vmatprep.subr.mxu0 0.0
  %1378 = vmatpush1.msra.mxu0 0.0
  %1379 = vmatprep.subr.mxu0 0.0
  %1380 = vmatpush1.msra.mxu0 0.0
  %1381 = vmatprep.subr.mxu0 0.0
  %1382 = vmatpush1.msra.mxu0 0.0
  %1383 = vmatprep.subr.mxu0 0.0
  %1384 = vmatpush1.msra.mxu0 0.0
  %1385 = vmatprep.subr.mxu0 0.0
  %1386 = vmatpush1.msra.mxu0 0.0
  %1387 = vmatprep.subr.mxu0 0.0
  %1388 = vmatpush1.msra.mxu0 0.0
  %1389 = vmatprep.subr.mxu0 0.0
  %1390 = vmatpush1.msra.mxu0 0.0
  %1391 = vmatprep.subr.mxu0 0.0
  %1392 = vmatpush1.msra.mxu0 0.0
  %1393 = vmatprep.subr.mxu0 0.0
  %1394 = vmatpush1.msra.mxu0 0.0
  %1395 = vmatprep.subr.mxu0 0.0
  %1396 = vmatpush1.msra.mxu0 0.0
  %1397 = vmatprep.subr.mxu0 0.0
  %1398 = vmatpush1.msra.mxu0 0.0
  %1399 = vmatprep.subr.mxu0 0.0
  %1400 = vmatpush1.msra.mxu0 0.0
  %1401 = vmatprep.subr.mxu0 0.0
  %1402 = vmatpush1.msra.mxu0 0.0
  %1403 = vmatprep.subr.mxu0 0.0
  %1404 = vmatpush1.msra.mxu0 0.0
  %1405 = vmatprep.subr.mxu0 0.0
  %1406 = vmatpush1.msra.mxu0 0.0
  %1407 = vmatprep.subr.mxu0 0.0
  %1408 = vmatpush1.msra.mxu0 0.0
  %1409 = vmatprep.subr.mxu0 0.0
  %1410 = vmatpush1.msra.mxu0 0.0
  %1411 = vmatprep.subr.mxu0 0.0
  %1412 = vmatpush1.msra.mxu0 0.0
  %1413 = vmatprep.subr.mxu0 0.0
  %1414 = vmatpush1.msra.mxu0 0.0
  %1415 = vmatprep.mubr.f32.mxu0 0.0
  %1416 = vmatmul.mubr.f32.gmra.mrb[0].mxu0 %v1349
  %v1417 = vpop.f32.mrb[0].mxu0
  %v1418 = vadd.f32 0.0, %v1417
  %v1419 = vpop.f32.mrb[0].mxu0
  %1420 = vdwg.mxu0
  %1421 = vrot.lane.b32.xlu0 %v173, 64
  %v1422 = vpop.permute.xlu0 %1421
  %v1425 = vsel %vm186, %v888, 0
  %1427 = vmatprep.subr.mxu0 0.0
  %1428 = vmatpush1.msra.mxu0 %v1422
  %1429 = vmatprep.subr.mxu0 0.0
  %1430 = vmatpush1.msra.mxu0 0.0
  %1431 = vmatprep.subr.mxu0 0.0
  %1432 = vmatpush1.msra.mxu0 0.0
  %1433 = vmatprep.subr.mxu0 0.0
  %1434 = vmatpush1.msra.mxu0 0.0
  %1435 = vmatprep.subr.mxu0 0.0
  %1436 = vmatpush1.msra.mxu0 0.0
  %1437 = vmatprep.subr.mxu0 0.0
  %1438 = vmatpush1.msra.mxu0 0.0
  %1439 = vmatprep.subr.mxu0 0.0
  %1440 = vmatpush1.msra.mxu0 0.0
  %1441 = vmatprep.subr.mxu0 0.0
  %1442 = vmatpush1.msra.mxu0 0.0
  %1443 = vmatprep.subr.mxu0 0.0
  %1444 = vmatpush1.msra.mxu0 0.0
  %1445 = vmatprep.subr.mxu0 0.0
  %1446 = vmatpush1.msra.mxu0 0.0
  %1447 = vmatprep.subr.mxu0 0.0
  %1448 = vmatpush1.msra.mxu0 0.0
  %1449 = vmatprep.subr.mxu0 0.0
  %1450 = vmatpush1.msra.mxu0 0.0
  %1451 = vmatprep.subr.mxu0 0.0
  %1452 = vmatpush1.msra.mxu0 0.0
  %1453 = vmatprep.subr.mxu0 0.0
  %1454 = vmatpush1.msra.mxu0 0.0
  %1455 = vmatprep.subr.mxu0 0.0
  %1456 = vmatpush1.msra.mxu0 0.0
  %1457 = vmatprep.subr.mxu0 0.0
  %1458 = vmatpush1.msra.mxu0 0.0
  %1459 = vmatprep.subr.mxu0 0.0
  %1460 = vmatpush1.msra.mxu0 0.0
  %1461 = vmatprep.subr.mxu0 0.0
  %1462 = vmatpush1.msra.mxu0 0.0
  %1463 = vmatprep.subr.mxu0 0.0
  %1464 = vmatpush1.msra.mxu0 0.0
  %1465 = vmatprep.subr.mxu0 0.0
  %1466 = vmatpush1.msra.mxu0 0.0
  %1467 = vmatprep.subr.mxu0 0.0
  %1468 = vmatpush1.msra.mxu0 0.0
  %1469 = vmatprep.subr.mxu0 0.0
  %1470 = vmatpush1.msra.mxu0 0.0
  %1471 = vmatprep.subr.mxu0 0.0
  %1472 = vmatpush1.msra.mxu0 0.0
  %1473 = vmatprep.subr.mxu0 0.0
  %1474 = vmatpush1.msra.mxu0 0.0
  %1475 = vmatprep.subr.mxu0 0.0
  %1476 = vmatpush1.msra.mxu0 0.0
  %1477 = vmatprep.subr.mxu0 0.0
  %1478 = vmatpush1.msra.mxu0 0.0
  %1479 = vmatprep.subr.mxu0 0.0
  %1480 = vmatpush1.msra.mxu0 0.0
  %1481 = vmatprep.subr.mxu0 0.0
  %1482 = vmatpush1.msra.mxu0 0.0
  %1483 = vmatprep.subr.mxu0 0.0
  %1484 = vmatpush1.msra.mxu0 0.0
  %1485 = vmatprep.subr.mxu0 0.0
  %1486 = vmatpush1.msra.mxu0 0.0
  %1487 = vmatprep.subr.mxu0 0.0
  %1488 = vmatpush1.msra.mxu0 0.0
  %1489 = vmatprep.subr.mxu0 0.0
  %1490 = vmatpush1.msra.mxu0 0.0
  %1491 = vmatprep.mubr.f32.mxu0 0.0
  %1492 = vmatmul.mubr.f32.gmra.mrb[0].mxu0 %v1425
  %v1493 = vpop.f32.mrb[0].mxu0
  %v1494 = vadd.f32 0.0, %v1493
  %v1495 = vpop.f32.mrb[0].mxu0
  %1496 = vdwg.mxu0
  %1499 = vrot.lane.b32.xlu0 %v1114, 8
  %v1500 = vpop.permute.xlu0 %1499
  %1501 = vrot.lane.b32.xlu0 %v1190, 8
  %v1502 = vpop.permute.xlu0 %1501
  %1507 = vrot.lane.b32.xlu0 %v1266, 16
  %v1508 = vpop.permute.xlu0 %1507
  %1509 = vrot.lane.b32.xlu0 %v1342, 16
  %v1510 = vpop.permute.xlu0 %1509
  %1515 = vrot.lane.b32.xlu0 %v1418, 24
  %v1516 = vpop.permute.xlu0 %1515
  %1517 = vrot.lane.b32.xlu0 %v1494, 24
  %v1518 = vpop.permute.xlu0 %1517
  %v1521 = vsel %vm186, %v962, %v1500
  %v1522 = vsel %vm186, %v1038, %v1502
  %vm1523 = vcmask 130048
  %v1524 = vsel %vm1523, %v1521, %v1508
  %v1525 = vsel %vm1523, %v1522, %v1510
  %vm1526 = vcmask 195584
  %v1527 = vsel %vm1526, %v1524, %v1516
  %v1528 = vsel %vm1526, %v1525, %v1518
  %v1529 = vld [vmem:[%s4] sm:$0xff]
  %v1530 = vld [vmem:[%s4 + $0x8] sm:$0xff]
  %v1531 = vld [vmem:[%s4 + $0x10] sm:$0xff]
  %v1532 = vld [vmem:[%s4 + $0x18] sm:$0xff]
  %v1533 = vld [vmem:[%s5] sm:$0x1]
  %v1535 = vlaneseq
  %v1536 = vshrl.u32 %v1535, 7
  %v1537 = vsub.s32 0, %v1536
  %v1538 = vrot.slane %v1533, %v1537
  %v1541 = vsel %vm74, %v1527, 0
  %v1544 = vsel %vm74, %v1528, 0
  %1546 = vmatprep.subr.mxu0 0.0
  %1547 = vmatpush1.msra.mxu0 %v1529
  %1548 = vmatprep.subr.mxu0 0.0
  %1549 = vmatpush1.msra.mxu0 %v1530
  %1550 = vmatprep.subr.mxu0 0.0
  %1551 = vmatpush1.msra.mxu0 %v1531
  %1552 = vmatprep.subr.mxu0 0.0
  %1553 = vmatpush1.msra.mxu0 %v1532
  %1554 = vmatprep.subr.mxu0 0.0
  %1555 = vmatpush1.msra.mxu0 0.0
  %1556 = vmatprep.subr.mxu0 0.0
  %1557 = vmatpush1.msra.mxu0 0.0
  %1558 = vmatprep.subr.mxu0 0.0
  %1559 = vmatpush1.msra.mxu0 0.0
  %1560 = vmatprep.subr.mxu0 0.0
  %1561 = vmatpush1.msra.mxu0 0.0
  %1562 = vmatprep.subr.mxu0 0.0
  %1563 = vmatpush1.msra.mxu0 0.0
  %1564 = vmatprep.subr.mxu0 0.0
  %1565 = vmatpush1.msra.mxu0 0.0
  %1566 = vmatprep.subr.mxu0 0.0
  %1567 = vmatpush1.msra.mxu0 0.0
  %1568 = vmatprep.subr.mxu0 0.0
  %1569 = vmatpush1.msra.mxu0 0.0
  %1570 = vmatprep.subr.mxu0 0.0
  %1571 = vmatpush1.msra.mxu0 0.0
  %1572 = vmatprep.subr.mxu0 0.0
  %1573 = vmatpush1.msra.mxu0 0.0
  %1574 = vmatprep.subr.mxu0 0.0
  %1575 = vmatpush1.msra.mxu0 0.0
  %1576 = vmatprep.subr.mxu0 0.0
  %1577 = vmatpush1.msra.mxu0 0.0
  %1578 = vmatprep.subr.mxu0 0.0
  %1579 = vmatpush1.msra.mxu0 0.0
  %1580 = vmatprep.subr.mxu0 0.0
  %1581 = vmatpush1.msra.mxu0 0.0
  %1582 = vmatprep.subr.mxu0 0.0
  %1583 = vmatpush1.msra.mxu0 0.0
  %1584 = vmatprep.subr.mxu0 0.0
  %1585 = vmatpush1.msra.mxu0 0.0
  %1586 = vmatprep.subr.mxu0 0.0
  %1587 = vmatpush1.msra.mxu0 0.0
  %1588 = vmatprep.subr.mxu0 0.0
  %1589 = vmatpush1.msra.mxu0 0.0
  %1590 = vmatprep.subr.mxu0 0.0
  %1591 = vmatpush1.msra.mxu0 0.0
  %1592 = vmatprep.subr.mxu0 0.0
  %1593 = vmatpush1.msra.mxu0 0.0
  %1594 = vmatprep.subr.mxu0 0.0
  %1595 = vmatpush1.msra.mxu0 0.0
  %1596 = vmatprep.subr.mxu0 0.0
  %1597 = vmatpush1.msra.mxu0 0.0
  %1598 = vmatprep.subr.mxu0 0.0
  %1599 = vmatpush1.msra.mxu0 0.0
  %1600 = vmatprep.subr.mxu0 0.0
  %1601 = vmatpush1.msra.mxu0 0.0
  %1602 = vmatprep.subr.mxu0 0.0
  %1603 = vmatpush1.msra.mxu0 0.0
  %1604 = vmatprep.subr.mxu0 0.0
  %1605 = vmatpush1.msra.mxu0 0.0
  %1606 = vmatprep.subr.mxu0 0.0
  %1607 = vmatpush1.msra.mxu0 0.0
  %1608 = vmatprep.subr.mxu0 0.0
  %1609 = vmatpush1.msra.mxu0 0.0
  %1610 = vmatprep.mubr.f32.mxu0 0.0
  %1611 = vmatmul.mubr.f32.gmra.mrb[0].mxu0 %v1541
  %v1612 = vpop.f32.mrb[0].mxu0
  %v1613 = vadd.f32 %v1538, %v1612
  %v1614 = vpop.f32.mrb[0].mxu0
  %1615 = vmatprep.mubr.f32.mxu0 0.0
  %1616 = vmatmul.mubr.f32.gmra.mrb[0].mxu0 %v1544
  %v1617 = vpop.f32.mrb[0].mxu0
  %v1618 = vadd.f32 %v1538, %v1617
  %v1619 = vpop.f32.mrb[0].mxu0
  %1620 = vdwg.mxu0
  %v1621 = vadd.f32 %v61, %v1613
  %v1622 = vadd.f32 %v62, %v1618
  %v1623 = vld [vmem:[%s6] sm:$0x1]
  %v1624 = vld [vmem:[%s7] sm:$0x1]
  %v1625 = vsel %vm74, %v1621, 0.0
  %1626 = vadd.xlane.f32.xlu0 %v1625
  %v1627 = vpop.xlane.xlu0 %1626
  %v1628 = vsel %vm74, %v1622, 0.0
  %1629 = vadd.xlane.f32.xlu0 %v1628
  %v1630 = vpop.xlane.xlu0 %1629
  %v1631 = vrcp.pop 32.0
  %v1632 = vmul.f32 %v1627, %v1631
  %v1633 = vmul.f32 %v1630, %v1631
  %v1634 = vsub.f32 %v1621, %v1632
  %v1635 = vsub.f32 %v1622, %v1633
  %v1636 = vmul.f32 %v1634, %v1634
  %v1637 = vmul.f32 %v1635, %v1635
  %v1638 = vsel %vm74, %v1636, 0.0
  %1639 = vadd.xlane.f32.xlu0 %v1638
  %v1640 = vpop.xlane.xlu0 %1639
  %v1641 = vsel %vm74, %v1637, 0.0
  %1642 = vadd.xlane.f32.xlu0 %v1641
  %v1643 = vpop.xlane.xlu0 %1642
  %v1644 = vmul.f32 %v1640, %v1631
  %v1645 = vmul.f32 %v1643, %v1631
  %v1646 = vadd.f32 %v1644, 1e-05
  %v1647 = vadd.f32 %v1645, 1e-05
  %v1648 = vrsqrt.pop %v1646
  %v1649 = vrsqrt.pop %v1647
  %v1650 = vmul.f32 %v1634, %v1648
  %v1651 = vmul.f32 %v1635, %v1649
  %v1653 = vlaneseq
  %v1654 = vshrl.u32 %v1653, 7
  %v1655 = vsub.s32 0, %v1654
  %v1656 = vrot.slane %v1623, %v1655
  %v1658 = vmul.f32 %v1650, %v1656
  %v1659 = vmul.f32 %v1651, %v1656
  %v1661 = vlaneseq
  %v1662 = vshrl.u32 %v1661, 7
  %v1663 = vsub.s32 0, %v1662
  %v1664 = vrot.slane %v1624, %v1663
  %v1666 = vadd.f32 %v1658, %v1664
  %v1667 = vadd.f32 %v1659, %v1664
  %v1668 = vpack.c.bf16 %v1667, %v1666
  %v1669 = vld [vmem:[%s8] sm:$0xff]
  %v1670 = vld [vmem:[%s8 + $0x8] sm:$0xff]
  %v1671 = vld [vmem:[%s8 + $0x10] sm:$0xff]
  %v1672 = vld [vmem:[%s8 + $0x18] sm:$0xff]
  %v1673 = vld [vmem:[%s8 + $0x20] sm:$0xff]
  %v1674 = vld [vmem:[%s8 + $0x28] sm:$0xff]
  %v1675 = vld [vmem:[%s8 + $0x30] sm:$0xff]
  %v1676 = vld [vmem:[%s8 + $0x38] sm:$0xff]
  %v1677 = vld [vmem:[%s8 + $0x40] sm:$0xff]
  %v1678 = vld [vmem:[%s8 + $0x48] sm:$0xff]
  %v1679 = vld [vmem:[%s8 + $0x50] sm:$0xff]
  %v1680 = vld [vmem:[%s8 + $0x58] sm:$0xff]
  %v1681 = vld [vmem:[%s8 + $0x60] sm:$0xff]
  %v1682 = vld [vmem:[%s8 + $0x68] sm:$0xff]
  %v1683 = vld [vmem:[%s8 + $0x70] sm:$0xff]
  %v1684 = vld [vmem:[%s8 + $0x78] sm:$0xff]
  %v1685 = vld [vmem:[%s8 + $0x80] sm:$0xff]
  %v1686 = vld [vmem:[%s8 + $0x88] sm:$0xff]
  %v1687 = vld [vmem:[%s8 + $0x90] sm:$0xff]
  %v1688 = vld [vmem:[%s8 + $0x98] sm:$0xff]
  %v1689 = vld [vmem:[%s8 + $0xa0] sm:$0xff]
  %v1690 = vld [vmem:[%s8 + $0xa8] sm:$0xff]
  %v1691 = vld [vmem:[%s8 + $0xb0] sm:$0xff]
  %v1692 = vld [vmem:[%s8 + $0xb8] sm:$0xff]
  %v1693 = vld [vmem:[%s8 + $0xc0] sm:$0xff]
  %v1694 = vld [vmem:[%s8 + $0xc8] sm:$0xff]
  %v1695 = vld [vmem:[%s8 + $0xd0] sm:$0xff]
  %v1696 = vld [vmem:[%s8 + $0xd8] sm:$0xff]
  %v1697 = vld [vmem:[%s8 + $0xe0] sm:$0xff]
  %v1698 = vld [vmem:[%s8 + $0xe8] sm:$0xff]
  %v1699 = vld [vmem:[%s8 + $0xf0] sm:$0xff]
  %v1700 = vld [vmem:[%s8 + $0xf8] sm:$0xff]
  %v1701 = vld [vmem:[%s9] sm:$0xff]
  %v1702 = vld [vmem:[%s9 + $0x8] sm:$0xff]
  %v1705 = vlaneseq
  %v1706 = vshrl.u32 %v1705, 7
  %v1707 = vsub.s32 0, %v1706
  %v1708 = vrot.slane %v1701, %v1707
  %v1709 = vlaneseq
  %v1710 = vshrl.u32 %v1709, 7
  %v1711 = vsub.s32 1, %v1710
  %v1712 = vrot.slane %v1701, %v1711
  %v1713 = vlaneseq
  %v1714 = vshrl.u32 %v1713, 7
  %v1715 = vsub.s32 2, %v1714
  %v1716 = vrot.slane %v1701, %v1715
  %v1717 = vlaneseq
  %v1718 = vshrl.u32 %v1717, 7
  %v1719 = vsub.s32 3, %v1718
  %v1720 = vrot.slane %v1701, %v1719
  %v1721 = vlaneseq
  %v1722 = vshrl.u32 %v1721, 7
  %v1723 = vsub.s32 4, %v1722
  %v1724 = vrot.slane %v1701, %v1723
  %v1725 = vlaneseq
  %v1726 = vshrl.u32 %v1725, 7
  %v1727 = vsub.s32 5, %v1726
  %v1728 = vrot.slane %v1701, %v1727
  %v1729 = vlaneseq
  %v1730 = vshrl.u32 %v1729, 7
  %v1731 = vsub.s32 6, %v1730
  %v1732 = vrot.slane %v1701, %v1731
  %v1733 = vlaneseq
  %v1734 = vshrl.u32 %v1733, 7
  %v1735 = vsub.s32 7, %v1734
  %v1736 = vrot.slane %v1701, %v1735
  %v1737 = vlaneseq
  %v1738 = vshrl.u32 %v1737, 7
  %v1739 = vsub.s32 0, %v1738
  %v1740 = vrot.slane %v1702, %v1739
  %v1741 = vlaneseq
  %v1742 = vshrl.u32 %v1741, 7
  %v1743 = vsub.s32 1, %v1742
  %v1744 = vrot.slane %v1702, %v1743
  %v1745 = vlaneseq
  %v1746 = vshrl.u32 %v1745, 7
  %v1747 = vsub.s32 2, %v1746
  %v1748 = vrot.slane %v1702, %v1747
  %v1749 = vlaneseq
  %v1750 = vshrl.u32 %v1749, 7
  %v1751 = vsub.s32 3, %v1750
  %v1752 = vrot.slane %v1702, %v1751
  %v1753 = vlaneseq
  %v1754 = vshrl.u32 %v1753, 7
  %v1755 = vsub.s32 4, %v1754
  %v1756 = vrot.slane %v1702, %v1755
  %v1757 = vlaneseq
  %v1758 = vshrl.u32 %v1757, 7
  %v1759 = vsub.s32 5, %v1758
  %v1760 = vrot.slane %v1702, %v1759
  %v1761 = vlaneseq
  %v1762 = vshrl.u32 %v1761, 7
  %v1763 = vsub.s32 6, %v1762
  %v1764 = vrot.slane %v1702, %v1763
  %v1765 = vlaneseq
  %v1766 = vshrl.u32 %v1765, 7
  %v1767 = vsub.s32 7, %v1766
  %v1768 = vrot.slane %v1702, %v1767
  %v1817 = vunpack.c.l.b16 %v1669
  %v1818 = vunpack.c.h.b16 %v1669
  %v1819 = vunpack.c.l.b16 %v1670
  %v1820 = vunpack.c.h.b16 %v1670
  %v1821 = vunpack.c.l.b16 %v1671
  %v1822 = vunpack.c.h.b16 %v1671
  %v1823 = vunpack.c.l.b16 %v1672
  %v1824 = vunpack.c.h.b16 %v1672
  %v1825 = vunpack.c.l.b16 %v1673
  %v1826 = vunpack.c.h.b16 %v1673
  %v1827 = vunpack.c.l.b16 %v1674
  %v1828 = vunpack.c.h.b16 %v1674
  %v1829 = vunpack.c.l.b16 %v1675
  %v1830 = vunpack.c.h.b16 %v1675
  %v1831 = vunpack.c.l.b16 %v1676
  %v1832 = vunpack.c.h.b16 %v1676
  %v1833 = vunpack.c.l.b16 %v1677
  %v1834 = vunpack.c.h.b16 %v1677
  %v1835 = vunpack.c.l.b16 %v1678
  %v1836 = vunpack.c.h.b16 %v1678
  %v1837 = vunpack.c.l.b16 %v1679
  %v1838 = vunpack.c.h.b16 %v1679
  %v1839 = vunpack.c.l.b16 %v1680
  %v1840 = vunpack.c.h.b16 %v1680
  %v1841 = vunpack.c.l.b16 %v1681
  %v1842 = vunpack.c.h.b16 %v1681
  %v1843 = vunpack.c.l.b16 %v1682
  %v1844 = vunpack.c.h.b16 %v1682
  %v1845 = vunpack.c.l.b16 %v1683
  %v1846 = vunpack.c.h.b16 %v1683
  %v1847 = vunpack.c.l.b16 %v1684
  %v1848 = vunpack.c.h.b16 %v1684
  %v1849 = vunpack.c.l.b16 %v1685
  %v1850 = vunpack.c.h.b16 %v1685
  %v1851 = vunpack.c.l.b16 %v1686
  %v1852 = vunpack.c.h.b16 %v1686
  %v1853 = vunpack.c.l.b16 %v1687
  %v1854 = vunpack.c.h.b16 %v1687
  %v1855 = vunpack.c.l.b16 %v1688
  %v1856 = vunpack.c.h.b16 %v1688
  %v1857 = vunpack.c.l.b16 %v1689
  %v1858 = vunpack.c.h.b16 %v1689
  %v1859 = vunpack.c.l.b16 %v1690
  %v1860 = vunpack.c.h.b16 %v1690
  %v1861 = vunpack.c.l.b16 %v1691
  %v1862 = vunpack.c.h.b16 %v1691
  %v1863 = vunpack.c.l.b16 %v1692
  %v1864 = vunpack.c.h.b16 %v1692
  %v1865 = vunpack.c.l.b16 %v1693
  %v1866 = vunpack.c.h.b16 %v1693
  %v1867 = vunpack.c.l.b16 %v1694
  %v1868 = vunpack.c.h.b16 %v1694
  %v1869 = vunpack.c.l.b16 %v1695
  %v1870 = vunpack.c.h.b16 %v1695
  %v1871 = vunpack.c.l.b16 %v1696
  %v1872 = vunpack.c.h.b16 %v1696
  %v1873 = vunpack.c.l.b16 %v1697
  %v1874 = vunpack.c.h.b16 %v1697
  %v1875 = vunpack.c.l.b16 %v1698
  %v1876 = vunpack.c.h.b16 %v1698
  %v1877 = vunpack.c.l.b16 %v1699
  %v1878 = vunpack.c.h.b16 %v1699
  %v1879 = vunpack.c.l.b16 %v1700
  %v1880 = vunpack.c.h.b16 %v1700
  %v1881 = vpack.c.b16 %v1833, %v1817
  %v1882 = vpack.c.b16 %v1834, %v1818
  %v1883 = vpack.c.b16 %v1835, %v1819
  %v1884 = vpack.c.b16 %v1836, %v1820
  %v1885 = vpack.c.b16 %v1837, %v1821
  %v1886 = vpack.c.b16 %v1838, %v1822
  %v1887 = vpack.c.b16 %v1839, %v1823
  %v1888 = vpack.c.b16 %v1840, %v1824
  %v1889 = vpack.c.b16 %v1841, %v1825
  %v1890 = vpack.c.b16 %v1842, %v1826
  %v1891 = vpack.c.b16 %v1843, %v1827
  %v1892 = vpack.c.b16 %v1844, %v1828
  %v1893 = vpack.c.b16 %v1845, %v1829
  %v1894 = vpack.c.b16 %v1846, %v1830
  %v1895 = vpack.c.b16 %v1847, %v1831
  %v1896 = vpack.c.b16 %v1848, %v1832
  %v1897 = vpack.c.b16 %v1865, %v1849
  %v1898 = vpack.c.b16 %v1866, %v1850
  %v1899 = vpack.c.b16 %v1867, %v1851
  %v1900 = vpack.c.b16 %v1868, %v1852
  %v1901 = vpack.c.b16 %v1869, %v1853
  %v1902 = vpack.c.b16 %v1870, %v1854
  %v1903 = vpack.c.b16 %v1871, %v1855
  %v1904 = vpack.c.b16 %v1872, %v1856
  %v1905 = vpack.c.b16 %v1873, %v1857
  %v1906 = vpack.c.b16 %v1874, %v1858
  %v1907 = vpack.c.b16 %v1875, %v1859
  %v1908 = vpack.c.b16 %v1876, %v1860
  %v1909 = vpack.c.b16 %v1877, %v1861
  %v1910 = vpack.c.b16 %v1878, %v1862
  %v1911 = vpack.c.b16 %v1879, %v1863
  %v1912 = vpack.c.b16 %v1880, %v1864
  %v1946 = vsel %vm74, %v1668, 0
  %1948 = vmatprep.subr.bf16.mxu0 %v1882
  %1949 = vmatpush1.bf16.msra.mxu0 %v1881
  %1950 = vmatprep.subr.bf16.mxu0 %v1898
  %1951 = vmatpush1.bf16.msra.mxu0 %v1897
  %1952 = vmatprep.subr.bf16.mxu0 0
  %1953 = vmatpush1.bf16.msra.mxu0 0
  %1954 = vmatprep.subr.bf16.mxu0 0
  %1955 = vmatpush1.bf16.msra.mxu0 0
  %1956 = vmatprep.subr.bf16.mxu0 0
  %1957 = vmatpush1.bf16.msra.mxu0 0
  %1958 = vmatprep.subr.bf16.mxu0 0
  %1959 = vmatpush1.bf16.msra.mxu0 0
  %1960 = vmatprep.subr.bf16.mxu0 0
  %1961 = vmatpush1.bf16.msra.mxu0 0
  %1962 = vmatprep.subr.bf16.mxu0 0
  %1963 = vmatpush1.bf16.msra.mxu0 0
  %1964 = vmatprep.subr.bf16.mxu0 0
  %1965 = vmatpush1.bf16.msra.mxu0 0
  %1966 = vmatprep.subr.bf16.mxu0 0
  %1967 = vmatpush1.bf16.msra.mxu0 0
  %1968 = vmatprep.subr.bf16.mxu0 0
  %1969 = vmatpush1.bf16.msra.mxu0 0
  %1970 = vmatprep.subr.bf16.mxu0 0
  %1971 = vmatpush1.bf16.msra.mxu0 0
  %1972 = vmatprep.subr.bf16.mxu0 0
  %1973 = vmatpush1.bf16.msra.mxu0 0
  %1974 = vmatprep.subr.bf16.mxu0 0
  %1975 = vmatpush1.bf16.msra.mxu0 0
  %1976 = vmatprep.subr.bf16.mxu0 0
  %1977 = vmatpush1.bf16.msra.mxu0 0
  %1978 = vmatprep.subr.bf16.mxu0 0
  %1979 = vmatpush1.bf16.msra.mxu0 0
  %1980 = vmatprep.mubr.bf16.mxu0 0
  %1981 = vmatmul.mubr.bf16.gmra.mrb[0].mxu0 %v1946
  %v1982 = vpop.f32.mrb[0].mxu0
  %v1983 = vadd.f32 %v1708, %v1982
  %v1984 = vpop.f32.mrb[0].mxu0
  %v1985 = vadd.f32 %v1712, %v1984
  %v1986 = vpop.f32.mrb[0].mxu0
  %v1987 = vadd.f32 %v1708, %v1986
  %v1988 = vpop.f32.mrb[0].mxu0
  %v1989 = vadd.f32 %v1712, %v1988
  %1990 = vdwg.mxu0
  %1991 = vmatprep.subr.bf16.mxu0 %v1884
  %1992 = vmatpush1.bf16.msra.mxu0 %v1883
  %1993 = vmatprep.subr.bf16.mxu0 %v1900
  %1994 = vmatpush1.bf16.msra.mxu0 %v1899
  %1995 = vmatprep.subr.bf16.mxu0 0
  %1996 = vmatpush1.bf16.msra.mxu0 0
  %1997 = vmatprep.subr.bf16.mxu0 0
  %1998 = vmatpush1.bf16.msra.mxu0 0
  %1999 = vmatprep.subr.bf16.mxu0 0
  %2000 = vmatpush1.bf16.msra.mxu0 0
  %2001 = vmatprep.subr.bf16.mxu0 0
  %2002 = vmatpush1.bf16.msra.mxu0 0
  %2003 = vmatprep.subr.bf16.mxu0 0
  %2004 = vmatpush1.bf16.msra.mxu0 0
  %2005 = vmatprep.subr.bf16.mxu0 0
  %2006 = vmatpush1.bf16.msra.mxu0 0
  %2007 = vmatprep.subr.bf16.mxu0 0
  %2008 = vmatpush1.bf16.msra.mxu0 0
  %2009 = vmatprep.subr.bf16.mxu0 0
  %2010 = vmatpush1.bf16.msra.mxu0 0
  %2011 = vmatprep.subr.bf16.mxu0 0
  %2012 = vmatpush1.bf16.msra.mxu0 0
  %2013 = vmatprep.subr.bf16.mxu0 0
  %2014 = vmatpush1.bf16.msra.mxu0 0
  %2015 = vmatprep.subr.bf16.mxu0 0
  %2016 = vmatpush1.bf16.msra.mxu0 0
  %2017 = vmatprep.subr.bf16.mxu0 0
  %2018 = vmatpush1.bf16.msra.mxu0 0
  %2019 = vmatprep.subr.bf16.mxu0 0
  %2020 = vmatpush1.bf16.msra.mxu0 0
  %2021 = vmatprep.subr.bf16.mxu0 0
  %2022 = vmatpush1.bf16.msra.mxu0 0
  %2023 = vmatprep.mubr.bf16.mxu0 0
  %2024 = vmatmul.mubr.bf16.gmra.mrb[0].mxu0 %v1946
  %v2025 = vpop.f32.mrb[0].mxu0
  %v2026 = vadd.f32 %v1716, %v2025
  %v2027 = vpop.f32.mrb[0].mxu0
  %v2028 = vadd.f32 %v1720, %v2027
  %v2029 = vpop.f32.mrb[0].mxu0
  %v2030 = vadd.f32 %v1716, %v2029
  %v2031 = vpop.f32.mrb[0].mxu0
  %v2032 = vadd.f32 %v1720, %v2031
  %2033 = vdwg.mxu0
  %2034 = vmatprep.subr.bf16.mxu0 %v1886
  %2035 = vmatpush1.bf16.msra.mxu0 %v1885
  %2036 = vmatprep.subr.bf16.mxu0 %v1902
  %2037 = vmatpush1.bf16.msra.mxu0 %v1901
  %2038 = vmatprep.subr.bf16.mxu0 0
  %2039 = vmatpush1.bf16.msra.mxu0 0
  %2040 = vmatprep.subr.bf16.mxu0 0
  %2041 = vmatpush1.bf16.msra.mxu0 0
  %2042 = vmatprep.subr.bf16.mxu0 0
  %2043 = vmatpush1.bf16.msra.mxu0 0
  %2044 = vmatprep.subr.bf16.mxu0 0
  %2045 = vmatpush1.bf16.msra.mxu0 0
  %2046 = vmatprep.subr.bf16.mxu0 0
  %2047 = vmatpush1.bf16.msra.mxu0 0
  %2048 = vmatprep.subr.bf16.mxu0 0
  %2049 = vmatpush1.bf16.msra.mxu0 0
  %2050 = vmatprep.subr.bf16.mxu0 0
  %2051 = vmatpush1.bf16.msra.mxu0 0
  %2052 = vmatprep.subr.bf16.mxu0 0
  %2053 = vmatpush1.bf16.msra.mxu0 0
  %2054 = vmatprep.subr.bf16.mxu0 0
  %2055 = vmatpush1.bf16.msra.mxu0 0
  %2056 = vmatprep.subr.bf16.mxu0 0
  %2057 = vmatpush1.bf16.msra.mxu0 0
  %2058 = vmatprep.subr.bf16.mxu0 0
  %2059 = vmatpush1.bf16.msra.mxu0 0
  %2060 = vmatprep.subr.bf16.mxu0 0
  %2061 = vmatpush1.bf16.msra.mxu0 0
  %2062 = vmatprep.subr.bf16.mxu0 0
  %2063 = vmatpush1.bf16.msra.mxu0 0
  %2064 = vmatprep.subr.bf16.mxu0 0
  %2065 = vmatpush1.bf16.msra.mxu0 0
  %2066 = vmatprep.mubr.bf16.mxu0 0
  %2067 = vmatmul.mubr.bf16.gmra.mrb[0].mxu0 %v1946
  %v2068 = vpop.f32.mrb[0].mxu0
  %v2069 = vadd.f32 %v1724, %v2068
  %v2070 = vpop.f32.mrb[0].mxu0
  %v2071 = vadd.f32 %v1728, %v2070
  %v2072 = vpop.f32.mrb[0].mxu0
  %v2073 = vadd.f32 %v1724, %v2072
  %v2074 = vpop.f32.mrb[0].mxu0
  %v2075 = vadd.f32 %v1728, %v2074
  %2076 = vdwg.mxu0
  %2077 = vmatprep.subr.bf16.mxu0 %v1888
  %2078 = vmatpush1.bf16.msra.mxu0 %v1887
  %2079 = vmatprep.subr.bf16.mxu0 %v1904
  %2080 = vmatpush1.bf16.msra.mxu0 %v1903
  %2081 = vmatprep.subr.bf16.mxu0 0
  %2082 = vmatpush1.bf16.msra.mxu0 0
  %2083 = vmatprep.subr.bf16.mxu0 0
  %2084 = vmatpush1.bf16.msra.mxu0 0
  %2085 = vmatprep.subr.bf16.mxu0 0
  %2086 = vmatpush1.bf16.msra.mxu0 0
  %2087 = vmatprep.subr.bf16.mxu0 0
  %2088 = vmatpush1.bf16.msra.mxu0 0
  %2089 = vmatprep.subr.bf16.mxu0 0
  %2090 = vmatpush1.bf16.msra.mxu0 0
  %2091 = vmatprep.subr.bf16.mxu0 0
  %2092 = vmatpush1.bf16.msra.mxu0 0
  %2093 = vmatprep.subr.bf16.mxu0 0
  %2094 = vmatpush1.bf16.msra.mxu0 0
  %2095 = vmatprep.subr.bf16.mxu0 0
  %2096 = vmatpush1.bf16.msra.mxu0 0
  %2097 = vmatprep.subr.bf16.mxu0 0
  %2098 = vmatpush1.bf16.msra.mxu0 0
  %2099 = vmatprep.subr.bf16.mxu0 0
  %2100 = vmatpush1.bf16.msra.mxu0 0
  %2101 = vmatprep.subr.bf16.mxu0 0
  %2102 = vmatpush1.bf16.msra.mxu0 0
  %2103 = vmatprep.subr.bf16.mxu0 0
  %2104 = vmatpush1.bf16.msra.mxu0 0
  %2105 = vmatprep.subr.bf16.mxu0 0
  %2106 = vmatpush1.bf16.msra.mxu0 0
  %2107 = vmatprep.subr.bf16.mxu0 0
  %2108 = vmatpush1.bf16.msra.mxu0 0
  %2109 = vmatprep.mubr.bf16.mxu0 0
  %2110 = vmatmul.mubr.bf16.gmra.mrb[0].mxu0 %v1946
  %v2111 = vpop.f32.mrb[0].mxu0
  %v2112 = vadd.f32 %v1732, %v2111
  %v2113 = vpop.f32.mrb[0].mxu0
  %v2114 = vadd.f32 %v1736, %v2113
  %v2115 = vpop.f32.mrb[0].mxu0
  %v2116 = vadd.f32 %v1732, %v2115
  %v2117 = vpop.f32.mrb[0].mxu0
  %v2118 = vadd.f32 %v1736, %v2117
  %2119 = vdwg.mxu0
  %2120 = vmatprep.subr.bf16.mxu0 %v1890
  %2121 = vmatpush1.bf16.msra.mxu0 %v1889
  %2122 = vmatprep.subr.bf16.mxu0 %v1906
  %2123 = vmatpush1.bf16.msra.mxu0 %v1905
  %2124 = vmatprep.subr.bf16.mxu0 0
  %2125 = vmatpush1.bf16.msra.mxu0 0
  %2126 = vmatprep.subr.bf16.mxu0 0
  %2127 = vmatpush1.bf16.msra.mxu0 0
  %2128 = vmatprep.subr.bf16.mxu0 0
  %2129 = vmatpush1.bf16.msra.mxu0 0
  %2130 = vmatprep.subr.bf16.mxu0 0
  %2131 = vmatpush1.bf16.msra.mxu0 0
  %2132 = vmatprep.subr.bf16.mxu0 0
  %2133 = vmatpush1.bf16.msra.mxu0 0
  %2134 = vmatprep.subr.bf16.mxu0 0
  %2135 = vmatpush1.bf16.msra.mxu0 0
  %2136 = vmatprep.subr.bf16.mxu0 0
  %2137 = vmatpush1.bf16.msra.mxu0 0
  %2138 = vmatprep.subr.bf16.mxu0 0
  %2139 = vmatpush1.bf16.msra.mxu0 0
  %2140 = vmatprep.subr.bf16.mxu0 0
  %2141 = vmatpush1.bf16.msra.mxu0 0
  %2142 = vmatprep.subr.bf16.mxu0 0
  %2143 = vmatpush1.bf16.msra.mxu0 0
  %2144 = vmatprep.subr.bf16.mxu0 0
  %2145 = vmatpush1.bf16.msra.mxu0 0
  %2146 = vmatprep.subr.bf16.mxu0 0
  %2147 = vmatpush1.bf16.msra.mxu0 0
  %2148 = vmatprep.subr.bf16.mxu0 0
  %2149 = vmatpush1.bf16.msra.mxu0 0
  %2150 = vmatprep.subr.bf16.mxu0 0
  %2151 = vmatpush1.bf16.msra.mxu0 0
  %2152 = vmatprep.mubr.bf16.mxu0 0
  %2153 = vmatmul.mubr.bf16.gmra.mrb[0].mxu0 %v1946
  %v2154 = vpop.f32.mrb[0].mxu0
  %v2155 = vadd.f32 %v1740, %v2154
  %v2156 = vpop.f32.mrb[0].mxu0
  %v2157 = vadd.f32 %v1744, %v2156
  %v2158 = vpop.f32.mrb[0].mxu0
  %v2159 = vadd.f32 %v1740, %v2158
  %v2160 = vpop.f32.mrb[0].mxu0
  %v2161 = vadd.f32 %v1744, %v2160
  %2162 = vdwg.mxu0
  %2163 = vmatprep.subr.bf16.mxu0 %v1892
  %2164 = vmatpush1.bf16.msra.mxu0 %v1891
  %2165 = vmatprep.subr.bf16.mxu0 %v1908
  %2166 = vmatpush1.bf16.msra.mxu0 %v1907
  %2167 = vmatprep.subr.bf16.mxu0 0
  %2168 = vmatpush1.bf16.msra.mxu0 0
  %2169 = vmatprep.subr.bf16.mxu0 0
  %2170 = vmatpush1.bf16.msra.mxu0 0
  %2171 = vmatprep.subr.bf16.mxu0 0
  %2172 = vmatpush1.bf16.msra.mxu0 0
  %2173 = vmatprep.subr.bf16.mxu0 0
  %2174 = vmatpush1.bf16.msra.mxu0 0
  %2175 = vmatprep.subr.bf16.mxu0 0
  %2176 = vmatpush1.bf16.msra.mxu0 0
  %2177 = vmatprep.subr.bf16.mxu0 0
  %2178 = vmatpush1.bf16.msra.mxu0 0
  %2179 = vmatprep.subr.bf16.mxu0 0
  %2180 = vmatpush1.bf16.msra.mxu0 0
  %2181 = vmatprep.subr.bf16.mxu0 0
  %2182 = vmatpush1.bf16.msra.mxu0 0
  %2183 = vmatprep.subr.bf16.mxu0 0
  %2184 = vmatpush1.bf16.msra.mxu0 0
  %2185 = vmatprep.subr.bf16.mxu0 0
  %2186 = vmatpush1.bf16.msra.mxu0 0
  %2187 = vmatprep.subr.bf16.mxu0 0
  %2188 = vmatpush1.bf16.msra.mxu0 0
  %2189 = vmatprep.subr.bf16.mxu0 0
  %2190 = vmatpush1.bf16.msra.mxu0 0
  %2191 = vmatprep.subr.bf16.mxu0 0
  %2192 = vmatpush1.bf16.msra.mxu0 0
  %2193 = vmatprep.subr.bf16.mxu0 0
  %2194 = vmatpush1.bf16.msra.mxu0 0
  %2195 = vmatprep.mubr.bf16.mxu0 0
  %2196 = vmatmul.mubr.bf16.gmra.mrb[0].mxu0 %v1946
  %v2197 = vpop.f32.mrb[0].mxu0
  %v2198 = vadd.f32 %v1748, %v2197
  %v2199 = vpop.f32.mrb[0].mxu0
  %v2200 = vadd.f32 %v1752, %v2199
  %v2201 = vpop.f32.mrb[0].mxu0
  %v2202 = vadd.f32 %v1748, %v2201
  %v2203 = vpop.f32.mrb[0].mxu0
  %v2204 = vadd.f32 %v1752, %v2203
  %2205 = vdwg.mxu0
  %2206 = vmatprep.subr.bf16.mxu0 %v1894
  %2207 = vmatpush1.bf16.msra.mxu0 %v1893
  %2208 = vmatprep.subr.bf16.mxu0 %v1910
  %2209 = vmatpush1.bf16.msra.mxu0 %v1909
  %2210 = vmatprep.subr.bf16.mxu0 0
  %2211 = vmatpush1.bf16.msra.mxu0 0
  %2212 = vmatprep.subr.bf16.mxu0 0
  %2213 = vmatpush1.bf16.msra.mxu0 0
  %2214 = vmatprep.subr.bf16.mxu0 0
  %2215 = vmatpush1.bf16.msra.mxu0 0
  %2216 = vmatprep.subr.bf16.mxu0 0
  %2217 = vmatpush1.bf16.msra.mxu0 0
  %2218 = vmatprep.subr.bf16.mxu0 0
  %2219 = vmatpush1.bf16.msra.mxu0 0
  %2220 = vmatprep.subr.bf16.mxu0 0
  %2221 = vmatpush1.bf16.msra.mxu0 0
  %2222 = vmatprep.subr.bf16.mxu0 0
  %2223 = vmatpush1.bf16.msra.mxu0 0
  %2224 = vmatprep.subr.bf16.mxu0 0
  %2225 = vmatpush1.bf16.msra.mxu0 0
  %2226 = vmatprep.subr.bf16.mxu0 0
  %2227 = vmatpush1.bf16.msra.mxu0 0
  %2228 = vmatprep.subr.bf16.mxu0 0
  %2229 = vmatpush1.bf16.msra.mxu0 0
  %2230 = vmatprep.subr.bf16.mxu0 0
  %2231 = vmatpush1.bf16.msra.mxu0 0
  %2232 = vmatprep.subr.bf16.mxu0 0
  %2233 = vmatpush1.bf16.msra.mxu0 0
  %2234 = vmatprep.subr.bf16.mxu0 0
  %2235 = vmatpush1.bf16.msra.mxu0 0
  %2236 = vmatprep.subr.bf16.mxu0 0
  %2237 = vmatpush1.bf16.msra.mxu0 0
  %2238 = vmatprep.mubr.bf16.mxu0 0
  %2239 = vmatmul.mubr.bf16.gmra.mrb[0].mxu0 %v1946
  %v2240 = vpop.f32.mrb[0].mxu0
  %v2241 = vadd.f32 %v1756, %v2240
  %v2242 = vpop.f32.mrb[0].mxu0
  %v2243 = vadd.f32 %v1760, %v2242
  %v2244 = vpop.f32.mrb[0].mxu0
  %v2245 = vadd.f32 %v1756, %v2244
  %v2246 = vpop.f32.mrb[0].mxu0
  %v2247 = vadd.f32 %v1760, %v2246
  %2248 = vdwg.mxu0
  %2249 = vmatprep.subr.bf16.mxu0 %v1896
  %2250 = vmatpush1.bf16.msra.mxu0 %v1895
  %2251 = vmatprep.subr.bf16.mxu0 %v1912
  %2252 = vmatpush1.bf16.msra.mxu0 %v1911
  %2253 = vmatprep.subr.bf16.mxu0 0
  %2254 = vmatpush1.bf16.msra.mxu0 0
  %2255 = vmatprep.subr.bf16.mxu0 0
  %2256 = vmatpush1.bf16.msra.mxu0 0
  %2257 = vmatprep.subr.bf16.mxu0 0
  %2258 = vmatpush1.bf16.msra.mxu0 0
  %2259 = vmatprep.subr.bf16.mxu0 0
  %2260 = vmatpush1.bf16.msra.mxu0 0
  %2261 = vmatprep.subr.bf16.mxu0 0
  %2262 = vmatpush1.bf16.msra.mxu0 0
  %2263 = vmatprep.subr.bf16.mxu0 0
  %2264 = vmatpush1.bf16.msra.mxu0 0
  %2265 = vmatprep.subr.bf16.mxu0 0
  %2266 = vmatpush1.bf16.msra.mxu0 0
  %2267 = vmatprep.subr.bf16.mxu0 0
  %2268 = vmatpush1.bf16.msra.mxu0 0
  %2269 = vmatprep.subr.bf16.mxu0 0
  %2270 = vmatpush1.bf16.msra.mxu0 0
  %2271 = vmatprep.subr.bf16.mxu0 0
  %2272 = vmatpush1.bf16.msra.mxu0 0
  %2273 = vmatprep.subr.bf16.mxu0 0
  %2274 = vmatpush1.bf16.msra.mxu0 0
  %2275 = vmatprep.subr.bf16.mxu0 0
  %2276 = vmatpush1.bf16.msra.mxu0 0
  %2277 = vmatprep.subr.bf16.mxu0 0
  %2278 = vmatpush1.bf16.msra.mxu0 0
  %2279 = vmatprep.subr.bf16.mxu0 0
  %2280 = vmatpush1.bf16.msra.mxu0 0
  %2281 = vmatprep.mubr.bf16.mxu0 0
  %2282 = vmatmul.mubr.bf16.gmra.mrb[0].mxu0 %v1946
  %v2283 = vpop.f32.mrb[0].mxu0
  %v2284 = vadd.f32 %v1764, %v2283
  %v2285 = vpop.f32.mrb[0].mxu0
  %v2286 = vadd.f32 %v1768, %v2285
  %v2287 = vpop.f32.mrb[0].mxu0
  %v2288 = vadd.f32 %v1764, %v2287
  %v2289 = vpop.f32.mrb[0].mxu0
  %v2290 = vadd.f32 %v1768, %v2289
  %2291 = vdwg.mxu0
  %v2292 = vmax.f32 %v1983, 0.0
  %v2293 = vmax.f32 %v1985, 0.0
  %v2294 = vmax.f32 %v2026, 0.0
  %v2295 = vmax.f32 %v2028, 0.0
  %v2296 = vmax.f32 %v2069, 0.0
  %v2297 = vmax.f32 %v2071, 0.0
  %v2298 = vmax.f32 %v2112, 0.0
  %v2299 = vmax.f32 %v2114, 0.0
  %v2300 = vmax.f32 %v2155, 0.0
  %v2301 = vmax.f32 %v2157, 0.0
  %v2302 = vmax.f32 %v2198, 0.0
  %v2303 = vmax.f32 %v2200, 0.0
  %v2304 = vmax.f32 %v2241, 0.0
  %v2305 = vmax.f32 %v2243, 0.0
  %v2306 = vmax.f32 %v2284, 0.0
  %v2307 = vmax.f32 %v2286, 0.0
  %v2308 = vmax.f32 %v1987, 0.0
  %v2309 = vmax.f32 %v1989, 0.0
  %v2310 = vmax.f32 %v2030, 0.0
  %v2311 = vmax.f32 %v2032, 0.0
  %v2312 = vmax.f32 %v2073, 0.0
  %v2313 = vmax.f32 %v2075, 0.0
  %v2314 = vmax.f32 %v2116, 0.0
  %v2315 = vmax.f32 %v2118, 0.0
  %v2316 = vmax.f32 %v2159, 0.0
  %v2317 = vmax.f32 %v2161, 0.0
  %v2318 = vmax.f32 %v2202, 0.0
  %v2319 = vmax.f32 %v2204, 0.0
  %v2320 = vmax.f32 %v2245, 0.0
  %v2321 = vmax.f32 %v2247, 0.0
  %v2322 = vmax.f32 %v2288, 0.0
  %v2323 = vmax.f32 %v2290, 0.0
  %v2324 = vpack.c.bf16 %v2308, %v2292
  %v2325 = vpack.c.bf16 %v2309, %v2293
  %v2326 = vpack.c.bf16 %v2310, %v2294
  %v2327 = vpack.c.bf16 %v2311, %v2295
  %v2328 = vpack.c.bf16 %v2312, %v2296
  %v2329 = vpack.c.bf16 %v2313, %v2297
  %v2330 = vpack.c.bf16 %v2314, %v2298
  %v2331 = vpack.c.bf16 %v2315, %v2299
  %v2332 = vpack.c.bf16 %v2316, %v2300
  %v2333 = vpack.c.bf16 %v2317, %v2301
  %v2334 = vpack.c.bf16 %v2318, %v2302
  %v2335 = vpack.c.bf16 %v2319, %v2303
  %v2336 = vpack.c.bf16 %v2320, %v2304
  %v2337 = vpack.c.bf16 %v2321, %v2305
  %v2338 = vpack.c.bf16 %v2322, %v2306
  %v2339 = vpack.c.bf16 %v2323, %v2307
  %v2340 = vld [vmem:[%s10] sm:$0xf]
  %v2341 = vld [vmem:[%s10 + $0x4] sm:$0xf]
  %v2342 = vld [vmem:[%s10 + $0x8] sm:$0xf]
  %v2343 = vld [vmem:[%s10 + $0xc] sm:$0xf]
  %v2344 = vld [vmem:[%s10 + $0x10] sm:$0xf]
  %v2345 = vld [vmem:[%s10 + $0x14] sm:$0xf]
  %v2346 = vld [vmem:[%s10 + $0x18] sm:$0xf]
  %v2347 = vld [vmem:[%s10 + $0x1c] sm:$0xf]
  %v2348 = vld [vmem:[%s10 + $0x20] sm:$0xf]
  %v2349 = vld [vmem:[%s10 + $0x24] sm:$0xf]
  %v2350 = vld [vmem:[%s10 + $0x28] sm:$0xf]
  %v2351 = vld [vmem:[%s10 + $0x2c] sm:$0xf]
  %v2352 = vld [vmem:[%s10 + $0x30] sm:$0xf]
  %v2353 = vld [vmem:[%s10 + $0x34] sm:$0xf]
  %v2354 = vld [vmem:[%s10 + $0x38] sm:$0xf]
  %v2355 = vld [vmem:[%s10 + $0x3c] sm:$0xf]
  %v2356 = vld [vmem:[%s10 + $0x40] sm:$0xf]
  %v2357 = vld [vmem:[%s10 + $0x44] sm:$0xf]
  %v2358 = vld [vmem:[%s10 + $0x48] sm:$0xf]
  %v2359 = vld [vmem:[%s10 + $0x4c] sm:$0xf]
  %v2360 = vld [vmem:[%s10 + $0x50] sm:$0xf]
  %v2361 = vld [vmem:[%s10 + $0x54] sm:$0xf]
  %v2362 = vld [vmem:[%s10 + $0x58] sm:$0xf]
  %v2363 = vld [vmem:[%s10 + $0x5c] sm:$0xf]
  %v2364 = vld [vmem:[%s10 + $0x60] sm:$0xf]
  %v2365 = vld [vmem:[%s10 + $0x64] sm:$0xf]
  %v2366 = vld [vmem:[%s10 + $0x68] sm:$0xf]
  %v2367 = vld [vmem:[%s10 + $0x6c] sm:$0xf]
  %v2368 = vld [vmem:[%s10 + $0x70] sm:$0xf]
  %v2369 = vld [vmem:[%s10 + $0x74] sm:$0xf]
  %v2370 = vld [vmem:[%s10 + $0x78] sm:$0xf]
  %v2371 = vld [vmem:[%s10 + $0x7c] sm:$0xf]
  %v2372 = vld [vmem:[%s10 + $0x80] sm:$0xf]
  %v2373 = vld [vmem:[%s10 + $0x84] sm:$0xf]
  %v2374 = vld [vmem:[%s10 + $0x88] sm:$0xf]
  %v2375 = vld [vmem:[%s10 + $0x8c] sm:$0xf]
  %v2376 = vld [vmem:[%s10 + $0x90] sm:$0xf]
  %v2377 = vld [vmem:[%s10 + $0x94] sm:$0xf]
  %v2378 = vld [vmem:[%s10 + $0x98] sm:$0xf]
  %v2379 = vld [vmem:[%s10 + $0x9c] sm:$0xf]
  %v2380 = vld [vmem:[%s10 + $0xa0] sm:$0xf]
  %v2381 = vld [vmem:[%s10 + $0xa4] sm:$0xf]
  %v2382 = vld [vmem:[%s10 + $0xa8] sm:$0xf]
  %v2383 = vld [vmem:[%s10 + $0xac] sm:$0xf]
  %v2384 = vld [vmem:[%s10 + $0xb0] sm:$0xf]
  %v2385 = vld [vmem:[%s10 + $0xb4] sm:$0xf]
  %v2386 = vld [vmem:[%s10 + $0xb8] sm:$0xf]
  %v2387 = vld [vmem:[%s10 + $0xbc] sm:$0xf]
  %v2388 = vld [vmem:[%s10 + $0xc0] sm:$0xf]
  %v2389 = vld [vmem:[%s10 + $0xc4] sm:$0xf]
  %v2390 = vld [vmem:[%s10 + $0xc8] sm:$0xf]
  %v2391 = vld [vmem:[%s10 + $0xcc] sm:$0xf]
  %v2392 = vld [vmem:[%s10 + $0xd0] sm:$0xf]
  %v2393 = vld [vmem:[%s10 + $0xd4] sm:$0xf]
  %v2394 = vld [vmem:[%s10 + $0xd8] sm:$0xf]
  %v2395 = vld [vmem:[%s10 + $0xdc] sm:$0xf]
  %v2396 = vld [vmem:[%s10 + $0xe0] sm:$0xf]
  %v2397 = vld [vmem:[%s10 + $0xe4] sm:$0xf]
  %v2398 = vld [vmem:[%s10 + $0xe8] sm:$0xf]
  %v2399 = vld [vmem:[%s10 + $0xec] sm:$0xf]
  %v2400 = vld [vmem:[%s10 + $0xf0] sm:$0xf]
  %v2401 = vld [vmem:[%s10 + $0xf4] sm:$0xf]
  %v2402 = vld [vmem:[%s10 + $0xf8] sm:$0xf]
  %v2403 = vld [vmem:[%s10 + $0xfc] sm:$0xf]
  %v2404 = vld [vmem:[%s10 + $0x100] sm:$0xf]
  %v2405 = vld [vmem:[%s10 + $0x104] sm:$0xf]
  %v2406 = vld [vmem:[%s10 + $0x108] sm:$0xf]
  %v2407 = vld [vmem:[%s10 + $0x10c] sm:$0xf]
  %v2408 = vld [vmem:[%s10 + $0x110] sm:$0xf]
  %v2409 = vld [vmem:[%s10 + $0x114] sm:$0xf]
  %v2410 = vld [vmem:[%s10 + $0x118] sm:$0xf]
  %v2411 = vld [vmem:[%s10 + $0x11c] sm:$0xf]
  %v2412 = vld [vmem:[%s10 + $0x120] sm:$0xf]
  %v2413 = vld [vmem:[%s10 + $0x124] sm:$0xf]
  %v2414 = vld [vmem:[%s10 + $0x128] sm:$0xf]
  %v2415 = vld [vmem:[%s10 + $0x12c] sm:$0xf]
  %v2416 = vld [vmem:[%s10 + $0x130] sm:$0xf]
  %v2417 = vld [vmem:[%s10 + $0x134] sm:$0xf]
  %v2418 = vld [vmem:[%s10 + $0x138] sm:$0xf]
  %v2419 = vld [vmem:[%s10 + $0x13c] sm:$0xf]
  %v2420 = vld [vmem:[%s10 + $0x140] sm:$0xf]
  %v2421 = vld [vmem:[%s10 + $0x144] sm:$0xf]
  %v2422 = vld [vmem:[%s10 + $0x148] sm:$0xf]
  %v2423 = vld [vmem:[%s10 + $0x14c] sm:$0xf]
  %v2424 = vld [vmem:[%s10 + $0x150] sm:$0xf]
  %v2425 = vld [vmem:[%s10 + $0x154] sm:$0xf]
  %v2426 = vld [vmem:[%s10 + $0x158] sm:$0xf]
  %v2427 = vld [vmem:[%s10 + $0x15c] sm:$0xf]
  %v2428 = vld [vmem:[%s10 + $0x160] sm:$0xf]
  %v2429 = vld [vmem:[%s10 + $0x164] sm:$0xf]
  %v2430 = vld [vmem:[%s10 + $0x168] sm:$0xf]
  %v2431 = vld [vmem:[%s10 + $0x16c] sm:$0xf]
  %v2432 = vld [vmem:[%s10 + $0x170] sm:$0xf]
  %v2433 = vld [vmem:[%s10 + $0x174] sm:$0xf]
  %v2434 = vld [vmem:[%s10 + $0x178] sm:$0xf]
  %v2435 = vld [vmem:[%s10 + $0x17c] sm:$0xf]
  %v2436 = vld [vmem:[%s10 + $0x180] sm:$0xf]
  %v2437 = vld [vmem:[%s10 + $0x184] sm:$0xf]
  %v2438 = vld [vmem:[%s10 + $0x188] sm:$0xf]
  %v2439 = vld [vmem:[%s10 + $0x18c] sm:$0xf]
  %v2440 = vld [vmem:[%s10 + $0x190] sm:$0xf]
  %v2441 = vld [vmem:[%s10 + $0x194] sm:$0xf]
  %v2442 = vld [vmem:[%s10 + $0x198] sm:$0xf]
  %v2443 = vld [vmem:[%s10 + $0x19c] sm:$0xf]
  %v2444 = vld [vmem:[%s10 + $0x1a0] sm:$0xf]
  %v2445 = vld [vmem:[%s10 + $0x1a4] sm:$0xf]
  %v2446 = vld [vmem:[%s10 + $0x1a8] sm:$0xf]
  %v2447 = vld [vmem:[%s10 + $0x1ac] sm:$0xf]
  %v2448 = vld [vmem:[%s10 + $0x1b0] sm:$0xf]
  %v2449 = vld [vmem:[%s10 + $0x1b4] sm:$0xf]
  %v2450 = vld [vmem:[%s10 + $0x1b8] sm:$0xf]
  %v2451 = vld [vmem:[%s10 + $0x1bc] sm:$0xf]
  %v2452 = vld [vmem:[%s10 + $0x1c0] sm:$0xf]
  %v2453 = vld [vmem:[%s10 + $0x1c4] sm:$0xf]
  %v2454 = vld [vmem:[%s10 + $0x1c8] sm:$0xf]
  %v2455 = vld [vmem:[%s10 + $0x1cc] sm:$0xf]
  %v2456 = vld [vmem:[%s10 + $0x1d0] sm:$0xf]
  %v2457 = vld [vmem:[%s10 + $0x1d4] sm:$0xf]
  %v2458 = vld [vmem:[%s10 + $0x1d8] sm:$0xf]
  %v2459 = vld [vmem:[%s10 + $0x1dc] sm:$0xf]
  %v2460 = vld [vmem:[%s10 + $0x1e0] sm:$0xf]
  %v2461 = vld [vmem:[%s10 + $0x1e4] sm:$0xf]
  %v2462 = vld [vmem:[%s10 + $0x1e8] sm:$0xf]
  %v2463 = vld [vmem:[%s10 + $0x1ec] sm:$0xf]
  %v2464 = vld [vmem:[%s10 + $0x1f0] sm:$0xf]
  %v2465 = vld [vmem:[%s10 + $0x1f4] sm:$0xf]
  %v2466 = vld [vmem:[%s10 + $0x1f8] sm:$0xf]
  %v2467 = vld [vmem:[%s10 + $0x1fc] sm:$0xf]
  %v2468 = vld [vmem:[%s10 + $0x200] sm:$0xf]
  %v2469 = vld [vmem:[%s10 + $0x204] sm:$0xf]
  %v2470 = vld [vmem:[%s10 + $0x208] sm:$0xf]
  %v2471 = vld [vmem:[%s10 + $0x20c] sm:$0xf]
  %v2472 = vld [vmem:[%s10 + $0x210] sm:$0xf]
  %v2473 = vld [vmem:[%s10 + $0x214] sm:$0xf]
  %v2474 = vld [vmem:[%s10 + $0x218] sm:$0xf]
  %v2475 = vld [vmem:[%s10 + $0x21c] sm:$0xf]
  %v2476 = vld [vmem:[%s10 + $0x220] sm:$0xf]
  %v2477 = vld [vmem:[%s10 + $0x224] sm:$0xf]
  %v2478 = vld [vmem:[%s10 + $0x228] sm:$0xf]
  %v2479 = vld [vmem:[%s10 + $0x22c] sm:$0xf]
  %v2480 = vld [vmem:[%s10 + $0x230] sm:$0xf]
  %v2481 = vld [vmem:[%s10 + $0x234] sm:$0xf]
  %v2482 = vld [vmem:[%s10 + $0x238] sm:$0xf]
  %v2483 = vld [vmem:[%s10 + $0x23c] sm:$0xf]
  %v2484 = vld [vmem:[%s10 + $0x240] sm:$0xf]
  %v2485 = vld [vmem:[%s10 + $0x244] sm:$0xf]
  %v2486 = vld [vmem:[%s10 + $0x248] sm:$0xf]
  %v2487 = vld [vmem:[%s10 + $0x24c] sm:$0xf]
  %v2488 = vld [vmem:[%s10 + $0x250] sm:$0xf]
  %v2489 = vld [vmem:[%s10 + $0x254] sm:$0xf]
  %v2490 = vld [vmem:[%s10 + $0x258] sm:$0xf]
  %v2491 = vld [vmem:[%s10 + $0x25c] sm:$0xf]
  %v2492 = vld [vmem:[%s10 + $0x260] sm:$0xf]
  %v2493 = vld [vmem:[%s10 + $0x264] sm:$0xf]
  %v2494 = vld [vmem:[%s10 + $0x268] sm:$0xf]
  %v2495 = vld [vmem:[%s10 + $0x26c] sm:$0xf]
  %v2496 = vld [vmem:[%s10 + $0x270] sm:$0xf]
  %v2497 = vld [vmem:[%s10 + $0x274] sm:$0xf]
  %v2498 = vld [vmem:[%s10 + $0x278] sm:$0xf]
  %v2499 = vld [vmem:[%s10 + $0x27c] sm:$0xf]
  %v2500 = vld [vmem:[%s10 + $0x280] sm:$0xf]
  %v2501 = vld [vmem:[%s10 + $0x284] sm:$0xf]
  %v2502 = vld [vmem:[%s10 + $0x288] sm:$0xf]
  %v2503 = vld [vmem:[%s10 + $0x28c] sm:$0xf]
  %v2504 = vld [vmem:[%s10 + $0x290] sm:$0xf]
  %v2505 = vld [vmem:[%s10 + $0x294] sm:$0xf]
  %v2506 = vld [vmem:[%s10 + $0x298] sm:$0xf]
  %v2507 = vld [vmem:[%s10 + $0x29c] sm:$0xf]
  %v2508 = vld [vmem:[%s10 + $0x2a0] sm:$0xf]
  %v2509 = vld [vmem:[%s10 + $0x2a4] sm:$0xf]
  %v2510 = vld [vmem:[%s10 + $0x2a8] sm:$0xf]
  %v2511 = vld [vmem:[%s10 + $0x2ac] sm:$0xf]
  %v2512 = vld [vmem:[%s10 + $0x2b0] sm:$0xf]
  %v2513 = vld [vmem:[%s10 + $0x2b4] sm:$0xf]
  %v2514 = vld [vmem:[%s10 + $0x2b8] sm:$0xf]
  %v2515 = vld [vmem:[%s10 + $0x2bc] sm:$0xf]
  %v2516 = vld [vmem:[%s10 + $0x2c0] sm:$0xf]
  %v2517 = vld [vmem:[%s10 + $0x2c4] sm:$0xf]
  %v2518 = vld [vmem:[%s10 + $0x2c8] sm:$0xf]
  %v2519 = vld [vmem:[%s10 + $0x2cc] sm:$0xf]
  %v2520 = vld [vmem:[%s10 + $0x2d0] sm:$0xf]
  %v2521 = vld [vmem:[%s10 + $0x2d4] sm:$0xf]
  %v2522 = vld [vmem:[%s10 + $0x2d8] sm:$0xf]
  %v2523 = vld [vmem:[%s10 + $0x2dc] sm:$0xf]
  %v2524 = vld [vmem:[%s10 + $0x2e0] sm:$0xf]
  %v2525 = vld [vmem:[%s10 + $0x2e4] sm:$0xf]
  %v2526 = vld [vmem:[%s10 + $0x2e8] sm:$0xf]
  %v2527 = vld [vmem:[%s10 + $0x2ec] sm:$0xf]
  %v2528 = vld [vmem:[%s10 + $0x2f0] sm:$0xf]
  %v2529 = vld [vmem:[%s10 + $0x2f4] sm:$0xf]
  %v2530 = vld [vmem:[%s10 + $0x2f8] sm:$0xf]
  %v2531 = vld [vmem:[%s10 + $0x2fc] sm:$0xf]
  %v2532 = vld [vmem:[%s10 + $0x300] sm:$0xf]
  %v2533 = vld [vmem:[%s10 + $0x304] sm:$0xf]
  %v2534 = vld [vmem:[%s10 + $0x308] sm:$0xf]
  %v2535 = vld [vmem:[%s10 + $0x30c] sm:$0xf]
  %v2536 = vld [vmem:[%s10 + $0x310] sm:$0xf]
  %v2537 = vld [vmem:[%s10 + $0x314] sm:$0xf]
  %v2538 = vld [vmem:[%s10 + $0x318] sm:$0xf]
  %v2539 = vld [vmem:[%s10 + $0x31c] sm:$0xf]
  %v2540 = vld [vmem:[%s10 + $0x320] sm:$0xf]
  %v2541 = vld [vmem:[%s10 + $0x324] sm:$0xf]
  %v2542 = vld [vmem:[%s10 + $0x328] sm:$0xf]
  %v2543 = vld [vmem:[%s10 + $0x32c] sm:$0xf]
  %v2544 = vld [vmem:[%s10 + $0x330] sm:$0xf]
  %v2545 = vld [vmem:[%s10 + $0x334] sm:$0xf]
  %v2546 = vld [vmem:[%s10 + $0x338] sm:$0xf]
  %v2547 = vld [vmem:[%s10 + $0x33c] sm:$0xf]
  %v2548 = vld [vmem:[%s10 + $0x340] sm:$0xf]
  %v2549 = vld [vmem:[%s10 + $0x344] sm:$0xf]
  %v2550 = vld [vmem:[%s10 + $0x348] sm:$0xf]
  %v2551 = vld [vmem:[%s10 + $0x34c] sm:$0xf]
  %v2552 = vld [vmem:[%s10 + $0x350] sm:$0xf]
  %v2553 = vld [vmem:[%s10 + $0x354] sm:$0xf]
  %v2554 = vld [vmem:[%s10 + $0x358] sm:$0xf]
  %v2555 = vld [vmem:[%s10 + $0x35c] sm:$0xf]
  %v2556 = vld [vmem:[%s10 + $0x360] sm:$0xf]
  %v2557 = vld [vmem:[%s10 + $0x364] sm:$0xf]
  %v2558 = vld [vmem:[%s10 + $0x368] sm:$0xf]
  %v2559 = vld [vmem:[%s10 + $0x36c] sm:$0xf]
  %v2560 = vld [vmem:[%s10 + $0x370] sm:$0xf]
  %v2561 = vld [vmem:[%s10 + $0x374] sm:$0xf]
  %v2562 = vld [vmem:[%s10 + $0x378] sm:$0xf]
  %v2563 = vld [vmem:[%s10 + $0x37c] sm:$0xf]
  %v2564 = vld [vmem:[%s10 + $0x380] sm:$0xf]
  %v2565 = vld [vmem:[%s10 + $0x384] sm:$0xf]
  %v2566 = vld [vmem:[%s10 + $0x388] sm:$0xf]
  %v2567 = vld [vmem:[%s10 + $0x38c] sm:$0xf]
  %v2568 = vld [vmem:[%s10 + $0x390] sm:$0xf]
  %v2569 = vld [vmem:[%s10 + $0x394] sm:$0xf]
  %v2570 = vld [vmem:[%s10 + $0x398] sm:$0xf]
  %v2571 = vld [vmem:[%s10 + $0x39c] sm:$0xf]
  %v2572 = vld [vmem:[%s10 + $0x3a0] sm:$0xf]
  %v2573 = vld [vmem:[%s10 + $0x3a4] sm:$0xf]
  %v2574 = vld [vmem:[%s10 + $0x3a8] sm:$0xf]
  %v2575 = vld [vmem:[%s10 + $0x3ac] sm:$0xf]
  %v2576 = vld [vmem:[%s10 + $0x3b0] sm:$0xf]
  %v2577 = vld [vmem:[%s10 + $0x3b4] sm:$0xf]
  %v2578 = vld [vmem:[%s10 + $0x3b8] sm:$0xf]
  %v2579 = vld [vmem:[%s10 + $0x3bc] sm:$0xf]
  %v2580 = vld [vmem:[%s10 + $0x3c0] sm:$0xf]
  %v2581 = vld [vmem:[%s10 + $0x3c4] sm:$0xf]
  %v2582 = vld [vmem:[%s10 + $0x3c8] sm:$0xf]
  %v2583 = vld [vmem:[%s10 + $0x3cc] sm:$0xf]
  %v2584 = vld [vmem:[%s10 + $0x3d0] sm:$0xf]
  %v2585 = vld [vmem:[%s10 + $0x3d4] sm:$0xf]
  %v2586 = vld [vmem:[%s10 + $0x3d8] sm:$0xf]
  %v2587 = vld [vmem:[%s10 + $0x3dc] sm:$0xf]
  %v2588 = vld [vmem:[%s10 + $0x3e0] sm:$0xf]
  %v2589 = vld [vmem:[%s10 + $0x3e4] sm:$0xf]
  %v2590 = vld [vmem:[%s10 + $0x3e8] sm:$0xf]
  %v2591 = vld [vmem:[%s10 + $0x3ec] sm:$0xf]
  %v2592 = vld [vmem:[%s10 + $0x3f0] sm:$0xf]
  %v2593 = vld [vmem:[%s10 + $0x3f4] sm:$0xf]
  %v2594 = vld [vmem:[%s10 + $0x3f8] sm:$0xf]
  %v2595 = vld [vmem:[%s10 + $0x3fc] sm:$0xf]
  %v2596 = vld [vmem:[%s11] sm:$0x1]
  %v2598 = vlaneseq
  %v2599 = vshrl.u32 %v2598, 7
  %v2600 = vsub.s32 0, %v2599
  %v2601 = vrot.slane %v2596, %v2600
  %v2859 = vunpack.c.l.b16 %v2340
  %v2860 = vunpack.c.l.b16 %v2341
  %v2861 = vunpack.c.l.b16 %v2342
  %v2862 = vunpack.c.l.b16 %v2343
  %v2863 = vunpack.c.l.b16 %v2344
  %v2864 = vunpack.c.l.b16 %v2345
  %v2865 = vunpack.c.l.b16 %v2346
  %v2866 = vunpack.c.l.b16 %v2347
  %v2867 = vunpack.c.l.b16 %v2348
  %v2868 = vunpack.c.l.b16 %v2349
  %v2869 = vunpack.c.l.b16 %v2350
  %v2870 = vunpack.c.l.b16 %v2351
  %v2871 = vunpack.c.l.b16 %v2352
  %v2872 = vunpack.c.l.b16 %v2353
  %v2873 = vunpack.c.l.b16 %v2354
  %v2874 = vunpack.c.l.b16 %v2355
  %v2875 = vunpack.c.l.b16 %v2356
  %v2876 = vunpack.c.l.b16 %v2357
  %v2877 = vunpack.c.l.b16 %v2358
  %v2878 = vunpack.c.l.b16 %v2359
  %v2879 = vunpack.c.l.b16 %v2360
  %v2880 = vunpack.c.l.b16 %v2361
  %v2881 = vunpack.c.l.b16 %v2362
  %v2882 = vunpack.c.l.b16 %v2363
  %v2883 = vunpack.c.l.b16 %v2364
  %v2884 = vunpack.c.l.b16 %v2365
  %v2885 = vunpack.c.l.b16 %v2366
  %v2886 = vunpack.c.l.b16 %v2367
  %v2887 = vunpack.c.l.b16 %v2368
  %v2888 = vunpack.c.l.b16 %v2369
  %v2889 = vunpack.c.l.b16 %v2370
  %v2890 = vunpack.c.l.b16 %v2371
  %v2891 = vunpack.c.l.b16 %v2372
  %v2892 = vunpack.c.l.b16 %v2373
  %v2893 = vunpack.c.l.b16 %v2374
  %v2894 = vunpack.c.l.b16 %v2375
  %v2895 = vunpack.c.l.b16 %v2376
  %v2896 = vunpack.c.l.b16 %v2377
  %v2897 = vunpack.c.l.b16 %v2378
  %v2898 = vunpack.c.l.b16 %v2379
  %v2899 = vunpack.c.l.b16 %v2380
  %v2900 = vunpack.c.l.b16 %v2381
  %v2901 = vunpack.c.l.b16 %v2382
  %v2902 = vunpack.c.l.b16 %v2383
  %v2903 = vunpack.c.l.b16 %v2384
  %v2904 = vunpack.c.l.b16 %v2385
  %v2905 = vunpack.c.l.b16 %v2386
  %v2906 = vunpack.c.l.b16 %v2387
  %v2907 = vunpack.c.l.b16 %v2388
  %v2908 = vunpack.c.l.b16 %v2389
  %v2909 = vunpack.c.l.b16 %v2390
  %v2910 = vunpack.c.l.b16 %v2391
  %v2911 = vunpack.c.l.b16 %v2392
  %v2912 = vunpack.c.l.b16 %v2393
  %v2913 = vunpack.c.l.b16 %v2394
  %v2914 = vunpack.c.l.b16 %v2395
  %v2915 = vunpack.c.l.b16 %v2396
  %v2916 = vunpack.c.l.b16 %v2397
  %v2917 = vunpack.c.l.b16 %v2398
  %v2918 = vunpack.c.l.b16 %v2399
  %v2919 = vunpack.c.l.b16 %v2400
  %v2920 = vunpack.c.l.b16 %v2401
  %v2921 = vunpack.c.l.b16 %v2402
  %v2922 = vunpack.c.l.b16 %v2403
  %v2923 = vunpack.c.l.b16 %v2404
  %v2924 = vunpack.c.l.b16 %v2405
  %v2925 = vunpack.c.l.b16 %v2406
  %v2926 = vunpack.c.l.b16 %v2407
  %v2927 = vunpack.c.l.b16 %v2408
  %v2928 = vunpack.c.l.b16 %v2409
  %v2929 = vunpack.c.l.b16 %v2410
  %v2930 = vunpack.c.l.b16 %v2411
  %v2931 = vunpack.c.l.b16 %v2412
  %v2932 = vunpack.c.l.b16 %v2413
  %v2933 = vunpack.c.l.b16 %v2414
  %v2934 = vunpack.c.l.b16 %v2415
  %v2935 = vunpack.c.l.b16 %v2416
  %v2936 = vunpack.c.l.b16 %v2417
  %v2937 = vunpack.c.l.b16 %v2418
  %v2938 = vunpack.c.l.b16 %v2419
  %v2939 = vunpack.c.l.b16 %v2420
  %v2940 = vunpack.c.l.b16 %v2421
  %v2941 = vunpack.c.l.b16 %v2422
  %v2942 = vunpack.c.l.b16 %v2423
  %v2943 = vunpack.c.l.b16 %v2424
  %v2944 = vunpack.c.l.b16 %v2425
  %v2945 = vunpack.c.l.b16 %v2426
  %v2946 = vunpack.c.l.b16 %v2427
  %v2947 = vunpack.c.l.b16 %v2428
  %v2948 = vunpack.c.l.b16 %v2429
  %v2949 = vunpack.c.l.b16 %v2430
  %v2950 = vunpack.c.l.b16 %v2431
  %v2951 = vunpack.c.l.b16 %v2432
  %v2952 = vunpack.c.l.b16 %v2433
  %v2953 = vunpack.c.l.b16 %v2434
  %v2954 = vunpack.c.l.b16 %v2435
  %v2955 = vunpack.c.l.b16 %v2436
  %v2956 = vunpack.c.l.b16 %v2437
  %v2957 = vunpack.c.l.b16 %v2438
  %v2958 = vunpack.c.l.b16 %v2439
  %v2959 = vunpack.c.l.b16 %v2440
  %v2960 = vunpack.c.l.b16 %v2441
  %v2961 = vunpack.c.l.b16 %v2442
  %v2962 = vunpack.c.l.b16 %v2443
  %v2963 = vunpack.c.l.b16 %v2444
  %v2964 = vunpack.c.l.b16 %v2445
  %v2965 = vunpack.c.l.b16 %v2446
  %v2966 = vunpack.c.l.b16 %v2447
  %v2967 = vunpack.c.l.b16 %v2448
  %v2968 = vunpack.c.l.b16 %v2449
  %v2969 = vunpack.c.l.b16 %v2450
  %v2970 = vunpack.c.l.b16 %v2451
  %v2971 = vunpack.c.l.b16 %v2452
  %v2972 = vunpack.c.l.b16 %v2453
  %v2973 = vunpack.c.l.b16 %v2454
  %v2974 = vunpack.c.l.b16 %v2455
  %v2975 = vunpack.c.l.b16 %v2456
  %v2976 = vunpack.c.l.b16 %v2457
  %v2977 = vunpack.c.l.b16 %v2458
  %v2978 = vunpack.c.l.b16 %v2459
  %v2979 = vunpack.c.l.b16 %v2460
  %v2980 = vunpack.c.l.b16 %v2461
  %v2981 = vunpack.c.l.b16 %v2462
  %v2982 = vunpack.c.l.b16 %v2463
  %v2983 = vunpack.c.l.b16 %v2464
  %v2984 = vunpack.c.l.b16 %v2465
  %v2985 = vunpack.c.l.b16 %v2466
  %v2986 = vunpack.c.l.b16 %v2467
  %v2987 = vunpack.c.l.b16 %v2468
  %v2988 = vunpack.c.l.b16 %v2469
  %v2989 = vunpack.c.l.b16 %v2470
  %v2990 = vunpack.c.l.b16 %v2471
  %v2991 = vunpack.c.l.b16 %v2472
  %v2992 = vunpack.c.l.b16 %v2473
  %v2993 = vunpack.c.l.b16 %v2474
  %v2994 = vunpack.c.l.b16 %v2475
  %v2995 = vunpack.c.l.b16 %v2476
  %v2996 = vunpack.c.l.b16 %v2477
  %v2997 = vunpack.c.l.b16 %v2478
  %v2998 = vunpack.c.l.b16 %v2479
  %v2999 = vunpack.c.l.b16 %v2480
  %v3000 = vunpack.c.l.b16 %v2481
  %v3001 = vunpack.c.l.b16 %v2482
  %v3002 = vunpack.c.l.b16 %v2483
  %v3003 = vunpack.c.l.b16 %v2484
  %v3004 = vunpack.c.l.b16 %v2485
  %v3005 = vunpack.c.l.b16 %v2486
  %v3006 = vunpack.c.l.b16 %v2487
  %v3007 = vunpack.c.l.b16 %v2488
  %v3008 = vunpack.c.l.b16 %v2489
  %v3009 = vunpack.c.l.b16 %v2490
  %v3010 = vunpack.c.l.b16 %v2491
  %v3011 = vunpack.c.l.b16 %v2492
  %v3012 = vunpack.c.l.b16 %v2493
  %v3013 = vunpack.c.l.b16 %v2494
  %v3014 = vunpack.c.l.b16 %v2495
  %v3015 = vunpack.c.l.b16 %v2496
  %v3016 = vunpack.c.l.b16 %v2497
  %v3017 = vunpack.c.l.b16 %v2498
  %v3018 = vunpack.c.l.b16 %v2499
  %v3019 = vunpack.c.l.b16 %v2500
  %v3020 = vunpack.c.l.b16 %v2501
  %v3021 = vunpack.c.l.b16 %v2502
  %v3022 = vunpack.c.l.b16 %v2503
  %v3023 = vunpack.c.l.b16 %v2504
  %v3024 = vunpack.c.l.b16 %v2505
  %v3025 = vunpack.c.l.b16 %v2506
  %v3026 = vunpack.c.l.b16 %v2507
  %v3027 = vunpack.c.l.b16 %v2508
  %v3028 = vunpack.c.l.b16 %v2509
  %v3029 = vunpack.c.l.b16 %v2510
  %v3030 = vunpack.c.l.b16 %v2511
  %v3031 = vunpack.c.l.b16 %v2512
  %v3032 = vunpack.c.l.b16 %v2513
  %v3033 = vunpack.c.l.b16 %v2514
  %v3034 = vunpack.c.l.b16 %v2515
  %v3035 = vunpack.c.l.b16 %v2516
  %v3036 = vunpack.c.l.b16 %v2517
  %v3037 = vunpack.c.l.b16 %v2518
  %v3038 = vunpack.c.l.b16 %v2519
  %v3039 = vunpack.c.l.b16 %v2520
  %v3040 = vunpack.c.l.b16 %v2521
  %v3041 = vunpack.c.l.b16 %v2522
  %v3042 = vunpack.c.l.b16 %v2523
  %v3043 = vunpack.c.l.b16 %v2524
  %v3044 = vunpack.c.l.b16 %v2525
  %v3045 = vunpack.c.l.b16 %v2526
  %v3046 = vunpack.c.l.b16 %v2527
  %v3047 = vunpack.c.l.b16 %v2528
  %v3048 = vunpack.c.l.b16 %v2529
  %v3049 = vunpack.c.l.b16 %v2530
  %v3050 = vunpack.c.l.b16 %v2531
  %v3051 = vunpack.c.l.b16 %v2532
  %v3052 = vunpack.c.l.b16 %v2533
  %v3053 = vunpack.c.l.b16 %v2534
  %v3054 = vunpack.c.l.b16 %v2535
  %v3055 = vunpack.c.l.b16 %v2536
  %v3056 = vunpack.c.l.b16 %v2537
  %v3057 = vunpack.c.l.b16 %v2538
  %v3058 = vunpack.c.l.b16 %v2539
  %v3059 = vunpack.c.l.b16 %v2540
  %v3060 = vunpack.c.l.b16 %v2541
  %v3061 = vunpack.c.l.b16 %v2542
  %v3062 = vunpack.c.l.b16 %v2543
  %v3063 = vunpack.c.l.b16 %v2544
  %v3064 = vunpack.c.l.b16 %v2545
  %v3065 = vunpack.c.l.b16 %v2546
  %v3066 = vunpack.c.l.b16 %v2547
  %v3067 = vunpack.c.l.b16 %v2548
  %v3068 = vunpack.c.l.b16 %v2549
  %v3069 = vunpack.c.l.b16 %v2550
  %v3070 = vunpack.c.l.b16 %v2551
  %v3071 = vunpack.c.l.b16 %v2552
  %v3072 = vunpack.c.l.b16 %v2553
  %v3073 = vunpack.c.l.b16 %v2554
  %v3074 = vunpack.c.l.b16 %v2555
  %v3075 = vunpack.c.l.b16 %v2556
  %v3076 = vunpack.c.l.b16 %v2557
  %v3077 = vunpack.c.l.b16 %v2558
  %v3078 = vunpack.c.l.b16 %v2559
  %v3079 = vunpack.c.l.b16 %v2560
  %v3080 = vunpack.c.l.b16 %v2561
  %v3081 = vunpack.c.l.b16 %v2562
  %v3082 = vunpack.c.l.b16 %v2563
  %v3083 = vunpack.c.l.b16 %v2564
  %v3084 = vunpack.c.l.b16 %v2565
  %v3085 = vunpack.c.l.b16 %v2566
  %v3086 = vunpack.c.l.b16 %v2567
  %v3087 = vunpack.c.l.b16 %v2568
  %v3088 = vunpack.c.l.b16 %v2569
  %v3089 = vunpack.c.l.b16 %v2570
  %v3090 = vunpack.c.l.b16 %v2571
  %v3091 = vunpack.c.l.b16 %v2572
  %v3092 = vunpack.c.l.b16 %v2573
  %v3093 = vunpack.c.l.b16 %v2574
  %v3094 = vunpack.c.l.b16 %v2575
  %v3095 = vunpack.c.l.b16 %v2576
  %v3096 = vunpack.c.l.b16 %v2577
  %v3097 = vunpack.c.l.b16 %v2578
  %v3098 = vunpack.c.l.b16 %v2579
  %v3099 = vunpack.c.l.b16 %v2580
  %v3100 = vunpack.c.l.b16 %v2581
  %v3101 = vunpack.c.l.b16 %v2582
  %v3102 = vunpack.c.l.b16 %v2583
  %v3103 = vunpack.c.l.b16 %v2584
  %v3104 = vunpack.c.l.b16 %v2585
  %v3105 = vunpack.c.l.b16 %v2586
  %v3106 = vunpack.c.l.b16 %v2587
  %v3107 = vunpack.c.l.b16 %v2588
  %v3108 = vunpack.c.l.b16 %v2589
  %v3109 = vunpack.c.l.b16 %v2590
  %v3110 = vunpack.c.l.b16 %v2591
  %v3111 = vunpack.c.l.b16 %v2592
  %v3112 = vunpack.c.l.b16 %v2593
  %v3113 = vunpack.c.l.b16 %v2594
  %v3114 = vunpack.c.l.b16 %v2595
  %v3115 = vpack.c.b16 %v2860, %v2859
  %v3116 = vpack.c.b16 %v2862, %v2861
  %v3117 = vpack.c.b16 %v2864, %v2863
  %v3118 = vpack.c.b16 %v2866, %v2865
  %v3119 = vpack.c.b16 %v2868, %v2867
  %v3120 = vpack.c.b16 %v2870, %v2869
  %v3121 = vpack.c.b16 %v2872, %v2871
  %v3122 = vpack.c.b16 %v2874, %v2873
  %v3123 = vpack.c.b16 %v2876, %v2875
  %v3124 = vpack.c.b16 %v2878, %v2877
  %v3125 = vpack.c.b16 %v2880, %v2879
  %v3126 = vpack.c.b16 %v2882, %v2881
  %v3127 = vpack.c.b16 %v2884, %v2883
  %v3128 = vpack.c.b16 %v2886, %v2885
  %v3129 = vpack.c.b16 %v2888, %v2887
  %v3130 = vpack.c.b16 %v2890, %v2889
  %v3131 = vpack.c.b16 %v2892, %v2891
  %v3132 = vpack.c.b16 %v2894, %v2893
  %v3133 = vpack.c.b16 %v2896, %v2895
  %v3134 = vpack.c.b16 %v2898, %v2897
  %v3135 = vpack.c.b16 %v2900, %v2899
  %v3136 = vpack.c.b16 %v2902, %v2901
  %v3137 = vpack.c.b16 %v2904, %v2903
  %v3138 = vpack.c.b16 %v2906, %v2905
  %v3139 = vpack.c.b16 %v2908, %v2907
  %v3140 = vpack.c.b16 %v2910, %v2909
  %v3141 = vpack.c.b16 %v2912, %v2911
  %v3142 = vpack.c.b16 %v2914, %v2913
  %v3143 = vpack.c.b16 %v2916, %v2915
  %v3144 = vpack.c.b16 %v2918, %v2917
  %v3145 = vpack.c.b16 %v2920, %v2919
  %v3146 = vpack.c.b16 %v2922, %v2921
  %v3147 = vpack.c.b16 %v2924, %v2923
  %v3148 = vpack.c.b16 %v2926, %v2925
  %v3149 = vpack.c.b16 %v2928, %v2927
  %v3150 = vpack.c.b16 %v2930, %v2929
  %v3151 = vpack.c.b16 %v2932, %v2931
  %v3152 = vpack.c.b16 %v2934, %v2933
  %v3153 = vpack.c.b16 %v2936, %v2935
  %v3154 = vpack.c.b16 %v2938, %v2937
  %v3155 = vpack.c.b16 %v2940, %v2939
  %v3156 = vpack.c.b16 %v2942, %v2941
  %v3157 = vpack.c.b16 %v2944, %v2943
  %v3158 = vpack.c.b16 %v2946, %v2945
  %v3159 = vpack.c.b16 %v2948, %v2947
  %v3160 = vpack.c.b16 %v2950, %v2949
  %v3161 = vpack.c.b16 %v2952, %v2951
  %v3162 = vpack.c.b16 %v2954, %v2953
  %v3163 = vpack.c.b16 %v2956, %v2955
  %v3164 = vpack.c.b16 %v2958, %v2957
  %v3165 = vpack.c.b16 %v2960, %v2959
  %v3166 = vpack.c.b16 %v2962, %v2961
  %v3167 = vpack.c.b16 %v2964, %v2963
  %v3168 = vpack.c.b16 %v2966, %v2965
  %v3169 = vpack.c.b16 %v2968, %v2967
  %v3170 = vpack.c.b16 %v2970, %v2969
  %v3171 = vpack.c.b16 %v2972, %v2971
  %v3172 = vpack.c.b16 %v2974, %v2973
  %v3173 = vpack.c.b16 %v2976, %v2975
  %v3174 = vpack.c.b16 %v2978, %v2977
  %v3175 = vpack.c.b16 %v2980, %v2979
  %v3176 = vpack.c.b16 %v2982, %v2981
  %v3177 = vpack.c.b16 %v2984, %v2983
  %v3178 = vpack.c.b16 %v2986, %v2985
  %v3179 = vpack.c.b16 %v2988, %v2987
  %v3180 = vpack.c.b16 %v2990, %v2989
  %v3181 = vpack.c.b16 %v2992, %v2991
  %v3182 = vpack.c.b16 %v2994, %v2993
  %v3183 = vpack.c.b16 %v2996, %v2995
  %v3184 = vpack.c.b16 %v2998, %v2997
  %v3185 = vpack.c.b16 %v3000, %v2999
  %v3186 = vpack.c.b16 %v3002, %v3001
  %v3187 = vpack.c.b16 %v3004, %v3003
  %v3188 = vpack.c.b16 %v3006, %v3005
  %v3189 = vpack.c.b16 %v3008, %v3007
  %v3190 = vpack.c.b16 %v3010, %v3009
  %v3191 = vpack.c.b16 %v3012, %v3011
  %v3192 = vpack.c.b16 %v3014, %v3013
  %v3193 = vpack.c.b16 %v3016, %v3015
  %v3194 = vpack.c.b16 %v3018, %v3017
  %v3195 = vpack.c.b16 %v3020, %v3019
  %v3196 = vpack.c.b16 %v3022, %v3021
  %v3197 = vpack.c.b16 %v3024, %v3023
  %v3198 = vpack.c.b16 %v3026, %v3025
  %v3199 = vpack.c.b16 %v3028, %v3027
  %v3200 = vpack.c.b16 %v3030, %v3029
  %v3201 = vpack.c.b16 %v3032, %v3031
  %v3202 = vpack.c.b16 %v3034, %v3033
  %v3203 = vpack.c.b16 %v3036, %v3035
  %v3204 = vpack.c.b16 %v3038, %v3037
  %v3205 = vpack.c.b16 %v3040, %v3039
  %v3206 = vpack.c.b16 %v3042, %v3041
  %v3207 = vpack.c.b16 %v3044, %v3043
  %v3208 = vpack.c.b16 %v3046, %v3045
  %v3209 = vpack.c.b16 %v3048, %v3047
  %v3210 = vpack.c.b16 %v3050, %v3049
  %v3211 = vpack.c.b16 %v3052, %v3051
  %v3212 = vpack.c.b16 %v3054, %v3053
  %v3213 = vpack.c.b16 %v3056, %v3055
  %v3214 = vpack.c.b16 %v3058, %v3057
  %v3215 = vpack.c.b16 %v3060, %v3059
  %v3216 = vpack.c.b16 %v3062, %v3061
  %v3217 = vpack.c.b16 %v3064, %v3063
  %v3218 = vpack.c.b16 %v3066, %v3065
  %v3219 = vpack.c.b16 %v3068, %v3067
  %v3220 = vpack.c.b16 %v3070, %v3069
  %v3221 = vpack.c.b16 %v3072, %v3071
  %v3222 = vpack.c.b16 %v3074, %v3073
  %v3223 = vpack.c.b16 %v3076, %v3075
  %v3224 = vpack.c.b16 %v3078, %v3077
  %v3225 = vpack.c.b16 %v3080, %v3079
  %v3226 = vpack.c.b16 %v3082, %v3081
  %v3227 = vpack.c.b16 %v3084, %v3083
  %v3228 = vpack.c.b16 %v3086, %v3085
  %v3229 = vpack.c.b16 %v3088, %v3087
  %v3230 = vpack.c.b16 %v3090, %v3089
  %v3231 = vpack.c.b16 %v3092, %v3091
  %v3232 = vpack.c.b16 %v3094, %v3093
  %v3233 = vpack.c.b16 %v3096, %v3095
  %v3234 = vpack.c.b16 %v3098, %v3097
  %v3235 = vpack.c.b16 %v3100, %v3099
  %v3236 = vpack.c.b16 %v3102, %v3101
  %v3237 = vpack.c.b16 %v3104, %v3103
  %v3238 = vpack.c.b16 %v3106, %v3105
  %v3239 = vpack.c.b16 %v3108, %v3107
  %v3240 = vpack.c.b16 %v3110, %v3109
  %v3241 = vpack.c.b16 %v3112, %v3111
  %v3242 = vpack.c.b16 %v3114, %v3113
  %3371 = vmatprep.subr.bf16.mxu0 0
  %3372 = vmatpush1.bf16.msra.mxu0 %v3115
  %3373 = vmatprep.subr.bf16.mxu0 0
  %3374 = vmatpush1.bf16.msra.mxu0 %v3116
  %3375 = vmatprep.subr.bf16.mxu0 0
  %3376 = vmatpush1.bf16.msra.mxu0 %v3117
  %3377 = vmatprep.subr.bf16.mxu0 0
  %3378 = vmatpush1.bf16.msra.mxu0 %v3118
  %3379 = vmatprep.subr.bf16.mxu0 0
  %3380 = vmatpush1.bf16.msra.mxu0 %v3119
  %3381 = vmatprep.subr.bf16.mxu0 0
  %3382 = vmatpush1.bf16.msra.mxu0 %v3120
  %3383 = vmatprep.subr.bf16.mxu0 0
  %3384 = vmatpush1.bf16.msra.mxu0 %v3121
  %3385 = vmatprep.subr.bf16.mxu0 0
  %3386 = vmatpush1.bf16.msra.mxu0 %v3122
  %3387 = vmatprep.subr.bf16.mxu0 0
  %3388 = vmatpush1.bf16.msra.mxu0 %v3123
  %3389 = vmatprep.subr.bf16.mxu0 0
  %3390 = vmatpush1.bf16.msra.mxu0 %v3124
  %3391 = vmatprep.subr.bf16.mxu0 0
  %3392 = vmatpush1.bf16.msra.mxu0 %v3125
  %3393 = vmatprep.subr.bf16.mxu0 0
  %3394 = vmatpush1.bf16.msra.mxu0 %v3126
  %3395 = vmatprep.subr.bf16.mxu0 0
  %3396 = vmatpush1.bf16.msra.mxu0 %v3127
  %3397 = vmatprep.subr.bf16.mxu0 0
  %3398 = vmatpush1.bf16.msra.mxu0 %v3128
  %3399 = vmatprep.subr.bf16.mxu0 0
  %3400 = vmatpush1.bf16.msra.mxu0 %v3129
  %3401 = vmatprep.subr.bf16.mxu0 0
  %3402 = vmatpush1.bf16.msra.mxu0 %v3130
  %3403 = vmatprep.mubr.bf16.mxu0 %v2325
  %3404 = vmatmul.mubr.bf16.gmra.mrb[0].mxu0 %v2324
  %v3405 = vpop.f32.mrb[0].mxu0
  %v3406 = vadd.f32 %v2601, %v3405
  %v3407 = vpop.f32.mrb[0].mxu0
  %v3408 = vpop.f32.mrb[0].mxu0
  %v3409 = vadd.f32 %v2601, %v3408
  %v3410 = vpop.f32.mrb[0].mxu0
  %3411 = vdwg.mxu0
  %3412 = vmatprep.subr.bf16.mxu0 0
  %3413 = vmatpush1.bf16.msra.mxu0 %v3131
  %3414 = vmatprep.subr.bf16.mxu0 0
  %3415 = vmatpush1.bf16.msra.mxu0 %v3132
  %3416 = vmatprep.subr.bf16.mxu0 0
  %3417 = vmatpush1.bf16.msra.mxu0 %v3133
  %3418 = vmatprep.subr.bf16.mxu0 0
  %3419 = vmatpush1.bf16.msra.mxu0 %v3134
  %3420 = vmatprep.subr.bf16.mxu0 0
  %3421 = vmatpush1.bf16.msra.mxu0 %v3135
  %3422 = vmatprep.subr.bf16.mxu0 0
  %3423 = vmatpush1.bf16.msra.mxu0 %v3136
  %3424 = vmatprep.subr.bf16.mxu0 0
  %3425 = vmatpush1.bf16.msra.mxu0 %v3137
  %3426 = vmatprep.subr.bf16.mxu0 0
  %3427 = vmatpush1.bf16.msra.mxu0 %v3138
  %3428 = vmatprep.subr.bf16.mxu0 0
  %3429 = vmatpush1.bf16.msra.mxu0 %v3139
  %3430 = vmatprep.subr.bf16.mxu0 0
  %3431 = vmatpush1.bf16.msra.mxu0 %v3140
  %3432 = vmatprep.subr.bf16.mxu0 0
  %3433 = vmatpush1.bf16.msra.mxu0 %v3141
  %3434 = vmatprep.subr.bf16.mxu0 0
  %3435 = vmatpush1.bf16.msra.mxu0 %v3142
  %3436 = vmatprep.subr.bf16.mxu0 0
  %3437 = vmatpush1.bf16.msra.mxu0 %v3143
  %3438 = vmatprep.subr.bf16.mxu0 0
  %3439 = vmatpush1.bf16.msra.mxu0 %v3144
  %3440 = vmatprep.subr.bf16.mxu0 0
  %3441 = vmatpush1.bf16.msra.mxu0 %v3145
  %3442 = vmatprep.subr.bf16.mxu0 0
  %3443 = vmatpush1.bf16.msra.mxu0 %v3146
  %3444 = vmatprep.mubr.bf16.mxu0 %v2327
  %3445 = vmatmul.mubr.bf16.gmra.mrb[0].mxu0 %v2326
  %v3446 = vpop.f32.mrb[0].mxu0
  %v3447 = vadd.f32 %v3406, %v3446
  %v3448 = vpop.f32.mrb[0].mxu0
  %v3449 = vpop.f32.mrb[0].mxu0
  %v3450 = vadd.f32 %v3409, %v3449
  %v3451 = vpop.f32.mrb[0].mxu0
  %3452 = vdwg.mxu0
  %3453 = vmatprep.subr.bf16.mxu0 0
  %3454 = vmatpush1.bf16.msra.mxu0 %v3147
  %3455 = vmatprep.subr.bf16.mxu0 0
  %3456 = vmatpush1.bf16.msra.mxu0 %v3148
  %3457 = vmatprep.subr.bf16.mxu0 0
  %3458 = vmatpush1.bf16.msra.mxu0 %v3149
  %3459 = vmatprep.subr.bf16.mxu0 0
  %3460 = vmatpush1.bf16.msra.mxu0 %v3150
  %3461 = vmatprep.subr.bf16.mxu0 0
  %3462 = vmatpush1.bf16.msra.mxu0 %v3151
  %3463 = vmatprep.subr.bf16.mxu0 0
  %3464 = vmatpush1.bf16.msra.mxu0 %v3152
  %3465 = vmatprep.subr.bf16.mxu0 0
  %3466 = vmatpush1.bf16.msra.mxu0 %v3153
  %3467 = vmatprep.subr.bf16.mxu0 0
  %3468 = vmatpush1.bf16.msra.mxu0 %v3154
  %3469 = vmatprep.subr.bf16.mxu0 0
  %3470 = vmatpush1.bf16.msra.mxu0 %v3155
  %3471 = vmatprep.subr.bf16.mxu0 0
  %3472 = vmatpush1.bf16.msra.mxu0 %v3156
  %3473 = vmatprep.subr.bf16.mxu0 0
  %3474 = vmatpush1.bf16.msra.mxu0 %v3157
  %3475 = vmatprep.subr.bf16.mxu0 0
  %3476 = vmatpush1.bf16.msra.mxu0 %v3158
  %3477 = vmatprep.subr.bf16.mxu0 0
  %3478 = vmatpush1.bf16.msra.mxu0 %v3159
  %3479 = vmatprep.subr.bf16.mxu0 0
  %3480 = vmatpush1.bf16.msra.mxu0 %v3160
  %3481 = vmatprep.subr.bf16.mxu0 0
  %3482 = vmatpush1.bf16.msra.mxu0 %v3161
  %3483 = vmatprep.subr.bf16.mxu0 0
  %3484 = vmatpush1.bf16.msra.mxu0 %v3162
  %3485 = vmatprep.mubr.bf16.mxu0 %v2329
  %3486 = vmatmul.mubr.bf16.gmra.mrb[0].mxu0 %v2328
  %v3487 = vpop.f32.mrb[0].mxu0
  %v3488 = vadd.f32 %v3447, %v3487
  %v3489 = vpop.f32.mrb[0].mxu0
  %v3490 = vpop.f32.mrb[0].mxu0
  %v3491 = vadd.f32 %v3450, %v3490
  %v3492 = vpop.f32.mrb[0].mxu0
  %3493 = vdwg.mxu0
  %3494 = vmatprep.subr.bf16.mxu0 0
  %3495 = vmatpush1.bf16.msra.mxu0 %v3163
  %3496 = vmatprep.subr.bf16.mxu0 0
  %3497 = vmatpush1.bf16.msra.mxu0 %v3164
  %3498 = vmatprep.subr.bf16.mxu0 0
  %3499 = vmatpush1.bf16.msra.mxu0 %v3165
  %3500 = vmatprep.subr.bf16.mxu0 0
  %3501 = vmatpush1.bf16.msra.mxu0 %v3166
  %3502 = vmatprep.subr.bf16.mxu0 0
  %3503 = vmatpush1.bf16.msra.mxu0 %v3167
  %3504 = vmatprep.subr.bf16.mxu0 0
  %3505 = vmatpush1.bf16.msra.mxu0 %v3168
  %3506 = vmatprep.subr.bf16.mxu0 0
  %3507 = vmatpush1.bf16.msra.mxu0 %v3169
  %3508 = vmatprep.subr.bf16.mxu0 0
  %3509 = vmatpush1.bf16.msra.mxu0 %v3170
  %3510 = vmatprep.subr.bf16.mxu0 0
  %3511 = vmatpush1.bf16.msra.mxu0 %v3171
  %3512 = vmatprep.subr.bf16.mxu0 0
  %3513 = vmatpush1.bf16.msra.mxu0 %v3172
  %3514 = vmatprep.subr.bf16.mxu0 0
  %3515 = vmatpush1.bf16.msra.mxu0 %v3173
  %3516 = vmatprep.subr.bf16.mxu0 0
  %3517 = vmatpush1.bf16.msra.mxu0 %v3174
  %3518 = vmatprep.subr.bf16.mxu0 0
  %3519 = vmatpush1.bf16.msra.mxu0 %v3175
  %3520 = vmatprep.subr.bf16.mxu0 0
  %3521 = vmatpush1.bf16.msra.mxu0 %v3176
  %3522 = vmatprep.subr.bf16.mxu0 0
  %3523 = vmatpush1.bf16.msra.mxu0 %v3177
  %3524 = vmatprep.subr.bf16.mxu0 0
  %3525 = vmatpush1.bf16.msra.mxu0 %v3178
  %3526 = vmatprep.mubr.bf16.mxu0 %v2331
  %3527 = vmatmul.mubr.bf16.gmra.mrb[0].mxu0 %v2330
  %v3528 = vpop.f32.mrb[0].mxu0
  %v3529 = vadd.f32 %v3488, %v3528
  %v3530 = vpop.f32.mrb[0].mxu0
  %v3531 = vpop.f32.mrb[0].mxu0
  %v3532 = vadd.f32 %v3491, %v3531
  %v3533 = vpop.f32.mrb[0].mxu0
  %3534 = vdwg.mxu0
  %3535 = vmatprep.subr.bf16.mxu0 0
  %3536 = vmatpush1.bf16.msra.mxu0 %v3179
  %3537 = vmatprep.subr.bf16.mxu0 0
  %3538 = vmatpush1.bf16.msra.mxu0 %v3180
  %3539 = vmatprep.subr.bf16.mxu0 0
  %3540 = vmatpush1.bf16.msra.mxu0 %v3181
  %3541 = vmatprep.subr.bf16.mxu0 0
  %3542 = vmatpush1.bf16.msra.mxu0 %v3182
  %3543 = vmatprep.subr.bf16.mxu0 0
  %3544 = vmatpush1.bf16.msra.mxu0 %v3183
  %3545 = vmatprep.subr.bf16.mxu0 0
  %3546 = vmatpush1.bf16.msra.mxu0 %v3184
  %3547 = vmatprep.subr.bf16.mxu0 0
  %3548 = vmatpush1.bf16.msra.mxu0 %v3185
  %3549 = vmatprep.subr.bf16.mxu0 0
  %3550 = vmatpush1.bf16.msra.mxu0 %v3186
  %3551 = vmatprep.subr.bf16.mxu0 0
  %3552 = vmatpush1.bf16.msra.mxu0 %v3187
  %3553 = vmatprep.subr.bf16.mxu0 0
  %3554 = vmatpush1.bf16.msra.mxu0 %v3188
  %3555 = vmatprep.subr.bf16.mxu0 0
  %3556 = vmatpush1.bf16.msra.mxu0 %v3189
  %3557 = vmatprep.subr.bf16.mxu0 0
  %3558 = vmatpush1.bf16.msra.mxu0 %v3190
  %3559 = vmatprep.subr.bf16.mxu0 0
  %3560 = vmatpush1.bf16.msra.mxu0 %v3191
  %3561 = vmatprep.subr.bf16.mxu0 0
  %3562 = vmatpush1.bf16.msra.mxu0 %v3192
  %3563 = vmatprep.subr.bf16.mxu0 0
  %3564 = vmatpush1.bf16.msra.mxu0 %v3193
  %3565 = vmatprep.subr.bf16.mxu0 0
  %3566 = vmatpush1.bf16.msra.mxu0 %v3194
  %3567 = vmatprep.mubr.bf16.mxu0 %v2333
  %3568 = vmatmul.mubr.bf16.gmra.mrb[0].mxu0 %v2332
  %v3569 = vpop.f32.mrb[0].mxu0
  %v3570 = vadd.f32 %v3529, %v3569
  %v3571 = vpop.f32.mrb[0].mxu0
  %v3572 = vpop.f32.mrb[0].mxu0
  %v3573 = vadd.f32 %v3532, %v3572
  %v3574 = vpop.f32.mrb[0].mxu0
  %3575 = vdwg.mxu0
  %3576 = vmatprep.subr.bf16.mxu0 0
  %3577 = vmatpush1.bf16.msra.mxu0 %v3195
  %3578 = vmatprep.subr.bf16.mxu0 0
  %3579 = vmatpush1.bf16.msra.mxu0 %v3196
  %3580 = vmatprep.subr.bf16.mxu0 0
  %3581 = vmatpush1.bf16.msra.mxu0 %v3197
  %3582 = vmatprep.subr.bf16.mxu0 0
  %3583 = vmatpush1.bf16.msra.mxu0 %v3198
  %3584 = vmatprep.subr.bf16.mxu0 0
  %3585 = vmatpush1.bf16.msra.mxu0 %v3199
  %3586 = vmatprep.subr.bf16.mxu0 0
  %3587 = vmatpush1.bf16.msra.mxu0 %v3200
  %3588 = vmatprep.subr.bf16.mxu0 0
  %3589 = vmatpush1.bf16.msra.mxu0 %v3201
  %3590 = vmatprep.subr.bf16.mxu0 0
  %3591 = vmatpush1.bf16.msra.mxu0 %v3202
  %3592 = vmatprep.subr.bf16.mxu0 0
  %3593 = vmatpush1.bf16.msra.mxu0 %v3203
  %3594 = vmatprep.subr.bf16.mxu0 0
  %3595 = vmatpush1.bf16.msra.mxu0 %v3204
  %3596 = vmatprep.subr.bf16.mxu0 0
  %3597 = vmatpush1.bf16.msra.mxu0 %v3205
  %3598 = vmatprep.subr.bf16.mxu0 0
  %3599 = vmatpush1.bf16.msra.mxu0 %v3206
  %3600 = vmatprep.subr.bf16.mxu0 0
  %3601 = vmatpush1.bf16.msra.mxu0 %v3207
  %3602 = vmatprep.subr.bf16.mxu0 0
  %3603 = vmatpush1.bf16.msra.mxu0 %v3208
  %3604 = vmatprep.subr.bf16.mxu0 0
  %3605 = vmatpush1.bf16.msra.mxu0 %v3209
  %3606 = vmatprep.subr.bf16.mxu0 0
  %3607 = vmatpush1.bf16.msra.mxu0 %v3210
  %3608 = vmatprep.mubr.bf16.mxu0 %v2335
  %3609 = vmatmul.mubr.bf16.gmra.mrb[0].mxu0 %v2334
  %v3610 = vpop.f32.mrb[0].mxu0
  %v3611 = vadd.f32 %v3570, %v3610
  %v3612 = vpop.f32.mrb[0].mxu0
  %v3613 = vpop.f32.mrb[0].mxu0
  %v3614 = vadd.f32 %v3573, %v3613
  %v3615 = vpop.f32.mrb[0].mxu0
  %3616 = vdwg.mxu0
  %3617 = vmatprep.subr.bf16.mxu0 0
  %3618 = vmatpush1.bf16.msra.mxu0 %v3211
  %3619 = vmatprep.subr.bf16.mxu0 0
  %3620 = vmatpush1.bf16.msra.mxu0 %v3212
  %3621 = vmatprep.subr.bf16.mxu0 0
  %3622 = vmatpush1.bf16.msra.mxu0 %v3213
  %3623 = vmatprep.subr.bf16.mxu0 0
  %3624 = vmatpush1.bf16.msra.mxu0 %v3214
  %3625 = vmatprep.subr.bf16.mxu0 0
  %3626 = vmatpush1.bf16.msra.mxu0 %v3215
  %3627 = vmatprep.subr.bf16.mxu0 0
  %3628 = vmatpush1.bf16.msra.mxu0 %v3216
  %3629 = vmatprep.subr.bf16.mxu0 0
  %3630 = vmatpush1.bf16.msra.mxu0 %v3217
  %3631 = vmatprep.subr.bf16.mxu0 0
  %3632 = vmatpush1.bf16.msra.mxu0 %v3218
  %3633 = vmatprep.subr.bf16.mxu0 0
  %3634 = vmatpush1.bf16.msra.mxu0 %v3219
  %3635 = vmatprep.subr.bf16.mxu0 0
  %3636 = vmatpush1.bf16.msra.mxu0 %v3220
  %3637 = vmatprep.subr.bf16.mxu0 0
  %3638 = vmatpush1.bf16.msra.mxu0 %v3221
  %3639 = vmatprep.subr.bf16.mxu0 0
  %3640 = vmatpush1.bf16.msra.mxu0 %v3222
  %3641 = vmatprep.subr.bf16.mxu0 0
  %3642 = vmatpush1.bf16.msra.mxu0 %v3223
  %3643 = vmatprep.subr.bf16.mxu0 0
  %3644 = vmatpush1.bf16.msra.mxu0 %v3224
  %3645 = vmatprep.subr.bf16.mxu0 0
  %3646 = vmatpush1.bf16.msra.mxu0 %v3225
  %3647 = vmatprep.subr.bf16.mxu0 0
  %3648 = vmatpush1.bf16.msra.mxu0 %v3226
  %3649 = vmatprep.mubr.bf16.mxu0 %v2337
  %3650 = vmatmul.mubr.bf16.gmra.mrb[0].mxu0 %v2336
  %v3651 = vpop.f32.mrb[0].mxu0
  %v3652 = vadd.f32 %v3611, %v3651
  %v3653 = vpop.f32.mrb[0].mxu0
  %v3654 = vpop.f32.mrb[0].mxu0
  %v3655 = vadd.f32 %v3614, %v3654
  %v3656 = vpop.f32.mrb[0].mxu0
  %3657 = vdwg.mxu0
  %3658 = vmatprep.subr.bf16.mxu0 0
  %3659 = vmatpush1.bf16.msra.mxu0 %v3227
  %3660 = vmatprep.subr.bf16.mxu0 0
  %3661 = vmatpush1.bf16.msra.mxu0 %v3228
  %3662 = vmatprep.subr.bf16.mxu0 0
  %3663 = vmatpush1.bf16.msra.mxu0 %v3229
  %3664 = vmatprep.subr.bf16.mxu0 0
  %3665 = vmatpush1.bf16.msra.mxu0 %v3230
  %3666 = vmatprep.subr.bf16.mxu0 0
  %3667 = vmatpush1.bf16.msra.mxu0 %v3231
  %3668 = vmatprep.subr.bf16.mxu0 0
  %3669 = vmatpush1.bf16.msra.mxu0 %v3232
  %3670 = vmatprep.subr.bf16.mxu0 0
  %3671 = vmatpush1.bf16.msra.mxu0 %v3233
  %3672 = vmatprep.subr.bf16.mxu0 0
  %3673 = vmatpush1.bf16.msra.mxu0 %v3234
  %3674 = vmatprep.subr.bf16.mxu0 0
  %3675 = vmatpush1.bf16.msra.mxu0 %v3235
  %3676 = vmatprep.subr.bf16.mxu0 0
  %3677 = vmatpush1.bf16.msra.mxu0 %v3236
  %3678 = vmatprep.subr.bf16.mxu0 0
  %3679 = vmatpush1.bf16.msra.mxu0 %v3237
  %3680 = vmatprep.subr.bf16.mxu0 0
  %3681 = vmatpush1.bf16.msra.mxu0 %v3238
  %3682 = vmatprep.subr.bf16.mxu0 0
  %3683 = vmatpush1.bf16.msra.mxu0 %v3239
  %3684 = vmatprep.subr.bf16.mxu0 0
  %3685 = vmatpush1.bf16.msra.mxu0 %v3240
  %3686 = vmatprep.subr.bf16.mxu0 0
  %3687 = vmatpush1.bf16.msra.mxu0 %v3241
  %3688 = vmatprep.subr.bf16.mxu0 0
  %3689 = vmatpush1.bf16.msra.mxu0 %v3242
  %3690 = vmatprep.mubr.bf16.mxu0 %v2339
  %3691 = vmatmul.mubr.bf16.gmra.mrb[0].mxu0 %v2338
  %v3692 = vpop.f32.mrb[0].mxu0
  %v3693 = vadd.f32 %v3652, %v3692
  %v3694 = vpop.f32.mrb[0].mxu0
  %v3695 = vpop.f32.mrb[0].mxu0
  %v3696 = vadd.f32 %v3655, %v3695
  %v3697 = vpop.f32.mrb[0].mxu0
  %3698 = vdwg.mxu0
  %v3699 = vadd.f32 %v1666, %v3693
  %v3700 = vadd.f32 %v1667, %v3696
  %v3701 = vld [vmem:[%s12] sm:$0x1]
  %v3702 = vld [vmem:[%s13] sm:$0x1]
  %v3703 = vsel %vm74, %v3699, 0.0
  %3704 = vadd.xlane.f32.xlu0 %v3703
  %v3705 = vpop.xlane.xlu0 %3704
  %v3706 = vsel %vm74, %v3700, 0.0
  %3707 = vadd.xlane.f32.xlu0 %v3706
  %v3708 = vpop.xlane.xlu0 %3707
  %v3709 = vmul.f32 %v3705, %v1631
  %v3710 = vmul.f32 %v3708, %v1631
  %v3711 = vsub.f32 %v3699, %v3709
  %v3712 = vsub.f32 %v3700, %v3710
  %v3713 = vmul.f32 %v3711, %v3711
  %v3714 = vmul.f32 %v3712, %v3712
  %v3715 = vsel %vm74, %v3713, 0.0
  %3716 = vadd.xlane.f32.xlu0 %v3715
  %v3717 = vpop.xlane.xlu0 %3716
  %v3718 = vsel %vm74, %v3714, 0.0
  %3719 = vadd.xlane.f32.xlu0 %v3718
  %v3720 = vpop.xlane.xlu0 %3719
  %v3721 = vmul.f32 %v3717, %v1631
  %v3722 = vmul.f32 %v3720, %v1631
  %v3723 = vadd.f32 %v3721, 1e-05
  %v3724 = vadd.f32 %v3722, 1e-05
  %v3725 = vrsqrt.pop %v3723
  %v3726 = vrsqrt.pop %v3724
  %v3727 = vmul.f32 %v3711, %v3725
  %v3728 = vmul.f32 %v3712, %v3726
  %v3730 = vlaneseq
  %v3731 = vshrl.u32 %v3730, 7
  %v3732 = vsub.s32 0, %v3731
  %v3733 = vrot.slane %v3701, %v3732
  %v3735 = vmul.f32 %v3727, %v3733
  %v3736 = vmul.f32 %v3728, %v3733
  %v3738 = vlaneseq
  %v3739 = vshrl.u32 %v3738, 7
  %v3740 = vsub.s32 0, %v3739
  %v3741 = vrot.slane %v3702, %v3740
  %v3743 = vadd.f32 %v3735, %v3741
  %v3744 = vadd.f32 %v3736, %v3741
  %s3745 = scalar_lea.vmem %s2, 32
  %v3746 = vld [vmem:[%s3745] sm:$0xff]
  %v3747 = vld [vmem:[%s3745 + $0x8] sm:$0xff]
  %v3748 = vld [vmem:[%s3745 + $0x10] sm:$0xff]
  %v3749 = vld [vmem:[%s3745 + $0x18] sm:$0xff]
  %s3750 = scalar_lea.vmem %s3, 1
  %v3751 = vld [vmem:[%s3750] sm:$0x1]
  %v3753 = vlaneseq
  %v3754 = vshrl.u32 %v3753, 7
  %v3755 = vsub.s32 0, %v3754
  %v3756 = vrot.slane %v3751, %v3755
  %v3759 = vsel %vm74, %v3743, 0
  %v3762 = vsel %vm74, %v3744, 0
  %3764 = vmatprep.subr.mxu0 0.0
  %3765 = vmatpush1.msra.mxu0 %v3746
  %3766 = vmatprep.subr.mxu0 0.0
  %3767 = vmatpush1.msra.mxu0 %v3747
  %3768 = vmatprep.subr.mxu0 0.0
  %3769 = vmatpush1.msra.mxu0 %v3748
  %3770 = vmatprep.subr.mxu0 0.0
  %3771 = vmatpush1.msra.mxu0 %v3749
  %3772 = vmatprep.subr.mxu0 0.0
  %3773 = vmatpush1.msra.mxu0 0.0
  %3774 = vmatprep.subr.mxu0 0.0
  %3775 = vmatpush1.msra.mxu0 0.0
  %3776 = vmatprep.subr.mxu0 0.0
  %3777 = vmatpush1.msra.mxu0 0.0
  %3778 = vmatprep.subr.mxu0 0.0
  %3779 = vmatpush1.msra.mxu0 0.0
  %3780 = vmatprep.subr.mxu0 0.0
  %3781 = vmatpush1.msra.mxu0 0.0
  %3782 = vmatprep.subr.mxu0 0.0
  %3783 = vmatpush1.msra.mxu0 0.0
  %3784 = vmatprep.subr.mxu0 0.0
  %3785 = vmatpush1.msra.mxu0 0.0
  %3786 = vmatprep.subr.mxu0 0.0
  %3787 = vmatpush1.msra.mxu0 0.0
  %3788 = vmatprep.subr.mxu0 0.0
  %3789 = vmatpush1.msra.mxu0 0.0
  %3790 = vmatprep.subr.mxu0 0.0
  %3791 = vmatpush1.msra.mxu0 0.0
  %3792 = vmatprep.subr.mxu0 0.0
  %3793 = vmatpush1.msra.mxu0 0.0
  %3794 = vmatprep.subr.mxu0 0.0
  %3795 = vmatpush1.msra.mxu0 0.0
  %3796 = vmatprep.subr.mxu0 0.0
  %3797 = vmatpush1.msra.mxu0 0.0
  %3798 = vmatprep.subr.mxu0 0.0
  %3799 = vmatpush1.msra.mxu0 0.0
  %3800 = vmatprep.subr.mxu0 0.0
  %3801 = vmatpush1.msra.mxu0 0.0
  %3802 = vmatprep.subr.mxu0 0.0
  %3803 = vmatpush1.msra.mxu0 0.0
  %3804 = vmatprep.subr.mxu0 0.0
  %3805 = vmatpush1.msra.mxu0 0.0
  %3806 = vmatprep.subr.mxu0 0.0
  %3807 = vmatpush1.msra.mxu0 0.0
  %3808 = vmatprep.subr.mxu0 0.0
  %3809 = vmatpush1.msra.mxu0 0.0
  %3810 = vmatprep.subr.mxu0 0.0
  %3811 = vmatpush1.msra.mxu0 0.0
  %3812 = vmatprep.subr.mxu0 0.0
  %3813 = vmatpush1.msra.mxu0 0.0
  %3814 = vmatprep.subr.mxu0 0.0
  %3815 = vmatpush1.msra.mxu0 0.0
  %3816 = vmatprep.subr.mxu0 0.0
  %3817 = vmatpush1.msra.mxu0 0.0
  %3818 = vmatprep.subr.mxu0 0.0
  %3819 = vmatpush1.msra.mxu0 0.0
  %3820 = vmatprep.subr.mxu0 0.0
  %3821 = vmatpush1.msra.mxu0 0.0
  %3822 = vmatprep.subr.mxu0 0.0
  %3823 = vmatpush1.msra.mxu0 0.0
  %3824 = vmatprep.subr.mxu0 0.0
  %3825 = vmatpush1.msra.mxu0 0.0
  %3826 = vmatprep.subr.mxu0 0.0
  %3827 = vmatpush1.msra.mxu0 0.0
  %3828 = vmatprep.mubr.f32.mxu0 0.0
  %3829 = vmatmul.mubr.f32.gmra.mrb[0].mxu0 %v3759
  %v3830 = vpop.f32.mrb[0].mxu0
  %v3831 = vadd.f32 %v3756, %v3830
  %v3832 = vpop.f32.mrb[0].mxu0
  %3833 = vmatprep.mubr.f32.mxu0 0.0
  %3834 = vmatmul.mubr.f32.gmra.mrb[0].mxu0 %v3762
  %v3835 = vpop.f32.mrb[0].mxu0
  %v3836 = vadd.f32 %v3756, %v3835
  %v3837 = vpop.f32.mrb[0].mxu0
  %3838 = vdwg.mxu0
  %3841 = vrot.lane.b32.xlu0 %v3831, 120
  %v3842 = vpop.permute.xlu0 %3841
  %3843 = vrot.lane.b32.xlu0 %v3836, 120
  %v3844 = vpop.permute.xlu0 %3843
  %3847 = vrot.lane.b32.xlu0 %v3831, 112
  %v3848 = vpop.permute.xlu0 %3847
  %3849 = vrot.lane.b32.xlu0 %v3836, 112
  %v3850 = vpop.permute.xlu0 %3849
  %3853 = vrot.lane.b32.xlu0 %v3831, 104
  %v3854 = vpop.permute.xlu0 %3853
  %3855 = vrot.lane.b32.xlu0 %v3836, 104
  %v3856 = vpop.permute.xlu0 %3855
  %v3859 = vmul.f32 %v3831, 0.35355338
  %v3860 = vmul.f32 %v3836, 0.35355338
  %v3861 = vmul.f32 %v3842, 0.35355338
  %v3862 = vmul.f32 %v3844, 0.35355338
  %v3863 = vmul.f32 %v3848, 0.35355338
  %v3864 = vmul.f32 %v3850, 0.35355338
  %v3865 = vmul.f32 %v3854, 0.35355338
  %v3866 = vmul.f32 %v3856, 0.35355338
  %3867 = vrot.lane.b32.xlu0 %v3831, 96
  %v3868 = vpop.permute.xlu0 %3867
  %v3870 = vsel %vm186, %v3859, 0
  %v3872 = vsel %vm186, %v3868, 0
  %3874 = vmatprep.subr.mxu0 0.0
  %3875 = vmatpush1.xpose.msra.mxu0 %v3872
  %3876 = vmatprep.subr.mxu0 0.0
  %3877 = vmatpush1.xpose.msra.mxu0 0.0
  %3878 = vmatprep.subr.mxu0 0.0
  %3879 = vmatpush1.xpose.msra.mxu0 0.0
  %3880 = vmatprep.subr.mxu0 0.0
  %3881 = vmatpush1.xpose.msra.mxu0 0.0
  %3882 = vmatprep.subr.mxu0 0.0
  %3883 = vmatpush1.xpose.msra.mxu0 0.0
  %3884 = vmatprep.subr.mxu0 0.0
  %3885 = vmatpush1.xpose.msra.mxu0 0.0
  %3886 = vmatprep.subr.mxu0 0.0
  %3887 = vmatpush1.xpose.msra.mxu0 0.0
  %3888 = vmatprep.subr.mxu0 0.0
  %3889 = vmatpush1.xpose.msra.mxu0 0.0
  %3890 = vmatprep.subr.mxu0 0.0
  %3891 = vmatpush1.xpose.msra.mxu0 0.0
  %3892 = vmatprep.subr.mxu0 0.0
  %3893 = vmatpush1.xpose.msra.mxu0 0.0
  %3894 = vmatprep.subr.mxu0 0.0
  %3895 = vmatpush1.xpose.msra.mxu0 0.0
  %3896 = vmatprep.subr.mxu0 0.0
  %3897 = vmatpush1.xpose.msra.mxu0 0.0
  %3898 = vmatprep.subr.mxu0 0.0
  %3899 = vmatpush1.xpose.msra.mxu0 0.0
  %3900 = vmatprep.subr.mxu0 0.0
  %3901 = vmatpush1.xpose.msra.mxu0 0.0
  %3902 = vmatprep.subr.mxu0 0.0
  %3903 = vmatpush1.xpose.msra.mxu0 0.0
  %3904 = vmatprep.subr.mxu0 0.0
  %3905 = vmatpush1.xpose.msra.mxu0 0.0
  %3906 = vmatprep.subr.mxu0 0.0
  %3907 = vmatpush1.xpose.msra.mxu0 0.0
  %3908 = vmatprep.subr.mxu0 0.0
  %3909 = vmatpush1.xpose.msra.mxu0 0.0
  %3910 = vmatprep.subr.mxu0 0.0
  %3911 = vmatpush1.xpose.msra.mxu0 0.0
  %3912 = vmatprep.subr.mxu0 0.0
  %3913 = vmatpush1.xpose.msra.mxu0 0.0
  %3914 = vmatprep.subr.mxu0 0.0
  %3915 = vmatpush1.xpose.msra.mxu0 0.0
  %3916 = vmatprep.subr.mxu0 0.0
  %3917 = vmatpush1.xpose.msra.mxu0 0.0
  %3918 = vmatprep.subr.mxu0 0.0
  %3919 = vmatpush1.xpose.msra.mxu0 0.0
  %3920 = vmatprep.subr.mxu0 0.0
  %3921 = vmatpush1.xpose.msra.mxu0 0.0
  %3922 = vmatprep.subr.mxu0 0.0
  %3923 = vmatpush1.xpose.msra.mxu0 0.0
  %3924 = vmatprep.subr.mxu0 0.0
  %3925 = vmatpush1.xpose.msra.mxu0 0.0
  %3926 = vmatprep.subr.mxu0 0.0
  %3927 = vmatpush1.xpose.msra.mxu0 0.0
  %3928 = vmatprep.subr.mxu0 0.0
  %3929 = vmatpush1.xpose.msra.mxu0 0.0
  %3930 = vmatprep.subr.mxu0 0.0
  %3931 = vmatpush1.xpose.msra.mxu0 0.0
  %3932 = vmatprep.subr.mxu0 0.0
  %3933 = vmatpush1.xpose.msra.mxu0 0.0
  %3934 = vmatprep.subr.mxu0 0.0
  %3935 = vmatpush1.xpose.msra.mxu0 0.0
  %3936 = vmatprep.subr.mxu0 0.0
  %3937 = vmatpush1.xpose.msra.mxu0 0.0
  %3938 = vmatprep.mubr.f32.mxu0 0.0
  %3939 = vmatmul.mubr.f32.gmra.mrb[0].mxu0 %v3870
  %v3940 = vpop.f32.mrb[0].mxu0
  %v3941 = vadd.f32 0.0, %v3940
  %v3942 = vpop.f32.mrb[0].mxu0
  %3943 = vdwg.mxu0
  %3944 = vrot.lane.b32.xlu0 %v3836, 96
  %v3945 = vpop.permute.xlu0 %3944
  %v3947 = vsel %vm186, %v3860, 0
  %v3949 = vsel %vm186, %v3945, 0
  %3951 = vmatprep.subr.mxu0 0.0
  %3952 = vmatpush1.xpose.msra.mxu0 %v3949
  %3953 = vmatprep.subr.mxu0 0.0
  %3954 = vmatpush1.xpose.msra.mxu0 0.0
  %3955 = vmatprep.subr.mxu0 0.0
  %3956 = vmatpush1.xpose.msra.mxu0 0.0
  %3957 = vmatprep.subr.mxu0 0.0
  %3958 = vmatpush1.xpose.msra.mxu0 0.0
  %3959 = vmatprep.subr.mxu0 0.0
  %3960 = vmatpush1.xpose.msra.mxu0 0.0
  %3961 = vmatprep.subr.mxu0 0.0
  %3962 = vmatpush1.xpose.msra.mxu0 0.0
  %3963 = vmatprep.subr.mxu0 0.0
  %3964 = vmatpush1.xpose.msra.mxu0 0.0
  %3965 = vmatprep.subr.mxu0 0.0
  %3966 = vmatpush1.xpose.msra.mxu0 0.0
  %3967 = vmatprep.subr.mxu0 0.0
  %3968 = vmatpush1.xpose.msra.mxu0 0.0
  %3969 = vmatprep.subr.mxu0 0.0
  %3970 = vmatpush1.xpose.msra.mxu0 0.0
  %3971 = vmatprep.subr.mxu0 0.0
  %3972 = vmatpush1.xpose.msra.mxu0 0.0
  %3973 = vmatprep.subr.mxu0 0.0
  %3974 = vmatpush1.xpose.msra.mxu0 0.0
  %3975 = vmatprep.subr.mxu0 0.0
  %3976 = vmatpush1.xpose.msra.mxu0 0.0
  %3977 = vmatprep.subr.mxu0 0.0
  %3978 = vmatpush1.xpose.msra.mxu0 0.0
  %3979 = vmatprep.subr.mxu0 0.0
  %3980 = vmatpush1.xpose.msra.mxu0 0.0
  %3981 = vmatprep.subr.mxu0 0.0
  %3982 = vmatpush1.xpose.msra.mxu0 0.0
  %3983 = vmatprep.subr.mxu0 0.0
  %3984 = vmatpush1.xpose.msra.mxu0 0.0
  %3985 = vmatprep.subr.mxu0 0.0
  %3986 = vmatpush1.xpose.msra.mxu0 0.0
  %3987 = vmatprep.subr.mxu0 0.0
  %3988 = vmatpush1.xpose.msra.mxu0 0.0
  %3989 = vmatprep.subr.mxu0 0.0
  %3990 = vmatpush1.xpose.msra.mxu0 0.0
  %3991 = vmatprep.subr.mxu0 0.0
  %3992 = vmatpush1.xpose.msra.mxu0 0.0
  %3993 = vmatprep.subr.mxu0 0.0
  %3994 = vmatpush1.xpose.msra.mxu0 0.0
  %3995 = vmatprep.subr.mxu0 0.0
  %3996 = vmatpush1.xpose.msra.mxu0 0.0
  %3997 = vmatprep.subr.mxu0 0.0
  %3998 = vmatpush1.xpose.msra.mxu0 0.0
  %3999 = vmatprep.subr.mxu0 0.0
  %4000 = vmatpush1.xpose.msra.mxu0 0.0
  %4001 = vmatprep.subr.mxu0 0.0
  %4002 = vmatpush1.xpose.msra.mxu0 0.0
  %4003 = vmatprep.subr.mxu0 0.0
  %4004 = vmatpush1.xpose.msra.mxu0 0.0
  %4005 = vmatprep.subr.mxu0 0.0
  %4006 = vmatpush1.xpose.msra.mxu0 0.0
  %4007 = vmatprep.subr.mxu0 0.0
  %4008 = vmatpush1.xpose.msra.mxu0 0.0
  %4009 = vmatprep.subr.mxu0 0.0
  %4010 = vmatpush1.xpose.msra.mxu0 0.0
  %4011 = vmatprep.subr.mxu0 0.0
  %4012 = vmatpush1.xpose.msra.mxu0 0.0
  %4013 = vmatprep.subr.mxu0 0.0
  %4014 = vmatpush1.xpose.msra.mxu0 0.0
  %4015 = vmatprep.mubr.f32.mxu0 0.0
  %4016 = vmatmul.mubr.f32.gmra.mrb[0].mxu0 %v3947
  %v4017 = vpop.f32.mrb[0].mxu0
  %v4018 = vadd.f32 0.0, %v4017
  %v4019 = vpop.f32.mrb[0].mxu0
  %4020 = vdwg.mxu0
  %4021 = vrot.lane.b32.xlu0 %v3842, 96
  %v4022 = vpop.permute.xlu0 %4021
  %v4024 = vsel %vm186, %v3861, 0
  %v4026 = vsel %vm186, %v4022, 0
  %4028 = vmatprep.subr.mxu0 0.0
  %4029 = vmatpush1.xpose.msra.mxu0 %v4026
  %4030 = vmatprep.subr.mxu0 0.0
  %4031 = vmatpush1.xpose.msra.mxu0 0.0
  %4032 = vmatprep.subr.mxu0 0.0
  %4033 = vmatpush1.xpose.msra.mxu0 0.0
  %4034 = vmatprep.subr.mxu0 0.0
  %4035 = vmatpush1.xpose.msra.mxu0 0.0
  %4036 = vmatprep.subr.mxu0 0.0
  %4037 = vmatpush1.xpose.msra.mxu0 0.0
  %4038 = vmatprep.subr.mxu0 0.0
  %4039 = vmatpush1.xpose.msra.mxu0 0.0
  %4040 = vmatprep.subr.mxu0 0.0
  %4041 = vmatpush1.xpose.msra.mxu0 0.0
  %4042 = vmatprep.subr.mxu0 0.0
  %4043 = vmatpush1.xpose.msra.mxu0 0.0
  %4044 = vmatprep.subr.mxu0 0.0
  %4045 = vmatpush1.xpose.msra.mxu0 0.0
  %4046 = vmatprep.subr.mxu0 0.0
  %4047 = vmatpush1.xpose.msra.mxu0 0.0
  %4048 = vmatprep.subr.mxu0 0.0
  %4049 = vmatpush1.xpose.msra.mxu0 0.0
  %4050 = vmatprep.subr.mxu0 0.0
  %4051 = vmatpush1.xpose.msra.mxu0 0.0
  %4052 = vmatprep.subr.mxu0 0.0
  %4053 = vmatpush1.xpose.msra.mxu0 0.0
  %4054 = vmatprep.subr.mxu0 0.0
  %4055 = vmatpush1.xpose.msra.mxu0 0.0
  %4056 = vmatprep.subr.mxu0 0.0
  %4057 = vmatpush1.xpose.msra.mxu0 0.0
  %4058 = vmatprep.subr.mxu0 0.0
  %4059 = vmatpush1.xpose.msra.mxu0 0.0
  %4060 = vmatprep.subr.mxu0 0.0
  %4061 = vmatpush1.xpose.msra.mxu0 0.0
  %4062 = vmatprep.subr.mxu0 0.0
  %4063 = vmatpush1.xpose.msra.mxu0 0.0
  %4064 = vmatprep.subr.mxu0 0.0
  %4065 = vmatpush1.xpose.msra.mxu0 0.0
  %4066 = vmatprep.subr.mxu0 0.0
  %4067 = vmatpush1.xpose.msra.mxu0 0.0
  %4068 = vmatprep.subr.mxu0 0.0
  %4069 = vmatpush1.xpose.msra.mxu0 0.0
  %4070 = vmatprep.subr.mxu0 0.0
  %4071 = vmatpush1.xpose.msra.mxu0 0.0
  %4072 = vmatprep.subr.mxu0 0.0
  %4073 = vmatpush1.xpose.msra.mxu0 0.0
  %4074 = vmatprep.subr.mxu0 0.0
  %4075 = vmatpush1.xpose.msra.mxu0 0.0
  %4076 = vmatprep.subr.mxu0 0.0
  %4077 = vmatpush1.xpose.msra.mxu0 0.0
  %4078 = vmatprep.subr.mxu0 0.0
  %4079 = vmatpush1.xpose.msra.mxu0 0.0
  %4080 = vmatprep.subr.mxu0 0.0
  %4081 = vmatpush1.xpose.msra.mxu0 0.0
  %4082 = vmatprep.subr.mxu0 0.0
  %4083 = vmatpush1.xpose.msra.mxu0 0.0
  %4084 = vmatprep.subr.mxu0 0.0
  %4085 = vmatpush1.xpose.msra.mxu0 0.0
  %4086 = vmatprep.subr.mxu0 0.0
  %4087 = vmatpush1.xpose.msra.mxu0 0.0
  %4088 = vmatprep.subr.mxu0 0.0
  %4089 = vmatpush1.xpose.msra.mxu0 0.0
  %4090 = vmatprep.subr.mxu0 0.0
  %4091 = vmatpush1.xpose.msra.mxu0 0.0
  %4092 = vmatprep.mubr.f32.mxu0 0.0
  %4093 = vmatmul.mubr.f32.gmra.mrb[0].mxu0 %v4024
  %v4094 = vpop.f32.mrb[0].mxu0
  %v4095 = vadd.f32 0.0, %v4094
  %v4096 = vpop.f32.mrb[0].mxu0
  %4097 = vdwg.mxu0
  %4098 = vrot.lane.b32.xlu0 %v3844, 96
  %v4099 = vpop.permute.xlu0 %4098
  %v4101 = vsel %vm186, %v3862, 0
  %v4103 = vsel %vm186, %v4099, 0
  %4105 = vmatprep.subr.mxu0 0.0
  %4106 = vmatpush1.xpose.msra.mxu0 %v4103
  %4107 = vmatprep.subr.mxu0 0.0
  %4108 = vmatpush1.xpose.msra.mxu0 0.0
  %4109 = vmatprep.subr.mxu0 0.0
  %4110 = vmatpush1.xpose.msra.mxu0 0.0
  %4111 = vmatprep.subr.mxu0 0.0
  %4112 = vmatpush1.xpose.msra.mxu0 0.0
  %4113 = vmatprep.subr.mxu0 0.0
  %4114 = vmatpush1.xpose.msra.mxu0 0.0
  %4115 = vmatprep.subr.mxu0 0.0
  %4116 = vmatpush1.xpose.msra.mxu0 0.0
  %4117 = vmatprep.subr.mxu0 0.0
  %4118 = vmatpush1.xpose.msra.mxu0 0.0
  %4119 = vmatprep.subr.mxu0 0.0
  %4120 = vmatpush1.xpose.msra.mxu0 0.0
  %4121 = vmatprep.subr.mxu0 0.0
  %4122 = vmatpush1.xpose.msra.mxu0 0.0
  %4123 = vmatprep.subr.mxu0 0.0
  %4124 = vmatpush1.xpose.msra.mxu0 0.0
  %4125 = vmatprep.subr.mxu0 0.0
  %4126 = vmatpush1.xpose.msra.mxu0 0.0
  %4127 = vmatprep.subr.mxu0 0.0
  %4128 = vmatpush1.xpose.msra.mxu0 0.0
  %4129 = vmatprep.subr.mxu0 0.0
  %4130 = vmatpush1.xpose.msra.mxu0 0.0
  %4131 = vmatprep.subr.mxu0 0.0
  %4132 = vmatpush1.xpose.msra.mxu0 0.0
  %4133 = vmatprep.subr.mxu0 0.0
  %4134 = vmatpush1.xpose.msra.mxu0 0.0
  %4135 = vmatprep.subr.mxu0 0.0
  %4136 = vmatpush1.xpose.msra.mxu0 0.0
  %4137 = vmatprep.subr.mxu0 0.0
  %4138 = vmatpush1.xpose.msra.mxu0 0.0
  %4139 = vmatprep.subr.mxu0 0.0
  %4140 = vmatpush1.xpose.msra.mxu0 0.0
  %4141 = vmatprep.subr.mxu0 0.0
  %4142 = vmatpush1.xpose.msra.mxu0 0.0
  %4143 = vmatprep.subr.mxu0 0.0
  %4144 = vmatpush1.xpose.msra.mxu0 0.0
  %4145 = vmatprep.subr.mxu0 0.0
  %4146 = vmatpush1.xpose.msra.mxu0 0.0
  %4147 = vmatprep.subr.mxu0 0.0
  %4148 = vmatpush1.xpose.msra.mxu0 0.0
  %4149 = vmatprep.subr.mxu0 0.0
  %4150 = vmatpush1.xpose.msra.mxu0 0.0
  %4151 = vmatprep.subr.mxu0 0.0
  %4152 = vmatpush1.xpose.msra.mxu0 0.0
  %4153 = vmatprep.subr.mxu0 0.0
  %4154 = vmatpush1.xpose.msra.mxu0 0.0
  %4155 = vmatprep.subr.mxu0 0.0
  %4156 = vmatpush1.xpose.msra.mxu0 0.0
  %4157 = vmatprep.subr.mxu0 0.0
  %4158 = vmatpush1.xpose.msra.mxu0 0.0
  %4159 = vmatprep.subr.mxu0 0.0
  %4160 = vmatpush1.xpose.msra.mxu0 0.0
  %4161 = vmatprep.subr.mxu0 0.0
  %4162 = vmatpush1.xpose.msra.mxu0 0.0
  %4163 = vmatprep.subr.mxu0 0.0
  %4164 = vmatpush1.xpose.msra.mxu0 0.0
  %4165 = vmatprep.subr.mxu0 0.0
  %4166 = vmatpush1.xpose.msra.mxu0 0.0
  %4167 = vmatprep.subr.mxu0 0.0
  %4168 = vmatpush1.xpose.msra.mxu0 0.0
  %4169 = vmatprep.mubr.f32.mxu0 0.0
  %4170 = vmatmul.mubr.f32.gmra.mrb[0].mxu0 %v4101
  %v4171 = vpop.f32.mrb[0].mxu0
  %v4172 = vadd.f32 0.0, %v4171
  %v4173 = vpop.f32.mrb[0].mxu0
  %4174 = vdwg.mxu0
  %4175 = vrot.lane.b32.xlu0 %v3848, 96
  %v4176 = vpop.permute.xlu0 %4175
  %v4178 = vsel %vm186, %v3863, 0
  %v4180 = vsel %vm186, %v4176, 0
  %4182 = vmatprep.subr.mxu0 0.0
  %4183 = vmatpush1.xpose.msra.mxu0 %v4180
  %4184 = vmatprep.subr.mxu0 0.0
  %4185 = vmatpush1.xpose.msra.mxu0 0.0
  %4186 = vmatprep.subr.mxu0 0.0
  %4187 = vmatpush1.xpose.msra.mxu0 0.0
  %4188 = vmatprep.subr.mxu0 0.0
  %4189 = vmatpush1.xpose.msra.mxu0 0.0
  %4190 = vmatprep.subr.mxu0 0.0
  %4191 = vmatpush1.xpose.msra.mxu0 0.0
  %4192 = vmatprep.subr.mxu0 0.0
  %4193 = vmatpush1.xpose.msra.mxu0 0.0
  %4194 = vmatprep.subr.mxu0 0.0
  %4195 = vmatpush1.xpose.msra.mxu0 0.0
  %4196 = vmatprep.subr.mxu0 0.0
  %4197 = vmatpush1.xpose.msra.mxu0 0.0
  %4198 = vmatprep.subr.mxu0 0.0
  %4199 = vmatpush1.xpose.msra.mxu0 0.0
  %4200 = vmatprep.subr.mxu0 0.0
  %4201 = vmatpush1.xpose.msra.mxu0 0.0
  %4202 = vmatprep.subr.mxu0 0.0
  %4203 = vmatpush1.xpose.msra.mxu0 0.0
  %4204 = vmatprep.subr.mxu0 0.0
  %4205 = vmatpush1.xpose.msra.mxu0 0.0
  %4206 = vmatprep.subr.mxu0 0.0
  %4207 = vmatpush1.xpose.msra.mxu0 0.0
  %4208 = vmatprep.subr.mxu0 0.0
  %4209 = vmatpush1.xpose.msra.mxu0 0.0
  %4210 = vmatprep.subr.mxu0 0.0
  %4211 = vmatpush1.xpose.msra.mxu0 0.0
  %4212 = vmatprep.subr.mxu0 0.0
  %4213 = vmatpush1.xpose.msra.mxu0 0.0
  %4214 = vmatprep.subr.mxu0 0.0
  %4215 = vmatpush1.xpose.msra.mxu0 0.0
  %4216 = vmatprep.subr.mxu0 0.0
  %4217 = vmatpush1.xpose.msra.mxu0 0.0
  %4218 = vmatprep.subr.mxu0 0.0
  %4219 = vmatpush1.xpose.msra.mxu0 0.0
  %4220 = vmatprep.subr.mxu0 0.0
  %4221 = vmatpush1.xpose.msra.mxu0 0.0
  %4222 = vmatprep.subr.mxu0 0.0
  %4223 = vmatpush1.xpose.msra.mxu0 0.0
  %4224 = vmatprep.subr.mxu0 0.0
  %4225 = vmatpush1.xpose.msra.mxu0 0.0
  %4226 = vmatprep.subr.mxu0 0.0
  %4227 = vmatpush1.xpose.msra.mxu0 0.0
  %4228 = vmatprep.subr.mxu0 0.0
  %4229 = vmatpush1.xpose.msra.mxu0 0.0
  %4230 = vmatprep.subr.mxu0 0.0
  %4231 = vmatpush1.xpose.msra.mxu0 0.0
  %4232 = vmatprep.subr.mxu0 0.0
  %4233 = vmatpush1.xpose.msra.mxu0 0.0
  %4234 = vmatprep.subr.mxu0 0.0
  %4235 = vmatpush1.xpose.msra.mxu0 0.0
  %4236 = vmatprep.subr.mxu0 0.0
  %4237 = vmatpush1.xpose.msra.mxu0 0.0
  %4238 = vmatprep.subr.mxu0 0.0
  %4239 = vmatpush1.xpose.msra.mxu0 0.0
  %4240 = vmatprep.subr.mxu0 0.0
  %4241 = vmatpush1.xpose.msra.mxu0 0.0
  %4242 = vmatprep.subr.mxu0 0.0
  %4243 = vmatpush1.xpose.msra.mxu0 0.0
  %4244 = vmatprep.subr.mxu0 0.0
  %4245 = vmatpush1.xpose.msra.mxu0 0.0
  %4246 = vmatprep.mubr.f32.mxu0 0.0
  %4247 = vmatmul.mubr.f32.gmra.mrb[0].mxu0 %v4178
  %v4248 = vpop.f32.mrb[0].mxu0
  %v4249 = vadd.f32 0.0, %v4248
  %v4250 = vpop.f32.mrb[0].mxu0
  %4251 = vdwg.mxu0
  %4252 = vrot.lane.b32.xlu0 %v3850, 96
  %v4253 = vpop.permute.xlu0 %4252
  %v4255 = vsel %vm186, %v3864, 0
  %v4257 = vsel %vm186, %v4253, 0
  %4259 = vmatprep.subr.mxu0 0.0
  %4260 = vmatpush1.xpose.msra.mxu0 %v4257
  %4261 = vmatprep.subr.mxu0 0.0
  %4262 = vmatpush1.xpose.msra.mxu0 0.0
  %4263 = vmatprep.subr.mxu0 0.0
  %4264 = vmatpush1.xpose.msra.mxu0 0.0
  %4265 = vmatprep.subr.mxu0 0.0
  %4266 = vmatpush1.xpose.msra.mxu0 0.0
  %4267 = vmatprep.subr.mxu0 0.0
  %4268 = vmatpush1.xpose.msra.mxu0 0.0
  %4269 = vmatprep.subr.mxu0 0.0
  %4270 = vmatpush1.xpose.msra.mxu0 0.0
  %4271 = vmatprep.subr.mxu0 0.0
  %4272 = vmatpush1.xpose.msra.mxu0 0.0
  %4273 = vmatprep.subr.mxu0 0.0
  %4274 = vmatpush1.xpose.msra.mxu0 0.0
  %4275 = vmatprep.subr.mxu0 0.0
  %4276 = vmatpush1.xpose.msra.mxu0 0.0
  %4277 = vmatprep.subr.mxu0 0.0
  %4278 = vmatpush1.xpose.msra.mxu0 0.0
  %4279 = vmatprep.subr.mxu0 0.0
  %4280 = vmatpush1.xpose.msra.mxu0 0.0
  %4281 = vmatprep.subr.mxu0 0.0
  %4282 = vmatpush1.xpose.msra.mxu0 0.0
  %4283 = vmatprep.subr.mxu0 0.0
  %4284 = vmatpush1.xpose.msra.mxu0 0.0
  %4285 = vmatprep.subr.mxu0 0.0
  %4286 = vmatpush1.xpose.msra.mxu0 0.0
  %4287 = vmatprep.subr.mxu0 0.0
  %4288 = vmatpush1.xpose.msra.mxu0 0.0
  %4289 = vmatprep.subr.mxu0 0.0
  %4290 = vmatpush1.xpose.msra.mxu0 0.0
  %4291 = vmatprep.subr.mxu0 0.0
  %4292 = vmatpush1.xpose.msra.mxu0 0.0
  %4293 = vmatprep.subr.mxu0 0.0
  %4294 = vmatpush1.xpose.msra.mxu0 0.0
  %4295 = vmatprep.subr.mxu0 0.0
  %4296 = vmatpush1.xpose.msra.mxu0 0.0
  %4297 = vmatprep.subr.mxu0 0.0
  %4298 = vmatpush1.xpose.msra.mxu0 0.0
  %4299 = vmatprep.subr.mxu0 0.0
  %4300 = vmatpush1.xpose.msra.mxu0 0.0
  %4301 = vmatprep.subr.mxu0 0.0
  %4302 = vmatpush1.xpose.msra.mxu0 0.0
  %4303 = vmatprep.subr.mxu0 0.0
  %4304 = vmatpush1.xpose.msra.mxu0 0.0
  %4305 = vmatprep.subr.mxu0 0.0
  %4306 = vmatpush1.xpose.msra.mxu0 0.0
  %4307 = vmatprep.subr.mxu0 0.0
  %4308 = vmatpush1.xpose.msra.mxu0 0.0
  %4309 = vmatprep.subr.mxu0 0.0
  %4310 = vmatpush1.xpose.msra.mxu0 0.0
  %4311 = vmatprep.subr.mxu0 0.0
  %4312 = vmatpush1.xpose.msra.mxu0 0.0
  %4313 = vmatprep.subr.mxu0 0.0
  %4314 = vmatpush1.xpose.msra.mxu0 0.0
  %4315 = vmatprep.subr.mxu0 0.0
  %4316 = vmatpush1.xpose.msra.mxu0 0.0
  %4317 = vmatprep.subr.mxu0 0.0
  %4318 = vmatpush1.xpose.msra.mxu0 0.0
  %4319 = vmatprep.subr.mxu0 0.0
  %4320 = vmatpush1.xpose.msra.mxu0 0.0
  %4321 = vmatprep.subr.mxu0 0.0
  %4322 = vmatpush1.xpose.msra.mxu0 0.0
  %4323 = vmatprep.mubr.f32.mxu0 0.0
  %4324 = vmatmul.mubr.f32.gmra.mrb[0].mxu0 %v4255
  %v4325 = vpop.f32.mrb[0].mxu0
  %v4326 = vadd.f32 0.0, %v4325
  %v4327 = vpop.f32.mrb[0].mxu0
  %4328 = vdwg.mxu0
  %4329 = vrot.lane.b32.xlu0 %v3854, 96
  %v4330 = vpop.permute.xlu0 %4329
  %v4332 = vsel %vm186, %v3865, 0
  %v4334 = vsel %vm186, %v4330, 0
  %4336 = vmatprep.subr.mxu0 0.0
  %4337 = vmatpush1.xpose.msra.mxu0 %v4334
  %4338 = vmatprep.subr.mxu0 0.0
  %4339 = vmatpush1.xpose.msra.mxu0 0.0
  %4340 = vmatprep.subr.mxu0 0.0
  %4341 = vmatpush1.xpose.msra.mxu0 0.0
  %4342 = vmatprep.subr.mxu0 0.0
  %4343 = vmatpush1.xpose.msra.mxu0 0.0
  %4344 = vmatprep.subr.mxu0 0.0
  %4345 = vmatpush1.xpose.msra.mxu0 0.0
  %4346 = vmatprep.subr.mxu0 0.0
  %4347 = vmatpush1.xpose.msra.mxu0 0.0
  %4348 = vmatprep.subr.mxu0 0.0
  %4349 = vmatpush1.xpose.msra.mxu0 0.0
  %4350 = vmatprep.subr.mxu0 0.0
  %4351 = vmatpush1.xpose.msra.mxu0 0.0
  %4352 = vmatprep.subr.mxu0 0.0
  %4353 = vmatpush1.xpose.msra.mxu0 0.0
  %4354 = vmatprep.subr.mxu0 0.0
  %4355 = vmatpush1.xpose.msra.mxu0 0.0
  %4356 = vmatprep.subr.mxu0 0.0
  %4357 = vmatpush1.xpose.msra.mxu0 0.0
  %4358 = vmatprep.subr.mxu0 0.0
  %4359 = vmatpush1.xpose.msra.mxu0 0.0
  %4360 = vmatprep.subr.mxu0 0.0
  %4361 = vmatpush1.xpose.msra.mxu0 0.0
  %4362 = vmatprep.subr.mxu0 0.0
  %4363 = vmatpush1.xpose.msra.mxu0 0.0
  %4364 = vmatprep.subr.mxu0 0.0
  %4365 = vmatpush1.xpose.msra.mxu0 0.0
  %4366 = vmatprep.subr.mxu0 0.0
  %4367 = vmatpush1.xpose.msra.mxu0 0.0
  %4368 = vmatprep.subr.mxu0 0.0
  %4369 = vmatpush1.xpose.msra.mxu0 0.0
  %4370 = vmatprep.subr.mxu0 0.0
  %4371 = vmatpush1.xpose.msra.mxu0 0.0
  %4372 = vmatprep.subr.mxu0 0.0
  %4373 = vmatpush1.xpose.msra.mxu0 0.0
  %4374 = vmatprep.subr.mxu0 0.0
  %4375 = vmatpush1.xpose.msra.mxu0 0.0
  %4376 = vmatprep.subr.mxu0 0.0
  %4377 = vmatpush1.xpose.msra.mxu0 0.0
  %4378 = vmatprep.subr.mxu0 0.0
  %4379 = vmatpush1.xpose.msra.mxu0 0.0
  %4380 = vmatprep.subr.mxu0 0.0
  %4381 = vmatpush1.xpose.msra.mxu0 0.0
  %4382 = vmatprep.subr.mxu0 0.0
  %4383 = vmatpush1.xpose.msra.mxu0 0.0
  %4384 = vmatprep.subr.mxu0 0.0
  %4385 = vmatpush1.xpose.msra.mxu0 0.0
  %4386 = vmatprep.subr.mxu0 0.0
  %4387 = vmatpush1.xpose.msra.mxu0 0.0
  %4388 = vmatprep.subr.mxu0 0.0
  %4389 = vmatpush1.xpose.msra.mxu0 0.0
  %4390 = vmatprep.subr.mxu0 0.0
  %4391 = vmatpush1.xpose.msra.mxu0 0.0
  %4392 = vmatprep.subr.mxu0 0.0
  %4393 = vmatpush1.xpose.msra.mxu0 0.0
  %4394 = vmatprep.subr.mxu0 0.0
  %4395 = vmatpush1.xpose.msra.mxu0 0.0
  %4396 = vmatprep.subr.mxu0 0.0
  %4397 = vmatpush1.xpose.msra.mxu0 0.0
  %4398 = vmatprep.subr.mxu0 0.0
  %4399 = vmatpush1.xpose.msra.mxu0 0.0
  %4400 = vmatprep.mubr.f32.mxu0 0.0
  %4401 = vmatmul.mubr.f32.gmra.mrb[0].mxu0 %v4332
  %v4402 = vpop.f32.mrb[0].mxu0
  %v4403 = vadd.f32 0.0, %v4402
  %v4404 = vpop.f32.mrb[0].mxu0
  %4405 = vdwg.mxu0
  %4406 = vrot.lane.b32.xlu0 %v3856, 96
  %v4407 = vpop.permute.xlu0 %4406
  %v4409 = vsel %vm186, %v3866, 0
  %v4411 = vsel %vm186, %v4407, 0
  %4413 = vmatprep.subr.mxu0 0.0
  %4414 = vmatpush1.xpose.msra.mxu0 %v4411
  %4415 = vmatprep.subr.mxu0 0.0
  %4416 = vmatpush1.xpose.msra.mxu0 0.0
  %4417 = vmatprep.subr.mxu0 0.0
  %4418 = vmatpush1.xpose.msra.mxu0 0.0
  %4419 = vmatprep.subr.mxu0 0.0
  %4420 = vmatpush1.xpose.msra.mxu0 0.0
  %4421 = vmatprep.subr.mxu0 0.0
  %4422 = vmatpush1.xpose.msra.mxu0 0.0
  %4423 = vmatprep.subr.mxu0 0.0
  %4424 = vmatpush1.xpose.msra.mxu0 0.0
  %4425 = vmatprep.subr.mxu0 0.0
  %4426 = vmatpush1.xpose.msra.mxu0 0.0
  %4427 = vmatprep.subr.mxu0 0.0
  %4428 = vmatpush1.xpose.msra.mxu0 0.0
  %4429 = vmatprep.subr.mxu0 0.0
  %4430 = vmatpush1.xpose.msra.mxu0 0.0
  %4431 = vmatprep.subr.mxu0 0.0
  %4432 = vmatpush1.xpose.msra.mxu0 0.0
  %4433 = vmatprep.subr.mxu0 0.0
  %4434 = vmatpush1.xpose.msra.mxu0 0.0
  %4435 = vmatprep.subr.mxu0 0.0
  %4436 = vmatpush1.xpose.msra.mxu0 0.0
  %4437 = vmatprep.subr.mxu0 0.0
  %4438 = vmatpush1.xpose.msra.mxu0 0.0
  %4439 = vmatprep.subr.mxu0 0.0
  %4440 = vmatpush1.xpose.msra.mxu0 0.0
  %4441 = vmatprep.subr.mxu0 0.0
  %4442 = vmatpush1.xpose.msra.mxu0 0.0
  %4443 = vmatprep.subr.mxu0 0.0
  %4444 = vmatpush1.xpose.msra.mxu0 0.0
  %4445 = vmatprep.subr.mxu0 0.0
  %4446 = vmatpush1.xpose.msra.mxu0 0.0
  %4447 = vmatprep.subr.mxu0 0.0
  %4448 = vmatpush1.xpose.msra.mxu0 0.0
  %4449 = vmatprep.subr.mxu0 0.0
  %4450 = vmatpush1.xpose.msra.mxu0 0.0
  %4451 = vmatprep.subr.mxu0 0.0
  %4452 = vmatpush1.xpose.msra.mxu0 0.0
  %4453 = vmatprep.subr.mxu0 0.0
  %4454 = vmatpush1.xpose.msra.mxu0 0.0
  %4455 = vmatprep.subr.mxu0 0.0
  %4456 = vmatpush1.xpose.msra.mxu0 0.0
  %4457 = vmatprep.subr.mxu0 0.0
  %4458 = vmatpush1.xpose.msra.mxu0 0.0
  %4459 = vmatprep.subr.mxu0 0.0
  %4460 = vmatpush1.xpose.msra.mxu0 0.0
  %4461 = vmatprep.subr.mxu0 0.0
  %4462 = vmatpush1.xpose.msra.mxu0 0.0
  %4463 = vmatprep.subr.mxu0 0.0
  %4464 = vmatpush1.xpose.msra.mxu0 0.0
  %4465 = vmatprep.subr.mxu0 0.0
  %4466 = vmatpush1.xpose.msra.mxu0 0.0
  %4467 = vmatprep.subr.mxu0 0.0
  %4468 = vmatpush1.xpose.msra.mxu0 0.0
  %4469 = vmatprep.subr.mxu0 0.0
  %4470 = vmatpush1.xpose.msra.mxu0 0.0
  %4471 = vmatprep.subr.mxu0 0.0
  %4472 = vmatpush1.xpose.msra.mxu0 0.0
  %4473 = vmatprep.subr.mxu0 0.0
  %4474 = vmatpush1.xpose.msra.mxu0 0.0
  %4475 = vmatprep.subr.mxu0 0.0
  %4476 = vmatpush1.xpose.msra.mxu0 0.0
  %4477 = vmatprep.mubr.f32.mxu0 0.0
  %4478 = vmatmul.mubr.f32.gmra.mrb[0].mxu0 %v4409
  %v4479 = vpop.f32.mrb[0].mxu0
  %v4480 = vadd.f32 0.0, %v4479
  %v4481 = vpop.f32.mrb[0].mxu0
  %4482 = vdwg.mxu0
  %v4483 = vsel %vm186, %v3941, -inf
  %4484 = vmax.xlane.f32.xlu0 %v4483
  %v4485 = vpop.xlane.xlu0 %4484
  %v4486 = vsel %vm186, %v4018, -inf
  %4487 = vmax.xlane.f32.xlu0 %v4486
  %v4488 = vpop.xlane.xlu0 %4487
  %v4489 = vsel %vm186, %v4095, -inf
  %4490 = vmax.xlane.f32.xlu0 %v4489
  %v4491 = vpop.xlane.xlu0 %4490
  %v4492 = vsel %vm186, %v4172, -inf
  %4493 = vmax.xlane.f32.xlu0 %v4492
  %v4494 = vpop.xlane.xlu0 %4493
  %v4495 = vsel %vm186, %v4249, -inf
  %4496 = vmax.xlane.f32.xlu0 %v4495
  %v4497 = vpop.xlane.xlu0 %4496
  %v4498 = vsel %vm186, %v4326, -inf
  %4499 = vmax.xlane.f32.xlu0 %v4498
  %v4500 = vpop.xlane.xlu0 %4499
  %v4501 = vsel %vm186, %v4403, -inf
  %4502 = vmax.xlane.f32.xlu0 %v4501
  %v4503 = vpop.xlane.xlu0 %4502
  %v4504 = vsel %vm186, %v4480, -inf
  %4505 = vmax.xlane.f32.xlu0 %v4504
  %v4506 = vpop.xlane.xlu0 %4505
  %v4507 = vsub.f32 %v3941, %v4485
  %v4508 = vsub.f32 %v4018, %v4488
  %v4509 = vsub.f32 %v4095, %v4491
  %v4510 = vsub.f32 %v4172, %v4494
  %v4511 = vsub.f32 %v4249, %v4497
  %v4512 = vsub.f32 %v4326, %v4500
  %v4513 = vsub.f32 %v4403, %v4503
  %v4514 = vsub.f32 %v4480, %v4506
  %v4515 = vmul.f32 %v4507, 1.442695
  %v4516 = vpow.pop %v4515
  %v4517 = vmul.f32 %v4508, 1.442695
  %v4518 = vpow.pop %v4517
  %v4519 = vmul.f32 %v4509, 1.442695
  %v4520 = vpow.pop %v4519
  %v4521 = vmul.f32 %v4510, 1.442695
  %v4522 = vpow.pop %v4521
  %v4523 = vmul.f32 %v4511, 1.442695
  %v4524 = vpow.pop %v4523
  %v4525 = vmul.f32 %v4512, 1.442695
  %v4526 = vpow.pop %v4525
  %v4527 = vmul.f32 %v4513, 1.442695
  %v4528 = vpow.pop %v4527
  %v4529 = vmul.f32 %v4514, 1.442695
  %v4530 = vpow.pop %v4529
  %v4531 = vsel %vm186, %v4516, 0.0
  %4532 = vadd.xlane.f32.xlu0 %v4531
  %v4533 = vpop.xlane.xlu0 %4532
  %v4534 = vsel %vm186, %v4518, 0.0
  %4535 = vadd.xlane.f32.xlu0 %v4534
  %v4536 = vpop.xlane.xlu0 %4535
  %v4537 = vsel %vm186, %v4520, 0.0
  %4538 = vadd.xlane.f32.xlu0 %v4537
  %v4539 = vpop.xlane.xlu0 %4538
  %v4540 = vsel %vm186, %v4522, 0.0
  %4541 = vadd.xlane.f32.xlu0 %v4540
  %v4542 = vpop.xlane.xlu0 %4541
  %v4543 = vsel %vm186, %v4524, 0.0
  %4544 = vadd.xlane.f32.xlu0 %v4543
  %v4545 = vpop.xlane.xlu0 %4544
  %v4546 = vsel %vm186, %v4526, 0.0
  %4547 = vadd.xlane.f32.xlu0 %v4546
  %v4548 = vpop.xlane.xlu0 %4547
  %v4549 = vsel %vm186, %v4528, 0.0
  %4550 = vadd.xlane.f32.xlu0 %v4549
  %v4551 = vpop.xlane.xlu0 %4550
  %v4552 = vsel %vm186, %v4530, 0.0
  %4553 = vadd.xlane.f32.xlu0 %v4552
  %v4554 = vpop.xlane.xlu0 %4553
  %v4555 = vrcp.pop %v4533
  %v4556 = vrcp.pop %v4536
  %v4557 = vrcp.pop %v4539
  %v4558 = vrcp.pop %v4542
  %v4559 = vrcp.pop %v4545
  %v4560 = vrcp.pop %v4548
  %v4561 = vrcp.pop %v4551
  %v4562 = vrcp.pop %v4554
  %v4563 = vmul.f32 %v4516, %v4555
  %v4564 = vmul.f32 %v4518, %v4556
  %v4565 = vmul.f32 %v4520, %v4557
  %v4566 = vmul.f32 %v4522, %v4558
  %v4567 = vmul.f32 %v4524, %v4559
  %v4568 = vmul.f32 %v4526, %v4560
  %v4569 = vmul.f32 %v4528, %v4561
  %v4570 = vmul.f32 %v4530, %v4562
  %4571 = vrot.lane.b32.xlu0 %v3831, 64
  %v4572 = vpop.permute.xlu0 %4571
  %v4575 = vsel %vm186, %v4563, 0
  %4577 = vmatprep.subr.mxu0 0.0
  %4578 = vmatpush1.msra.mxu0 %v4572
  %4579 = vmatprep.subr.mxu0 0.0
  %4580 = vmatpush1.msra.mxu0 0.0
  %4581 = vmatprep.subr.mxu0 0.0
  %4582 = vmatpush1.msra.mxu0 0.0
  %4583 = vmatprep.subr.mxu0 0.0
  %4584 = vmatpush1.msra.mxu0 0.0
  %4585 = vmatprep.subr.mxu0 0.0
  %4586 = vmatpush1.msra.mxu0 0.0
  %4587 = vmatprep.subr.mxu0 0.0
  %4588 = vmatpush1.msra.mxu0 0.0
  %4589 = vmatprep.subr.mxu0 0.0
  %4590 = vmatpush1.msra.mxu0 0.0
  %4591 = vmatprep.subr.mxu0 0.0
  %4592 = vmatpush1.msra.mxu0 0.0
  %4593 = vmatprep.subr.mxu0 0.0
  %4594 = vmatpush1.msra.mxu0 0.0
  %4595 = vmatprep.subr.mxu0 0.0
  %4596 = vmatpush1.msra.mxu0 0.0
  %4597 = vmatprep.subr.mxu0 0.0
  %4598 = vmatpush1.msra.mxu0 0.0
  %4599 = vmatprep.subr.mxu0 0.0
  %4600 = vmatpush1.msra.mxu0 0.0
  %4601 = vmatprep.subr.mxu0 0.0
  %4602 = vmatpush1.msra.mxu0 0.0
  %4603 = vmatprep.subr.mxu0 0.0
  %4604 = vmatpush1.msra.mxu0 0.0
  %4605 = vmatprep.subr.mxu0 0.0
  %4606 = vmatpush1.msra.mxu0 0.0
  %4607 = vmatprep.subr.mxu0 0.0
  %4608 = vmatpush1.msra.mxu0 0.0
  %4609 = vmatprep.subr.mxu0 0.0
  %4610 = vmatpush1.msra.mxu0 0.0
  %4611 = vmatprep.subr.mxu0 0.0
  %4612 = vmatpush1.msra.mxu0 0.0
  %4613 = vmatprep.subr.mxu0 0.0
  %4614 = vmatpush1.msra.mxu0 0.0
  %4615 = vmatprep.subr.mxu0 0.0
  %4616 = vmatpush1.msra.mxu0 0.0
  %4617 = vmatprep.subr.mxu0 0.0
  %4618 = vmatpush1.msra.mxu0 0.0
  %4619 = vmatprep.subr.mxu0 0.0
  %4620 = vmatpush1.msra.mxu0 0.0
  %4621 = vmatprep.subr.mxu0 0.0
  %4622 = vmatpush1.msra.mxu0 0.0
  %4623 = vmatprep.subr.mxu0 0.0
  %4624 = vmatpush1.msra.mxu0 0.0
  %4625 = vmatprep.subr.mxu0 0.0
  %4626 = vmatpush1.msra.mxu0 0.0
  %4627 = vmatprep.subr.mxu0 0.0
  %4628 = vmatpush1.msra.mxu0 0.0
  %4629 = vmatprep.subr.mxu0 0.0
  %4630 = vmatpush1.msra.mxu0 0.0
  %4631 = vmatprep.subr.mxu0 0.0
  %4632 = vmatpush1.msra.mxu0 0.0
  %4633 = vmatprep.subr.mxu0 0.0
  %4634 = vmatpush1.msra.mxu0 0.0
  %4635 = vmatprep.subr.mxu0 0.0
  %4636 = vmatpush1.msra.mxu0 0.0
  %4637 = vmatprep.subr.mxu0 0.0
  %4638 = vmatpush1.msra.mxu0 0.0
  %4639 = vmatprep.subr.mxu0 0.0
  %4640 = vmatpush1.msra.mxu0 0.0
  %4641 = vmatprep.mubr.f32.mxu0 0.0
  %4642 = vmatmul.mubr.f32.gmra.mrb[0].mxu0 %v4575
  %v4643 = vpop.f32.mrb[0].mxu0
  %v4644 = vadd.f32 0.0, %v4643
  %v4645 = vpop.f32.mrb[0].mxu0
  %4646 = vdwg.mxu0
  %4647 = vrot.lane.b32.xlu0 %v3836, 64
  %v4648 = vpop.permute.xlu0 %4647
  %v4651 = vsel %vm186, %v4564, 0
  %4653 = vmatprep.subr.mxu0 0.0
  %4654 = vmatpush1.msra.mxu0 %v4648
  %4655 = vmatprep.subr.mxu0 0.0
  %4656 = vmatpush1.msra.mxu0 0.0
  %4657 = vmatprep.subr.mxu0 0.0
  %4658 = vmatpush1.msra.mxu0 0.0
  %4659 = vmatprep.subr.mxu0 0.0
  %4660 = vmatpush1.msra.mxu0 0.0
  %4661 = vmatprep.subr.mxu0 0.0
  %4662 = vmatpush1.msra.mxu0 0.0
  %4663 = vmatprep.subr.mxu0 0.0
  %4664 = vmatpush1.msra.mxu0 0.0
  %4665 = vmatprep.subr.mxu0 0.0
  %4666 = vmatpush1.msra.mxu0 0.0
  %4667 = vmatprep.subr.mxu0 0.0
  %4668 = vmatpush1.msra.mxu0 0.0
  %4669 = vmatprep.subr.mxu0 0.0
  %4670 = vmatpush1.msra.mxu0 0.0
  %4671 = vmatprep.subr.mxu0 0.0
  %4672 = vmatpush1.msra.mxu0 0.0
  %4673 = vmatprep.subr.mxu0 0.0
  %4674 = vmatpush1.msra.mxu0 0.0
  %4675 = vmatprep.subr.mxu0 0.0
  %4676 = vmatpush1.msra.mxu0 0.0
  %4677 = vmatprep.subr.mxu0 0.0
  %4678 = vmatpush1.msra.mxu0 0.0
  %4679 = vmatprep.subr.mxu0 0.0
  %4680 = vmatpush1.msra.mxu0 0.0
  %4681 = vmatprep.subr.mxu0 0.0
  %4682 = vmatpush1.msra.mxu0 0.0
  %4683 = vmatprep.subr.mxu0 0.0
  %4684 = vmatpush1.msra.mxu0 0.0
  %4685 = vmatprep.subr.mxu0 0.0
  %4686 = vmatpush1.msra.mxu0 0.0
  %4687 = vmatprep.subr.mxu0 0.0
  %4688 = vmatpush1.msra.mxu0 0.0
  %4689 = vmatprep.subr.mxu0 0.0
  %4690 = vmatpush1.msra.mxu0 0.0
  %4691 = vmatprep.subr.mxu0 0.0
  %4692 = vmatpush1.msra.mxu0 0.0
  %4693 = vmatprep.subr.mxu0 0.0
  %4694 = vmatpush1.msra.mxu0 0.0
  %4695 = vmatprep.subr.mxu0 0.0
  %4696 = vmatpush1.msra.mxu0 0.0
  %4697 = vmatprep.subr.mxu0 0.0
  %4698 = vmatpush1.msra.mxu0 0.0
  %4699 = vmatprep.subr.mxu0 0.0
  %4700 = vmatpush1.msra.mxu0 0.0
  %4701 = vmatprep.subr.mxu0 0.0
  %4702 = vmatpush1.msra.mxu0 0.0
  %4703 = vmatprep.subr.mxu0 0.0
  %4704 = vmatpush1.msra.mxu0 0.0
  %4705 = vmatprep.subr.mxu0 0.0
  %4706 = vmatpush1.msra.mxu0 0.0
  %4707 = vmatprep.subr.mxu0 0.0
  %4708 = vmatpush1.msra.mxu0 0.0
  %4709 = vmatprep.subr.mxu0 0.0
  %4710 = vmatpush1.msra.mxu0 0.0
  %4711 = vmatprep.subr.mxu0 0.0
  %4712 = vmatpush1.msra.mxu0 0.0
  %4713 = vmatprep.subr.mxu0 0.0
  %4714 = vmatpush1.msra.mxu0 0.0
  %4715 = vmatprep.subr.mxu0 0.0
  %4716 = vmatpush1.msra.mxu0 0.0
  %4717 = vmatprep.mubr.f32.mxu0 0.0
  %4718 = vmatmul.mubr.f32.gmra.mrb[0].mxu0 %v4651
  %v4719 = vpop.f32.mrb[0].mxu0
  %v4720 = vadd.f32 0.0, %v4719
  %v4721 = vpop.f32.mrb[0].mxu0
  %4722 = vdwg.mxu0
  %4723 = vrot.lane.b32.xlu0 %v3842, 64
  %v4724 = vpop.permute.xlu0 %4723
  %v4727 = vsel %vm186, %v4565, 0
  %4729 = vmatprep.subr.mxu0 0.0
  %4730 = vmatpush1.msra.mxu0 %v4724
  %4731 = vmatprep.subr.mxu0 0.0
  %4732 = vmatpush1.msra.mxu0 0.0
  %4733 = vmatprep.subr.mxu0 0.0
  %4734 = vmatpush1.msra.mxu0 0.0
  %4735 = vmatprep.subr.mxu0 0.0
  %4736 = vmatpush1.msra.mxu0 0.0
  %4737 = vmatprep.subr.mxu0 0.0
  %4738 = vmatpush1.msra.mxu0 0.0
  %4739 = vmatprep.subr.mxu0 0.0
  %4740 = vmatpush1.msra.mxu0 0.0
  %4741 = vmatprep.subr.mxu0 0.0
  %4742 = vmatpush1.msra.mxu0 0.0
  %4743 = vmatprep.subr.mxu0 0.0
  %4744 = vmatpush1.msra.mxu0 0.0
  %4745 = vmatprep.subr.mxu0 0.0
  %4746 = vmatpush1.msra.mxu0 0.0
  %4747 = vmatprep.subr.mxu0 0.0
  %4748 = vmatpush1.msra.mxu0 0.0
  %4749 = vmatprep.subr.mxu0 0.0
  %4750 = vmatpush1.msra.mxu0 0.0
  %4751 = vmatprep.subr.mxu0 0.0
  %4752 = vmatpush1.msra.mxu0 0.0
  %4753 = vmatprep.subr.mxu0 0.0
  %4754 = vmatpush1.msra.mxu0 0.0
  %4755 = vmatprep.subr.mxu0 0.0
  %4756 = vmatpush1.msra.mxu0 0.0
  %4757 = vmatprep.subr.mxu0 0.0
  %4758 = vmatpush1.msra.mxu0 0.0
  %4759 = vmatprep.subr.mxu0 0.0
  %4760 = vmatpush1.msra.mxu0 0.0
  %4761 = vmatprep.subr.mxu0 0.0
  %4762 = vmatpush1.msra.mxu0 0.0
  %4763 = vmatprep.subr.mxu0 0.0
  %4764 = vmatpush1.msra.mxu0 0.0
  %4765 = vmatprep.subr.mxu0 0.0
  %4766 = vmatpush1.msra.mxu0 0.0
  %4767 = vmatprep.subr.mxu0 0.0
  %4768 = vmatpush1.msra.mxu0 0.0
  %4769 = vmatprep.subr.mxu0 0.0
  %4770 = vmatpush1.msra.mxu0 0.0
  %4771 = vmatprep.subr.mxu0 0.0
  %4772 = vmatpush1.msra.mxu0 0.0
  %4773 = vmatprep.subr.mxu0 0.0
  %4774 = vmatpush1.msra.mxu0 0.0
  %4775 = vmatprep.subr.mxu0 0.0
  %4776 = vmatpush1.msra.mxu0 0.0
  %4777 = vmatprep.subr.mxu0 0.0
  %4778 = vmatpush1.msra.mxu0 0.0
  %4779 = vmatprep.subr.mxu0 0.0
  %4780 = vmatpush1.msra.mxu0 0.0
  %4781 = vmatprep.subr.mxu0 0.0
  %4782 = vmatpush1.msra.mxu0 0.0
  %4783 = vmatprep.subr.mxu0 0.0
  %4784 = vmatpush1.msra.mxu0 0.0
  %4785 = vmatprep.subr.mxu0 0.0
  %4786 = vmatpush1.msra.mxu0 0.0
  %4787 = vmatprep.subr.mxu0 0.0
  %4788 = vmatpush1.msra.mxu0 0.0
  %4789 = vmatprep.subr.mxu0 0.0
  %4790 = vmatpush1.msra.mxu0 0.0
  %4791 = vmatprep.subr.mxu0 0.0
  %4792 = vmatpush1.msra.mxu0 0.0
  %4793 = vmatprep.mubr.f32.mxu0 0.0
  %4794 = vmatmul.mubr.f32.gmra.mrb[0].mxu0 %v4727
  %v4795 = vpop.f32.mrb[0].mxu0
  %v4796 = vadd.f32 0.0, %v4795
  %v4797 = vpop.f32.mrb[0].mxu0
  %4798 = vdwg.mxu0
  %4799 = vrot.lane.b32.xlu0 %v3844, 64
  %v4800 = vpop.permute.xlu0 %4799
  %v4803 = vsel %vm186, %v4566, 0
  %4805 = vmatprep.subr.mxu0 0.0
  %4806 = vmatpush1.msra.mxu0 %v4800
  %4807 = vmatprep.subr.mxu0 0.0
  %4808 = vmatpush1.msra.mxu0 0.0
  %4809 = vmatprep.subr.mxu0 0.0
  %4810 = vmatpush1.msra.mxu0 0.0
  %4811 = vmatprep.subr.mxu0 0.0
  %4812 = vmatpush1.msra.mxu0 0.0
  %4813 = vmatprep.subr.mxu0 0.0
  %4814 = vmatpush1.msra.mxu0 0.0
  %4815 = vmatprep.subr.mxu0 0.0
  %4816 = vmatpush1.msra.mxu0 0.0
  %4817 = vmatprep.subr.mxu0 0.0
  %4818 = vmatpush1.msra.mxu0 0.0
  %4819 = vmatprep.subr.mxu0 0.0
  %4820 = vmatpush1.msra.mxu0 0.0
  %4821 = vmatprep.subr.mxu0 0.0
  %4822 = vmatpush1.msra.mxu0 0.0
  %4823 = vmatprep.subr.mxu0 0.0
  %4824 = vmatpush1.msra.mxu0 0.0
  %4825 = vmatprep.subr.mxu0 0.0
  %4826 = vmatpush1.msra.mxu0 0.0
  %4827 = vmatprep.subr.mxu0 0.0
  %4828 = vmatpush1.msra.mxu0 0.0
  %4829 = vmatprep.subr.mxu0 0.0
  %4830 = vmatpush1.msra.mxu0 0.0
  %4831 = vmatprep.subr.mxu0 0.0
  %4832 = vmatpush1.msra.mxu0 0.0
  %4833 = vmatprep.subr.mxu0 0.0
  %4834 = vmatpush1.msra.mxu0 0.0
  %4835 = vmatprep.subr.mxu0 0.0
  %4836 = vmatpush1.msra.mxu0 0.0
  %4837 = vmatprep.subr.mxu0 0.0
  %4838 = vmatpush1.msra.mxu0 0.0
  %4839 = vmatprep.subr.mxu0 0.0
  %4840 = vmatpush1.msra.mxu0 0.0
  %4841 = vmatprep.subr.mxu0 0.0
  %4842 = vmatpush1.msra.mxu0 0.0
  %4843 = vmatprep.subr.mxu0 0.0
  %4844 = vmatpush1.msra.mxu0 0.0
  %4845 = vmatprep.subr.mxu0 0.0
  %4846 = vmatpush1.msra.mxu0 0.0
  %4847 = vmatprep.subr.mxu0 0.0
  %4848 = vmatpush1.msra.mxu0 0.0
  %4849 = vmatprep.subr.mxu0 0.0
  %4850 = vmatpush1.msra.mxu0 0.0
  %4851 = vmatprep.subr.mxu0 0.0
  %4852 = vmatpush1.msra.mxu0 0.0
  %4853 = vmatprep.subr.mxu0 0.0
  %4854 = vmatpush1.msra.mxu0 0.0
  %4855 = vmatprep.subr.mxu0 0.0
  %4856 = vmatpush1.msra.mxu0 0.0
  %4857 = vmatprep.subr.mxu0 0.0
  %4858 = vmatpush1.msra.mxu0 0.0
  %4859 = vmatprep.subr.mxu0 0.0
  %4860 = vmatpush1.msra.mxu0 0.0
  %4861 = vmatprep.subr.mxu0 0.0
  %4862 = vmatpush1.msra.mxu0 0.0
  %4863 = vmatprep.subr.mxu0 0.0
  %4864 = vmatpush1.msra.mxu0 0.0
  %4865 = vmatprep.subr.mxu0 0.0
  %4866 = vmatpush1.msra.mxu0 0.0
  %4867 = vmatprep.subr.mxu0 0.0
  %4868 = vmatpush1.msra.mxu0 0.0
  %4869 = vmatprep.mubr.f32.mxu0 0.0
  %4870 = vmatmul.mubr.f32.gmra.mrb[0].mxu0 %v4803
  %v4871 = vpop.f32.mrb[0].mxu0
  %v4872 = vadd.f32 0.0, %v4871
  %v4873 = vpop.f32.mrb[0].mxu0
  %4874 = vdwg.mxu0
  %4875 = vrot.lane.b32.xlu0 %v3848, 64
  %v4876 = vpop.permute.xlu0 %4875
  %v4879 = vsel %vm186, %v4567, 0
  %4881 = vmatprep.subr.mxu0 0.0
  %4882 = vmatpush1.msra.mxu0 %v4876
  %4883 = vmatprep.subr.mxu0 0.0
  %4884 = vmatpush1.msra.mxu0 0.0
  %4885 = vmatprep.subr.mxu0 0.0
  %4886 = vmatpush1.msra.mxu0 0.0
  %4887 = vmatprep.subr.mxu0 0.0
  %4888 = vmatpush1.msra.mxu0 0.0
  %4889 = vmatprep.subr.mxu0 0.0
  %4890 = vmatpush1.msra.mxu0 0.0
  %4891 = vmatprep.subr.mxu0 0.0
  %4892 = vmatpush1.msra.mxu0 0.0
  %4893 = vmatprep.subr.mxu0 0.0
  %4894 = vmatpush1.msra.mxu0 0.0
  %4895 = vmatprep.subr.mxu0 0.0
  %4896 = vmatpush1.msra.mxu0 0.0
  %4897 = vmatprep.subr.mxu0 0.0
  %4898 = vmatpush1.msra.mxu0 0.0
  %4899 = vmatprep.subr.mxu0 0.0
  %4900 = vmatpush1.msra.mxu0 0.0
  %4901 = vmatprep.subr.mxu0 0.0
  %4902 = vmatpush1.msra.mxu0 0.0
  %4903 = vmatprep.subr.mxu0 0.0
  %4904 = vmatpush1.msra.mxu0 0.0
  %4905 = vmatprep.subr.mxu0 0.0
  %4906 = vmatpush1.msra.mxu0 0.0
  %4907 = vmatprep.subr.mxu0 0.0
  %4908 = vmatpush1.msra.mxu0 0.0
  %4909 = vmatprep.subr.mxu0 0.0
  %4910 = vmatpush1.msra.mxu0 0.0
  %4911 = vmatprep.subr.mxu0 0.0
  %4912 = vmatpush1.msra.mxu0 0.0
  %4913 = vmatprep.subr.mxu0 0.0
  %4914 = vmatpush1.msra.mxu0 0.0
  %4915 = vmatprep.subr.mxu0 0.0
  %4916 = vmatpush1.msra.mxu0 0.0
  %4917 = vmatprep.subr.mxu0 0.0
  %4918 = vmatpush1.msra.mxu0 0.0
  %4919 = vmatprep.subr.mxu0 0.0
  %4920 = vmatpush1.msra.mxu0 0.0
  %4921 = vmatprep.subr.mxu0 0.0
  %4922 = vmatpush1.msra.mxu0 0.0
  %4923 = vmatprep.subr.mxu0 0.0
  %4924 = vmatpush1.msra.mxu0 0.0
  %4925 = vmatprep.subr.mxu0 0.0
  %4926 = vmatpush1.msra.mxu0 0.0
  %4927 = vmatprep.subr.mxu0 0.0
  %4928 = vmatpush1.msra.mxu0 0.0
  %4929 = vmatprep.subr.mxu0 0.0
  %4930 = vmatpush1.msra.mxu0 0.0
  %4931 = vmatprep.subr.mxu0 0.0
  %4932 = vmatpush1.msra.mxu0 0.0
  %4933 = vmatprep.subr.mxu0 0.0
  %4934 = vmatpush1.msra.mxu0 0.0
  %4935 = vmatprep.subr.mxu0 0.0
  %4936 = vmatpush1.msra.mxu0 0.0
  %4937 = vmatprep.subr.mxu0 0.0
  %4938 = vmatpush1.msra.mxu0 0.0
  %4939 = vmatprep.subr.mxu0 0.0
  %4940 = vmatpush1.msra.mxu0 0.0
  %4941 = vmatprep.subr.mxu0 0.0
  %4942 = vmatpush1.msra.mxu0 0.0
  %4943 = vmatprep.subr.mxu0 0.0
  %4944 = vmatpush1.msra.mxu0 0.0
  %4945 = vmatprep.mubr.f32.mxu0 0.0
  %4946 = vmatmul.mubr.f32.gmra.mrb[0].mxu0 %v4879
  %v4947 = vpop.f32.mrb[0].mxu0
  %v4948 = vadd.f32 0.0, %v4947
  %v4949 = vpop.f32.mrb[0].mxu0
  %4950 = vdwg.mxu0
  %4951 = vrot.lane.b32.xlu0 %v3850, 64
  %v4952 = vpop.permute.xlu0 %4951
  %v4955 = vsel %vm186, %v4568, 0
  %4957 = vmatprep.subr.mxu0 0.0
  %4958 = vmatpush1.msra.mxu0 %v4952
  %4959 = vmatprep.subr.mxu0 0.0
  %4960 = vmatpush1.msra.mxu0 0.0
  %4961 = vmatprep.subr.mxu0 0.0
  %4962 = vmatpush1.msra.mxu0 0.0
  %4963 = vmatprep.subr.mxu0 0.0
  %4964 = vmatpush1.msra.mxu0 0.0
  %4965 = vmatprep.subr.mxu0 0.0
  %4966 = vmatpush1.msra.mxu0 0.0
  %4967 = vmatprep.subr.mxu0 0.0
  %4968 = vmatpush1.msra.mxu0 0.0
  %4969 = vmatprep.subr.mxu0 0.0
  %4970 = vmatpush1.msra.mxu0 0.0
  %4971 = vmatprep.subr.mxu0 0.0
  %4972 = vmatpush1.msra.mxu0 0.0
  %4973 = vmatprep.subr.mxu0 0.0
  %4974 = vmatpush1.msra.mxu0 0.0
  %4975 = vmatprep.subr.mxu0 0.0
  %4976 = vmatpush1.msra.mxu0 0.0
  %4977 = vmatprep.subr.mxu0 0.0
  %4978 = vmatpush1.msra.mxu0 0.0
  %4979 = vmatprep.subr.mxu0 0.0
  %4980 = vmatpush1.msra.mxu0 0.0
  %4981 = vmatprep.subr.mxu0 0.0
  %4982 = vmatpush1.msra.mxu0 0.0
  %4983 = vmatprep.subr.mxu0 0.0
  %4984 = vmatpush1.msra.mxu0 0.0
  %4985 = vmatprep.subr.mxu0 0.0
  %4986 = vmatpush1.msra.mxu0 0.0
  %4987 = vmatprep.subr.mxu0 0.0
  %4988 = vmatpush1.msra.mxu0 0.0
  %4989 = vmatprep.subr.mxu0 0.0
  %4990 = vmatpush1.msra.mxu0 0.0
  %4991 = vmatprep.subr.mxu0 0.0
  %4992 = vmatpush1.msra.mxu0 0.0
  %4993 = vmatprep.subr.mxu0 0.0
  %4994 = vmatpush1.msra.mxu0 0.0
  %4995 = vmatprep.subr.mxu0 0.0
  %4996 = vmatpush1.msra.mxu0 0.0
  %4997 = vmatprep.subr.mxu0 0.0
  %4998 = vmatpush1.msra.mxu0 0.0
  %4999 = vmatprep.subr.mxu0 0.0
  %5000 = vmatpush1.msra.mxu0 0.0
  %5001 = vmatprep.subr.mxu0 0.0
  %5002 = vmatpush1.msra.mxu0 0.0
  %5003 = vmatprep.subr.mxu0 0.0
  %5004 = vmatpush1.msra.mxu0 0.0
  %5005 = vmatprep.subr.mxu0 0.0
  %5006 = vmatpush1.msra.mxu0 0.0
  %5007 = vmatprep.subr.mxu0 0.0
  %5008 = vmatpush1.msra.mxu0 0.0
  %5009 = vmatprep.subr.mxu0 0.0
  %5010 = vmatpush1.msra.mxu0 0.0
  %5011 = vmatprep.subr.mxu0 0.0
  %5012 = vmatpush1.msra.mxu0 0.0
  %5013 = vmatprep.subr.mxu0 0.0
  %5014 = vmatpush1.msra.mxu0 0.0
  %5015 = vmatprep.subr.mxu0 0.0
  %5016 = vmatpush1.msra.mxu0 0.0
  %5017 = vmatprep.subr.mxu0 0.0
  %5018 = vmatpush1.msra.mxu0 0.0
  %5019 = vmatprep.subr.mxu0 0.0
  %5020 = vmatpush1.msra.mxu0 0.0
  %5021 = vmatprep.mubr.f32.mxu0 0.0
  %5022 = vmatmul.mubr.f32.gmra.mrb[0].mxu0 %v4955
  %v5023 = vpop.f32.mrb[0].mxu0
  %v5024 = vadd.f32 0.0, %v5023
  %v5025 = vpop.f32.mrb[0].mxu0
  %5026 = vdwg.mxu0
  %5027 = vrot.lane.b32.xlu0 %v3854, 64
  %v5028 = vpop.permute.xlu0 %5027
  %v5031 = vsel %vm186, %v4569, 0
  %5033 = vmatprep.subr.mxu0 0.0
  %5034 = vmatpush1.msra.mxu0 %v5028
  %5035 = vmatprep.subr.mxu0 0.0
  %5036 = vmatpush1.msra.mxu0 0.0
  %5037 = vmatprep.subr.mxu0 0.0
  %5038 = vmatpush1.msra.mxu0 0.0
  %5039 = vmatprep.subr.mxu0 0.0
  %5040 = vmatpush1.msra.mxu0 0.0
  %5041 = vmatprep.subr.mxu0 0.0
  %5042 = vmatpush1.msra.mxu0 0.0
  %5043 = vmatprep.subr.mxu0 0.0
  %5044 = vmatpush1.msra.mxu0 0.0
  %5045 = vmatprep.subr.mxu0 0.0
  %5046 = vmatpush1.msra.mxu0 0.0
  %5047 = vmatprep.subr.mxu0 0.0
  %5048 = vmatpush1.msra.mxu0 0.0
  %5049 = vmatprep.subr.mxu0 0.0
  %5050 = vmatpush1.msra.mxu0 0.0
  %5051 = vmatprep.subr.mxu0 0.0
  %5052 = vmatpush1.msra.mxu0 0.0
  %5053 = vmatprep.subr.mxu0 0.0
  %5054 = vmatpush1.msra.mxu0 0.0
  %5055 = vmatprep.subr.mxu0 0.0
  %5056 = vmatpush1.msra.mxu0 0.0
  %5057 = vmatprep.subr.mxu0 0.0
  %5058 = vmatpush1.msra.mxu0 0.0
  %5059 = vmatprep.subr.mxu0 0.0
  %5060 = vmatpush1.msra.mxu0 0.0
  %5061 = vmatprep.subr.mxu0 0.0
  %5062 = vmatpush1.msra.mxu0 0.0
  %5063 = vmatprep.subr.mxu0 0.0
  %5064 = vmatpush1.msra.mxu0 0.0
  %5065 = vmatprep.subr.mxu0 0.0
  %5066 = vmatpush1.msra.mxu0 0.0
  %5067 = vmatprep.subr.mxu0 0.0
  %5068 = vmatpush1.msra.mxu0 0.0
  %5069 = vmatprep.subr.mxu0 0.0
  %5070 = vmatpush1.msra.mxu0 0.0
  %5071 = vmatprep.subr.mxu0 0.0
  %5072 = vmatpush1.msra.mxu0 0.0
  %5073 = vmatprep.subr.mxu0 0.0
  %5074 = vmatpush1.msra.mxu0 0.0
  %5075 = vmatprep.subr.mxu0 0.0
  %5076 = vmatpush1.msra.mxu0 0.0
  %5077 = vmatprep.subr.mxu0 0.0
  %5078 = vmatpush1.msra.mxu0 0.0
  %5079 = vmatprep.subr.mxu0 0.0
  %5080 = vmatpush1.msra.mxu0 0.0
  %5081 = vmatprep.subr.mxu0 0.0
  %5082 = vmatpush1.msra.mxu0 0.0
  %5083 = vmatprep.subr.mxu0 0.0
  %5084 = vmatpush1.msra.mxu0 0.0
  %5085 = vmatprep.subr.mxu0 0.0
  %5086 = vmatpush1.msra.mxu0 0.0
  %5087 = vmatprep.subr.mxu0 0.0
  %5088 = vmatpush1.msra.mxu0 0.0
  %5089 = vmatprep.subr.mxu0 0.0
  %5090 = vmatpush1.msra.mxu0 0.0
  %5091 = vmatprep.subr.mxu0 0.0
  %5092 = vmatpush1.msra.mxu0 0.0
  %5093 = vmatprep.subr.mxu0 0.0
  %5094 = vmatpush1.msra.mxu0 0.0
  %5095 = vmatprep.subr.mxu0 0.0
  %5096 = vmatpush1.msra.mxu0 0.0
  %5097 = vmatprep.mubr.f32.mxu0 0.0
  %5098 = vmatmul.mubr.f32.gmra.mrb[0].mxu0 %v5031
  %v5099 = vpop.f32.mrb[0].mxu0
  %v5100 = vadd.f32 0.0, %v5099
  %v5101 = vpop.f32.mrb[0].mxu0
  %5102 = vdwg.mxu0
  %5103 = vrot.lane.b32.xlu0 %v3856, 64
  %v5104 = vpop.permute.xlu0 %5103
  %v5107 = vsel %vm186, %v4570, 0
  %5109 = vmatprep.subr.mxu0 0.0
  %5110 = vmatpush1.msra.mxu0 %v5104
  %5111 = vmatprep.subr.mxu0 0.0
  %5112 = vmatpush1.msra.mxu0 0.0
  %5113 = vmatprep.subr.mxu0 0.0
  %5114 = vmatpush1.msra.mxu0 0.0
  %5115 = vmatprep.subr.mxu0 0.0
  %5116 = vmatpush1.msra.mxu0 0.0
  %5117 = vmatprep.subr.mxu0 0.0
  %5118 = vmatpush1.msra.mxu0 0.0
  %5119 = vmatprep.subr.mxu0 0.0
  %5120 = vmatpush1.msra.mxu0 0.0
  %5121 = vmatprep.subr.mxu0 0.0
  %5122 = vmatpush1.msra.mxu0 0.0
  %5123 = vmatprep.subr.mxu0 0.0
  %5124 = vmatpush1.msra.mxu0 0.0
  %5125 = vmatprep.subr.mxu0 0.0
  %5126 = vmatpush1.msra.mxu0 0.0
  %5127 = vmatprep.subr.mxu0 0.0
  %5128 = vmatpush1.msra.mxu0 0.0
  %5129 = vmatprep.subr.mxu0 0.0
  %5130 = vmatpush1.msra.mxu0 0.0
  %5131 = vmatprep.subr.mxu0 0.0
  %5132 = vmatpush1.msra.mxu0 0.0
  %5133 = vmatprep.subr.mxu0 0.0
  %5134 = vmatpush1.msra.mxu0 0.0
  %5135 = vmatprep.subr.mxu0 0.0
  %5136 = vmatpush1.msra.mxu0 0.0
  %5137 = vmatprep.subr.mxu0 0.0
  %5138 = vmatpush1.msra.mxu0 0.0
  %5139 = vmatprep.subr.mxu0 0.0
  %5140 = vmatpush1.msra.mxu0 0.0
  %5141 = vmatprep.subr.mxu0 0.0
  %5142 = vmatpush1.msra.mxu0 0.0
  %5143 = vmatprep.subr.mxu0 0.0
  %5144 = vmatpush1.msra.mxu0 0.0
  %5145 = vmatprep.subr.mxu0 0.0
  %5146 = vmatpush1.msra.mxu0 0.0
  %5147 = vmatprep.subr.mxu0 0.0
  %5148 = vmatpush1.msra.mxu0 0.0
  %5149 = vmatprep.subr.mxu0 0.0
  %5150 = vmatpush1.msra.mxu0 0.0
  %5151 = vmatprep.subr.mxu0 0.0
  %5152 = vmatpush1.msra.mxu0 0.0
  %5153 = vmatprep.subr.mxu0 0.0
  %5154 = vmatpush1.msra.mxu0 0.0
  %5155 = vmatprep.subr.mxu0 0.0
  %5156 = vmatpush1.msra.mxu0 0.0
  %5157 = vmatprep.subr.mxu0 0.0
  %5158 = vmatpush1.msra.mxu0 0.0
  %5159 = vmatprep.subr.mxu0 0.0
  %5160 = vmatpush1.msra.mxu0 0.0
  %5161 = vmatprep.subr.mxu0 0.0
  %5162 = vmatpush1.msra.mxu0 0.0
  %5163 = vmatprep.subr.mxu0 0.0
  %5164 = vmatpush1.msra.mxu0 0.0
  %5165 = vmatprep.subr.mxu0 0.0
  %5166 = vmatpush1.msra.mxu0 0.0
  %5167 = vmatprep.subr.mxu0 0.0
  %5168 = vmatpush1.msra.mxu0 0.0
  %5169 = vmatprep.subr.mxu0 0.0
  %5170 = vmatpush1.msra.mxu0 0.0
  %5171 = vmatprep.subr.mxu0 0.0
  %5172 = vmatpush1.msra.mxu0 0.0
  %5173 = vmatprep.mubr.f32.mxu0 0.0
  %5174 = vmatmul.mubr.f32.gmra.mrb[0].mxu0 %v5107
  %v5175 = vpop.f32.mrb[0].mxu0
  %v5176 = vadd.f32 0.0, %v5175
  %v5177 = vpop.f32.mrb[0].mxu0
  %5178 = vdwg.mxu0
  %5181 = vrot.lane.b32.xlu0 %v4796, 8
  %v5182 = vpop.permute.xlu0 %5181
  %5183 = vrot.lane.b32.xlu0 %v4872, 8
  %v5184 = vpop.permute.xlu0 %5183
  %5189 = vrot.lane.b32.xlu0 %v4948, 16
  %v5190 = vpop.permute.xlu0 %5189
  %5191 = vrot.lane.b32.xlu0 %v5024, 16
  %v5192 = vpop.permute.xlu0 %5191
  %5197 = vrot.lane.b32.xlu0 %v5100, 24
  %v5198 = vpop.permute.xlu0 %5197
  %5199 = vrot.lane.b32.xlu0 %v5176, 24
  %v5200 = vpop.permute.xlu0 %5199
  %v5203 = vsel %vm186, %v4644, %v5182
  %v5204 = vsel %vm186, %v4720, %v5184
  %v5205 = vsel %vm1523, %v5203, %v5190
  %v5206 = vsel %vm1523, %v5204, %v5192
  %v5207 = vsel %vm1526, %v5205, %v5198
  %v5208 = vsel %vm1526, %v5206, %v5200
  %s5209 = scalar_lea.vmem %s4, 32
  %v5210 = vld [vmem:[%s5209] sm:$0xff]
  %v5211 = vld [vmem:[%s5209 + $0x8] sm:$0xff]
  %v5212 = vld [vmem:[%s5209 + $0x10] sm:$0xff]
  %v5213 = vld [vmem:[%s5209 + $0x18] sm:$0xff]
  %s5214 = scalar_lea.vmem %s5, 1
  %v5215 = vld [vmem:[%s5214] sm:$0x1]
  %v5217 = vlaneseq
  %v5218 = vshrl.u32 %v5217, 7
  %v5219 = vsub.s32 0, %v5218
  %v5220 = vrot.slane %v5215, %v5219
  %v5223 = vsel %vm74, %v5207, 0
  %v5226 = vsel %vm74, %v5208, 0
  %5228 = vmatprep.subr.mxu0 0.0
  %5229 = vmatpush1.msra.mxu0 %v5210
  %5230 = vmatprep.subr.mxu0 0.0
  %5231 = vmatpush1.msra.mxu0 %v5211
  %5232 = vmatprep.subr.mxu0 0.0
  %5233 = vmatpush1.msra.mxu0 %v5212
  %5234 = vmatprep.subr.mxu0 0.0
  %5235 = vmatpush1.msra.mxu0 %v5213
  %5236 = vmatprep.subr.mxu0 0.0
  %5237 = vmatpush1.msra.mxu0 0.0
  %5238 = vmatprep.subr.mxu0 0.0
  %5239 = vmatpush1.msra.mxu0 0.0
  %5240 = vmatprep.subr.mxu0 0.0
  %5241 = vmatpush1.msra.mxu0 0.0
  %5242 = vmatprep.subr.mxu0 0.0
  %5243 = vmatpush1.msra.mxu0 0.0
  %5244 = vmatprep.subr.mxu0 0.0
  %5245 = vmatpush1.msra.mxu0 0.0
  %5246 = vmatprep.subr.mxu0 0.0
  %5247 = vmatpush1.msra.mxu0 0.0
  %5248 = vmatprep.subr.mxu0 0.0
  %5249 = vmatpush1.msra.mxu0 0.0
  %5250 = vmatprep.subr.mxu0 0.0
  %5251 = vmatpush1.msra.mxu0 0.0
  %5252 = vmatprep.subr.mxu0 0.0
  %5253 = vmatpush1.msra.mxu0 0.0
  %5254 = vmatprep.subr.mxu0 0.0
  %5255 = vmatpush1.msra.mxu0 0.0
  %5256 = vmatprep.subr.mxu0 0.0
  %5257 = vmatpush1.msra.mxu0 0.0
  %5258 = vmatprep.subr.mxu0 0.0
  %5259 = vmatpush1.msra.mxu0 0.0
  %5260 = vmatprep.subr.mxu0 0.0
  %5261 = vmatpush1.msra.mxu0 0.0
  %5262 = vmatprep.subr.mxu0 0.0
  %5263 = vmatpush1.msra.mxu0 0.0
  %5264 = vmatprep.subr.mxu0 0.0
  %5265 = vmatpush1.msra.mxu0 0.0
  %5266 = vmatprep.subr.mxu0 0.0
  %5267 = vmatpush1.msra.mxu0 0.0
  %5268 = vmatprep.subr.mxu0 0.0
  %5269 = vmatpush1.msra.mxu0 0.0
  %5270 = vmatprep.subr.mxu0 0.0
  %5271 = vmatpush1.msra.mxu0 0.0
  %5272 = vmatprep.subr.mxu0 0.0
  %5273 = vmatpush1.msra.mxu0 0.0
  %5274 = vmatprep.subr.mxu0 0.0
  %5275 = vmatpush1.msra.mxu0 0.0
  %5276 = vmatprep.subr.mxu0 0.0
  %5277 = vmatpush1.msra.mxu0 0.0
  %5278 = vmatprep.subr.mxu0 0.0
  %5279 = vmatpush1.msra.mxu0 0.0
  %5280 = vmatprep.subr.mxu0 0.0
  %5281 = vmatpush1.msra.mxu0 0.0
  %5282 = vmatprep.subr.mxu0 0.0
  %5283 = vmatpush1.msra.mxu0 0.0
  %5284 = vmatprep.subr.mxu0 0.0
  %5285 = vmatpush1.msra.mxu0 0.0
  %5286 = vmatprep.subr.mxu0 0.0
  %5287 = vmatpush1.msra.mxu0 0.0
  %5288 = vmatprep.subr.mxu0 0.0
  %5289 = vmatpush1.msra.mxu0 0.0
  %5290 = vmatprep.subr.mxu0 0.0
  %5291 = vmatpush1.msra.mxu0 0.0
  %5292 = vmatprep.mubr.f32.mxu0 0.0
  %5293 = vmatmul.mubr.f32.gmra.mrb[0].mxu0 %v5223
  %v5294 = vpop.f32.mrb[0].mxu0
  %v5295 = vadd.f32 %v5220, %v5294
  %v5296 = vpop.f32.mrb[0].mxu0
  %5297 = vmatprep.mubr.f32.mxu0 0.0
  %5298 = vmatmul.mubr.f32.gmra.mrb[0].mxu0 %v5226
  %v5299 = vpop.f32.mrb[0].mxu0
  %v5300 = vadd.f32 %v5220, %v5299
  %v5301 = vpop.f32.mrb[0].mxu0
  %5302 = vdwg.mxu0
  %v5303 = vadd.f32 %v3743, %v5295
  %v5304 = vadd.f32 %v3744, %v5300
  %s5305 = scalar_lea.vmem %s6, 1
  %v5306 = vld [vmem:[%s5305] sm:$0x1]
  %s5307 = scalar_lea.vmem %s7, 1
  %v5308 = vld [vmem:[%s5307] sm:$0x1]
  %v5309 = vsel %vm74, %v5303, 0.0
  %5310 = vadd.xlane.f32.xlu0 %v5309
  %v5311 = vpop.xlane.xlu0 %5310
  %v5312 = vsel %vm74, %v5304, 0.0
  %5313 = vadd.xlane.f32.xlu0 %v5312
  %v5314 = vpop.xlane.xlu0 %5313
  %v5315 = vmul.f32 %v5311, %v1631
  %v5316 = vmul.f32 %v5314, %v1631
  %v5317 = vsub.f32 %v5303, %v5315
  %v5318 = vsub.f32 %v5304, %v5316
  %v5319 = vmul.f32 %v5317, %v5317
  %v5320 = vmul.f32 %v5318, %v5318
  %v5321 = vsel %vm74, %v5319, 0.0
  %5322 = vadd.xlane.f32.xlu0 %v5321
  %v5323 = vpop.xlane.xlu0 %5322
  %v5324 = vsel %vm74, %v5320, 0.0
  %5325 = vadd.xlane.f32.xlu0 %v5324
  %v5326 = vpop.xlane.xlu0 %5325
  %v5327 = vmul.f32 %v5323, %v1631
  %v5328 = vmul.f32 %v5326, %v1631
  %v5329 = vadd.f32 %v5327, 1e-05
  %v5330 = vadd.f32 %v5328, 1e-05
  %v5331 = vrsqrt.pop %v5329
  %v5332 = vrsqrt.pop %v5330
  %v5333 = vmul.f32 %v5317, %v5331
  %v5334 = vmul.f32 %v5318, %v5332
  %v5336 = vlaneseq
  %v5337 = vshrl.u32 %v5336, 7
  %v5338 = vsub.s32 0, %v5337
  %v5339 = vrot.slane %v5306, %v5338
  %v5341 = vmul.f32 %v5333, %v5339
  %v5342 = vmul.f32 %v5334, %v5339
  %v5344 = vlaneseq
  %v5345 = vshrl.u32 %v5344, 7
  %v5346 = vsub.s32 0, %v5345
  %v5347 = vrot.slane %v5308, %v5346
  %v5349 = vadd.f32 %v5341, %v5347
  %v5350 = vadd.f32 %v5342, %v5347
  %v5351 = vpack.c.bf16 %v5350, %v5349
  %s5352 = scalar_lea.vmem %s8, 256
  %v5353 = vld [vmem:[%s5352] sm:$0xff]
  %v5354 = vld [vmem:[%s5352 + $0x8] sm:$0xff]
  %v5355 = vld [vmem:[%s5352 + $0x10] sm:$0xff]
  %v5356 = vld [vmem:[%s5352 + $0x18] sm:$0xff]
  %v5357 = vld [vmem:[%s5352 + $0x20] sm:$0xff]
  %v5358 = vld [vmem:[%s5352 + $0x28] sm:$0xff]
  %v5359 = vld [vmem:[%s5352 + $0x30] sm:$0xff]
  %v5360 = vld [vmem:[%s5352 + $0x38] sm:$0xff]
  %v5361 = vld [vmem:[%s5352 + $0x40] sm:$0xff]
  %v5362 = vld [vmem:[%s5352 + $0x48] sm:$0xff]
  %v5363 = vld [vmem:[%s5352 + $0x50] sm:$0xff]
  %v5364 = vld [vmem:[%s5352 + $0x58] sm:$0xff]
  %v5365 = vld [vmem:[%s5352 + $0x60] sm:$0xff]
  %v5366 = vld [vmem:[%s5352 + $0x68] sm:$0xff]
  %v5367 = vld [vmem:[%s5352 + $0x70] sm:$0xff]
  %v5368 = vld [vmem:[%s5352 + $0x78] sm:$0xff]
  %v5369 = vld [vmem:[%s5352 + $0x80] sm:$0xff]
  %v5370 = vld [vmem:[%s5352 + $0x88] sm:$0xff]
  %v5371 = vld [vmem:[%s5352 + $0x90] sm:$0xff]
  %v5372 = vld [vmem:[%s5352 + $0x98] sm:$0xff]
  %v5373 = vld [vmem:[%s5352 + $0xa0] sm:$0xff]
  %v5374 = vld [vmem:[%s5352 + $0xa8] sm:$0xff]
  %v5375 = vld [vmem:[%s5352 + $0xb0] sm:$0xff]
  %v5376 = vld [vmem:[%s5352 + $0xb8] sm:$0xff]
  %v5377 = vld [vmem:[%s5352 + $0xc0] sm:$0xff]
  %v5378 = vld [vmem:[%s5352 + $0xc8] sm:$0xff]
  %v5379 = vld [vmem:[%s5352 + $0xd0] sm:$0xff]
  %v5380 = vld [vmem:[%s5352 + $0xd8] sm:$0xff]
  %v5381 = vld [vmem:[%s5352 + $0xe0] sm:$0xff]
  %v5382 = vld [vmem:[%s5352 + $0xe8] sm:$0xff]
  %v5383 = vld [vmem:[%s5352 + $0xf0] sm:$0xff]
  %v5384 = vld [vmem:[%s5352 + $0xf8] sm:$0xff]
  %s5385 = scalar_lea.vmem %s9, 16
  %v5386 = vld [vmem:[%s5385] sm:$0xff]
  %v5387 = vld [vmem:[%s5385 + $0x8] sm:$0xff]
  %v5390 = vlaneseq
  %v5391 = vshrl.u32 %v5390, 7
  %v5392 = vsub.s32 0, %v5391
  %v5393 = vrot.slane %v5386, %v5392
  %v5394 = vlaneseq
  %v5395 = vshrl.u32 %v5394, 7
  %v5396 = vsub.s32 1, %v5395
  %v5397 = vrot.slane %v5386, %v5396
  %v5398 = vlaneseq
  %v5399 = vshrl.u32 %v5398, 7
  %v5400 = vsub.s32 2, %v5399
  %v5401 = vrot.slane %v5386, %v5400
  %v5402 = vlaneseq
  %v5403 = vshrl.u32 %v5402, 7
  %v5404 = vsub.s32 3, %v5403
  %v5405 = vrot.slane %v5386, %v5404
  %v5406 = vlaneseq
  %v5407 = vshrl.u32 %v5406, 7
  %v5408 = vsub.s32 4, %v5407
  %v5409 = vrot.slane %v5386, %v5408
  %v5410 = vlaneseq
  %v5411 = vshrl.u32 %v5410, 7
  %v5412 = vsub.s32 5, %v5411
  %v5413 = vrot.slane %v5386, %v5412
  %v5414 = vlaneseq
  %v5415 = vshrl.u32 %v5414, 7
  %v5416 = vsub.s32 6, %v5415
  %v5417 = vrot.slane %v5386, %v5416
  %v5418 = vlaneseq
  %v5419 = vshrl.u32 %v5418, 7
  %v5420 = vsub.s32 7, %v5419
  %v5421 = vrot.slane %v5386, %v5420
  %v5422 = vlaneseq
  %v5423 = vshrl.u32 %v5422, 7
  %v5424 = vsub.s32 0, %v5423
  %v5425 = vrot.slane %v5387, %v5424
  %v5426 = vlaneseq
  %v5427 = vshrl.u32 %v5426, 7
  %v5428 = vsub.s32 1, %v5427
  %v5429 = vrot.slane %v5387, %v5428
  %v5430 = vlaneseq
  %v5431 = vshrl.u32 %v5430, 7
  %v5432 = vsub.s32 2, %v5431
  %v5433 = vrot.slane %v5387, %v5432
  %v5434 = vlaneseq
  %v5435 = vshrl.u32 %v5434, 7
  %v5436 = vsub.s32 3, %v5435
  %v5437 = vrot.slane %v5387, %v5436
  %v5438 = vlaneseq
  %v5439 = vshrl.u32 %v5438, 7
  %v5440 = vsub.s32 4, %v5439
  %v5441 = vrot.slane %v5387, %v5440
  %v5442 = vlaneseq
  %v5443 = vshrl.u32 %v5442, 7
  %v5444 = vsub.s32 5, %v5443
  %v5445 = vrot.slane %v5387, %v5444
  %v5446 = vlaneseq
  %v5447 = vshrl.u32 %v5446, 7
  %v5448 = vsub.s32 6, %v5447
  %v5449 = vrot.slane %v5387, %v5448
  %v5450 = vlaneseq
  %v5451 = vshrl.u32 %v5450, 7
  %v5452 = vsub.s32 7, %v5451
  %v5453 = vrot.slane %v5387, %v5452
  %v5502 = vunpack.c.l.b16 %v5353
  %v5503 = vunpack.c.h.b16 %v5353
  %v5504 = vunpack.c.l.b16 %v5354
  %v5505 = vunpack.c.h.b16 %v5354
  %v5506 = vunpack.c.l.b16 %v5355
  %v5507 = vunpack.c.h.b16 %v5355
  %v5508 = vunpack.c.l.b16 %v5356
  %v5509 = vunpack.c.h.b16 %v5356
  %v5510 = vunpack.c.l.b16 %v5357
  %v5511 = vunpack.c.h.b16 %v5357
  %v5512 = vunpack.c.l.b16 %v5358
  %v5513 = vunpack.c.h.b16 %v5358
  %v5514 = vunpack.c.l.b16 %v5359
  %v5515 = vunpack.c.h.b16 %v5359
  %v5516 = vunpack.c.l.b16 %v5360
  %v5517 = vunpack.c.h.b16 %v5360
  %v5518 = vunpack.c.l.b16 %v5361
  %v5519 = vunpack.c.h.b16 %v5361
  %v5520 = vunpack.c.l.b16 %v5362
  %v5521 = vunpack.c.h.b16 %v5362
  %v5522 = vunpack.c.l.b16 %v5363
  %v5523 = vunpack.c.h.b16 %v5363
  %v5524 = vunpack.c.l.b16 %v5364
  %v5525 = vunpack.c.h.b16 %v5364
  %v5526 = vunpack.c.l.b16 %v5365
  %v5527 = vunpack.c.h.b16 %v5365
  %v5528 = vunpack.c.l.b16 %v5366
  %v5529 = vunpack.c.h.b16 %v5366
  %v5530 = vunpack.c.l.b16 %v5367
  %v5531 = vunpack.c.h.b16 %v5367
  %v5532 = vunpack.c.l.b16 %v5368
  %v5533 = vunpack.c.h.b16 %v5368
  %v5534 = vunpack.c.l.b16 %v5369
  %v5535 = vunpack.c.h.b16 %v5369
  %v5536 = vunpack.c.l.b16 %v5370
  %v5537 = vunpack.c.h.b16 %v5370
  %v5538 = vunpack.c.l.b16 %v5371
  %v5539 = vunpack.c.h.b16 %v5371
  %v5540 = vunpack.c.l.b16 %v5372
  %v5541 = vunpack.c.h.b16 %v5372
  %v5542 = vunpack.c.l.b16 %v5373
  %v5543 = vunpack.c.h.b16 %v5373
  %v5544 = vunpack.c.l.b16 %v5374
  %v5545 = vunpack.c.h.b16 %v5374
  %v5546 = vunpack.c.l.b16 %v5375
  %v5547 = vunpack.c.h.b16 %v5375
  %v5548 = vunpack.c.l.b16 %v5376
  %v5549 = vunpack.c.h.b16 %v5376
  %v5550 = vunpack.c.l.b16 %v5377
  %v5551 = vunpack.c.h.b16 %v5377
  %v5552 = vunpack.c.l.b16 %v5378
  %v5553 = vunpack.c.h.b16 %v5378
  %v5554 = vunpack.c.l.b16 %v5379
  %v5555 = vunpack.c.h.b16 %v5379
  %v5556 = vunpack.c.l.b16 %v5380
  %v5557 = vunpack.c.h.b16 %v5380
  %v5558 = vunpack.c.l.b16 %v5381
  %v5559 = vunpack.c.h.b16 %v5381
  %v5560 = vunpack.c.l.b16 %v5382
  %v5561 = vunpack.c.h.b16 %v5382
  %v5562 = vunpack.c.l.b16 %v5383
  %v5563 = vunpack.c.h.b16 %v5383
  %v5564 = vunpack.c.l.b16 %v5384
  %v5565 = vunpack.c.h.b16 %v5384
  %v5566 = vpack.c.b16 %v5518, %v5502
  %v5567 = vpack.c.b16 %v5519, %v5503
  %v5568 = vpack.c.b16 %v5520, %v5504
  %v5569 = vpack.c.b16 %v5521, %v5505
  %v5570 = vpack.c.b16 %v5522, %v5506
  %v5571 = vpack.c.b16 %v5523, %v5507
  %v5572 = vpack.c.b16 %v5524, %v5508
  %v5573 = vpack.c.b16 %v5525, %v5509
  %v5574 = vpack.c.b16 %v5526, %v5510
  %v5575 = vpack.c.b16 %v5527, %v5511
  %v5576 = vpack.c.b16 %v5528, %v5512
  %v5577 = vpack.c.b16 %v5529, %v5513
  %v5578 = vpack.c.b16 %v5530, %v5514
  %v5579 = vpack.c.b16 %v5531, %v5515
  %v5580 = vpack.c.b16 %v5532, %v5516
  %v5581 = vpack.c.b16 %v5533, %v5517
  %v5582 = vpack.c.b16 %v5550, %v5534
  %v5583 = vpack.c.b16 %v5551, %v5535
  %v5584 = vpack.c.b16 %v5552, %v5536
  %v5585 = vpack.c.b16 %v5553, %v5537
  %v5586 = vpack.c.b16 %v5554, %v5538
  %v5587 = vpack.c.b16 %v5555, %v5539
  %v5588 = vpack.c.b16 %v5556, %v5540
  %v5589 = vpack.c.b16 %v5557, %v5541
  %v5590 = vpack.c.b16 %v5558, %v5542
  %v5591 = vpack.c.b16 %v5559, %v5543
  %v5592 = vpack.c.b16 %v5560, %v5544
  %v5593 = vpack.c.b16 %v5561, %v5545
  %v5594 = vpack.c.b16 %v5562, %v5546
  %v5595 = vpack.c.b16 %v5563, %v5547
  %v5596 = vpack.c.b16 %v5564, %v5548
  %v5597 = vpack.c.b16 %v5565, %v5549
  %v5631 = vsel %vm74, %v5351, 0
  %5633 = vmatprep.subr.bf16.mxu0 %v5567
  %5634 = vmatpush1.bf16.msra.mxu0 %v5566
  %5635 = vmatprep.subr.bf16.mxu0 %v5583
  %5636 = vmatpush1.bf16.msra.mxu0 %v5582
  %5637 = vmatprep.subr.bf16.mxu0 0
  %5638 = vmatpush1.bf16.msra.mxu0 0
  %5639 = vmatprep.subr.bf16.mxu0 0
  %5640 = vmatpush1.bf16.msra.mxu0 0
  %5641 = vmatprep.subr.bf16.mxu0 0
  %5642 = vmatpush1.bf16.msra.mxu0 0
  %5643 = vmatprep.subr.bf16.mxu0 0
  %5644 = vmatpush1.bf16.msra.mxu0 0
  %5645 = vmatprep.subr.bf16.mxu0 0
  %5646 = vmatpush1.bf16.msra.mxu0 0
  %5647 = vmatprep.subr.bf16.mxu0 0
  %5648 = vmatpush1.bf16.msra.mxu0 0
  %5649 = vmatprep.subr.bf16.mxu0 0
  %5650 = vmatpush1.bf16.msra.mxu0 0
  %5651 = vmatprep.subr.bf16.mxu0 0
  %5652 = vmatpush1.bf16.msra.mxu0 0
  %5653 = vmatprep.subr.bf16.mxu0 0
  %5654 = vmatpush1.bf16.msra.mxu0 0
  %5655 = vmatprep.subr.bf16.mxu0 0
  %5656 = vmatpush1.bf16.msra.mxu0 0
  %5657 = vmatprep.subr.bf16.mxu0 0
  %5658 = vmatpush1.bf16.msra.mxu0 0
  %5659 = vmatprep.subr.bf16.mxu0 0
  %5660 = vmatpush1.bf16.msra.mxu0 0
  %5661 = vmatprep.subr.bf16.mxu0 0
  %5662 = vmatpush1.bf16.msra.mxu0 0
  %5663 = vmatprep.subr.bf16.mxu0 0
  %5664 = vmatpush1.bf16.msra.mxu0 0
  %5665 = vmatprep.mubr.bf16.mxu0 0
  %5666 = vmatmul.mubr.bf16.gmra.mrb[0].mxu0 %v5631
  %v5667 = vpop.f32.mrb[0].mxu0
  %v5668 = vadd.f32 %v5393, %v5667
  %v5669 = vpop.f32.mrb[0].mxu0
  %v5670 = vadd.f32 %v5397, %v5669
  %v5671 = vpop.f32.mrb[0].mxu0
  %v5672 = vadd.f32 %v5393, %v5671
  %v5673 = vpop.f32.mrb[0].mxu0
  %v5674 = vadd.f32 %v5397, %v5673
  %5675 = vdwg.mxu0
  %5676 = vmatprep.subr.bf16.mxu0 %v5569
  %5677 = vmatpush1.bf16.msra.mxu0 %v5568
  %5678 = vmatprep.subr.bf16.mxu0 %v5585
  %5679 = vmatpush1.bf16.msra.mxu0 %v5584
  %5680 = vmatprep.subr.bf16.mxu0 0
  %5681 = vmatpush1.bf16.msra.mxu0 0
  %5682 = vmatprep.subr.bf16.mxu0 0
  %5683 = vmatpush1.bf16.msra.mxu0 0
  %5684 = vmatprep.subr.bf16.mxu0 0
  %5685 = vmatpush1.bf16.msra.mxu0 0
  %5686 = vmatprep.subr.bf16.mxu0 0
  %5687 = vmatpush1.bf16.msra.mxu0 0
  %5688 = vmatprep.subr.bf16.mxu0 0
  %5689 = vmatpush1.bf16.msra.mxu0 0
  %5690 = vmatprep.subr.bf16.mxu0 0
  %5691 = vmatpush1.bf16.msra.mxu0 0
  %5692 = vmatprep.subr.bf16.mxu0 0
  %5693 = vmatpush1.bf16.msra.mxu0 0
  %5694 = vmatprep.subr.bf16.mxu0 0
  %5695 = vmatpush1.bf16.msra.mxu0 0
  %5696 = vmatprep.subr.bf16.mxu0 0
  %5697 = vmatpush1.bf16.msra.mxu0 0
  %5698 = vmatprep.subr.bf16.mxu0 0
  %5699 = vmatpush1.bf16.msra.mxu0 0
  %5700 = vmatprep.subr.bf16.mxu0 0
  %5701 = vmatpush1.bf16.msra.mxu0 0
  %5702 = vmatprep.subr.bf16.mxu0 0
  %5703 = vmatpush1.bf16.msra.mxu0 0
  %5704 = vmatprep.subr.bf16.mxu0 0
  %5705 = vmatpush1.bf16.msra.mxu0 0
  %5706 = vmatprep.subr.bf16.mxu0 0
  %5707 = vmatpush1.bf16.msra.mxu0 0
  %5708 = vmatprep.mubr.bf16.mxu0 0
  %5709 = vmatmul.mubr.bf16.gmra.mrb[0].mxu0 %v5631
  %v5710 = vpop.f32.mrb[0].mxu0
  %v5711 = vadd.f32 %v5401, %v5710
  %v5712 = vpop.f32.mrb[0].mxu0
  %v5713 = vadd.f32 %v5405, %v5712
  %v5714 = vpop.f32.mrb[0].mxu0
  %v5715 = vadd.f32 %v5401, %v5714
  %v5716 = vpop.f32.mrb[0].mxu0
  %v5717 = vadd.f32 %v5405, %v5716
  %5718 = vdwg.mxu0
  %5719 = vmatprep.subr.bf16.mxu0 %v5571
  %5720 = vmatpush1.bf16.msra.mxu0 %v5570
  %5721 = vmatprep.subr.bf16.mxu0 %v5587
  %5722 = vmatpush1.bf16.msra.mxu0 %v5586
  %5723 = vmatprep.subr.bf16.mxu0 0
  %5724 = vmatpush1.bf16.msra.mxu0 0
  %5725 = vmatprep.subr.bf16.mxu0 0
  %5726 = vmatpush1.bf16.msra.mxu0 0
  %5727 = vmatprep.subr.bf16.mxu0 0
  %5728 = vmatpush1.bf16.msra.mxu0 0
  %5729 = vmatprep.subr.bf16.mxu0 0
  %5730 = vmatpush1.bf16.msra.mxu0 0
  %5731 = vmatprep.subr.bf16.mxu0 0
  %5732 = vmatpush1.bf16.msra.mxu0 0
  %5733 = vmatprep.subr.bf16.mxu0 0
  %5734 = vmatpush1.bf16.msra.mxu0 0
  %5735 = vmatprep.subr.bf16.mxu0 0
  %5736 = vmatpush1.bf16.msra.mxu0 0
  %5737 = vmatprep.subr.bf16.mxu0 0
  %5738 = vmatpush1.bf16.msra.mxu0 0
  %5739 = vmatprep.subr.bf16.mxu0 0
  %5740 = vmatpush1.bf16.msra.mxu0 0
  %5741 = vmatprep.subr.bf16.mxu0 0
  %5742 = vmatpush1.bf16.msra.mxu0 0
  %5743 = vmatprep.subr.bf16.mxu0 0
  %5744 = vmatpush1.bf16.msra.mxu0 0
  %5745 = vmatprep.subr.bf16.mxu0 0
  %5746 = vmatpush1.bf16.msra.mxu0 0
  %5747 = vmatprep.subr.bf16.mxu0 0
  %5748 = vmatpush1.bf16.msra.mxu0 0
  %5749 = vmatprep.subr.bf16.mxu0 0
  %5750 = vmatpush1.bf16.msra.mxu0 0
  %5751 = vmatprep.mubr.bf16.mxu0 0
  %5752 = vmatmul.mubr.bf16.gmra.mrb[0].mxu0 %v5631
  %v5753 = vpop.f32.mrb[0].mxu0
  %v5754 = vadd.f32 %v5409, %v5753
  %v5755 = vpop.f32.mrb[0].mxu0
  %v5756 = vadd.f32 %v5413, %v5755
  %v5757 = vpop.f32.mrb[0].mxu0
  %v5758 = vadd.f32 %v5409, %v5757
  %v5759 = vpop.f32.mrb[0].mxu0
  %v5760 = vadd.f32 %v5413, %v5759
  %5761 = vdwg.mxu0
  %5762 = vmatprep.subr.bf16.mxu0 %v5573
  %5763 = vmatpush1.bf16.msra.mxu0 %v5572
  %5764 = vmatprep.subr.bf16.mxu0 %v5589
  %5765 = vmatpush1.bf16.msra.mxu0 %v5588
  %5766 = vmatprep.subr.bf16.mxu0 0
  %5767 = vmatpush1.bf16.msra.mxu0 0
  %5768 = vmatprep.subr.bf16.mxu0 0
  %5769 = vmatpush1.bf16.msra.mxu0 0
  %5770 = vmatprep.subr.bf16.mxu0 0
  %5771 = vmatpush1.bf16.msra.mxu0 0
  %5772 = vmatprep.subr.bf16.mxu0 0
  %5773 = vmatpush1.bf16.msra.mxu0 0
  %5774 = vmatprep.subr.bf16.mxu0 0
  %5775 = vmatpush1.bf16.msra.mxu0 0
  %5776 = vmatprep.subr.bf16.mxu0 0
  %5777 = vmatpush1.bf16.msra.mxu0 0
  %5778 = vmatprep.subr.bf16.mxu0 0
  %5779 = vmatpush1.bf16.msra.mxu0 0
  %5780 = vmatprep.subr.bf16.mxu0 0
  %5781 = vmatpush1.bf16.msra.mxu0 0
  %5782 = vmatprep.subr.bf16.mxu0 0
  %5783 = vmatpush1.bf16.msra.mxu0 0
  %5784 = vmatprep.subr.bf16.mxu0 0
  %5785 = vmatpush1.bf16.msra.mxu0 0
  %5786 = vmatprep.subr.bf16.mxu0 0
  %5787 = vmatpush1.bf16.msra.mxu0 0
  %5788 = vmatprep.subr.bf16.mxu0 0
  %5789 = vmatpush1.bf16.msra.mxu0 0
  %5790 = vmatprep.subr.bf16.mxu0 0
  %5791 = vmatpush1.bf16.msra.mxu0 0
  %5792 = vmatprep.subr.bf16.mxu0 0
  %5793 = vmatpush1.bf16.msra.mxu0 0
  %5794 = vmatprep.mubr.bf16.mxu0 0
  %5795 = vmatmul.mubr.bf16.gmra.mrb[0].mxu0 %v5631
  %v5796 = vpop.f32.mrb[0].mxu0
  %v5797 = vadd.f32 %v5417, %v5796
  %v5798 = vpop.f32.mrb[0].mxu0
  %v5799 = vadd.f32 %v5421, %v5798
  %v5800 = vpop.f32.mrb[0].mxu0
  %v5801 = vadd.f32 %v5417, %v5800
  %v5802 = vpop.f32.mrb[0].mxu0
  %v5803 = vadd.f32 %v5421, %v5802
  %5804 = vdwg.mxu0
  %5805 = vmatprep.subr.bf16.mxu0 %v5575
  %5806 = vmatpush1.bf16.msra.mxu0 %v5574
  %5807 = vmatprep.subr.bf16.mxu0 %v5591
  %5808 = vmatpush1.bf16.msra.mxu0 %v5590
  %5809 = vmatprep.subr.bf16.mxu0 0
  %5810 = vmatpush1.bf16.msra.mxu0 0
  %5811 = vmatprep.subr.bf16.mxu0 0
  %5812 = vmatpush1.bf16.msra.mxu0 0
  %5813 = vmatprep.subr.bf16.mxu0 0
  %5814 = vmatpush1.bf16.msra.mxu0 0
  %5815 = vmatprep.subr.bf16.mxu0 0
  %5816 = vmatpush1.bf16.msra.mxu0 0
  %5817 = vmatprep.subr.bf16.mxu0 0
  %5818 = vmatpush1.bf16.msra.mxu0 0
  %5819 = vmatprep.subr.bf16.mxu0 0
  %5820 = vmatpush1.bf16.msra.mxu0 0
  %5821 = vmatprep.subr.bf16.mxu0 0
  %5822 = vmatpush1.bf16.msra.mxu0 0
  %5823 = vmatprep.subr.bf16.mxu0 0
  %5824 = vmatpush1.bf16.msra.mxu0 0
  %5825 = vmatprep.subr.bf16.mxu0 0
  %5826 = vmatpush1.bf16.msra.mxu0 0
  %5827 = vmatprep.subr.bf16.mxu0 0
  %5828 = vmatpush1.bf16.msra.mxu0 0
  %5829 = vmatprep.subr.bf16.mxu0 0
  %5830 = vmatpush1.bf16.msra.mxu0 0
  %5831 = vmatprep.subr.bf16.mxu0 0
  %5832 = vmatpush1.bf16.msra.mxu0 0
  %5833 = vmatprep.subr.bf16.mxu0 0
  %5834 = vmatpush1.bf16.msra.mxu0 0
  %5835 = vmatprep.subr.bf16.mxu0 0
  %5836 = vmatpush1.bf16.msra.mxu0 0
  %5837 = vmatprep.mubr.bf16.mxu0 0
  %5838 = vmatmul.mubr.bf16.gmra.mrb[0].mxu0 %v5631
  %v5839 = vpop.f32.mrb[0].mxu0
  %v5840 = vadd.f32 %v5425, %v5839
  %v5841 = vpop.f32.mrb[0].mxu0
  %v5842 = vadd.f32 %v5429, %v5841
  %v5843 = vpop.f32.mrb[0].mxu0
  %v5844 = vadd.f32 %v5425, %v5843
  %v5845 = vpop.f32.mrb[0].mxu0
  %v5846 = vadd.f32 %v5429, %v5845
  %5847 = vdwg.mxu0
  %5848 = vmatprep.subr.bf16.mxu0 %v5577
  %5849 = vmatpush1.bf16.msra.mxu0 %v5576
  %5850 = vmatprep.subr.bf16.mxu0 %v5593
  %5851 = vmatpush1.bf16.msra.mxu0 %v5592
  %5852 = vmatprep.subr.bf16.mxu0 0
  %5853 = vmatpush1.bf16.msra.mxu0 0
  %5854 = vmatprep.subr.bf16.mxu0 0
  %5855 = vmatpush1.bf16.msra.mxu0 0
  %5856 = vmatprep.subr.bf16.mxu0 0
  %5857 = vmatpush1.bf16.msra.mxu0 0
  %5858 = vmatprep.subr.bf16.mxu0 0
  %5859 = vmatpush1.bf16.msra.mxu0 0
  %5860 = vmatprep.subr.bf16.mxu0 0
  %5861 = vmatpush1.bf16.msra.mxu0 0
  %5862 = vmatprep.subr.bf16.mxu0 0
  %5863 = vmatpush1.bf16.msra.mxu0 0
  %5864 = vmatprep.subr.bf16.mxu0 0
  %5865 = vmatpush1.bf16.msra.mxu0 0
  %5866 = vmatprep.subr.bf16.mxu0 0
  %5867 = vmatpush1.bf16.msra.mxu0 0
  %5868 = vmatprep.subr.bf16.mxu0 0
  %5869 = vmatpush1.bf16.msra.mxu0 0
  %5870 = vmatprep.subr.bf16.mxu0 0
  %5871 = vmatpush1.bf16.msra.mxu0 0
  %5872 = vmatprep.subr.bf16.mxu0 0
  %5873 = vmatpush1.bf16.msra.mxu0 0
  %5874 = vmatprep.subr.bf16.mxu0 0
  %5875 = vmatpush1.bf16.msra.mxu0 0
  %5876 = vmatprep.subr.bf16.mxu0 0
  %5877 = vmatpush1.bf16.msra.mxu0 0
  %5878 = vmatprep.subr.bf16.mxu0 0
  %5879 = vmatpush1.bf16.msra.mxu0 0
  %5880 = vmatprep.mubr.bf16.mxu0 0
  %5881 = vmatmul.mubr.bf16.gmra.mrb[0].mxu0 %v5631
  %v5882 = vpop.f32.mrb[0].mxu0
  %v5883 = vadd.f32 %v5433, %v5882
  %v5884 = vpop.f32.mrb[0].mxu0
  %v5885 = vadd.f32 %v5437, %v5884
  %v5886 = vpop.f32.mrb[0].mxu0
  %v5887 = vadd.f32 %v5433, %v5886
  %v5888 = vpop.f32.mrb[0].mxu0
  %v5889 = vadd.f32 %v5437, %v5888
  %5890 = vdwg.mxu0
  %5891 = vmatprep.subr.bf16.mxu0 %v5579
  %5892 = vmatpush1.bf16.msra.mxu0 %v5578
  %5893 = vmatprep.subr.bf16.mxu0 %v5595
  %5894 = vmatpush1.bf16.msra.mxu0 %v5594
  %5895 = vmatprep.subr.bf16.mxu0 0
  %5896 = vmatpush1.bf16.msra.mxu0 0
  %5897 = vmatprep.subr.bf16.mxu0 0
  %5898 = vmatpush1.bf16.msra.mxu0 0
  %5899 = vmatprep.subr.bf16.mxu0 0
  %5900 = vmatpush1.bf16.msra.mxu0 0
  %5901 = vmatprep.subr.bf16.mxu0 0
  %5902 = vmatpush1.bf16.msra.mxu0 0
  %5903 = vmatprep.subr.bf16.mxu0 0
  %5904 = vmatpush1.bf16.msra.mxu0 0
  %5905 = vmatprep.subr.bf16.mxu0 0
  %5906 = vmatpush1.bf16.msra.mxu0 0
  %5907 = vmatprep.subr.bf16.mxu0 0
  %5908 = vmatpush1.bf16.msra.mxu0 0
  %5909 = vmatprep.subr.bf16.mxu0 0
  %5910 = vmatpush1.bf16.msra.mxu0 0
  %5911 = vmatprep.subr.bf16.mxu0 0
  %5912 = vmatpush1.bf16.msra.mxu0 0
  %5913 = vmatprep.subr.bf16.mxu0 0
  %5914 = vmatpush1.bf16.msra.mxu0 0
  %5915 = vmatprep.subr.bf16.mxu0 0
  %5916 = vmatpush1.bf16.msra.mxu0 0
  %5917 = vmatprep.subr.bf16.mxu0 0
  %5918 = vmatpush1.bf16.msra.mxu0 0
  %5919 = vmatprep.subr.bf16.mxu0 0
  %5920 = vmatpush1.bf16.msra.mxu0 0
  %5921 = vmatprep.subr.bf16.mxu0 0
  %5922 = vmatpush1.bf16.msra.mxu0 0
  %5923 = vmatprep.mubr.bf16.mxu0 0
  %5924 = vmatmul.mubr.bf16.gmra.mrb[0].mxu0 %v5631
  %v5925 = vpop.f32.mrb[0].mxu0
  %v5926 = vadd.f32 %v5441, %v5925
  %v5927 = vpop.f32.mrb[0].mxu0
  %v5928 = vadd.f32 %v5445, %v5927
  %v5929 = vpop.f32.mrb[0].mxu0
  %v5930 = vadd.f32 %v5441, %v5929
  %v5931 = vpop.f32.mrb[0].mxu0
  %v5932 = vadd.f32 %v5445, %v5931
  %5933 = vdwg.mxu0
  %5934 = vmatprep.subr.bf16.mxu0 %v5581
  %5935 = vmatpush1.bf16.msra.mxu0 %v5580
  %5936 = vmatprep.subr.bf16.mxu0 %v5597
  %5937 = vmatpush1.bf16.msra.mxu0 %v5596
  %5938 = vmatprep.subr.bf16.mxu0 0
  %5939 = vmatpush1.bf16.msra.mxu0 0
  %5940 = vmatprep.subr.bf16.mxu0 0
  %5941 = vmatpush1.bf16.msra.mxu0 0
  %5942 = vmatprep.subr.bf16.mxu0 0
  %5943 = vmatpush1.bf16.msra.mxu0 0
  %5944 = vmatprep.subr.bf16.mxu0 0
  %5945 = vmatpush1.bf16.msra.mxu0 0
  %5946 = vmatprep.subr.bf16.mxu0 0
  %5947 = vmatpush1.bf16.msra.mxu0 0
  %5948 = vmatprep.subr.bf16.mxu0 0
  %5949 = vmatpush1.bf16.msra.mxu0 0
  %5950 = vmatprep.subr.bf16.mxu0 0
  %5951 = vmatpush1.bf16.msra.mxu0 0
  %5952 = vmatprep.subr.bf16.mxu0 0
  %5953 = vmatpush1.bf16.msra.mxu0 0
  %5954 = vmatprep.subr.bf16.mxu0 0
  %5955 = vmatpush1.bf16.msra.mxu0 0
  %5956 = vmatprep.subr.bf16.mxu0 0
  %5957 = vmatpush1.bf16.msra.mxu0 0
  %5958 = vmatprep.subr.bf16.mxu0 0
  %5959 = vmatpush1.bf16.msra.mxu0 0
  %5960 = vmatprep.subr.bf16.mxu0 0
  %5961 = vmatpush1.bf16.msra.mxu0 0
  %5962 = vmatprep.subr.bf16.mxu0 0
  %5963 = vmatpush1.bf16.msra.mxu0 0
  %5964 = vmatprep.subr.bf16.mxu0 0
  %5965 = vmatpush1.bf16.msra.mxu0 0
  %5966 = vmatprep.mubr.bf16.mxu0 0
  %5967 = vmatmul.mubr.bf16.gmra.mrb[0].mxu0 %v5631
  %v5968 = vpop.f32.mrb[0].mxu0
  %v5969 = vadd.f32 %v5449, %v5968
  %v5970 = vpop.f32.mrb[0].mxu0
  %v5971 = vadd.f32 %v5453, %v5970
  %v5972 = vpop.f32.mrb[0].mxu0
  %v5973 = vadd.f32 %v5449, %v5972
  %v5974 = vpop.f32.mrb[0].mxu0
  %v5975 = vadd.f32 %v5453, %v5974
  %5976 = vdwg.mxu0
  %v5977 = vmax.f32 %v5668, 0.0
  %v5978 = vmax.f32 %v5670, 0.0
  %v5979 = vmax.f32 %v5711, 0.0
  %v5980 = vmax.f32 %v5713, 0.0
  %v5981 = vmax.f32 %v5754, 0.0
  %v5982 = vmax.f32 %v5756, 0.0
  %v5983 = vmax.f32 %v5797, 0.0
  %v5984 = vmax.f32 %v5799, 0.0
  %v5985 = vmax.f32 %v5840, 0.0
  %v5986 = vmax.f32 %v5842, 0.0
  %v5987 = vmax.f32 %v5883, 0.0
  %v5988 = vmax.f32 %v5885, 0.0
  %v5989 = vmax.f32 %v5926, 0.0
  %v5990 = vmax.f32 %v5928, 0.0
  %v5991 = vmax.f32 %v5969, 0.0
  %v5992 = vmax.f32 %v5971, 0.0
  %v5993 = vmax.f32 %v5672, 0.0
  %v5994 = vmax.f32 %v5674, 0.0
  %v5995 = vmax.f32 %v5715, 0.0
  %v5996 = vmax.f32 %v5717, 0.0
  %v5997 = vmax.f32 %v5758, 0.0
  %v5998 = vmax.f32 %v5760, 0.0
  %v5999 = vmax.f32 %v5801, 0.0
  %v6000 = vmax.f32 %v5803, 0.0
  %v6001 = vmax.f32 %v5844, 0.0
  %v6002 = vmax.f32 %v5846, 0.0
  %v6003 = vmax.f32 %v5887, 0.0
  %v6004 = vmax.f32 %v5889, 0.0
  %v6005 = vmax.f32 %v5930, 0.0
  %v6006 = vmax.f32 %v5932, 0.0
  %v6007 = vmax.f32 %v5973, 0.0
  %v6008 = vmax.f32 %v5975, 0.0
  %v6009 = vpack.c.bf16 %v5993, %v5977
  %v6010 = vpack.c.bf16 %v5994, %v5978
  %v6011 = vpack.c.bf16 %v5995, %v5979
  %v6012 = vpack.c.bf16 %v5996, %v5980
  %v6013 = vpack.c.bf16 %v5997, %v5981
  %v6014 = vpack.c.bf16 %v5998, %v5982
  %v6015 = vpack.c.bf16 %v5999, %v5983
  %v6016 = vpack.c.bf16 %v6000, %v5984
  %v6017 = vpack.c.bf16 %v6001, %v5985
  %v6018 = vpack.c.bf16 %v6002, %v5986
  %v6019 = vpack.c.bf16 %v6003, %v5987
  %v6020 = vpack.c.bf16 %v6004, %v5988
  %v6021 = vpack.c.bf16 %v6005, %v5989
  %v6022 = vpack.c.bf16 %v6006, %v5990
  %v6023 = vpack.c.bf16 %v6007, %v5991
  %v6024 = vpack.c.bf16 %v6008, %v5992
  %s6025 = scalar_lea.vmem %s10, 1024
  %v6026 = vld [vmem:[%s6025] sm:$0xf]
  %v6027 = vld [vmem:[%s6025 + $0x4] sm:$0xf]
  %v6028 = vld [vmem:[%s6025 + $0x8] sm:$0xf]
  %v6029 = vld [vmem:[%s6025 + $0xc] sm:$0xf]
  %v6030 = vld [vmem:[%s6025 + $0x10] sm:$0xf]
  %v6031 = vld [vmem:[%s6025 + $0x14] sm:$0xf]
  %v6032 = vld [vmem:[%s6025 + $0x18] sm:$0xf]
  %v6033 = vld [vmem:[%s6025 + $0x1c] sm:$0xf]
  %v6034 = vld [vmem:[%s6025 + $0x20] sm:$0xf]
  %v6035 = vld [vmem:[%s6025 + $0x24] sm:$0xf]
  %v6036 = vld [vmem:[%s6025 + $0x28] sm:$0xf]
  %v6037 = vld [vmem:[%s6025 + $0x2c] sm:$0xf]
  %v6038 = vld [vmem:[%s6025 + $0x30] sm:$0xf]
  %v6039 = vld [vmem:[%s6025 + $0x34] sm:$0xf]
  %v6040 = vld [vmem:[%s6025 + $0x38] sm:$0xf]
  %v6041 = vld [vmem:[%s6025 + $0x3c] sm:$0xf]
  %v6042 = vld [vmem:[%s6025 + $0x40] sm:$0xf]
  %v6043 = vld [vmem:[%s6025 + $0x44] sm:$0xf]
  %v6044 = vld [vmem:[%s6025 + $0x48] sm:$0xf]
  %v6045 = vld [vmem:[%s6025 + $0x4c] sm:$0xf]
  %v6046 = vld [vmem:[%s6025 + $0x50] sm:$0xf]
  %v6047 = vld [vmem:[%s6025 + $0x54] sm:$0xf]
  %v6048 = vld [vmem:[%s6025 + $0x58] sm:$0xf]
  %v6049 = vld [vmem:[%s6025 + $0x5c] sm:$0xf]
  %v6050 = vld [vmem:[%s6025 + $0x60] sm:$0xf]
  %v6051 = vld [vmem:[%s6025 + $0x64] sm:$0xf]
  %v6052 = vld [vmem:[%s6025 + $0x68] sm:$0xf]
  %v6053 = vld [vmem:[%s6025 + $0x6c] sm:$0xf]
  %v6054 = vld [vmem:[%s6025 + $0x70] sm:$0xf]
  %v6055 = vld [vmem:[%s6025 + $0x74] sm:$0xf]
  %v6056 = vld [vmem:[%s6025 + $0x78] sm:$0xf]
  %v6057 = vld [vmem:[%s6025 + $0x7c] sm:$0xf]
  %v6058 = vld [vmem:[%s6025 + $0x80] sm:$0xf]
  %v6059 = vld [vmem:[%s6025 + $0x84] sm:$0xf]
  %v6060 = vld [vmem:[%s6025 + $0x88] sm:$0xf]
  %v6061 = vld [vmem:[%s6025 + $0x8c] sm:$0xf]
  %v6062 = vld [vmem:[%s6025 + $0x90] sm:$0xf]
  %v6063 = vld [vmem:[%s6025 + $0x94] sm:$0xf]
  %v6064 = vld [vmem:[%s6025 + $0x98] sm:$0xf]
  %v6065 = vld [vmem:[%s6025 + $0x9c] sm:$0xf]
  %v6066 = vld [vmem:[%s6025 + $0xa0] sm:$0xf]
  %v6067 = vld [vmem:[%s6025 + $0xa4] sm:$0xf]
  %v6068 = vld [vmem:[%s6025 + $0xa8] sm:$0xf]
  %v6069 = vld [vmem:[%s6025 + $0xac] sm:$0xf]
  %v6070 = vld [vmem:[%s6025 + $0xb0] sm:$0xf]
  %v6071 = vld [vmem:[%s6025 + $0xb4] sm:$0xf]
  %v6072 = vld [vmem:[%s6025 + $0xb8] sm:$0xf]
  %v6073 = vld [vmem:[%s6025 + $0xbc] sm:$0xf]
  %v6074 = vld [vmem:[%s6025 + $0xc0] sm:$0xf]
  %v6075 = vld [vmem:[%s6025 + $0xc4] sm:$0xf]
  %v6076 = vld [vmem:[%s6025 + $0xc8] sm:$0xf]
  %v6077 = vld [vmem:[%s6025 + $0xcc] sm:$0xf]
  %v6078 = vld [vmem:[%s6025 + $0xd0] sm:$0xf]
  %v6079 = vld [vmem:[%s6025 + $0xd4] sm:$0xf]
  %v6080 = vld [vmem:[%s6025 + $0xd8] sm:$0xf]
  %v6081 = vld [vmem:[%s6025 + $0xdc] sm:$0xf]
  %v6082 = vld [vmem:[%s6025 + $0xe0] sm:$0xf]
  %v6083 = vld [vmem:[%s6025 + $0xe4] sm:$0xf]
  %v6084 = vld [vmem:[%s6025 + $0xe8] sm:$0xf]
  %v6085 = vld [vmem:[%s6025 + $0xec] sm:$0xf]
  %v6086 = vld [vmem:[%s6025 + $0xf0] sm:$0xf]
  %v6087 = vld [vmem:[%s6025 + $0xf4] sm:$0xf]
  %v6088 = vld [vmem:[%s6025 + $0xf8] sm:$0xf]
  %v6089 = vld [vmem:[%s6025 + $0xfc] sm:$0xf]
  %v6090 = vld [vmem:[%s6025 + $0x100] sm:$0xf]
  %v6091 = vld [vmem:[%s6025 + $0x104] sm:$0xf]
  %v6092 = vld [vmem:[%s6025 + $0x108] sm:$0xf]
  %v6093 = vld [vmem:[%s6025 + $0x10c] sm:$0xf]
  %v6094 = vld [vmem:[%s6025 + $0x110] sm:$0xf]
  %v6095 = vld [vmem:[%s6025 + $0x114] sm:$0xf]
  %v6096 = vld [vmem:[%s6025 + $0x118] sm:$0xf]
  %v6097 = vld [vmem:[%s6025 + $0x11c] sm:$0xf]
  %v6098 = vld [vmem:[%s6025 + $0x120] sm:$0xf]
  %v6099 = vld [vmem:[%s6025 + $0x124] sm:$0xf]
  %v6100 = vld [vmem:[%s6025 + $0x128] sm:$0xf]
  %v6101 = vld [vmem:[%s6025 + $0x12c] sm:$0xf]
  %v6102 = vld [vmem:[%s6025 + $0x130] sm:$0xf]
  %v6103 = vld [vmem:[%s6025 + $0x134] sm:$0xf]
  %v6104 = vld [vmem:[%s6025 + $0x138] sm:$0xf]
  %v6105 = vld [vmem:[%s6025 + $0x13c] sm:$0xf]
  %v6106 = vld [vmem:[%s6025 + $0x140] sm:$0xf]
  %v6107 = vld [vmem:[%s6025 + $0x144] sm:$0xf]
  %v6108 = vld [vmem:[%s6025 + $0x148] sm:$0xf]
  %v6109 = vld [vmem:[%s6025 + $0x14c] sm:$0xf]
  %v6110 = vld [vmem:[%s6025 + $0x150] sm:$0xf]
  %v6111 = vld [vmem:[%s6025 + $0x154] sm:$0xf]
  %v6112 = vld [vmem:[%s6025 + $0x158] sm:$0xf]
  %v6113 = vld [vmem:[%s6025 + $0x15c] sm:$0xf]
  %v6114 = vld [vmem:[%s6025 + $0x160] sm:$0xf]
  %v6115 = vld [vmem:[%s6025 + $0x164] sm:$0xf]
  %v6116 = vld [vmem:[%s6025 + $0x168] sm:$0xf]
  %v6117 = vld [vmem:[%s6025 + $0x16c] sm:$0xf]
  %v6118 = vld [vmem:[%s6025 + $0x170] sm:$0xf]
  %v6119 = vld [vmem:[%s6025 + $0x174] sm:$0xf]
  %v6120 = vld [vmem:[%s6025 + $0x178] sm:$0xf]
  %v6121 = vld [vmem:[%s6025 + $0x17c] sm:$0xf]
  %v6122 = vld [vmem:[%s6025 + $0x180] sm:$0xf]
  %v6123 = vld [vmem:[%s6025 + $0x184] sm:$0xf]
  %v6124 = vld [vmem:[%s6025 + $0x188] sm:$0xf]
  %v6125 = vld [vmem:[%s6025 + $0x18c] sm:$0xf]
  %v6126 = vld [vmem:[%s6025 + $0x190] sm:$0xf]
  %v6127 = vld [vmem:[%s6025 + $0x194] sm:$0xf]
  %v6128 = vld [vmem:[%s6025 + $0x198] sm:$0xf]
  %v6129 = vld [vmem:[%s6025 + $0x19c] sm:$0xf]
  %v6130 = vld [vmem:[%s6025 + $0x1a0] sm:$0xf]
  %v6131 = vld [vmem:[%s6025 + $0x1a4] sm:$0xf]
  %v6132 = vld [vmem:[%s6025 + $0x1a8] sm:$0xf]
  %v6133 = vld [vmem:[%s6025 + $0x1ac] sm:$0xf]
  %v6134 = vld [vmem:[%s6025 + $0x1b0] sm:$0xf]
  %v6135 = vld [vmem:[%s6025 + $0x1b4] sm:$0xf]
  %v6136 = vld [vmem:[%s6025 + $0x1b8] sm:$0xf]
  %v6137 = vld [vmem:[%s6025 + $0x1bc] sm:$0xf]
  %v6138 = vld [vmem:[%s6025 + $0x1c0] sm:$0xf]
  %v6139 = vld [vmem:[%s6025 + $0x1c4] sm:$0xf]
  %v6140 = vld [vmem:[%s6025 + $0x1c8] sm:$0xf]
  %v6141 = vld [vmem:[%s6025 + $0x1cc] sm:$0xf]
  %v6142 = vld [vmem:[%s6025 + $0x1d0] sm:$0xf]
  %v6143 = vld [vmem:[%s6025 + $0x1d4] sm:$0xf]
  %v6144 = vld [vmem:[%s6025 + $0x1d8] sm:$0xf]
  %v6145 = vld [vmem:[%s6025 + $0x1dc] sm:$0xf]
  %v6146 = vld [vmem:[%s6025 + $0x1e0] sm:$0xf]
  %v6147 = vld [vmem:[%s6025 + $0x1e4] sm:$0xf]
  %v6148 = vld [vmem:[%s6025 + $0x1e8] sm:$0xf]
  %v6149 = vld [vmem:[%s6025 + $0x1ec] sm:$0xf]
  %v6150 = vld [vmem:[%s6025 + $0x1f0] sm:$0xf]
  %v6151 = vld [vmem:[%s6025 + $0x1f4] sm:$0xf]
  %v6152 = vld [vmem:[%s6025 + $0x1f8] sm:$0xf]
  %v6153 = vld [vmem:[%s6025 + $0x1fc] sm:$0xf]
  %v6154 = vld [vmem:[%s6025 + $0x200] sm:$0xf]
  %v6155 = vld [vmem:[%s6025 + $0x204] sm:$0xf]
  %v6156 = vld [vmem:[%s6025 + $0x208] sm:$0xf]
  %v6157 = vld [vmem:[%s6025 + $0x20c] sm:$0xf]
  %v6158 = vld [vmem:[%s6025 + $0x210] sm:$0xf]
  %v6159 = vld [vmem:[%s6025 + $0x214] sm:$0xf]
  %v6160 = vld [vmem:[%s6025 + $0x218] sm:$0xf]
  %v6161 = vld [vmem:[%s6025 + $0x21c] sm:$0xf]
  %v6162 = vld [vmem:[%s6025 + $0x220] sm:$0xf]
  %v6163 = vld [vmem:[%s6025 + $0x224] sm:$0xf]
  %v6164 = vld [vmem:[%s6025 + $0x228] sm:$0xf]
  %v6165 = vld [vmem:[%s6025 + $0x22c] sm:$0xf]
  %v6166 = vld [vmem:[%s6025 + $0x230] sm:$0xf]
  %v6167 = vld [vmem:[%s6025 + $0x234] sm:$0xf]
  %v6168 = vld [vmem:[%s6025 + $0x238] sm:$0xf]
  %v6169 = vld [vmem:[%s6025 + $0x23c] sm:$0xf]
  %v6170 = vld [vmem:[%s6025 + $0x240] sm:$0xf]
  %v6171 = vld [vmem:[%s6025 + $0x244] sm:$0xf]
  %v6172 = vld [vmem:[%s6025 + $0x248] sm:$0xf]
  %v6173 = vld [vmem:[%s6025 + $0x24c] sm:$0xf]
  %v6174 = vld [vmem:[%s6025 + $0x250] sm:$0xf]
  %v6175 = vld [vmem:[%s6025 + $0x254] sm:$0xf]
  %v6176 = vld [vmem:[%s6025 + $0x258] sm:$0xf]
  %v6177 = vld [vmem:[%s6025 + $0x25c] sm:$0xf]
  %v6178 = vld [vmem:[%s6025 + $0x260] sm:$0xf]
  %v6179 = vld [vmem:[%s6025 + $0x264] sm:$0xf]
  %v6180 = vld [vmem:[%s6025 + $0x268] sm:$0xf]
  %v6181 = vld [vmem:[%s6025 + $0x26c] sm:$0xf]
  %v6182 = vld [vmem:[%s6025 + $0x270] sm:$0xf]
  %v6183 = vld [vmem:[%s6025 + $0x274] sm:$0xf]
  %v6184 = vld [vmem:[%s6025 + $0x278] sm:$0xf]
  %v6185 = vld [vmem:[%s6025 + $0x27c] sm:$0xf]
  %v6186 = vld [vmem:[%s6025 + $0x280] sm:$0xf]
  %v6187 = vld [vmem:[%s6025 + $0x284] sm:$0xf]
  %v6188 = vld [vmem:[%s6025 + $0x288] sm:$0xf]
  %v6189 = vld [vmem:[%s6025 + $0x28c] sm:$0xf]
  %v6190 = vld [vmem:[%s6025 + $0x290] sm:$0xf]
  %v6191 = vld [vmem:[%s6025 + $0x294] sm:$0xf]
  %v6192 = vld [vmem:[%s6025 + $0x298] sm:$0xf]
  %v6193 = vld [vmem:[%s6025 + $0x29c] sm:$0xf]
  %v6194 = vld [vmem:[%s6025 + $0x2a0] sm:$0xf]
  %v6195 = vld [vmem:[%s6025 + $0x2a4] sm:$0xf]
  %v6196 = vld [vmem:[%s6025 + $0x2a8] sm:$0xf]
  %v6197 = vld [vmem:[%s6025 + $0x2ac] sm:$0xf]
  %v6198 = vld [vmem:[%s6025 + $0x2b0] sm:$0xf]
  %v6199 = vld [vmem:[%s6025 + $0x2b4] sm:$0xf]
  %v6200 = vld [vmem:[%s6025 + $0x2b8] sm:$0xf]
  %v6201 = vld [vmem:[%s6025 + $0x2bc] sm:$0xf]
  %v6202 = vld [vmem:[%s6025 + $0x2c0] sm:$0xf]
  %v6203 = vld [vmem:[%s6025 + $0x2c4] sm:$0xf]
  %v6204 = vld [vmem:[%s6025 + $0x2c8] sm:$0xf]
  %v6205 = vld [vmem:[%s6025 + $0x2cc] sm:$0xf]
  %v6206 = vld [vmem:[%s6025 + $0x2d0] sm:$0xf]
  %v6207 = vld [vmem:[%s6025 + $0x2d4] sm:$0xf]
  %v6208 = vld [vmem:[%s6025 + $0x2d8] sm:$0xf]
  %v6209 = vld [vmem:[%s6025 + $0x2dc] sm:$0xf]
  %v6210 = vld [vmem:[%s6025 + $0x2e0] sm:$0xf]
  %v6211 = vld [vmem:[%s6025 + $0x2e4] sm:$0xf]
  %v6212 = vld [vmem:[%s6025 + $0x2e8] sm:$0xf]
  %v6213 = vld [vmem:[%s6025 + $0x2ec] sm:$0xf]
  %v6214 = vld [vmem:[%s6025 + $0x2f0] sm:$0xf]
  %v6215 = vld [vmem:[%s6025 + $0x2f4] sm:$0xf]
  %v6216 = vld [vmem:[%s6025 + $0x2f8] sm:$0xf]
  %v6217 = vld [vmem:[%s6025 + $0x2fc] sm:$0xf]
  %v6218 = vld [vmem:[%s6025 + $0x300] sm:$0xf]
  %v6219 = vld [vmem:[%s6025 + $0x304] sm:$0xf]
  %v6220 = vld [vmem:[%s6025 + $0x308] sm:$0xf]
  %v6221 = vld [vmem:[%s6025 + $0x30c] sm:$0xf]
  %v6222 = vld [vmem:[%s6025 + $0x310] sm:$0xf]
  %v6223 = vld [vmem:[%s6025 + $0x314] sm:$0xf]
  %v6224 = vld [vmem:[%s6025 + $0x318] sm:$0xf]
  %v6225 = vld [vmem:[%s6025 + $0x31c] sm:$0xf]
  %v6226 = vld [vmem:[%s6025 + $0x320] sm:$0xf]
  %v6227 = vld [vmem:[%s6025 + $0x324] sm:$0xf]
  %v6228 = vld [vmem:[%s6025 + $0x328] sm:$0xf]
  %v6229 = vld [vmem:[%s6025 + $0x32c] sm:$0xf]
  %v6230 = vld [vmem:[%s6025 + $0x330] sm:$0xf]
  %v6231 = vld [vmem:[%s6025 + $0x334] sm:$0xf]
  %v6232 = vld [vmem:[%s6025 + $0x338] sm:$0xf]
  %v6233 = vld [vmem:[%s6025 + $0x33c] sm:$0xf]
  %v6234 = vld [vmem:[%s6025 + $0x340] sm:$0xf]
  %v6235 = vld [vmem:[%s6025 + $0x344] sm:$0xf]
  %v6236 = vld [vmem:[%s6025 + $0x348] sm:$0xf]
  %v6237 = vld [vmem:[%s6025 + $0x34c] sm:$0xf]
  %v6238 = vld [vmem:[%s6025 + $0x350] sm:$0xf]
  %v6239 = vld [vmem:[%s6025 + $0x354] sm:$0xf]
  %v6240 = vld [vmem:[%s6025 + $0x358] sm:$0xf]
  %v6241 = vld [vmem:[%s6025 + $0x35c] sm:$0xf]
  %v6242 = vld [vmem:[%s6025 + $0x360] sm:$0xf]
  %v6243 = vld [vmem:[%s6025 + $0x364] sm:$0xf]
  %v6244 = vld [vmem:[%s6025 + $0x368] sm:$0xf]
  %v6245 = vld [vmem:[%s6025 + $0x36c] sm:$0xf]
  %v6246 = vld [vmem:[%s6025 + $0x370] sm:$0xf]
  %v6247 = vld [vmem:[%s6025 + $0x374] sm:$0xf]
  %v6248 = vld [vmem:[%s6025 + $0x378] sm:$0xf]
  %v6249 = vld [vmem:[%s6025 + $0x37c] sm:$0xf]
  %v6250 = vld [vmem:[%s6025 + $0x380] sm:$0xf]
  %v6251 = vld [vmem:[%s6025 + $0x384] sm:$0xf]
  %v6252 = vld [vmem:[%s6025 + $0x388] sm:$0xf]
  %v6253 = vld [vmem:[%s6025 + $0x38c] sm:$0xf]
  %v6254 = vld [vmem:[%s6025 + $0x390] sm:$0xf]
  %v6255 = vld [vmem:[%s6025 + $0x394] sm:$0xf]
  %v6256 = vld [vmem:[%s6025 + $0x398] sm:$0xf]
  %v6257 = vld [vmem:[%s6025 + $0x39c] sm:$0xf]
  %v6258 = vld [vmem:[%s6025 + $0x3a0] sm:$0xf]
  %v6259 = vld [vmem:[%s6025 + $0x3a4] sm:$0xf]
  %v6260 = vld [vmem:[%s6025 + $0x3a8] sm:$0xf]
  %v6261 = vld [vmem:[%s6025 + $0x3ac] sm:$0xf]
  %v6262 = vld [vmem:[%s6025 + $0x3b0] sm:$0xf]
  %v6263 = vld [vmem:[%s6025 + $0x3b4] sm:$0xf]
  %v6264 = vld [vmem:[%s6025 + $0x3b8] sm:$0xf]
  %v6265 = vld [vmem:[%s6025 + $0x3bc] sm:$0xf]
  %v6266 = vld [vmem:[%s6025 + $0x3c0] sm:$0xf]
  %v6267 = vld [vmem:[%s6025 + $0x3c4] sm:$0xf]
  %v6268 = vld [vmem:[%s6025 + $0x3c8] sm:$0xf]
  %v6269 = vld [vmem:[%s6025 + $0x3cc] sm:$0xf]
  %v6270 = vld [vmem:[%s6025 + $0x3d0] sm:$0xf]
  %v6271 = vld [vmem:[%s6025 + $0x3d4] sm:$0xf]
  %v6272 = vld [vmem:[%s6025 + $0x3d8] sm:$0xf]
  %v6273 = vld [vmem:[%s6025 + $0x3dc] sm:$0xf]
  %v6274 = vld [vmem:[%s6025 + $0x3e0] sm:$0xf]
  %v6275 = vld [vmem:[%s6025 + $0x3e4] sm:$0xf]
  %v6276 = vld [vmem:[%s6025 + $0x3e8] sm:$0xf]
  %v6277 = vld [vmem:[%s6025 + $0x3ec] sm:$0xf]
  %v6278 = vld [vmem:[%s6025 + $0x3f0] sm:$0xf]
  %v6279 = vld [vmem:[%s6025 + $0x3f4] sm:$0xf]
  %v6280 = vld [vmem:[%s6025 + $0x3f8] sm:$0xf]
  %v6281 = vld [vmem:[%s6025 + $0x3fc] sm:$0xf]
  %s6282 = scalar_lea.vmem %s11, 1
  %v6283 = vld [vmem:[%s6282] sm:$0x1]
  %v6285 = vlaneseq
  %v6286 = vshrl.u32 %v6285, 7
  %v6287 = vsub.s32 0, %v6286
  %v6288 = vrot.slane %v6283, %v6287
  %v6546 = vunpack.c.l.b16 %v6026
  %v6547 = vunpack.c.l.b16 %v6027
  %v6548 = vunpack.c.l.b16 %v6028
  %v6549 = vunpack.c.l.b16 %v6029
  %v6550 = vunpack.c.l.b16 %v6030
  %v6551 = vunpack.c.l.b16 %v6031
  %v6552 = vunpack.c.l.b16 %v6032
  %v6553 = vunpack.c.l.b16 %v6033
  %v6554 = vunpack.c.l.b16 %v6034
  %v6555 = vunpack.c.l.b16 %v6035
  %v6556 = vunpack.c.l.b16 %v6036
  %v6557 = vunpack.c.l.b16 %v6037
  %v6558 = vunpack.c.l.b16 %v6038
  %v6559 = vunpack.c.l.b16 %v6039
  %v6560 = vunpack.c.l.b16 %v6040
  %v6561 = vunpack.c.l.b16 %v6041
  %v6562 = vunpack.c.l.b16 %v6042
  %v6563 = vunpack.c.l.b16 %v6043
  %v6564 = vunpack.c.l.b16 %v6044
  %v6565 = vunpack.c.l.b16 %v6045
  %v6566 = vunpack.c.l.b16 %v6046
  %v6567 = vunpack.c.l.b16 %v6047
  %v6568 = vunpack.c.l.b16 %v6048
  %v6569 = vunpack.c.l.b16 %v6049
  %v6570 = vunpack.c.l.b16 %v6050
  %v6571 = vunpack.c.l.b16 %v6051
  %v6572 = vunpack.c.l.b16 %v6052
  %v6573 = vunpack.c.l.b16 %v6053
  %v6574 = vunpack.c.l.b16 %v6054
  %v6575 = vunpack.c.l.b16 %v6055
  %v6576 = vunpack.c.l.b16 %v6056
  %v6577 = vunpack.c.l.b16 %v6057
  %v6578 = vunpack.c.l.b16 %v6058
  %v6579 = vunpack.c.l.b16 %v6059
  %v6580 = vunpack.c.l.b16 %v6060
  %v6581 = vunpack.c.l.b16 %v6061
  %v6582 = vunpack.c.l.b16 %v6062
  %v6583 = vunpack.c.l.b16 %v6063
  %v6584 = vunpack.c.l.b16 %v6064
  %v6585 = vunpack.c.l.b16 %v6065
  %v6586 = vunpack.c.l.b16 %v6066
  %v6587 = vunpack.c.l.b16 %v6067
  %v6588 = vunpack.c.l.b16 %v6068
  %v6589 = vunpack.c.l.b16 %v6069
  %v6590 = vunpack.c.l.b16 %v6070
  %v6591 = vunpack.c.l.b16 %v6071
  %v6592 = vunpack.c.l.b16 %v6072
  %v6593 = vunpack.c.l.b16 %v6073
  %v6594 = vunpack.c.l.b16 %v6074
  %v6595 = vunpack.c.l.b16 %v6075
  %v6596 = vunpack.c.l.b16 %v6076
  %v6597 = vunpack.c.l.b16 %v6077
  %v6598 = vunpack.c.l.b16 %v6078
  %v6599 = vunpack.c.l.b16 %v6079
  %v6600 = vunpack.c.l.b16 %v6080
  %v6601 = vunpack.c.l.b16 %v6081
  %v6602 = vunpack.c.l.b16 %v6082
  %v6603 = vunpack.c.l.b16 %v6083
  %v6604 = vunpack.c.l.b16 %v6084
  %v6605 = vunpack.c.l.b16 %v6085
  %v6606 = vunpack.c.l.b16 %v6086
  %v6607 = vunpack.c.l.b16 %v6087
  %v6608 = vunpack.c.l.b16 %v6088
  %v6609 = vunpack.c.l.b16 %v6089
  %v6610 = vunpack.c.l.b16 %v6090
  %v6611 = vunpack.c.l.b16 %v6091
  %v6612 = vunpack.c.l.b16 %v6092
  %v6613 = vunpack.c.l.b16 %v6093
  %v6614 = vunpack.c.l.b16 %v6094
  %v6615 = vunpack.c.l.b16 %v6095
  %v6616 = vunpack.c.l.b16 %v6096
  %v6617 = vunpack.c.l.b16 %v6097
  %v6618 = vunpack.c.l.b16 %v6098
  %v6619 = vunpack.c.l.b16 %v6099
  %v6620 = vunpack.c.l.b16 %v6100
  %v6621 = vunpack.c.l.b16 %v6101
  %v6622 = vunpack.c.l.b16 %v6102
  %v6623 = vunpack.c.l.b16 %v6103
  %v6624 = vunpack.c.l.b16 %v6104
  %v6625 = vunpack.c.l.b16 %v6105
  %v6626 = vunpack.c.l.b16 %v6106
  %v6627 = vunpack.c.l.b16 %v6107
  %v6628 = vunpack.c.l.b16 %v6108
  %v6629 = vunpack.c.l.b16 %v6109
  %v6630 = vunpack.c.l.b16 %v6110
  %v6631 = vunpack.c.l.b16 %v6111
  %v6632 = vunpack.c.l.b16 %v6112
  %v6633 = vunpack.c.l.b16 %v6113
  %v6634 = vunpack.c.l.b16 %v6114
  %v6635 = vunpack.c.l.b16 %v6115
  %v6636 = vunpack.c.l.b16 %v6116
  %v6637 = vunpack.c.l.b16 %v6117
  %v6638 = vunpack.c.l.b16 %v6118
  %v6639 = vunpack.c.l.b16 %v6119
  %v6640 = vunpack.c.l.b16 %v6120
  %v6641 = vunpack.c.l.b16 %v6121
  %v6642 = vunpack.c.l.b16 %v6122
  %v6643 = vunpack.c.l.b16 %v6123
  %v6644 = vunpack.c.l.b16 %v6124
  %v6645 = vunpack.c.l.b16 %v6125
  %v6646 = vunpack.c.l.b16 %v6126
  %v6647 = vunpack.c.l.b16 %v6127
  %v6648 = vunpack.c.l.b16 %v6128
  %v6649 = vunpack.c.l.b16 %v6129
  %v6650 = vunpack.c.l.b16 %v6130
  %v6651 = vunpack.c.l.b16 %v6131
  %v6652 = vunpack.c.l.b16 %v6132
  %v6653 = vunpack.c.l.b16 %v6133
  %v6654 = vunpack.c.l.b16 %v6134
  %v6655 = vunpack.c.l.b16 %v6135
  %v6656 = vunpack.c.l.b16 %v6136
  %v6657 = vunpack.c.l.b16 %v6137
  %v6658 = vunpack.c.l.b16 %v6138
  %v6659 = vunpack.c.l.b16 %v6139
  %v6660 = vunpack.c.l.b16 %v6140
  %v6661 = vunpack.c.l.b16 %v6141
  %v6662 = vunpack.c.l.b16 %v6142
  %v6663 = vunpack.c.l.b16 %v6143
  %v6664 = vunpack.c.l.b16 %v6144
  %v6665 = vunpack.c.l.b16 %v6145
  %v6666 = vunpack.c.l.b16 %v6146
  %v6667 = vunpack.c.l.b16 %v6147
  %v6668 = vunpack.c.l.b16 %v6148
  %v6669 = vunpack.c.l.b16 %v6149
  %v6670 = vunpack.c.l.b16 %v6150
  %v6671 = vunpack.c.l.b16 %v6151
  %v6672 = vunpack.c.l.b16 %v6152
  %v6673 = vunpack.c.l.b16 %v6153
  %v6674 = vunpack.c.l.b16 %v6154
  %v6675 = vunpack.c.l.b16 %v6155
  %v6676 = vunpack.c.l.b16 %v6156
  %v6677 = vunpack.c.l.b16 %v6157
  %v6678 = vunpack.c.l.b16 %v6158
  %v6679 = vunpack.c.l.b16 %v6159
  %v6680 = vunpack.c.l.b16 %v6160
  %v6681 = vunpack.c.l.b16 %v6161
  %v6682 = vunpack.c.l.b16 %v6162
  %v6683 = vunpack.c.l.b16 %v6163
  %v6684 = vunpack.c.l.b16 %v6164
  %v6685 = vunpack.c.l.b16 %v6165
  %v6686 = vunpack.c.l.b16 %v6166
  %v6687 = vunpack.c.l.b16 %v6167
  %v6688 = vunpack.c.l.b16 %v6168
  %v6689 = vunpack.c.l.b16 %v6169
  %v6690 = vunpack.c.l.b16 %v6170
  %v6691 = vunpack.c.l.b16 %v6171
  %v6692 = vunpack.c.l.b16 %v6172
  %v6693 = vunpack.c.l.b16 %v6173
  %v6694 = vunpack.c.l.b16 %v6174
  %v6695 = vunpack.c.l.b16 %v6175
  %v6696 = vunpack.c.l.b16 %v6176
  %v6697 = vunpack.c.l.b16 %v6177
  %v6698 = vunpack.c.l.b16 %v6178
  %v6699 = vunpack.c.l.b16 %v6179
  %v6700 = vunpack.c.l.b16 %v6180
  %v6701 = vunpack.c.l.b16 %v6181
  %v6702 = vunpack.c.l.b16 %v6182
  %v6703 = vunpack.c.l.b16 %v6183
  %v6704 = vunpack.c.l.b16 %v6184
  %v6705 = vunpack.c.l.b16 %v6185
  %v6706 = vunpack.c.l.b16 %v6186
  %v6707 = vunpack.c.l.b16 %v6187
  %v6708 = vunpack.c.l.b16 %v6188
  %v6709 = vunpack.c.l.b16 %v6189
  %v6710 = vunpack.c.l.b16 %v6190
  %v6711 = vunpack.c.l.b16 %v6191
  %v6712 = vunpack.c.l.b16 %v6192
  %v6713 = vunpack.c.l.b16 %v6193
  %v6714 = vunpack.c.l.b16 %v6194
  %v6715 = vunpack.c.l.b16 %v6195
  %v6716 = vunpack.c.l.b16 %v6196
  %v6717 = vunpack.c.l.b16 %v6197
  %v6718 = vunpack.c.l.b16 %v6198
  %v6719 = vunpack.c.l.b16 %v6199
  %v6720 = vunpack.c.l.b16 %v6200
  %v6721 = vunpack.c.l.b16 %v6201
  %v6722 = vunpack.c.l.b16 %v6202
  %v6723 = vunpack.c.l.b16 %v6203
  %v6724 = vunpack.c.l.b16 %v6204
  %v6725 = vunpack.c.l.b16 %v6205
  %v6726 = vunpack.c.l.b16 %v6206
  %v6727 = vunpack.c.l.b16 %v6207
  %v6728 = vunpack.c.l.b16 %v6208
  %v6729 = vunpack.c.l.b16 %v6209
  %v6730 = vunpack.c.l.b16 %v6210
  %v6731 = vunpack.c.l.b16 %v6211
  %v6732 = vunpack.c.l.b16 %v6212
  %v6733 = vunpack.c.l.b16 %v6213
  %v6734 = vunpack.c.l.b16 %v6214
  %v6735 = vunpack.c.l.b16 %v6215
  %v6736 = vunpack.c.l.b16 %v6216
  %v6737 = vunpack.c.l.b16 %v6217
  %v6738 = vunpack.c.l.b16 %v6218
  %v6739 = vunpack.c.l.b16 %v6219
  %v6740 = vunpack.c.l.b16 %v6220
  %v6741 = vunpack.c.l.b16 %v6221
  %v6742 = vunpack.c.l.b16 %v6222
  %v6743 = vunpack.c.l.b16 %v6223
  %v6744 = vunpack.c.l.b16 %v6224
  %v6745 = vunpack.c.l.b16 %v6225
  %v6746 = vunpack.c.l.b16 %v6226
  %v6747 = vunpack.c.l.b16 %v6227
  %v6748 = vunpack.c.l.b16 %v6228
  %v6749 = vunpack.c.l.b16 %v6229
  %v6750 = vunpack.c.l.b16 %v6230
  %v6751 = vunpack.c.l.b16 %v6231
  %v6752 = vunpack.c.l.b16 %v6232
  %v6753 = vunpack.c.l.b16 %v6233
  %v6754 = vunpack.c.l.b16 %v6234
  %v6755 = vunpack.c.l.b16 %v6235
  %v6756 = vunpack.c.l.b16 %v6236
  %v6757 = vunpack.c.l.b16 %v6237
  %v6758 = vunpack.c.l.b16 %v6238
  %v6759 = vunpack.c.l.b16 %v6239
  %v6760 = vunpack.c.l.b16 %v6240
  %v6761 = vunpack.c.l.b16 %v6241
  %v6762 = vunpack.c.l.b16 %v6242
  %v6763 = vunpack.c.l.b16 %v6243
  %v6764 = vunpack.c.l.b16 %v6244
  %v6765 = vunpack.c.l.b16 %v6245
  %v6766 = vunpack.c.l.b16 %v6246
  %v6767 = vunpack.c.l.b16 %v6247
  %v6768 = vunpack.c.l.b16 %v6248
  %v6769 = vunpack.c.l.b16 %v6249
  %v6770 = vunpack.c.l.b16 %v6250
  %v6771 = vunpack.c.l.b16 %v6251
  %v6772 = vunpack.c.l.b16 %v6252
  %v6773 = vunpack.c.l.b16 %v6253
  %v6774 = vunpack.c.l.b16 %v6254
  %v6775 = vunpack.c.l.b16 %v6255
  %v6776 = vunpack.c.l.b16 %v6256
  %v6777 = vunpack.c.l.b16 %v6257
  %v6778 = vunpack.c.l.b16 %v6258
  %v6779 = vunpack.c.l.b16 %v6259
  %v6780 = vunpack.c.l.b16 %v6260
  %v6781 = vunpack.c.l.b16 %v6261
  %v6782 = vunpack.c.l.b16 %v6262
  %v6783 = vunpack.c.l.b16 %v6263
  %v6784 = vunpack.c.l.b16 %v6264
  %v6785 = vunpack.c.l.b16 %v6265
  %v6786 = vunpack.c.l.b16 %v6266
  %v6787 = vunpack.c.l.b16 %v6267
  %v6788 = vunpack.c.l.b16 %v6268
  %v6789 = vunpack.c.l.b16 %v6269
  %v6790 = vunpack.c.l.b16 %v6270
  %v6791 = vunpack.c.l.b16 %v6271
  %v6792 = vunpack.c.l.b16 %v6272
  %v6793 = vunpack.c.l.b16 %v6273
  %v6794 = vunpack.c.l.b16 %v6274
  %v6795 = vunpack.c.l.b16 %v6275
  %v6796 = vunpack.c.l.b16 %v6276
  %v6797 = vunpack.c.l.b16 %v6277
  %v6798 = vunpack.c.l.b16 %v6278
  %v6799 = vunpack.c.l.b16 %v6279
  %v6800 = vunpack.c.l.b16 %v6280
  %v6801 = vunpack.c.l.b16 %v6281
  %v6802 = vpack.c.b16 %v6547, %v6546
  %v6803 = vpack.c.b16 %v6549, %v6548
  %v6804 = vpack.c.b16 %v6551, %v6550
  %v6805 = vpack.c.b16 %v6553, %v6552
  %v6806 = vpack.c.b16 %v6555, %v6554
  %v6807 = vpack.c.b16 %v6557, %v6556
  %v6808 = vpack.c.b16 %v6559, %v6558
  %v6809 = vpack.c.b16 %v6561, %v6560
  %v6810 = vpack.c.b16 %v6563, %v6562
  %v6811 = vpack.c.b16 %v6565, %v6564
  %v6812 = vpack.c.b16 %v6567, %v6566
  %v6813 = vpack.c.b16 %v6569, %v6568
  %v6814 = vpack.c.b16 %v6571, %v6570
  %v6815 = vpack.c.b16 %v6573, %v6572
  %v6816 = vpack.c.b16 %v6575, %v6574
  %v6817 = vpack.c.b16 %v6577, %v6576
  %v6818 = vpack.c.b16 %v6579, %v6578
  %v6819 = vpack.c.b16 %v6581, %v6580
  %v6820 = vpack.c.b16 %v6583, %v6582
  %v6821 = vpack.c.b16 %v6585, %v6584
  %v6822 = vpack.c.b16 %v6587, %v6586
  %v6823 = vpack.c.b16 %v6589, %v6588
  %v6824 = vpack.c.b16 %v6591, %v6590
  %v6825 = vpack.c.b16 %v6593, %v6592
  %v6826 = vpack.c.b16 %v6595, %v6594
  %v6827 = vpack.c.b16 %v6597, %v6596
  %v6828 = vpack.c.b16 %v6599, %v6598
  %v6829 = vpack.c.b16 %v6601, %v6600
  %v6830 = vpack.c.b16 %v6603, %v6602
  %v6831 = vpack.c.b16 %v6605, %v6604
  %v6832 = vpack.c.b16 %v6607, %v6606
  %v6833 = vpack.c.b16 %v6609, %v6608
  %v6834 = vpack.c.b16 %v6611, %v6610
  %v6835 = vpack.c.b16 %v6613, %v6612
  %v6836 = vpack.c.b16 %v6615, %v6614
  %v6837 = vpack.c.b16 %v6617, %v6616
  %v6838 = vpack.c.b16 %v6619, %v6618
  %v6839 = vpack.c.b16 %v6621, %v6620
  %v6840 = vpack.c.b16 %v6623, %v6622
  %v6841 = vpack.c.b16 %v6625, %v6624
  %v6842 = vpack.c.b16 %v6627, %v6626
  %v6843 = vpack.c.b16 %v6629, %v6628
  %v6844 = vpack.c.b16 %v6631, %v6630
  %v6845 = vpack.c.b16 %v6633, %v6632
  %v6846 = vpack.c.b16 %v6635, %v6634
  %v6847 = vpack.c.b16 %v6637, %v6636
  %v6848 = vpack.c.b16 %v6639, %v6638
  %v6849 = vpack.c.b16 %v6641, %v6640
  %v6850 = vpack.c.b16 %v6643, %v6642
  %v6851 = vpack.c.b16 %v6645, %v6644
  %v6852 = vpack.c.b16 %v6647, %v6646
  %v6853 = vpack.c.b16 %v6649, %v6648
  %v6854 = vpack.c.b16 %v6651, %v6650
  %v6855 = vpack.c.b16 %v6653, %v6652
  %v6856 = vpack.c.b16 %v6655, %v6654
  %v6857 = vpack.c.b16 %v6657, %v6656
  %v6858 = vpack.c.b16 %v6659, %v6658
  %v6859 = vpack.c.b16 %v6661, %v6660
  %v6860 = vpack.c.b16 %v6663, %v6662
  %v6861 = vpack.c.b16 %v6665, %v6664
  %v6862 = vpack.c.b16 %v6667, %v6666
  %v6863 = vpack.c.b16 %v6669, %v6668
  %v6864 = vpack.c.b16 %v6671, %v6670
  %v6865 = vpack.c.b16 %v6673, %v6672
  %v6866 = vpack.c.b16 %v6675, %v6674
  %v6867 = vpack.c.b16 %v6677, %v6676
  %v6868 = vpack.c.b16 %v6679, %v6678
  %v6869 = vpack.c.b16 %v6681, %v6680
  %v6870 = vpack.c.b16 %v6683, %v6682
  %v6871 = vpack.c.b16 %v6685, %v6684
  %v6872 = vpack.c.b16 %v6687, %v6686
  %v6873 = vpack.c.b16 %v6689, %v6688
  %v6874 = vpack.c.b16 %v6691, %v6690
  %v6875 = vpack.c.b16 %v6693, %v6692
  %v6876 = vpack.c.b16 %v6695, %v6694
  %v6877 = vpack.c.b16 %v6697, %v6696
  %v6878 = vpack.c.b16 %v6699, %v6698
  %v6879 = vpack.c.b16 %v6701, %v6700
  %v6880 = vpack.c.b16 %v6703, %v6702
  %v6881 = vpack.c.b16 %v6705, %v6704
  %v6882 = vpack.c.b16 %v6707, %v6706
  %v6883 = vpack.c.b16 %v6709, %v6708
  %v6884 = vpack.c.b16 %v6711, %v6710
  %v6885 = vpack.c.b16 %v6713, %v6712
  %v6886 = vpack.c.b16 %v6715, %v6714
  %v6887 = vpack.c.b16 %v6717, %v6716
  %v6888 = vpack.c.b16 %v6719, %v6718
  %v6889 = vpack.c.b16 %v6721, %v6720
  %v6890 = vpack.c.b16 %v6723, %v6722
  %v6891 = vpack.c.b16 %v6725, %v6724
  %v6892 = vpack.c.b16 %v6727, %v6726
  %v6893 = vpack.c.b16 %v6729, %v6728
  %v6894 = vpack.c.b16 %v6731, %v6730
  %v6895 = vpack.c.b16 %v6733, %v6732
  %v6896 = vpack.c.b16 %v6735, %v6734
  %v6897 = vpack.c.b16 %v6737, %v6736
  %v6898 = vpack.c.b16 %v6739, %v6738
  %v6899 = vpack.c.b16 %v6741, %v6740
  %v6900 = vpack.c.b16 %v6743, %v6742
  %v6901 = vpack.c.b16 %v6745, %v6744
  %v6902 = vpack.c.b16 %v6747, %v6746
  %v6903 = vpack.c.b16 %v6749, %v6748
  %v6904 = vpack.c.b16 %v6751, %v6750
  %v6905 = vpack.c.b16 %v6753, %v6752
  %v6906 = vpack.c.b16 %v6755, %v6754
  %v6907 = vpack.c.b16 %v6757, %v6756
  %v6908 = vpack.c.b16 %v6759, %v6758
  %v6909 = vpack.c.b16 %v6761, %v6760
  %v6910 = vpack.c.b16 %v6763, %v6762
  %v6911 = vpack.c.b16 %v6765, %v6764
  %v6912 = vpack.c.b16 %v6767, %v6766
  %v6913 = vpack.c.b16 %v6769, %v6768
  %v6914 = vpack.c.b16 %v6771, %v6770
  %v6915 = vpack.c.b16 %v6773, %v6772
  %v6916 = vpack.c.b16 %v6775, %v6774
  %v6917 = vpack.c.b16 %v6777, %v6776
  %v6918 = vpack.c.b16 %v6779, %v6778
  %v6919 = vpack.c.b16 %v6781, %v6780
  %v6920 = vpack.c.b16 %v6783, %v6782
  %v6921 = vpack.c.b16 %v6785, %v6784
  %v6922 = vpack.c.b16 %v6787, %v6786
  %v6923 = vpack.c.b16 %v6789, %v6788
  %v6924 = vpack.c.b16 %v6791, %v6790
  %v6925 = vpack.c.b16 %v6793, %v6792
  %v6926 = vpack.c.b16 %v6795, %v6794
  %v6927 = vpack.c.b16 %v6797, %v6796
  %v6928 = vpack.c.b16 %v6799, %v6798
  %v6929 = vpack.c.b16 %v6801, %v6800
  %7058 = vmatprep.subr.bf16.mxu0 0
  %7059 = vmatpush1.bf16.msra.mxu0 %v6802
  %7060 = vmatprep.subr.bf16.mxu0 0
  %7061 = vmatpush1.bf16.msra.mxu0 %v6803
  %7062 = vmatprep.subr.bf16.mxu0 0
  %7063 = vmatpush1.bf16.msra.mxu0 %v6804
  %7064 = vmatprep.subr.bf16.mxu0 0
  %7065 = vmatpush1.bf16.msra.mxu0 %v6805
  %7066 = vmatprep.subr.bf16.mxu0 0
  %7067 = vmatpush1.bf16.msra.mxu0 %v6806
  %7068 = vmatprep.subr.bf16.mxu0 0
  %7069 = vmatpush1.bf16.msra.mxu0 %v6807
  %7070 = vmatprep.subr.bf16.mxu0 0
  %7071 = vmatpush1.bf16.msra.mxu0 %v6808
  %7072 = vmatprep.subr.bf16.mxu0 0
  %7073 = vmatpush1.bf16.msra.mxu0 %v6809
  %7074 = vmatprep.subr.bf16.mxu0 0
  %7075 = vmatpush1.bf16.msra.mxu0 %v6810
  %7076 = vmatprep.subr.bf16.mxu0 0
  %7077 = vmatpush1.bf16.msra.mxu0 %v6811
  %7078 = vmatprep.subr.bf16.mxu0 0
  %7079 = vmatpush1.bf16.msra.mxu0 %v6812
  %7080 = vmatprep.subr.bf16.mxu0 0
  %7081 = vmatpush1.bf16.msra.mxu0 %v6813
  %7082 = vmatprep.subr.bf16.mxu0 0
  %7083 = vmatpush1.bf16.msra.mxu0 %v6814
  %7084 = vmatprep.subr.bf16.mxu0 0
  %7085 = vmatpush1.bf16.msra.mxu0 %v6815
  %7086 = vmatprep.subr.bf16.mxu0 0
  %7087 = vmatpush1.bf16.msra.mxu0 %v6816
  %7088 = vmatprep.subr.bf16.mxu0 0
  %7089 = vmatpush1.bf16.msra.mxu0 %v6817
  %7090 = vmatprep.mubr.bf16.mxu0 %v6010
  %7091 = vmatmul.mubr.bf16.gmra.mrb[0].mxu0 %v6009
  %v7092 = vpop.f32.mrb[0].mxu0
  %v7093 = vadd.f32 %v6288, %v7092
  %v7094 = vpop.f32.mrb[0].mxu0
  %v7095 = vpop.f32.mrb[0].mxu0
  %v7096 = vadd.f32 %v6288, %v7095
  %v7097 = vpop.f32.mrb[0].mxu0
  %7098 = vdwg.mxu0
  %7099 = vmatprep.subr.bf16.mxu0 0
  %7100 = vmatpush1.bf16.msra.mxu0 %v6818
  %7101 = vmatprep.subr.bf16.mxu0 0
  %7102 = vmatpush1.bf16.msra.mxu0 %v6819
  %7103 = vmatprep.subr.bf16.mxu0 0
  %7104 = vmatpush1.bf16.msra.mxu0 %v6820
  %7105 = vmatprep.subr.bf16.mxu0 0
  %7106 = vmatpush1.bf16.msra.mxu0 %v6821
  %7107 = vmatprep.subr.bf16.mxu0 0
  %7108 = vmatpush1.bf16.msra.mxu0 %v6822
  %7109 = vmatprep.subr.bf16.mxu0 0
  %7110 = vmatpush1.bf16.msra.mxu0 %v6823
  %7111 = vmatprep.subr.bf16.mxu0 0
  %7112 = vmatpush1.bf16.msra.mxu0 %v6824
  %7113 = vmatprep.subr.bf16.mxu0 0
  %7114 = vmatpush1.bf16.msra.mxu0 %v6825
  %7115 = vmatprep.subr.bf16.mxu0 0
  %7116 = vmatpush1.bf16.msra.mxu0 %v6826
  %7117 = vmatprep.subr.bf16.mxu0 0
  %7118 = vmatpush1.bf16.msra.mxu0 %v6827
  %7119 = vmatprep.subr.bf16.mxu0 0
  %7120 = vmatpush1.bf16.msra.mxu0 %v6828
  %7121 = vmatprep.subr.bf16.mxu0 0
  %7122 = vmatpush1.bf16.msra.mxu0 %v6829
  %7123 = vmatprep.subr.bf16.mxu0 0
  %7124 = vmatpush1.bf16.msra.mxu0 %v6830
  %7125 = vmatprep.subr.bf16.mxu0 0
  %7126 = vmatpush1.bf16.msra.mxu0 %v6831
  %7127 = vmatprep.subr.bf16.mxu0 0
  %7128 = vmatpush1.bf16.msra.mxu0 %v6832
  %7129 = vmatprep.subr.bf16.mxu0 0
  %7130 = vmatpush1.bf16.msra.mxu0 %v6833
  %7131 = vmatprep.mubr.bf16.mxu0 %v6012
  %7132 = vmatmul.mubr.bf16.gmra.mrb[0].mxu0 %v6011
  %v7133 = vpop.f32.mrb[0].mxu0
  %v7134 = vadd.f32 %v7093, %v7133
  %v7135 = vpop.f32.mrb[0].mxu0
  %v7136 = vpop.f32.mrb[0].mxu0
  %v7137 = vadd.f32 %v7096, %v7136
  %v7138 = vpop.f32.mrb[0].mxu0
  %7139 = vdwg.mxu0
  %7140 = vmatprep.subr.bf16.mxu0 0
  %7141 = vmatpush1.bf16.msra.mxu0 %v6834
  %7142 = vmatprep.subr.bf16.mxu0 0
  %7143 = vmatpush1.bf16.msra.mxu0 %v6835
  %7144 = vmatprep.subr.bf16.mxu0 0
  %7145 = vmatpush1.bf16.msra.mxu0 %v6836
  %7146 = vmatprep.subr.bf16.mxu0 0
  %7147 = vmatpush1.bf16.msra.mxu0 %v6837
  %7148 = vmatprep.subr.bf16.mxu0 0
  %7149 = vmatpush1.bf16.msra.mxu0 %v6838
  %7150 = vmatprep.subr.bf16.mxu0 0
  %7151 = vmatpush1.bf16.msra.mxu0 %v6839
  %7152 = vmatprep.subr.bf16.mxu0 0
  %7153 = vmatpush1.bf16.msra.mxu0 %v6840
  %7154 = vmatprep.subr.bf16.mxu0 0
  %7155 = vmatpush1.bf16.msra.mxu0 %v6841
  %7156 = vmatprep.subr.bf16.mxu0 0
  %7157 = vmatpush1.bf16.msra.mxu0 %v6842
  %7158 = vmatprep.subr.bf16.mxu0 0
  %7159 = vmatpush1.bf16.msra.mxu0 %v6843
  %7160 = vmatprep.subr.bf16.mxu0 0
  %7161 = vmatpush1.bf16.msra.mxu0 %v6844
  %7162 = vmatprep.subr.bf16.mxu0 0
  %7163 = vmatpush1.bf16.msra.mxu0 %v6845
  %7164 = vmatprep.subr.bf16.mxu0 0
  %7165 = vmatpush1.bf16.msra.mxu0 %v6846
  %7166 = vmatprep.subr.bf16.mxu0 0
  %7167 = vmatpush1.bf16.msra.mxu0 %v6847
  %7168 = vmatprep.subr.bf16.mxu0 0
  %7169 = vmatpush1.bf16.msra.mxu0 %v6848
  %7170 = vmatprep.subr.bf16.mxu0 0
  %7171 = vmatpush1.bf16.msra.mxu0 %v6849
  %7172 = vmatprep.mubr.bf16.mxu0 %v6014
  %7173 = vmatmul.mubr.bf16.gmra.mrb[0].mxu0 %v6013
  %v7174 = vpop.f32.mrb[0].mxu0
  %v7175 = vadd.f32 %v7134, %v7174
  %v7176 = vpop.f32.mrb[0].mxu0
  %v7177 = vpop.f32.mrb[0].mxu0
  %v7178 = vadd.f32 %v7137, %v7177
  %v7179 = vpop.f32.mrb[0].mxu0
  %7180 = vdwg.mxu0
  %7181 = vmatprep.subr.bf16.mxu0 0
  %7182 = vmatpush1.bf16.msra.mxu0 %v6850
  %7183 = vmatprep.subr.bf16.mxu0 0
  %7184 = vmatpush1.bf16.msra.mxu0 %v6851
  %7185 = vmatprep.subr.bf16.mxu0 0
  %7186 = vmatpush1.bf16.msra.mxu0 %v6852
  %7187 = vmatprep.subr.bf16.mxu0 0
  %7188 = vmatpush1.bf16.msra.mxu0 %v6853
  %7189 = vmatprep.subr.bf16.mxu0 0
  %7190 = vmatpush1.bf16.msra.mxu0 %v6854
  %7191 = vmatprep.subr.bf16.mxu0 0
  %7192 = vmatpush1.bf16.msra.mxu0 %v6855
  %7193 = vmatprep.subr.bf16.mxu0 0
  %7194 = vmatpush1.bf16.msra.mxu0 %v6856
  %7195 = vmatprep.subr.bf16.mxu0 0
  %7196 = vmatpush1.bf16.msra.mxu0 %v6857
  %7197 = vmatprep.subr.bf16.mxu0 0
  %7198 = vmatpush1.bf16.msra.mxu0 %v6858
  %7199 = vmatprep.subr.bf16.mxu0 0
  %7200 = vmatpush1.bf16.msra.mxu0 %v6859
  %7201 = vmatprep.subr.bf16.mxu0 0
  %7202 = vmatpush1.bf16.msra.mxu0 %v6860
  %7203 = vmatprep.subr.bf16.mxu0 0
  %7204 = vmatpush1.bf16.msra.mxu0 %v6861
  %7205 = vmatprep.subr.bf16.mxu0 0
  %7206 = vmatpush1.bf16.msra.mxu0 %v6862
  %7207 = vmatprep.subr.bf16.mxu0 0
  %7208 = vmatpush1.bf16.msra.mxu0 %v6863
  %7209 = vmatprep.subr.bf16.mxu0 0
  %7210 = vmatpush1.bf16.msra.mxu0 %v6864
  %7211 = vmatprep.subr.bf16.mxu0 0
  %7212 = vmatpush1.bf16.msra.mxu0 %v6865
  %7213 = vmatprep.mubr.bf16.mxu0 %v6016
  %7214 = vmatmul.mubr.bf16.gmra.mrb[0].mxu0 %v6015
  %v7215 = vpop.f32.mrb[0].mxu0
  %v7216 = vadd.f32 %v7175, %v7215
  %v7217 = vpop.f32.mrb[0].mxu0
  %v7218 = vpop.f32.mrb[0].mxu0
  %v7219 = vadd.f32 %v7178, %v7218
  %v7220 = vpop.f32.mrb[0].mxu0
  %7221 = vdwg.mxu0
  %7222 = vmatprep.subr.bf16.mxu0 0
  %7223 = vmatpush1.bf16.msra.mxu0 %v6866
  %7224 = vmatprep.subr.bf16.mxu0 0
  %7225 = vmatpush1.bf16.msra.mxu0 %v6867
  %7226 = vmatprep.subr.bf16.mxu0 0
  %7227 = vmatpush1.bf16.msra.mxu0 %v6868
  %7228 = vmatprep.subr.bf16.mxu0 0
  %7229 = vmatpush1.bf16.msra.mxu0 %v6869
  %7230 = vmatprep.subr.bf16.mxu0 0
  %7231 = vmatpush1.bf16.msra.mxu0 %v6870
  %7232 = vmatprep.subr.bf16.mxu0 0
  %7233 = vmatpush1.bf16.msra.mxu0 %v6871
  %7234 = vmatprep.subr.bf16.mxu0 0
  %7235 = vmatpush1.bf16.msra.mxu0 %v6872
  %7236 = vmatprep.subr.bf16.mxu0 0
  %7237 = vmatpush1.bf16.msra.mxu0 %v6873
  %7238 = vmatprep.subr.bf16.mxu0 0
  %7239 = vmatpush1.bf16.msra.mxu0 %v6874
  %7240 = vmatprep.subr.bf16.mxu0 0
  %7241 = vmatpush1.bf16.msra.mxu0 %v6875
  %7242 = vmatprep.subr.bf16.mxu0 0
  %7243 = vmatpush1.bf16.msra.mxu0 %v6876
  %7244 = vmatprep.subr.bf16.mxu0 0
  %7245 = vmatpush1.bf16.msra.mxu0 %v6877
  %7246 = vmatprep.subr.bf16.mxu0 0
  %7247 = vmatpush1.bf16.msra.mxu0 %v6878
  %7248 = vmatprep.subr.bf16.mxu0 0
  %7249 = vmatpush1.bf16.msra.mxu0 %v6879
  %7250 = vmatprep.subr.bf16.mxu0 0
  %7251 = vmatpush1.bf16.msra.mxu0 %v6880
  %7252 = vmatprep.subr.bf16.mxu0 0
  %7253 = vmatpush1.bf16.msra.mxu0 %v6881
  %7254 = vmatprep.mubr.bf16.mxu0 %v6018
  %7255 = vmatmul.mubr.bf16.gmra.mrb[0].mxu0 %v6017
  %v7256 = vpop.f32.mrb[0].mxu0
  %v7257 = vadd.f32 %v7216, %v7256
  %v7258 = vpop.f32.mrb[0].mxu0
  %v7259 = vpop.f32.mrb[0].mxu0
  %v7260 = vadd.f32 %v7219, %v7259
  %v7261 = vpop.f32.mrb[0].mxu0
  %7262 = vdwg.mxu0
  %7263 = vmatprep.subr.bf16.mxu0 0
  %7264 = vmatpush1.bf16.msra.mxu0 %v6882
  %7265 = vmatprep.subr.bf16.mxu0 0
  %7266 = vmatpush1.bf16.msra.mxu0 %v6883
  %7267 = vmatprep.subr.bf16.mxu0 0
  %7268 = vmatpush1.bf16.msra.mxu0 %v6884
  %7269 = vmatprep.subr.bf16.mxu0 0
  %7270 = vmatpush1.bf16.msra.mxu0 %v6885
  %7271 = vmatprep.subr.bf16.mxu0 0
  %7272 = vmatpush1.bf16.msra.mxu0 %v6886
  %7273 = vmatprep.subr.bf16.mxu0 0
  %7274 = vmatpush1.bf16.msra.mxu0 %v6887
  %7275 = vmatprep.subr.bf16.mxu0 0
  %7276 = vmatpush1.bf16.msra.mxu0 %v6888
  %7277 = vmatprep.subr.bf16.mxu0 0
  %7278 = vmatpush1.bf16.msra.mxu0 %v6889
  %7279 = vmatprep.subr.bf16.mxu0 0
  %7280 = vmatpush1.bf16.msra.mxu0 %v6890
  %7281 = vmatprep.subr.bf16.mxu0 0
  %7282 = vmatpush1.bf16.msra.mxu0 %v6891
  %7283 = vmatprep.subr.bf16.mxu0 0
  %7284 = vmatpush1.bf16.msra.mxu0 %v6892
  %7285 = vmatprep.subr.bf16.mxu0 0
  %7286 = vmatpush1.bf16.msra.mxu0 %v6893
  %7287 = vmatprep.subr.bf16.mxu0 0
  %7288 = vmatpush1.bf16.msra.mxu0 %v6894
  %7289 = vmatprep.subr.bf16.mxu0 0
  %7290 = vmatpush1.bf16.msra.mxu0 %v6895
  %7291 = vmatprep.subr.bf16.mxu0 0
  %7292 = vmatpush1.bf16.msra.mxu0 %v6896
  %7293 = vmatprep.subr.bf16.mxu0 0
  %7294 = vmatpush1.bf16.msra.mxu0 %v6897
  %7295 = vmatprep.mubr.bf16.mxu0 %v6020
  %7296 = vmatmul.mubr.bf16.gmra.mrb[0].mxu0 %v6019
  %v7297 = vpop.f32.mrb[0].mxu0
  %v7298 = vadd.f32 %v7257, %v7297
  %v7299 = vpop.f32.mrb[0].mxu0
  %v7300 = vpop.f32.mrb[0].mxu0
  %v7301 = vadd.f32 %v7260, %v7300
  %v7302 = vpop.f32.mrb[0].mxu0
  %7303 = vdwg.mxu0
  %7304 = vmatprep.subr.bf16.mxu0 0
  %7305 = vmatpush1.bf16.msra.mxu0 %v6898
  %7306 = vmatprep.subr.bf16.mxu0 0
  %7307 = vmatpush1.bf16.msra.mxu0 %v6899
  %7308 = vmatprep.subr.bf16.mxu0 0
  %7309 = vmatpush1.bf16.msra.mxu0 %v6900
  %7310 = vmatprep.subr.bf16.mxu0 0
  %7311 = vmatpush1.bf16.msra.mxu0 %v6901
  %7312 = vmatprep.subr.bf16.mxu0 0
  %7313 = vmatpush1.bf16.msra.mxu0 %v6902
  %7314 = vmatprep.subr.bf16.mxu0 0
  %7315 = vmatpush1.bf16.msra.mxu0 %v6903
  %7316 = vmatprep.subr.bf16.mxu0 0
  %7317 = vmatpush1.bf16.msra.mxu0 %v6904
  %7318 = vmatprep.subr.bf16.mxu0 0
  %7319 = vmatpush1.bf16.msra.mxu0 %v6905
  %7320 = vmatprep.subr.bf16.mxu0 0
  %7321 = vmatpush1.bf16.msra.mxu0 %v6906
  %7322 = vmatprep.subr.bf16.mxu0 0
  %7323 = vmatpush1.bf16.msra.mxu0 %v6907
  %7324 = vmatprep.subr.bf16.mxu0 0
  %7325 = vmatpush1.bf16.msra.mxu0 %v6908
  %7326 = vmatprep.subr.bf16.mxu0 0
  %7327 = vmatpush1.bf16.msra.mxu0 %v6909
  %7328 = vmatprep.subr.bf16.mxu0 0
  %7329 = vmatpush1.bf16.msra.mxu0 %v6910
  %7330 = vmatprep.subr.bf16.mxu0 0
  %7331 = vmatpush1.bf16.msra.mxu0 %v6911
  %7332 = vmatprep.subr.bf16.mxu0 0
  %7333 = vmatpush1.bf16.msra.mxu0 %v6912
  %7334 = vmatprep.subr.bf16.mxu0 0
  %7335 = vmatpush1.bf16.msra.mxu0 %v6913
  %7336 = vmatprep.mubr.bf16.mxu0 %v6022
  %7337 = vmatmul.mubr.bf16.gmra.mrb[0].mxu0 %v6021
  %v7338 = vpop.f32.mrb[0].mxu0
  %v7339 = vadd.f32 %v7298, %v7338
  %v7340 = vpop.f32.mrb[0].mxu0
  %v7341 = vpop.f32.mrb[0].mxu0
  %v7342 = vadd.f32 %v7301, %v7341
  %v7343 = vpop.f32.mrb[0].mxu0
  %7344 = vdwg.mxu0
  %7345 = vmatprep.subr.bf16.mxu0 0
  %7346 = vmatpush1.bf16.msra.mxu0 %v6914
  %7347 = vmatprep.subr.bf16.mxu0 0
  %7348 = vmatpush1.bf16.msra.mxu0 %v6915
  %7349 = vmatprep.subr.bf16.mxu0 0
  %7350 = vmatpush1.bf16.msra.mxu0 %v6916
  %7351 = vmatprep.subr.bf16.mxu0 0
  %7352 = vmatpush1.bf16.msra.mxu0 %v6917
  %7353 = vmatprep.subr.bf16.mxu0 0
  %7354 = vmatpush1.bf16.msra.mxu0 %v6918
  %7355 = vmatprep.subr.bf16.mxu0 0
  %7356 = vmatpush1.bf16.msra.mxu0 %v6919
  %7357 = vmatprep.subr.bf16.mxu0 0
  %7358 = vmatpush1.bf16.msra.mxu0 %v6920
  %7359 = vmatprep.subr.bf16.mxu0 0
  %7360 = vmatpush1.bf16.msra.mxu0 %v6921
  %7361 = vmatprep.subr.bf16.mxu0 0
  %7362 = vmatpush1.bf16.msra.mxu0 %v6922
  %7363 = vmatprep.subr.bf16.mxu0 0
  %7364 = vmatpush1.bf16.msra.mxu0 %v6923
  %7365 = vmatprep.subr.bf16.mxu0 0
  %7366 = vmatpush1.bf16.msra.mxu0 %v6924
  %7367 = vmatprep.subr.bf16.mxu0 0
  %7368 = vmatpush1.bf16.msra.mxu0 %v6925
  %7369 = vmatprep.subr.bf16.mxu0 0
  %7370 = vmatpush1.bf16.msra.mxu0 %v6926
  %7371 = vmatprep.subr.bf16.mxu0 0
  %7372 = vmatpush1.bf16.msra.mxu0 %v6927
  %7373 = vmatprep.subr.bf16.mxu0 0
  %7374 = vmatpush1.bf16.msra.mxu0 %v6928
  %7375 = vmatprep.subr.bf16.mxu0 0
  %7376 = vmatpush1.bf16.msra.mxu0 %v6929
  %7377 = vmatprep.mubr.bf16.mxu0 %v6024
  %7378 = vmatmul.mubr.bf16.gmra.mrb[0].mxu0 %v6023
  %v7379 = vpop.f32.mrb[0].mxu0
  %v7380 = vadd.f32 %v7339, %v7379
  %v7381 = vpop.f32.mrb[0].mxu0
  %v7382 = vpop.f32.mrb[0].mxu0
  %v7383 = vadd.f32 %v7342, %v7382
  %v7384 = vpop.f32.mrb[0].mxu0
  %7385 = vdwg.mxu0
  %v7386 = vadd.f32 %v5349, %v7380
  %v7387 = vadd.f32 %v5350, %v7383
  %s7388 = scalar_lea.vmem %s12, 1
  %v7389 = vld [vmem:[%s7388] sm:$0x1]
  %s7390 = scalar_lea.vmem %s13, 1
  %v7391 = vld [vmem:[%s7390] sm:$0x1]
  %v7392 = vsel %vm74, %v7386, 0.0
  %7393 = vadd.xlane.f32.xlu0 %v7392
  %v7394 = vpop.xlane.xlu0 %7393
  %v7395 = vsel %vm74, %v7387, 0.0
  %7396 = vadd.xlane.f32.xlu0 %v7395
  %v7397 = vpop.xlane.xlu0 %7396
  %v7398 = vmul.f32 %v7394, %v1631
  %v7399 = vmul.f32 %v7397, %v1631
  %v7400 = vsub.f32 %v7386, %v7398
  %v7401 = vsub.f32 %v7387, %v7399
  %v7402 = vmul.f32 %v7400, %v7400
  %v7403 = vmul.f32 %v7401, %v7401
  %v7404 = vsel %vm74, %v7402, 0.0
  %7405 = vadd.xlane.f32.xlu0 %v7404
  %v7406 = vpop.xlane.xlu0 %7405
  %v7407 = vsel %vm74, %v7403, 0.0
  %7408 = vadd.xlane.f32.xlu0 %v7407
  %v7409 = vpop.xlane.xlu0 %7408
  %v7410 = vmul.f32 %v7406, %v1631
  %v7411 = vmul.f32 %v7409, %v1631
  %v7412 = vadd.f32 %v7410, 1e-05
  %v7413 = vadd.f32 %v7411, 1e-05
  %v7414 = vrsqrt.pop %v7412
  %v7415 = vrsqrt.pop %v7413
  %v7416 = vmul.f32 %v7400, %v7414
  %v7417 = vmul.f32 %v7401, %v7415
  %v7419 = vlaneseq
  %v7420 = vshrl.u32 %v7419, 7
  %v7421 = vsub.s32 0, %v7420
  %v7422 = vrot.slane %v7389, %v7421
  %v7424 = vmul.f32 %v7416, %v7422
  %v7425 = vmul.f32 %v7417, %v7422
  %v7427 = vlaneseq
  %v7428 = vshrl.u32 %v7427, 7
  %v7429 = vsub.s32 0, %v7428
  %v7430 = vrot.slane %v7391, %v7429
  %v7432 = vadd.f32 %v7424, %v7430
  %v7433 = vadd.f32 %v7425, %v7430
  %v7434 = vsel %vm74, %v7432, 0.0
  %v7435 = vrot.slane %v7434, 4
  %v7436 = vadd.f32 %v7434, %v7435
  %v7437 = vrot.slane %v7436, 2
  %v7438 = vadd.f32 %v7436, %v7437
  %v7439 = vrot.slane %v7438, 1
  %v7440 = vadd.f32 %v7438, %v7439
  %v7441 = vsel %vm74, %v7433, 0.0
  %v7442 = vrot.slane %v7441, 4
  %v7443 = vadd.f32 %v7441, %v7442
  %v7444 = vrot.slane %v7443, 2
  %v7445 = vadd.f32 %v7443, %v7444
  %v7446 = vrot.slane %v7445, 1
  %v7447 = vadd.f32 %v7445, %v7446
  %v7448 = vrcp.pop 8.0
  %v7449 = vmul.f32 %v7440, %v7448
  %v7450 = vmul.f32 %v7447, %v7448
  %v7451 = vld [vmem:[%s14] sm:$0xff]
  %v7452 = vld [vmem:[%s14 + $0x8] sm:$0xff]
  %v7453 = vld [vmem:[%s14 + $0x10] sm:$0xff]
  %v7454 = vld [vmem:[%s14 + $0x18] sm:$0xff]
  %v7455 = vld [vmem:[#allocation2] sm:$0x1]
  %v7457 = vlaneseq
  %v7458 = vshrl.u32 %v7457, 7
  %v7459 = vsub.s32 0, %v7458
  %v7460 = vrot.slane %v7455, %v7459
  %vm7464 = vcmask 1041409
  %v7465 = vsel %vm7464, %v7450, %v7449
  %v7466 = vsel %vm74, %v7465, 0
  %7468 = vmatprep.subr.mxu0 0.0
  %7469 = vmatpush1.msra.mxu0 %v7451
  %7470 = vmatprep.subr.mxu0 0.0
  %7471 = vmatpush1.msra.mxu0 %v7452
  %7472 = vmatprep.subr.mxu0 0.0
  %7473 = vmatpush1.msra.mxu0 %v7453
  %7474 = vmatprep.subr.mxu0 0.0
  %7475 = vmatpush1.msra.mxu0 %v7454
  %7476 = vmatprep.subr.mxu0 0.0
  %7477 = vmatpush1.msra.mxu0 0.0
  %7478 = vmatprep.subr.mxu0 0.0
  %7479 = vmatpush1.msra.mxu0 0.0
  %7480 = vmatprep.subr.mxu0 0.0
  %7481 = vmatpush1.msra.mxu0 0.0
  %7482 = vmatprep.subr.mxu0 0.0
  %7483 = vmatpush1.msra.mxu0 0.0
  %7484 = vmatprep.subr.mxu0 0.0
  %7485 = vmatpush1.msra.mxu0 0.0
  %7486 = vmatprep.subr.mxu0 0.0
  %7487 = vmatpush1.msra.mxu0 0.0
  %7488 = vmatprep.subr.mxu0 0.0
  %7489 = vmatpush1.msra.mxu0 0.0
  %7490 = vmatprep.subr.mxu0 0.0
  %7491 = vmatpush1.msra.mxu0 0.0
  %7492 = vmatprep.subr.mxu0 0.0
  %7493 = vmatpush1.msra.mxu0 0.0
  %7494 = vmatprep.subr.mxu0 0.0
  %7495 = vmatpush1.msra.mxu0 0.0
  %7496 = vmatprep.subr.mxu0 0.0
  %7497 = vmatpush1.msra.mxu0 0.0
  %7498 = vmatprep.subr.mxu0 0.0
  %7499 = vmatpush1.msra.mxu0 0.0
  %7500 = vmatprep.subr.mxu0 0.0
  %7501 = vmatpush1.msra.mxu0 0.0
  %7502 = vmatprep.subr.mxu0 0.0
  %7503 = vmatpush1.msra.mxu0 0.0
  %7504 = vmatprep.subr.mxu0 0.0
  %7505 = vmatpush1.msra.mxu0 0.0
  %7506 = vmatprep.subr.mxu0 0.0
  %7507 = vmatpush1.msra.mxu0 0.0
  %7508 = vmatprep.subr.mxu0 0.0
  %7509 = vmatpush1.msra.mxu0 0.0
  %7510 = vmatprep.subr.mxu0 0.0
  %7511 = vmatpush1.msra.mxu0 0.0
  %7512 = vmatprep.subr.mxu0 0.0
  %7513 = vmatpush1.msra.mxu0 0.0
  %7514 = vmatprep.subr.mxu0 0.0
  %7515 = vmatpush1.msra.mxu0 0.0
  %7516 = vmatprep.subr.mxu0 0.0
  %7517 = vmatpush1.msra.mxu0 0.0
  %7518 = vmatprep.subr.mxu0 0.0
  %7519 = vmatpush1.msra.mxu0 0.0
  %7520 = vmatprep.subr.mxu0 0.0
  %7521 = vmatpush1.msra.mxu0 0.0
  %7522 = vmatprep.subr.mxu0 0.0
  %7523 = vmatpush1.msra.mxu0 0.0
  %7524 = vmatprep.subr.mxu0 0.0
  %7525 = vmatpush1.msra.mxu0 0.0
  %7526 = vmatprep.subr.mxu0 0.0
  %7527 = vmatpush1.msra.mxu0 0.0
  %7528 = vmatprep.subr.mxu0 0.0
  %7529 = vmatpush1.msra.mxu0 0.0
  %7530 = vmatprep.subr.mxu0 0.0
  %7531 = vmatpush1.msra.mxu0 0.0
  %7532 = vmatprep.mubr.f32.mxu0 0.0
  %7533 = vmatmul.mubr.f32.gmra.mrb[0].mxu0 %v7466
  %v7534 = vpop.f32.mrb[0].mxu0
  %v7535 = vadd.f32 %v7460, %v7534
  %v7536 = vpop.f32.mrb[0].mxu0
  %7537 = vdwg.mxu0
  %vm7538 = vcmask 1024
  %7539 = vst.msk [vmem:[%s16] sm:$0x3] %vm7538, %v7535
  // Predicated region
  $region66: #{transformer_encoder_forward.1} parent=0 // pred_check
    _
  $region67: #{transformer_encoder_forward.1} parent=0 // pred_check_branch
    %7541 = sbr.rel (0) target = $region69
  $region68: #{transformer_encoder_forward.1} parent=0 // pred_region
    _
  $region69: #{transformer_encoder_forward.1} parent=0 // pred_fallthru
    _
  // Predicated region
  $region70: #{transformer_encoder_forward.1} parent=0 // pred_check
    _
  $region71: #{transformer_encoder_forward.1} parent=0 // pred_check_branch
    %7543 = sbr.rel (0) target = $region73
  $region72: #{transformer_encoder_forward.1} parent=0 // pred_region
    _
  $region73: #{transformer_encoder_forward.1} parent=0 // pred_fallthru
    _

</llo_original>
